<compile_context>
chip_gen: v7x
topology: tpu7x:2x2x1
jax: 0.10.0
libtpu: 0.0.40
codegen_flags: <defaults>
</compile_context>

<pallas_src>
import numpy as np
import jax
import jax.numpy as jnp
from jax import lax
from jax.experimental import pallas as pl
from jax.experimental.pallas import tpu as pltpu

BN_EPS = 1e-5
_VMEM_LIMIT = 32 * 1024 * 1024          # footprint ~3 MiB raw; ample headroom

# Geometry implied by Linear(12 * 12 * 12, 4): 48x48 input, two 2x2 pools.
H1, W1, C_IN = 48, 48, 3
C = 12                                   # channel width of every conv block
H2, W2 = 24, 24
H3, W3 = 12, 12
N_CLASSES = 4


# ----------------------------------------------------------------------------
# In-kernel building blocks (operate on VMEM-resident jnp values / refs)
# ----------------------------------------------------------------------------
def _conv_bn_relu(z, msk_ref, bcat_ref, t_ref, gb_ref):
    """3x3 'same' conv as ONE fused matmul (K = 3*W*Cin) + training-mode
    BatchNorm over (N, H, W) + ReLU.  Conv bias omitted (cancelled by BN)."""
    f32 = jnp.float32
    bf16 = jnp.bfloat16
    rows = z.shape[0]

    msk = msk_ref[...]                                        # (rows, 2) f32
    up = pltpu.roll(z, 1, axis=0) * msk[:, 0:1]               # row h-1 (0 at h=0)
    dn = pltpu.roll(z, rows - 1, axis=0) * msk[:, 1:2]        # row h+1 (0 at h=H-1)
    zcat = jnp.concatenate([up, z, dn], axis=1).astype(bf16)  # (rows, 3*W*Cin)
    y = jnp.dot(zcat, bcat_ref[...], preferred_element_type=f32)   # (rows, W*Cout)

    # BatchNorm (training-mode batch stats, biased variance) -- all in f32.
    t = t_ref[...]                                            # (Cout, W*Cout) 0/1
    w = t.shape[1] // t.shape[0]                              # W (python int)
    stats_cols = jnp.concatenate(
        [jnp.mean(y, axis=0, keepdims=True),
         jnp.mean(y * y, axis=0, keepdims=True)], axis=0)     # (2, W*Cout)
    stats_c = lax.dot_general(stats_cols, t, (((1,), (1,)), ((), ())),
                              preferred_element_type=f32) * (1.0 / w)   # (2, Cout)
    mean_c = stats_c[0:1]
    var_c = jnp.maximum(stats_c[1:2] - mean_c * mean_c, 0.0)
    scale_c = gb_ref[0] * lax.rsqrt(var_c + BN_EPS)           # gamma / sqrt(var+eps)
    off_c = gb_ref[1] - mean_c * scale_c                      # beta - mean*scale
    so = jnp.dot(jnp.concatenate([scale_c, off_c], axis=0), t,
                 preferred_element_type=f32)                  # (2, W*Cout)
    return jnp.maximum(y * so[0:1] + so[1:2], 0.0)


def _maxpool(z, pe_ref, qq_ref):
    """MaxPool2d(2, 2) on the (N*H, W*C) slab: sublane roll + max + even-row
    selection matmul, then even/odd column selection matmuls (exact)."""
    f32 = jnp.float32
    bf16 = jnp.bfloat16
    rows = z.shape[0]
    m = jnp.maximum(z, pltpu.roll(z, rows - 1, axis=0)).astype(bf16)  # max(z[i], z[i+1])
    r = jnp.dot(pe_ref[...], m, preferred_element_type=f32)           # keep even rows
    rb = r.astype(bf16)
    return jnp.maximum(jnp.dot(rb, qq_ref[0], preferred_element_type=f32),
                       jnp.dot(rb, qq_ref[1], preferred_element_type=f32))


def net_kernel(x_ref,
               msk1, b1, t1, gb1, pe1, qq1,
               msk2, b2, t2, gb2, pe2, qq2,
               msk3, b3, t3, gb3, b4, gb4,
               wl, mk, ro, cs, lb,
               o_ref):
    f32 = jnp.float32
    z = x_ref[...]                                      # (N*48, 48*3)
    z = _conv_bn_relu(z, msk1, b1, t1, gb1)             # (N*48, 48*12)
    z = _maxpool(z, pe1, qq1)                           # (N*24, 24*12)
    z = _conv_bn_relu(z, msk2, b2, t2, gb2)             # (N*24, 24*12)
    z = _maxpool(z, pe2, qq2)                           # (N*12, 12*12)
    z = _conv_bn_relu(z, msk3, b3, t3, gb3)             # (N*12, 12*12)
    z = _conv_bn_relu(z, msk3, b4, t3, gb4)             # (N*12, 12*12)

    # Final Linear; torch's NCHW x.view(N, -1) is folded into wl/mk/ro/cs.
    c1 = jnp.dot(z, wl[...], preferred_element_type=f32)             # (N*12, 12*4)
    y = (jnp.dot(jnp.dot(ro[...], c1 * mk[...], preferred_element_type=f32),
                 cs[...], preferred_element_type=f32) + lb[...])     # (N, 4)
    o_ref[...] = y.astype(o_ref.dtype)


# ----------------------------------------------------------------------------
# One-time constant / weight packing (outside the per-forward hot path)
# ----------------------------------------------------------------------------
def _shift_masks(n, h):
    """(n*h, 2) f32: col0 zeroes rows with h==0 (for the 'up' roll), col1 zeroes
    rows with h==H-1 (for the 'down' roll) -- exact zero-padding at image edges."""
    i = np.arange(n * h)
    up = (i % h != 0).astype(np.float32)
    dn = (i % h != h - 1).astype(np.float32)
    return np.stack([up, dn], axis=1)


def _pool_row_even(n, h):
    """(n*h/2, n*h) 0/1 selection of even rows (per image)."""
    hh = h // 2
    pe = np.zeros((n * hh, n * h), np.float32)
    for i in range(n):
        for q in range(hh):
            pe[i * hh + q, i * h + 2 * q] = 1.0
    return pe


def _pool_col_mats(w, c):
    wh = w // 2
    qe = np.zeros((w * c, wh * c), np.float32)
    qo = np.zeros((w * c, wh * c), np.float32)
    for q in range(wh):
        for cc in range(c):
            qe[(2 * q) * c + cc, q * c + cc] = 1.0
            qo[(2 * q + 1) * c + cc, q * c + cc] = 1.0
    return np.stack([qe, qo])


def _bn_bcast(w, c):
    """(C, W*C) 0/1: per-channel -> slab-column broadcast (also used transposed
    via dot_general to gather per-channel sums)."""
    t = np.zeros((c, w * c), np.float32)
    for ww in range(w):
        for cc in range(c):
            t[cc, ww * c + cc] = 1.0
    return t


def _flatten_mats(n, h, m):
    """Constants implementing Y[n,m] = sum_h C1[n*h+h', h'*m+m] (diag over h)."""
    mk = np.zeros((n * h, h * m), np.float32)
    ro = np.zeros((n, n * h), np.float32)
    cs = np.zeros((h * m, m), np.float32)
    for r_ in range(n * h):
        for k in range(h * m):
            if k // m == r_ % h:
                mk[r_, k] = 1.0
    for i in range(n):
        ro[i, i * h:(i + 1) * h] = 1.0
    for k in range(h * m):
        cs[k, k % m] = 1.0
    return mk, ro, cs


def _band_blocks(w_hwio, w_spatial):
    """(3, W*Cin, W*Cout): for each kernel row dy, a block-banded matrix so that
    slab_row @ B[dy] applies the horizontal taps (out-of-range taps drop to 0,
    which is exactly the zero padding)."""
    _, _, cin, cout = w_hwio.shape
    blocks = []
    for dy in range(3):
        b = jnp.zeros((w_spatial * cin, w_spatial * cout), jnp.float32)
        for dx in range(3):
            sel = jnp.eye(w_spatial, w_spatial, k=1 - dx, dtype=jnp.float32)
            b = b + jnp.kron(sel, w_hwio[dy, dx])
        blocks.append(b)
    return jnp.stack(blocks)


def pack_params(params, n):
    """Precompute every kernel operand.  Called once; ~2.6 MiB total."""
    bf16 = jnp.bfloat16
    f32 = jnp.float32

    msk1 = jnp.asarray(_shift_masks(n, H1))
    msk2 = jnp.asarray(_shift_masks(n, H2))
    msk3 = jnp.asarray(_shift_masks(n, H3))
    pe1 = jnp.asarray(_pool_row_even(n, H1)).astype(bf16)
    pe2 = jnp.asarray(_pool_row_even(n, H2)).astype(bf16)
    qq1 = jnp.asarray(_pool_col_mats(W1, C)).astype(bf16)
    qq2 = jnp.asarray(_pool_col_mats(W2, C)).astype(bf16)
    t1 = jnp.asarray(_bn_bcast(W1, C))
    t2 = jnp.asarray(_bn_bcast(W2, C))
    t3 = jnp.asarray(_bn_bcast(W3, C))
    mk, ro, cs = (jnp.asarray(a) for a in _flatten_mats(n, H3, N_CLASSES))

    def gb(p):
        return jnp.stack([p["gamma"].reshape(1, -1),
                          p["beta"].reshape(1, -1)]).astype(f32)   # (2, 1, C)

    def bcat(w_hwio, w_spatial):
        blocks = _band_blocks(w_hwio, w_spatial)                   # (3, WCin, WCout)
        return blocks.reshape(-1, blocks.shape[-1]).astype(bf16)   # (3*WCin, WCout)

    b1 = bcat(params["conv1"]["w"], W1)
    b2 = bcat(params["conv2"]["w"], W2)
    b3 = bcat(params["conv3"]["w"], W3)
    b4 = bcat(params["conv4"]["w"], W3)

    # Fold torch's NCHW flatten into the linear weight: WL[w*C+c, h*4+m]
    # = W_torch[m, c*144 + h*12 + w].  Kept in f32 (tiny) for accuracy.
    wt = params["lin_w"].reshape(N_CLASSES, C, H3, W3)             # (m, c, h, w)
    wl = jnp.transpose(wt, (3, 1, 2, 0)).reshape(W3 * C, H3 * N_CLASSES).astype(f32)
    lb = params["lin_b"].reshape(1, N_CLASSES).astype(f32)

    return [msk1, b1, t1, gb(params["conv1"]), pe1, qq1,
            msk2, b2, t2, gb(params["conv2"]), pe2, qq2,
            msk3, b3, t3, gb(params["conv3"]), b4, gb(params["conv4"]),
            wl, mk, ro, cs, lb]


# ----------------------------------------------------------------------------
# Wrapper: single fused pallas_call
# ----------------------------------------------------------------------------
def _full_spec(a):
    nd = a.ndim
    return pl.BlockSpec(a.shape, lambda i, _nd=nd: (0,) * _nd)


def net_forward(packed, x_nchw):
    n = x_nchw.shape[0]
    # NCHW -> NHWC -> (N*H, W*Cin) slab: the only XLA-side layout glue (55 KB).
    x = jnp.transpose(x_nchw.astype(jnp.float32), (0, 2, 3, 1)).reshape(n * H1, W1 * C_IN)
    args = (x, *packed)
    return pl.pallas_call(
        net_kernel,
        out_shape=jax.ShapeDtypeStruct((n, N_CLASSES), jnp.float32),
        grid=(1,),
        in_specs=[_full_spec(a) for a in args],
        out_specs=pl.BlockSpec((n, N_CLASSES), lambda i: (0, 0)),
        compiler_params=pltpu.CompilerParams(
            dimension_semantics=("arbitrary",),
            vmem_limit_bytes=_VMEM_LIMIT,
        ),
    )(*args)


# ----------------------------------------------------------------------------
# Parameters (deterministic synthetic init; conv weights stored HWIO)
# ----------------------------------------------------------------------------
def init_params(key):
    keys = jax.random.split(key, 6)

    def conv_block(k, cin, cout):
        k1, k2, k3, k4 = jax.random.split(k, 4)
        return dict(
            w=0.1 * jax.random.normal(k1, (3, 3, cin, cout), jnp.float32),
            # Conv bias kept for fidelity to torch; it is exactly cancelled by
            # training-mode BN, so the kernel never uses it.
            b=0.1 * jax.random.normal(k2, (cout,), jnp.float32),
            gamma=1.0 + 0.1 * jax.random.normal(k3, (cout,), jnp.float32),
            beta=0.1 * jax.random.normal(k4, (cout,), jnp.float32),
        )

    return dict(
        conv1=conv_block(keys[0], C_IN, C),
        conv2=conv_block(keys[1], C, C),
        conv3=conv_block(keys[2], C, C),   # see TODO(synk) at top of file
        conv4=conv_block(keys[3], C, C),   # see TODO(synk) at top of file
        # torch Linear weight layout: (out_features, in_features), NCHW flatten.
        lin_w=0.02 * jax.random.normal(keys[4], (N_CLASSES, C * H3 * W3), jnp.float32),
        lin_b=0.02 * jax.random.normal(keys[5], (N_CLASSES,), jnp.float32),
    )


# ----------------------------------------------------------------------------
# Pure-JAX/XLA reference (mirrors the PyTorch forward, incl. the conv bias)
# ----------------------------------------------------------------------------
def reference_forward(params, x_nchw):
    x = jnp.transpose(x_nchw.astype(jnp.float32), (0, 2, 3, 1))

    def block(x, p):
        y = lax.conv_general_dilated(
            x, p["w"], window_strides=(1, 1), padding="SAME",
            dimension_numbers=("NHWC", "HWIO", "NHWC"),
            precision=lax.Precision.HIGHEST)
        y = y + p["b"]                                   # cancelled by BN below
        mean = jnp.mean(y, axis=(0, 1, 2))
        var = jnp.mean(jnp.square(y - mean), axis=(0, 1, 2))
        y = (y - mean) * lax.rsqrt(var + BN_EPS) * p["gamma"] + p["beta"]
        return jnp.maximum(y, 0.0)

    def pool(x):
        n, h, w, c = x.shape
        return jnp.max(x.reshape(n, h // 2, 2, w // 2, 2, c), axis=(2, 4))

    x = block(x, params["conv1"]); x = pool(x)
    x = block(x, params["conv2"]); x = pool(x)
    x = block(x, params["conv3"])
    x = block(x, params["conv4"])
    flat = jnp.transpose(x, (0, 3, 1, 2)).reshape(x.shape[0], -1)   # NCHW flatten
    return (jnp.dot(flat, params["lin_w"].T, precision=lax.Precision.HIGHEST)
            + params["lin_b"])


if __name__ == "__main__":
    key = jax.random.PRNGKey(0)
    pkey, xkey = jax.random.split(key)
    params = init_params(pkey)
    # NCHW input, spatial 48x48 so flattened features match Linear(12*12*12, 4).
    x = jax.random.normal(xkey, (2, 3, H1, W1), jnp.float32)

    packed = pack_params(params, n=2)            # one-time weight/constant packing
    fwd = jax.jit(net_forward)
    out = jax.block_until_ready(fwd(packed, x))

    assert out.shape == (2, N_CLASSES), out.shape
    assert bool(jnp.all(jnp.isfinite(out)))
    ref = jax.block_until_ready(jax.jit(reference_forward)(params, x))
    max_err = float(jnp.max(jnp.abs(out - ref)))
    assert max_err < 5e-2, f"mismatch vs reference: {max_err}"
    print("KERNEL_OK")
</pallas_src>

<mosaic_0001>
module attributes {stable_mosaic.version = 11 : i64} {
  func.func @net_kernel(%arg0: i32, %arg1: memref<96x144xf32, #tpu.memory_space<vmem>>, %arg2: memref<96x2xf32, #tpu.memory_space<vmem>>, %arg3: memref<432x576xbf16, #tpu.memory_space<vmem>>, %arg4: memref<12x576xf32, #tpu.memory_space<vmem>>, %arg5: memref<2x1x12xf32, #tpu.memory_space<vmem>>, %arg6: memref<48x96xbf16, #tpu.memory_space<vmem>>, %arg7: memref<2x576x288xbf16, #tpu.memory_space<vmem>>, %arg8: memref<48x2xf32, #tpu.memory_space<vmem>>, %arg9: memref<864x288xbf16, #tpu.memory_space<vmem>>, %arg10: memref<12x288xf32, #tpu.memory_space<vmem>>, %arg11: memref<2x1x12xf32, #tpu.memory_space<vmem>>, %arg12: memref<24x48xbf16, #tpu.memory_space<vmem>>, %arg13: memref<2x288x144xbf16, #tpu.memory_space<vmem>>, %arg14: memref<24x2xf32, #tpu.memory_space<vmem>>, %arg15: memref<432x144xbf16, #tpu.memory_space<vmem>>, %arg16: memref<12x144xf32, #tpu.memory_space<vmem>>, %arg17: memref<2x1x12xf32, #tpu.memory_space<vmem>>, %arg18: memref<432x144xbf16, #tpu.memory_space<vmem>>, %arg19: memref<2x1x12xf32, #tpu.memory_space<vmem>>, %arg20: memref<144x48xf32, #tpu.memory_space<vmem>>, %arg21: memref<24x48xf32, #tpu.memory_space<vmem>>, %arg22: memref<2x24xf32, #tpu.memory_space<vmem>>, %arg23: memref<48x4xf32, #tpu.memory_space<vmem>>, %arg24: memref<1x4xf32, #tpu.memory_space<vmem>>, %arg25: memref<2x4xf32, #tpu.memory_space<vmem>>) attributes {dimension_semantics = [#tpu.dimension_semantics<arbitrary>], iteration_bounds = array<i64: 1>, scalar_prefetch = 0 : i64, scratch_operands = 0 : i64, tpu.core_type = #tpu.core_type<tc>, window_params = [{pipeline_mode = #tpu.pipeline_mode<synchronous>, transform_indices = @transform_0, window_bounds = array<i64: 96, 144>}, {pipeline_mode = #tpu.pipeline_mode<synchronous>, transform_indices = @transform_1, window_bounds = array<i64: 96, 2>}, {pipeline_mode = #tpu.pipeline_mode<synchronous>, transform_indices = @transform_2, window_bounds = array<i64: 432, 576>}, {pipeline_mode = #tpu.pipeline_mode<synchronous>, transform_indices = @transform_3, window_bounds = array<i64: 12, 576>}, {pipeline_mode = #tpu.pipeline_mode<synchronous>, transform_indices = @transform_4, window_bounds = array<i64: 2, 1, 12>}, {pipeline_mode = #tpu.pipeline_mode<synchronous>, transform_indices = @transform_5, window_bounds = array<i64: 48, 96>}, {pipeline_mode = #tpu.pipeline_mode<synchronous>, transform_indices = @transform_6, window_bounds = array<i64: 2, 576, 288>}, {pipeline_mode = #tpu.pipeline_mode<synchronous>, transform_indices = @transform_7, window_bounds = array<i64: 48, 2>}, {pipeline_mode = #tpu.pipeline_mode<synchronous>, transform_indices = @transform_8, window_bounds = array<i64: 864, 288>}, {pipeline_mode = #tpu.pipeline_mode<synchronous>, transform_indices = @transform_9, window_bounds = array<i64: 12, 288>}, {pipeline_mode = #tpu.pipeline_mode<synchronous>, transform_indices = @transform_10, window_bounds = array<i64: 2, 1, 12>}, {pipeline_mode = #tpu.pipeline_mode<synchronous>, transform_indices = @transform_11, window_bounds = array<i64: 24, 48>}, {pipeline_mode = #tpu.pipeline_mode<synchronous>, transform_indices = @transform_12, window_bounds = array<i64: 2, 288, 144>}, {pipeline_mode = #tpu.pipeline_mode<synchronous>, transform_indices = @transform_13, window_bounds = array<i64: 24, 2>}, {pipeline_mode = #tpu.pipeline_mode<synchronous>, transform_indices = @transform_14, window_bounds = array<i64: 432, 144>}, {pipeline_mode = #tpu.pipeline_mode<synchronous>, transform_indices = @transform_15, window_bounds = array<i64: 12, 144>}, {pipeline_mode = #tpu.pipeline_mode<synchronous>, transform_indices = @transform_16, window_bounds = array<i64: 2, 1, 12>}, {pipeline_mode = #tpu.pipeline_mode<synchronous>, transform_indices = @transform_17, window_bounds = array<i64: 432, 144>}, {pipeline_mode = #tpu.pipeline_mode<synchronous>, transform_indices = @transform_18, window_bounds = array<i64: 2, 1, 12>}, {pipeline_mode = #tpu.pipeline_mode<synchronous>, transform_indices = @transform_19, window_bounds = array<i64: 144, 48>}, {pipeline_mode = #tpu.pipeline_mode<synchronous>, transform_indices = @transform_20, window_bounds = array<i64: 24, 48>}, {pipeline_mode = #tpu.pipeline_mode<synchronous>, transform_indices = @transform_21, window_bounds = array<i64: 2, 24>}, {pipeline_mode = #tpu.pipeline_mode<synchronous>, transform_indices = @transform_22, window_bounds = array<i64: 48, 4>}, {pipeline_mode = #tpu.pipeline_mode<synchronous>, transform_indices = @transform_23, window_bounds = array<i64: 1, 4>}, {pipeline_mode = #tpu.pipeline_mode<synchronous>, transform_indices = @transform_24, window_bounds = array<i64: 2, 4>}]} {
    %c0 = arith.constant 0 : index
    %c0_0 = arith.constant 0 : index
    %0 = vector.load %arg1[%c0, %c0_0] : memref<96x144xf32, #tpu.memory_space<vmem>>, vector<96x144xf32>
    %c0_1 = arith.constant 0 : index
    %c0_2 = arith.constant 0 : index
    %1 = vector.load %arg2[%c0_1, %c0_2] : memref<96x2xf32, #tpu.memory_space<vmem>>, vector<96x2xf32>
    %c1_i32 = arith.constant 1 : i32
    %2 = tpu.dynamic_rotate %0 by %c1_i32 dim 0 : vector<96x144xf32>, i32 -> vector<96x144xf32>
    %3 = vector.extract_strided_slice %1 {offsets = [0, 0], sizes = [96, 1], strides = [1, 1]} : vector<96x2xf32> to vector<96x1xf32>
    %4 = vector.broadcast %3 : vector<96x1xf32> to vector<96x144xf32>
    %5 = arith.mulf %2, %4 : vector<96x144xf32>
    %c95_i32 = arith.constant 95 : i32
    %6 = tpu.dynamic_rotate %0 by %c95_i32 dim 0 : vector<96x144xf32>, i32 -> vector<96x144xf32>
    %7 = vector.extract_strided_slice %1 {offsets = [0, 1], sizes = [96, 1], strides = [1, 1]} : vector<96x2xf32> to vector<96x1xf32>
    %8 = vector.broadcast %7 : vector<96x1xf32> to vector<96x144xf32>
    %9 = arith.mulf %6, %8 : vector<96x144xf32>
    %10 = tpu.concatenate %5, %0, %9 in 1 : vector<96x144xf32>, vector<96x144xf32>, vector<96x144xf32> -> vector<96x432xf32>
    %11 = arith.truncf %10 : vector<96x432xf32> to vector<96x432xbf16>
    %c0_3 = arith.constant 0 : index
    %c0_4 = arith.constant 0 : index
    %12 = vector.load %arg3[%c0_3, %c0_4] : memref<432x576xbf16, #tpu.memory_space<vmem>>, vector<432x576xbf16>
    %cst = arith.constant dense<0.000000e+00> : vector<96x576xf32>
    %13 = tpu.matmul %11, %12, %cst {dimension_numbers = #tpu.dot_dimension_numbers<[1], [0], [0], [1], [0, 0, 1, 1], [], []>} : vector<96x432xbf16>, vector<432x576xbf16>, vector<96x576xf32> -> vector<96x576xf32>
    %c0_5 = arith.constant 0 : index
    %c0_6 = arith.constant 0 : index
    %14 = vector.load %arg4[%c0_5, %c0_6] : memref<12x576xf32, #tpu.memory_space<vmem>>, vector<12x576xf32>
    %cst_7 = arith.constant dense<0.000000e+00> : vector<576xf32>
    %15 = vector.multi_reduction <add>, %13, %cst_7 [0] : vector<96x576xf32> to vector<576xf32>
    %16 = vector.shape_cast %15 : vector<576xf32> to vector<1x576xf32>
    %cst_8 = arith.constant 9.600000e+01 : f32
    %17 = vector.broadcast %cst_8 : f32 to vector<1x576xf32>
    %18 = arith.divf %16, %17 : vector<1x576xf32>
    %19 = arith.mulf %13, %13 : vector<96x576xf32>
    %cst_9 = arith.constant dense<0.000000e+00> : vector<576xf32>
    %20 = vector.multi_reduction <add>, %19, %cst_9 [0] : vector<96x576xf32> to vector<576xf32>
    %21 = vector.shape_cast %20 : vector<576xf32> to vector<1x576xf32>
    %cst_10 = arith.constant 9.600000e+01 : f32
    %22 = vector.broadcast %cst_10 : f32 to vector<1x576xf32>
    %23 = arith.divf %21, %22 : vector<1x576xf32>
    %24 = tpu.concatenate %18, %23 in 0 : vector<1x576xf32>, vector<1x576xf32> -> vector<2x576xf32>
    %cst_11 = arith.constant dense<0.000000e+00> : vector<2x12xf32>
    %25 = tpu.matmul %24, %14, %cst_11 {dimension_numbers = #tpu.dot_dimension_numbers<[1], [1], [0], [0], [0, 0, 1, 0], [], []>} : vector<2x576xf32>, vector<12x576xf32>, vector<2x12xf32> -> vector<2x12xf32>
    %cst_12 = arith.constant 0.020833334 : f32
    %26 = vector.broadcast %cst_12 : f32 to vector<2x12xf32>
    %27 = arith.mulf %25, %26 : vector<2x12xf32>
    %28 = vector.extract_strided_slice %27 {offsets = [0, 0], sizes = [1, 12], strides = [1, 1]} : vector<2x12xf32> to vector<1x12xf32>
    %29 = vector.extract_strided_slice %27 {offsets = [1, 0], sizes = [1, 12], strides = [1, 1]} : vector<2x12xf32> to vector<1x12xf32>
    %30 = arith.mulf %28, %28 : vector<1x12xf32>
    %31 = arith.subf %29, %30 : vector<1x12xf32>
    %cst_13 = arith.constant 0.000000e+00 : f32
    %32 = vector.broadcast %cst_13 : f32 to vector<1x12xf32>
    %33 = arith.maximumf %31, %32 : vector<1x12xf32>
    %c0_14 = arith.constant 0 : index
    %c0_15 = arith.constant 0 : index
    %c0_16 = arith.constant 0 : index
    %34 = vector.load %arg5[%c0_14, %c0_15, %c0_16] : memref<2x1x12xf32, #tpu.memory_space<vmem>>, vector<1x1x12xf32>
    %35 = vector.shape_cast %34 : vector<1x1x12xf32> to vector<1x12xf32>
    %cst_17 = arith.constant 9.99999974E-6 : f32
    %36 = vector.broadcast %cst_17 : f32 to vector<1x12xf32>
    %37 = arith.addf %33, %36 : vector<1x12xf32>
    %38 = math.rsqrt %37 : vector<1x12xf32>
    %39 = arith.mulf %35, %38 : vector<1x12xf32>
    %c1 = arith.constant 1 : index
    %c0_18 = arith.constant 0 : index
    %c0_19 = arith.constant 0 : index
    %40 = vector.load %arg5[%c1, %c0_18, %c0_19] : memref<2x1x12xf32, #tpu.memory_space<vmem>>, vector<1x1x12xf32>
    %41 = vector.shape_cast %40 : vector<1x1x12xf32> to vector<1x12xf32>
    %42 = arith.mulf %28, %39 : vector<1x12xf32>
    %43 = arith.subf %41, %42 : vector<1x12xf32>
    %44 = tpu.concatenate %39, %43 in 0 : vector<1x12xf32>, vector<1x12xf32> -> vector<2x12xf32>
    %cst_20 = arith.constant dense<0.000000e+00> : vector<2x576xf32>
    %45 = tpu.matmul %44, %14, %cst_20 {dimension_numbers = #tpu.dot_dimension_numbers<[1], [0], [0], [1], [0, 0, 1, 1], [], []>} : vector<2x12xf32>, vector<12x576xf32>, vector<2x576xf32> -> vector<2x576xf32>
    %46 = vector.extract_strided_slice %45 {offsets = [0, 0], sizes = [1, 576], strides = [1, 1]} : vector<2x576xf32> to vector<1x576xf32>
    %47 = vector.broadcast %46 : vector<1x576xf32> to vector<96x576xf32>
    %48 = arith.mulf %13, %47 : vector<96x576xf32>
    %49 = vector.extract_strided_slice %45 {offsets = [1, 0], sizes = [1, 576], strides = [1, 1]} : vector<2x576xf32> to vector<1x576xf32>
    %50 = vector.broadcast %49 : vector<1x576xf32> to vector<96x576xf32>
    %51 = arith.addf %48, %50 : vector<96x576xf32>
    %cst_21 = arith.constant 0.000000e+00 : f32
    %52 = vector.broadcast %cst_21 : f32 to vector<96x576xf32>
    %53 = arith.maximumf %51, %52 : vector<96x576xf32>
    %c95_i32_22 = arith.constant 95 : i32
    %54 = tpu.dynamic_rotate %53 by %c95_i32_22 dim 0 : vector<96x576xf32>, i32 -> vector<96x576xf32>
    %55 = arith.maximumf %53, %54 : vector<96x576xf32>
    %56 = arith.truncf %55 : vector<96x576xf32> to vector<96x576xbf16>
    %c0_23 = arith.constant 0 : index
    %c0_24 = arith.constant 0 : index
    %57 = vector.load %arg6[%c0_23, %c0_24] : memref<48x96xbf16, #tpu.memory_space<vmem>>, vector<48x96xbf16>
    %cst_25 = arith.constant dense<0.000000e+00> : vector<48x576xf32>
    %58 = tpu.matmul %57, %56, %cst_25 {dimension_numbers = #tpu.dot_dimension_numbers<[1], [0], [0], [1], [0, 0, 1, 1], [], []>} : vector<48x96xbf16>, vector<96x576xbf16>, vector<48x576xf32> -> vector<48x576xf32>
    %59 = arith.truncf %58 : vector<48x576xf32> to vector<48x576xbf16>
    %c0_26 = arith.constant 0 : index
    %c0_27 = arith.constant 0 : index
    %c0_28 = arith.constant 0 : index
    %60 = vector.load %arg7[%c0_26, %c0_27, %c0_28] : memref<2x576x288xbf16, #tpu.memory_space<vmem>>, vector<1x576x288xbf16>
    %61 = vector.shape_cast %60 : vector<1x576x288xbf16> to vector<576x288xbf16>
    %cst_29 = arith.constant dense<0.000000e+00> : vector<48x288xf32>
    %62 = tpu.matmul %59, %61, %cst_29 {dimension_numbers = #tpu.dot_dimension_numbers<[1], [0], [0], [1], [0, 0, 1, 1], [], []>} : vector<48x576xbf16>, vector<576x288xbf16>, vector<48x288xf32> -> vector<48x288xf32>
    %c1_30 = arith.constant 1 : index
    %c0_31 = arith.constant 0 : index
    %c0_32 = arith.constant 0 : index
    %63 = vector.load %arg7[%c1_30, %c0_31, %c0_32] : memref<2x576x288xbf16, #tpu.memory_space<vmem>>, vector<1x576x288xbf16>
    %64 = vector.shape_cast %63 : vector<1x576x288xbf16> to vector<576x288xbf16>
    %cst_33 = arith.constant dense<0.000000e+00> : vector<48x288xf32>
    %65 = tpu.matmul %59, %64, %cst_33 {dimension_numbers = #tpu.dot_dimension_numbers<[1], [0], [0], [1], [0, 0, 1, 1], [], []>} : vector<48x576xbf16>, vector<576x288xbf16>, vector<48x288xf32> -> vector<48x288xf32>
    %66 = arith.maximumf %62, %65 : vector<48x288xf32>
    %c0_34 = arith.constant 0 : index
    %c0_35 = arith.constant 0 : index
    %67 = vector.load %arg8[%c0_34, %c0_35] : memref<48x2xf32, #tpu.memory_space<vmem>>, vector<48x2xf32>
    %c1_i32_36 = arith.constant 1 : i32
    %68 = tpu.dynamic_rotate %66 by %c1_i32_36 dim 0 : vector<48x288xf32>, i32 -> vector<48x288xf32>
    %69 = vector.extract_strided_slice %67 {offsets = [0, 0], sizes = [48, 1], strides = [1, 1]} : vector<48x2xf32> to vector<48x1xf32>
    %70 = vector.broadcast %69 : vector<48x1xf32> to vector<48x288xf32>
    %71 = arith.mulf %68, %70 : vector<48x288xf32>
    %c47_i32 = arith.constant 47 : i32
    %72 = tpu.dynamic_rotate %66 by %c47_i32 dim 0 : vector<48x288xf32>, i32 -> vector<48x288xf32>
    %73 = vector.extract_strided_slice %67 {offsets = [0, 1], sizes = [48, 1], strides = [1, 1]} : vector<48x2xf32> to vector<48x1xf32>
    %74 = vector.broadcast %73 : vector<48x1xf32> to vector<48x288xf32>
    %75 = arith.mulf %72, %74 : vector<48x288xf32>
    %76 = tpu.concatenate %71, %66, %75 in 1 : vector<48x288xf32>, vector<48x288xf32>, vector<48x288xf32> -> vector<48x864xf32>
    %77 = arith.truncf %76 : vector<48x864xf32> to vector<48x864xbf16>
    %c0_37 = arith.constant 0 : index
    %c0_38 = arith.constant 0 : index
    %78 = vector.load %arg9[%c0_37, %c0_38] : memref<864x288xbf16, #tpu.memory_space<vmem>>, vector<864x288xbf16>
    %cst_39 = arith.constant dense<0.000000e+00> : vector<48x288xf32>
    %79 = tpu.matmul %77, %78, %cst_39 {dimension_numbers = #tpu.dot_dimension_numbers<[1], [0], [0], [1], [0, 0, 1, 1], [], []>} : vector<48x864xbf16>, vector<864x288xbf16>, vector<48x288xf32> -> vector<48x288xf32>
    %c0_40 = arith.constant 0 : index
    %c0_41 = arith.constant 0 : index
    %80 = vector.load %arg10[%c0_40, %c0_41] : memref<12x288xf32, #tpu.memory_space<vmem>>, vector<12x288xf32>
    %cst_42 = arith.constant dense<0.000000e+00> : vector<288xf32>
    %81 = vector.multi_reduction <add>, %79, %cst_42 [0] : vector<48x288xf32> to vector<288xf32>
    %82 = vector.shape_cast %81 : vector<288xf32> to vector<1x288xf32>
    %cst_43 = arith.constant 4.800000e+01 : f32
    %83 = vector.broadcast %cst_43 : f32 to vector<1x288xf32>
    %84 = arith.divf %82, %83 : vector<1x288xf32>
    %85 = arith.mulf %79, %79 : vector<48x288xf32>
    %cst_44 = arith.constant dense<0.000000e+00> : vector<288xf32>
    %86 = vector.multi_reduction <add>, %85, %cst_44 [0] : vector<48x288xf32> to vector<288xf32>
    %87 = vector.shape_cast %86 : vector<288xf32> to vector<1x288xf32>
    %cst_45 = arith.constant 4.800000e+01 : f32
    %88 = vector.broadcast %cst_45 : f32 to vector<1x288xf32>
    %89 = arith.divf %87, %88 : vector<1x288xf32>
    %90 = tpu.concatenate %84, %89 in 0 : vector<1x288xf32>, vector<1x288xf32> -> vector<2x288xf32>
    %cst_46 = arith.constant dense<0.000000e+00> : vector<2x12xf32>
    %91 = tpu.matmul %90, %80, %cst_46 {dimension_numbers = #tpu.dot_dimension_numbers<[1], [1], [0], [0], [0, 0, 1, 0], [], []>} : vector<2x288xf32>, vector<12x288xf32>, vector<2x12xf32> -> vector<2x12xf32>
    %cst_47 = arith.constant 0.0416666679 : f32
    %92 = vector.broadcast %cst_47 : f32 to vector<2x12xf32>
    %93 = arith.mulf %91, %92 : vector<2x12xf32>
    %94 = vector.extract_strided_slice %93 {offsets = [0, 0], sizes = [1, 12], strides = [1, 1]} : vector<2x12xf32> to vector<1x12xf32>
    %95 = vector.extract_strided_slice %93 {offsets = [1, 0], sizes = [1, 12], strides = [1, 1]} : vector<2x12xf32> to vector<1x12xf32>
    %96 = arith.mulf %94, %94 : vector<1x12xf32>
    %97 = arith.subf %95, %96 : vector<1x12xf32>
    %cst_48 = arith.constant 0.000000e+00 : f32
    %98 = vector.broadcast %cst_48 : f32 to vector<1x12xf32>
    %99 = arith.maximumf %97, %98 : vector<1x12xf32>
    %c0_49 = arith.constant 0 : index
    %c0_50 = arith.constant 0 : index
    %c0_51 = arith.constant 0 : index
    %100 = vector.load %arg11[%c0_49, %c0_50, %c0_51] : memref<2x1x12xf32, #tpu.memory_space<vmem>>, vector<1x1x12xf32>
    %101 = vector.shape_cast %100 : vector<1x1x12xf32> to vector<1x12xf32>
    %cst_52 = arith.constant 9.99999974E-6 : f32
    %102 = vector.broadcast %cst_52 : f32 to vector<1x12xf32>
    %103 = arith.addf %99, %102 : vector<1x12xf32>
    %104 = math.rsqrt %103 : vector<1x12xf32>
    %105 = arith.mulf %101, %104 : vector<1x12xf32>
    %c1_53 = arith.constant 1 : index
    %c0_54 = arith.constant 0 : index
    %c0_55 = arith.constant 0 : index
    %106 = vector.load %arg11[%c1_53, %c0_54, %c0_55] : memref<2x1x12xf32, #tpu.memory_space<vmem>>, vector<1x1x12xf32>
    %107 = vector.shape_cast %106 : vector<1x1x12xf32> to vector<1x12xf32>
    %108 = arith.mulf %94, %105 : vector<1x12xf32>
    %109 = arith.subf %107, %108 : vector<1x12xf32>
    %110 = tpu.concatenate %105, %109 in 0 : vector<1x12xf32>, vector<1x12xf32> -> vector<2x12xf32>
    %cst_56 = arith.constant dense<0.000000e+00> : vector<2x288xf32>
    %111 = tpu.matmul %110, %80, %cst_56 {dimension_numbers = #tpu.dot_dimension_numbers<[1], [0], [0], [1], [0, 0, 1, 1], [], []>} : vector<2x12xf32>, vector<12x288xf32>, vector<2x288xf32> -> vector<2x288xf32>
    %112 = vector.extract_strided_slice %111 {offsets = [0, 0], sizes = [1, 288], strides = [1, 1]} : vector<2x288xf32> to vector<1x288xf32>
    %113 = vector.broadcast %112 : vector<1x288xf32> to vector<48x288xf32>
    %114 = arith.mulf %79, %113 : vector<48x288xf32>
    %115 = vector.extract_strided_slice %111 {offsets = [1, 0], sizes = [1, 288], strides = [1, 1]} : vector<2x288xf32> to vector<1x288xf32>
    %116 = vector.broadcast %115 : vector<1x288xf32> to vector<48x288xf32>
    %117 = arith.addf %114, %116 : vector<48x288xf32>
    %cst_57 = arith.constant 0.000000e+00 : f32
    %118 = vector.broadcast %cst_57 : f32 to vector<48x288xf32>
    %119 = arith.maximumf %117, %118 : vector<48x288xf32>
    %c47_i32_58 = arith.constant 47 : i32
    %120 = tpu.dynamic_rotate %119 by %c47_i32_58 dim 0 : vector<48x288xf32>, i32 -> vector<48x288xf32>
    %121 = arith.maximumf %119, %120 : vector<48x288xf32>
    %122 = arith.truncf %121 : vector<48x288xf32> to vector<48x288xbf16>
    %c0_59 = arith.constant 0 : index
    %c0_60 = arith.constant 0 : index
    %123 = vector.load %arg12[%c0_59, %c0_60] : memref<24x48xbf16, #tpu.memory_space<vmem>>, vector<24x48xbf16>
    %cst_61 = arith.constant dense<0.000000e+00> : vector<24x288xf32>
    %124 = tpu.matmul %123, %122, %cst_61 {dimension_numbers = #tpu.dot_dimension_numbers<[1], [0], [0], [1], [0, 0, 1, 1], [], []>} : vector<24x48xbf16>, vector<48x288xbf16>, vector<24x288xf32> -> vector<24x288xf32>
    %125 = arith.truncf %124 : vector<24x288xf32> to vector<24x288xbf16>
    %c0_62 = arith.constant 0 : index
    %c0_63 = arith.constant 0 : index
    %c0_64 = arith.constant 0 : index
    %126 = vector.load %arg13[%c0_62, %c0_63, %c0_64] : memref<2x288x144xbf16, #tpu.memory_space<vmem>>, vector<1x288x144xbf16>
    %127 = vector.shape_cast %126 : vector<1x288x144xbf16> to vector<288x144xbf16>
    %cst_65 = arith.constant dense<0.000000e+00> : vector<24x144xf32>
    %128 = tpu.matmul %125, %127, %cst_65 {dimension_numbers = #tpu.dot_dimension_numbers<[1], [0], [0], [1], [0, 0, 1, 1], [], []>} : vector<24x288xbf16>, vector<288x144xbf16>, vector<24x144xf32> -> vector<24x144xf32>
    %c1_66 = arith.constant 1 : index
    %c0_67 = arith.constant 0 : index
    %c0_68 = arith.constant 0 : index
    %129 = vector.load %arg13[%c1_66, %c0_67, %c0_68] : memref<2x288x144xbf16, #tpu.memory_space<vmem>>, vector<1x288x144xbf16>
    %130 = vector.shape_cast %129 : vector<1x288x144xbf16> to vector<288x144xbf16>
    %cst_69 = arith.constant dense<0.000000e+00> : vector<24x144xf32>
    %131 = tpu.matmul %125, %130, %cst_69 {dimension_numbers = #tpu.dot_dimension_numbers<[1], [0], [0], [1], [0, 0, 1, 1], [], []>} : vector<24x288xbf16>, vector<288x144xbf16>, vector<24x144xf32> -> vector<24x144xf32>
    %132 = arith.maximumf %128, %131 : vector<24x144xf32>
    %c0_70 = arith.constant 0 : index
    %c0_71 = arith.constant 0 : index
    %133 = vector.load %arg14[%c0_70, %c0_71] : memref<24x2xf32, #tpu.memory_space<vmem>>, vector<24x2xf32>
    %c1_i32_72 = arith.constant 1 : i32
    %134 = tpu.dynamic_rotate %132 by %c1_i32_72 dim 0 : vector<24x144xf32>, i32 -> vector<24x144xf32>
    %135 = vector.extract_strided_slice %133 {offsets = [0, 0], sizes = [24, 1], strides = [1, 1]} : vector<24x2xf32> to vector<24x1xf32>
    %136 = vector.broadcast %135 : vector<24x1xf32> to vector<24x144xf32>
    %137 = arith.mulf %134, %136 : vector<24x144xf32>
    %c23_i32 = arith.constant 23 : i32
    %138 = tpu.dynamic_rotate %132 by %c23_i32 dim 0 : vector<24x144xf32>, i32 -> vector<24x144xf32>
    %139 = vector.extract_strided_slice %133 {offsets = [0, 1], sizes = [24, 1], strides = [1, 1]} : vector<24x2xf32> to vector<24x1xf32>
    %140 = vector.broadcast %139 : vector<24x1xf32> to vector<24x144xf32>
    %141 = arith.mulf %138, %140 : vector<24x144xf32>
    %142 = tpu.concatenate %137, %132, %141 in 1 : vector<24x144xf32>, vector<24x144xf32>, vector<24x144xf32> -> vector<24x432xf32>
    %143 = arith.truncf %142 : vector<24x432xf32> to vector<24x432xbf16>
    %c0_73 = arith.constant 0 : index
    %c0_74 = arith.constant 0 : index
    %144 = vector.load %arg15[%c0_73, %c0_74] : memref<432x144xbf16, #tpu.memory_space<vmem>>, vector<432x144xbf16>
    %cst_75 = arith.constant dense<0.000000e+00> : vector<24x144xf32>
    %145 = tpu.matmul %143, %144, %cst_75 {dimension_numbers = #tpu.dot_dimension_numbers<[1], [0], [0], [1], [0, 0, 1, 1], [], []>} : vector<24x432xbf16>, vector<432x144xbf16>, vector<24x144xf32> -> vector<24x144xf32>
    %c0_76 = arith.constant 0 : index
    %c0_77 = arith.constant 0 : index
    %146 = vector.load %arg16[%c0_76, %c0_77] : memref<12x144xf32, #tpu.memory_space<vmem>>, vector<12x144xf32>
    %cst_78 = arith.constant dense<0.000000e+00> : vector<144xf32>
    %147 = vector.multi_reduction <add>, %145, %cst_78 [0] : vector<24x144xf32> to vector<144xf32>
    %148 = vector.shape_cast %147 : vector<144xf32> to vector<1x144xf32>
    %cst_79 = arith.constant 2.400000e+01 : f32
    %149 = vector.broadcast %cst_79 : f32 to vector<1x144xf32>
    %150 = arith.divf %148, %149 : vector<1x144xf32>
    %151 = arith.mulf %145, %145 : vector<24x144xf32>
    %cst_80 = arith.constant dense<0.000000e+00> : vector<144xf32>
    %152 = vector.multi_reduction <add>, %151, %cst_80 [0] : vector<24x144xf32> to vector<144xf32>
    %153 = vector.shape_cast %152 : vector<144xf32> to vector<1x144xf32>
    %cst_81 = arith.constant 2.400000e+01 : f32
    %154 = vector.broadcast %cst_81 : f32 to vector<1x144xf32>
    %155 = arith.divf %153, %154 : vector<1x144xf32>
    %156 = tpu.concatenate %150, %155 in 0 : vector<1x144xf32>, vector<1x144xf32> -> vector<2x144xf32>
    %cst_82 = arith.constant dense<0.000000e+00> : vector<2x12xf32>
    %157 = tpu.matmul %156, %146, %cst_82 {dimension_numbers = #tpu.dot_dimension_numbers<[1], [1], [0], [0], [0, 0, 1, 0], [], []>} : vector<2x144xf32>, vector<12x144xf32>, vector<2x12xf32> -> vector<2x12xf32>
    %cst_83 = arith.constant 0.0833333358 : f32
    %158 = vector.broadcast %cst_83 : f32 to vector<2x12xf32>
    %159 = arith.mulf %157, %158 : vector<2x12xf32>
    %160 = vector.extract_strided_slice %159 {offsets = [0, 0], sizes = [1, 12], strides = [1, 1]} : vector<2x12xf32> to vector<1x12xf32>
    %161 = vector.extract_strided_slice %159 {offsets = [1, 0], sizes = [1, 12], strides = [1, 1]} : vector<2x12xf32> to vector<1x12xf32>
    %162 = arith.mulf %160, %160 : vector<1x12xf32>
    %163 = arith.subf %161, %162 : vector<1x12xf32>
    %cst_84 = arith.constant 0.000000e+00 : f32
    %164 = vector.broadcast %cst_84 : f32 to vector<1x12xf32>
    %165 = arith.maximumf %163, %164 : vector<1x12xf32>
    %c0_85 = arith.constant 0 : index
    %c0_86 = arith.constant 0 : index
    %c0_87 = arith.constant 0 : index
    %166 = vector.load %arg17[%c0_85, %c0_86, %c0_87] : memref<2x1x12xf32, #tpu.memory_space<vmem>>, vector<1x1x12xf32>
    %167 = vector.shape_cast %166 : vector<1x1x12xf32> to vector<1x12xf32>
    %cst_88 = arith.constant 9.99999974E-6 : f32
    %168 = vector.broadcast %cst_88 : f32 to vector<1x12xf32>
    %169 = arith.addf %165, %168 : vector<1x12xf32>
    %170 = math.rsqrt %169 : vector<1x12xf32>
    %171 = arith.mulf %167, %170 : vector<1x12xf32>
    %c1_89 = arith.constant 1 : index
    %c0_90 = arith.constant 0 : index
    %c0_91 = arith.constant 0 : index
    %172 = vector.load %arg17[%c1_89, %c0_90, %c0_91] : memref<2x1x12xf32, #tpu.memory_space<vmem>>, vector<1x1x12xf32>
    %173 = vector.shape_cast %172 : vector<1x1x12xf32> to vector<1x12xf32>
    %174 = arith.mulf %160, %171 : vector<1x12xf32>
    %175 = arith.subf %173, %174 : vector<1x12xf32>
    %176 = tpu.concatenate %171, %175 in 0 : vector<1x12xf32>, vector<1x12xf32> -> vector<2x12xf32>
    %cst_92 = arith.constant dense<0.000000e+00> : vector<2x144xf32>
    %177 = tpu.matmul %176, %146, %cst_92 {dimension_numbers = #tpu.dot_dimension_numbers<[1], [0], [0], [1], [0, 0, 1, 1], [], []>} : vector<2x12xf32>, vector<12x144xf32>, vector<2x144xf32> -> vector<2x144xf32>
    %178 = vector.extract_strided_slice %177 {offsets = [0, 0], sizes = [1, 144], strides = [1, 1]} : vector<2x144xf32> to vector<1x144xf32>
    %179 = vector.broadcast %178 : vector<1x144xf32> to vector<24x144xf32>
    %180 = arith.mulf %145, %179 : vector<24x144xf32>
    %181 = vector.extract_strided_slice %177 {offsets = [1, 0], sizes = [1, 144], strides = [1, 1]} : vector<2x144xf32> to vector<1x144xf32>
    %182 = vector.broadcast %181 : vector<1x144xf32> to vector<24x144xf32>
    %183 = arith.addf %180, %182 : vector<24x144xf32>
    %cst_93 = arith.constant 0.000000e+00 : f32
    %184 = vector.broadcast %cst_93 : f32 to vector<24x144xf32>
    %185 = arith.maximumf %183, %184 : vector<24x144xf32>
    %c0_94 = arith.constant 0 : index
    %c0_95 = arith.constant 0 : index
    %186 = vector.load %arg14[%c0_94, %c0_95] : memref<24x2xf32, #tpu.memory_space<vmem>>, vector<24x2xf32>
    %c1_i32_96 = arith.constant 1 : i32
    %187 = tpu.dynamic_rotate %185 by %c1_i32_96 dim 0 : vector<24x144xf32>, i32 -> vector<24x144xf32>
    %188 = vector.extract_strided_slice %186 {offsets = [0, 0], sizes = [24, 1], strides = [1, 1]} : vector<24x2xf32> to vector<24x1xf32>
    %189 = vector.broadcast %188 : vector<24x1xf32> to vector<24x144xf32>
    %190 = arith.mulf %187, %189 : vector<24x144xf32>
    %c23_i32_97 = arith.constant 23 : i32
    %191 = tpu.dynamic_rotate %185 by %c23_i32_97 dim 0 : vector<24x144xf32>, i32 -> vector<24x144xf32>
    %192 = vector.extract_strided_slice %186 {offsets = [0, 1], sizes = [24, 1], strides = [1, 1]} : vector<24x2xf32> to vector<24x1xf32>
    %193 = vector.broadcast %192 : vector<24x1xf32> to vector<24x144xf32>
    %194 = arith.mulf %191, %193 : vector<24x144xf32>
    %195 = tpu.concatenate %190, %185, %194 in 1 : vector<24x144xf32>, vector<24x144xf32>, vector<24x144xf32> -> vector<24x432xf32>
    %196 = arith.truncf %195 : vector<24x432xf32> to vector<24x432xbf16>
    %c0_98 = arith.constant 0 : index
    %c0_99 = arith.constant 0 : index
    %197 = vector.load %arg18[%c0_98, %c0_99] : memref<432x144xbf16, #tpu.memory_space<vmem>>, vector<432x144xbf16>
    %cst_100 = arith.constant dense<0.000000e+00> : vector<24x144xf32>
    %198 = tpu.matmul %196, %197, %cst_100 {dimension_numbers = #tpu.dot_dimension_numbers<[1], [0], [0], [1], [0, 0, 1, 1], [], []>} : vector<24x432xbf16>, vector<432x144xbf16>, vector<24x144xf32> -> vector<24x144xf32>
    %c0_101 = arith.constant 0 : index
    %c0_102 = arith.constant 0 : index
    %199 = vector.load %arg16[%c0_101, %c0_102] : memref<12x144xf32, #tpu.memory_space<vmem>>, vector<12x144xf32>
    %cst_103 = arith.constant dense<0.000000e+00> : vector<144xf32>
    %200 = vector.multi_reduction <add>, %198, %cst_103 [0] : vector<24x144xf32> to vector<144xf32>
    %201 = vector.shape_cast %200 : vector<144xf32> to vector<1x144xf32>
    %cst_104 = arith.constant 2.400000e+01 : f32
    %202 = vector.broadcast %cst_104 : f32 to vector<1x144xf32>
    %203 = arith.divf %201, %202 : vector<1x144xf32>
    %204 = arith.mulf %198, %198 : vector<24x144xf32>
    %cst_105 = arith.constant dense<0.000000e+00> : vector<144xf32>
    %205 = vector.multi_reduction <add>, %204, %cst_105 [0] : vector<24x144xf32> to vector<144xf32>
    %206 = vector.shape_cast %205 : vector<144xf32> to vector<1x144xf32>
    %cst_106 = arith.constant 2.400000e+01 : f32
    %207 = vector.broadcast %cst_106 : f32 to vector<1x144xf32>
    %208 = arith.divf %206, %207 : vector<1x144xf32>
    %209 = tpu.concatenate %203, %208 in 0 : vector<1x144xf32>, vector<1x144xf32> -> vector<2x144xf32>
    %cst_107 = arith.constant dense<0.000000e+00> : vector<2x12xf32>
    %210 = tpu.matmul %209, %199, %cst_107 {dimension_numbers = #tpu.dot_dimension_numbers<[1], [1], [0], [0], [0, 0, 1, 0], [], []>} : vector<2x144xf32>, vector<12x144xf32>, vector<2x12xf32> -> vector<2x12xf32>
    %cst_108 = arith.constant 0.0833333358 : f32
    %211 = vector.broadcast %cst_108 : f32 to vector<2x12xf32>
    %212 = arith.mulf %210, %211 : vector<2x12xf32>
    %213 = vector.extract_strided_slice %212 {offsets = [0, 0], sizes = [1, 12], strides = [1, 1]} : vector<2x12xf32> to vector<1x12xf32>
    %214 = vector.extract_strided_slice %212 {offsets = [1, 0], sizes = [1, 12], strides = [1, 1]} : vector<2x12xf32> to vector<1x12xf32>
    %215 = arith.mulf %213, %213 : vector<1x12xf32>
    %216 = arith.subf %214, %215 : vector<1x12xf32>
    %cst_109 = arith.constant 0.000000e+00 : f32
    %217 = vector.broadcast %cst_109 : f32 to vector<1x12xf32>
    %218 = arith.maximumf %216, %217 : vector<1x12xf32>
    %c0_110 = arith.constant 0 : index
    %c0_111 = arith.constant 0 : index
    %c0_112 = arith.constant 0 : index
    %219 = vector.load %arg19[%c0_110, %c0_111, %c0_112] : memref<2x1x12xf32, #tpu.memory_space<vmem>>, vector<1x1x12xf32>
    %220 = vector.shape_cast %219 : vector<1x1x12xf32> to vector<1x12xf32>
    %cst_113 = arith.constant 9.99999974E-6 : f32
    %221 = vector.broadcast %cst_113 : f32 to vector<1x12xf32>
    %222 = arith.addf %218, %221 : vector<1x12xf32>
    %223 = math.rsqrt %222 : vector<1x12xf32>
    %224 = arith.mulf %220, %223 : vector<1x12xf32>
    %c1_114 = arith.constant 1 : index
    %c0_115 = arith.constant 0 : index
    %c0_116 = arith.constant 0 : index
    %225 = vector.load %arg19[%c1_114, %c0_115, %c0_116] : memref<2x1x12xf32, #tpu.memory_space<vmem>>, vector<1x1x12xf32>
    %226 = vector.shape_cast %225 : vector<1x1x12xf32> to vector<1x12xf32>
    %227 = arith.mulf %213, %224 : vector<1x12xf32>
    %228 = arith.subf %226, %227 : vector<1x12xf32>
    %229 = tpu.concatenate %224, %228 in 0 : vector<1x12xf32>, vector<1x12xf32> -> vector<2x12xf32>
    %cst_117 = arith.constant dense<0.000000e+00> : vector<2x144xf32>
    %230 = tpu.matmul %229, %199, %cst_117 {dimension_numbers = #tpu.dot_dimension_numbers<[1], [0], [0], [1], [0, 0, 1, 1], [], []>} : vector<2x12xf32>, vector<12x144xf32>, vector<2x144xf32> -> vector<2x144xf32>
    %231 = vector.extract_strided_slice %230 {offsets = [0, 0], sizes = [1, 144], strides = [1, 1]} : vector<2x144xf32> to vector<1x144xf32>
    %232 = vector.broadcast %231 : vector<1x144xf32> to vector<24x144xf32>
    %233 = arith.mulf %198, %232 : vector<24x144xf32>
    %234 = vector.extract_strided_slice %230 {offsets = [1, 0], sizes = [1, 144], strides = [1, 1]} : vector<2x144xf32> to vector<1x144xf32>
    %235 = vector.broadcast %234 : vector<1x144xf32> to vector<24x144xf32>
    %236 = arith.addf %233, %235 : vector<24x144xf32>
    %cst_118 = arith.constant 0.000000e+00 : f32
    %237 = vector.broadcast %cst_118 : f32 to vector<24x144xf32>
    %238 = arith.maximumf %236, %237 : vector<24x144xf32>
    %c0_119 = arith.constant 0 : index
    %c0_120 = arith.constant 0 : index
    %239 = vector.load %arg20[%c0_119, %c0_120] : memref<144x48xf32, #tpu.memory_space<vmem>>, vector<144x48xf32>
    %cst_121 = arith.constant dense<0.000000e+00> : vector<24x48xf32>
    %240 = tpu.matmul %238, %239, %cst_121 {dimension_numbers = #tpu.dot_dimension_numbers<[1], [0], [0], [1], [0, 0, 1, 1], [], []>} : vector<24x144xf32>, vector<144x48xf32>, vector<24x48xf32> -> vector<24x48xf32>
    %c0_122 = arith.constant 0 : index
    %c0_123 = arith.constant 0 : index
    %241 = vector.load %arg22[%c0_122, %c0_123] : memref<2x24xf32, #tpu.memory_space<vmem>>, vector<2x24xf32>
    %c0_124 = arith.constant 0 : index
    %c0_125 = arith.constant 0 : index
    %242 = vector.load %arg21[%c0_124, %c0_125] : memref<24x48xf32, #tpu.memory_space<vmem>>, vector<24x48xf32>
    %243 = arith.mulf %240, %242 : vector<24x48xf32>
    %cst_126 = arith.constant dense<0.000000e+00> : vector<2x48xf32>
    %244 = tpu.matmul %241, %243, %cst_126 {dimension_numbers = #tpu.dot_dimension_numbers<[1], [0], [0], [1], [0, 0, 1, 1], [], []>} : vector<2x24xf32>, vector<24x48xf32>, vector<2x48xf32> -> vector<2x48xf32>
    %c0_127 = arith.constant 0 : index
    %c0_128 = arith.constant 0 : index
    %245 = vector.load %arg23[%c0_127, %c0_128] : memref<48x4xf32, #tpu.memory_space<vmem>>, vector<48x4xf32>
    %cst_129 = arith.constant dense<0.000000e+00> : vector<2x4xf32>
    %246 = tpu.matmul %244, %245, %cst_129 {dimension_numbers = #tpu.dot_dimension_numbers<[1], [0], [0], [1], [0, 0, 1, 1], [], []>} : vector<2x48xf32>, vector<48x4xf32>, vector<2x4xf32> -> vector<2x4xf32>
    %c0_130 = arith.constant 0 : index
    %c0_131 = arith.constant 0 : index
    %247 = vector.load %arg24[%c0_130, %c0_131] : memref<1x4xf32, #tpu.memory_space<vmem>>, vector<1x4xf32>
    %248 = vector.broadcast %247 : vector<1x4xf32> to vector<2x4xf32>
    %249 = arith.addf %246, %248 : vector<2x4xf32>
    %c0_132 = arith.constant 0 : index
    %c0_133 = arith.constant 0 : index
    %250 = vector.load %arg25[%c0_132, %c0_133] : memref<2x4xf32, #tpu.memory_space<vmem>>, vector<2x4xf32>
    tpu.vector_store %arg25[%c0_132, %c0_133], %249 {strides = array<i32>} : memref<2x4xf32, #tpu.memory_space<vmem>>, vector<2x4xf32>,
    return
  }
  func.func @transform_0(%arg0: i32) -> (i32, i32) {
    %c0_i32 = arith.constant 0 : i32
    %c0_i32_0 = arith.constant 0 : i32
    %c0_i32_1 = arith.constant 0 : i32
    return %c0_i32, %c0_i32_0 : i32, i32
  }
  func.func @transform_1(%arg0: i32) -> (i32, i32) {
    %c0_i32 = arith.constant 0 : i32
    %c0_i32_0 = arith.constant 0 : i32
    %c0_i32_1 = arith.constant 0 : i32
    return %c0_i32, %c0_i32_0 : i32, i32
  }
  func.func @transform_2(%arg0: i32) -> (i32, i32) {
    %c0_i32 = arith.constant 0 : i32
    %c0_i32_0 = arith.constant 0 : i32
    %c0_i32_1 = arith.constant 0 : i32
    return %c0_i32, %c0_i32_0 : i32, i32
  }
  func.func @transform_3(%arg0: i32) -> (i32, i32) {
    %c0_i32 = arith.constant 0 : i32
    %c0_i32_0 = arith.constant 0 : i32
    %c0_i32_1 = arith.constant 0 : i32
    return %c0_i32, %c0_i32_0 : i32, i32
  }
  func.func @transform_4(%arg0: i32) -> (i32, i32, i32) {
    %c0_i32 = arith.constant 0 : i32
    %c0_i32_0 = arith.constant 0 : i32
    %c0_i32_1 = arith.constant 0 : i32
    %c0_i32_2 = arith.constant 0 : i32
    return %c0_i32, %c0_i32_0, %c0_i32_1 : i32, i32, i32
  }
  func.func @transform_5(%arg0: i32) -> (i32, i32) {
    %c0_i32 = arith.constant 0 : i32
    %c0_i32_0 = arith.constant 0 : i32
    %c0_i32_1 = arith.constant 0 : i32
    return %c0_i32, %c0_i32_0 : i32, i32
  }
  func.func @transform_6(%arg0: i32) -> (i32, i32, i32) {
    %c0_i32 = arith.constant 0 : i32
    %c0_i32_0 = arith.constant 0 : i32
    %c0_i32_1 = arith.constant 0 : i32
    %c0_i32_2 = arith.constant 0 : i32
    return %c0_i32, %c0_i32_0, %c0_i32_1 : i32, i32, i32
  }
  func.func @transform_7(%arg0: i32) -> (i32, i32) {
    %c0_i32 = arith.constant 0 : i32
    %c0_i32_0 = arith.constant 0 : i32
    %c0_i32_1 = arith.constant 0 : i32
    return %c0_i32, %c0_i32_0 : i32, i32
  }
  func.func @transform_8(%arg0: i32) -> (i32, i32) {
    %c0_i32 = arith.constant 0 : i32
    %c0_i32_0 = arith.constant 0 : i32
    %c0_i32_1 = arith.constant 0 : i32
    return %c0_i32, %c0_i32_0 : i32, i32
  }
  func.func @transform_9(%arg0: i32) -> (i32, i32) {
    %c0_i32 = arith.constant 0 : i32
    %c0_i32_0 = arith.constant 0 : i32
    %c0_i32_1 = arith.constant 0 : i32
    return %c0_i32, %c0_i32_0 : i32, i32
  }
  func.func @transform_10(%arg0: i32) -> (i32, i32, i32) {
    %c0_i32 = arith.constant 0 : i32
    %c0_i32_0 = arith.constant 0 : i32
    %c0_i32_1 = arith.constant 0 : i32
    %c0_i32_2 = arith.constant 0 : i32
    return %c0_i32, %c0_i32_0, %c0_i32_1 : i32, i32, i32
  }
  func.func @transform_11(%arg0: i32) -> (i32, i32) {
    %c0_i32 = arith.constant 0 : i32
    %c0_i32_0 = arith.constant 0 : i32
    %c0_i32_1 = arith.constant 0 : i32
    return %c0_i32, %c0_i32_0 : i32, i32
  }
  func.func @transform_12(%arg0: i32) -> (i32, i32, i32) {
    %c0_i32 = arith.constant 0 : i32
    %c0_i32_0 = arith.constant 0 : i32
    %c0_i32_1 = arith.constant 0 : i32
    %c0_i32_2 = arith.constant 0 : i32
    return %c0_i32, %c0_i32_0, %c0_i32_1 : i32, i32, i32
  }
  func.func @transform_13(%arg0: i32) -> (i32, i32) {
    %c0_i32 = arith.constant 0 : i32
    %c0_i32_0 = arith.constant 0 : i32
    %c0_i32_1 = arith.constant 0 : i32
    return %c0_i32, %c0_i32_0 : i32, i32
  }
  func.func @transform_14(%arg0: i32) -> (i32, i32) {
    %c0_i32 = arith.constant 0 : i32
    %c0_i32_0 = arith.constant 0 : i32
    %c0_i32_1 = arith.constant 0 : i32
    return %c0_i32, %c0_i32_0 : i32, i32
  }
  func.func @transform_15(%arg0: i32) -> (i32, i32) {
    %c0_i32 = arith.constant 0 : i32
    %c0_i32_0 = arith.constant 0 : i32
    %c0_i32_1 = arith.constant 0 : i32
    return %c0_i32, %c0_i32_0 : i32, i32
  }
  func.func @transform_16(%arg0: i32) -> (i32, i32, i32) {
    %c0_i32 = arith.constant 0 : i32
    %c0_i32_0 = arith.constant 0 : i32
    %c0_i32_1 = arith.constant 0 : i32
    %c0_i32_2 = arith.constant 0 : i32
    return %c0_i32, %c0_i32_0, %c0_i32_1 : i32, i32, i32
  }
  func.func @transform_17(%arg0: i32) -> (i32, i32) {
    %c0_i32 = arith.constant 0 : i32
    %c0_i32_0 = arith.constant 0 : i32
    %c0_i32_1 = arith.constant 0 : i32
    return %c0_i32, %c0_i32_0 : i32, i32
  }
  func.func @transform_18(%arg0: i32) -> (i32, i32, i32) {
    %c0_i32 = arith.constant 0 : i32
    %c0_i32_0 = arith.constant 0 : i32
    %c0_i32_1 = arith.constant 0 : i32
    %c0_i32_2 = arith.constant 0 : i32
    return %c0_i32, %c0_i32_0, %c0_i32_1 : i32, i32, i32
  }
  func.func @transform_19(%arg0: i32) -> (i32, i32) {
    %c0_i32 = arith.constant 0 : i32
    %c0_i32_0 = arith.constant 0 : i32
    %c0_i32_1 = arith.constant 0 : i32
    return %c0_i32, %c0_i32_0 : i32, i32
  }
  func.func @transform_20(%arg0: i32) -> (i32, i32) {
    %c0_i32 = arith.constant 0 : i32
    %c0_i32_0 = arith.constant 0 : i32
    %c0_i32_1 = arith.constant 0 : i32
    return %c0_i32, %c0_i32_0 : i32, i32
  }
  func.func @transform_21(%arg0: i32) -> (i32, i32) {
    %c0_i32 = arith.constant 0 : i32
    %c0_i32_0 = arith.constant 0 : i32
    %c0_i32_1 = arith.constant 0 : i32
    return %c0_i32, %c0_i32_0 : i32, i32
  }
  func.func @transform_22(%arg0: i32) -> (i32, i32) {
    %c0_i32 = arith.constant 0 : i32
    %c0_i32_0 = arith.constant 0 : i32
    %c0_i32_1 = arith.constant 0 : i32
    return %c0_i32, %c0_i32_0 : i32, i32
  }
  func.func @transform_23(%arg0: i32) -> (i32, i32) {
    %c0_i32 = arith.constant 0 : i32
    %c0_i32_0 = arith.constant 0 : i32
    %c0_i32_1 = arith.constant 0 : i32
    return %c0_i32, %c0_i32_0 : i32, i32
  }
  func.func @transform_24(%arg0: i32) -> (i32, i32) {
    %c0_i32 = arith.constant 0 : i32
    %c0_i32_0 = arith.constant 0 : i32
    %c0_i32_1 = arith.constant 0 : i32
    return %c0_i32, %c0_i32_0 : i32, i32
  }
}

</mosaic_0001>

<llo_original>
// kernel: net_forward.1
$region0: #{net_forward.1}
  #allocation0 [shape = 'u32[]', space=smem, size = 0x4, offset = 0x4, fixed_abs, tag = 'smem constant byte address 0x4 - core index']
  #allocation1 [shape = 'u32[144,128]{1,0:T(1,128)}', space=vmem, size = 0x12000, scoped, tag = 'internal scratch']
  %s0 = inlined_call_operand.vmem [shape: f32[96,144], index: 0, kind: input, shape index: {}]
  %s1 = inlined_call_operand.vmem [shape: f32[96,2], index: 1, kind: input, shape index: {}]
  %s2 = inlined_call_operand.vmem [shape: bf16[432,576], index: 2, kind: input, shape index: {}]
  %s3 = inlined_call_operand.vmem [shape: f32[12,576], index: 3, kind: input, shape index: {}]
  %s4 = inlined_call_operand.vmem [shape: f32[2,1,12], index: 4, kind: input, shape index: {}]
  %s5 = inlined_call_operand.vmem [shape: bf16[48,96], index: 5, kind: input, shape index: {}]
  %s6 = inlined_call_operand.vmem [shape: bf16[2,576,288], index: 6, kind: input, shape index: {}]
  %s7 = inlined_call_operand.vmem [shape: f32[48,2], index: 7, kind: input, shape index: {}]
  %s8 = inlined_call_operand.vmem [shape: bf16[864,288], index: 8, kind: input, shape index: {}]
  %s9 = inlined_call_operand.vmem [shape: f32[12,288], index: 9, kind: input, shape index: {}]
  %s10 = inlined_call_operand.vmem [shape: f32[2,1,12], index: 10, kind: input, shape index: {}]
  %s11 = inlined_call_operand.vmem [shape: bf16[24,48], index: 11, kind: input, shape index: {}]
  %s12 = inlined_call_operand.vmem [shape: bf16[2,288,144], index: 12, kind: input, shape index: {}]
  %s13 = inlined_call_operand.vmem [shape: f32[24,2], index: 13, kind: input, shape index: {}]
  %s14 = inlined_call_operand.vmem [shape: bf16[432,144], index: 14, kind: input, shape index: {}]
  %s15 = inlined_call_operand.vmem [shape: f32[12,144], index: 15, kind: input, shape index: {}]
  %s16 = inlined_call_operand.vmem [shape: f32[2,1,12], index: 16, kind: input, shape index: {}]
  %s17 = inlined_call_operand.vmem [shape: bf16[432,144], index: 17, kind: input, shape index: {}]
  %s18 = inlined_call_operand.vmem [shape: f32[2,1,12], index: 18, kind: input, shape index: {}]
  %s19 = inlined_call_operand.vmem [shape: f32[144,48], index: 19, kind: input, shape index: {}]
  %s20 = inlined_call_operand.vmem [shape: f32[24,48], index: 20, kind: input, shape index: {}]
  %s21 = inlined_call_operand.vmem [shape: f32[2,24], index: 21, kind: input, shape index: {}]
  %s22 = inlined_call_operand.vmem [shape: f32[48,4], index: 22, kind: input, shape index: {}]
  %s23 = inlined_call_operand.vmem [shape: f32[1,4], index: 23, kind: input, shape index: {}]
  %s24 = inlined_call_operand.hbm [shape: f32[2,4], index: 24, kind: output, shape index: {}]
  %s25 = sld [smem:[#allocation0]]
  $region106: #{net_forward.1} parent=0
    _
  %s27 = ssub.s32 1, %s25
  %s28 = scalar_select 0, %s27, %s25
  $region1: #{net_forward.1} parent=0
    #allocation2 [shape = 'u8[1024]{0}', space=vmem, size = 0x400, scoped, tag = 'output window, operand 0, single buffered']
    #allocation3 [shape = 's32[1]{0}', space=sflag, size = 0x4, scoped, tag = 'scoped memory for net_forward.1']
    %29 = vsyncpa [#allocation3], 0
    // Predicated region
    $region2: #{net_forward.1} parent=1 // pred_check
      _
    $region3: #{net_forward.1} parent=1 // pred_check_branch
      %31 = sbr.rel (0) target = $region5
    $region4: #{net_forward.1} parent=1 // pred_region
      _
    $region5: #{net_forward.1} parent=1 // pred_fallthru
      _
    // Predicated region
    $region6: #{net_forward.1} parent=1 // pred_check
      _
    $region7: #{net_forward.1} parent=1 // pred_check_branch
      %33 = sbr.rel (0) target = $region9
    $region8: #{net_forward.1} parent=1 // pred_region
      _
    $region9: #{net_forward.1} parent=1 // pred_fallthru
      _
    // Predicated region
    $region10: #{net_forward.1} parent=1 // pred_check
      _
    $region11: #{net_forward.1} parent=1 // pred_check_branch
      %35 = sbr.rel (0) target = $region13
    $region12: #{net_forward.1} parent=1 // pred_region
      _
    $region13: #{net_forward.1} parent=1 // pred_fallthru
      _
    // Predicated region
    $region14: #{net_forward.1} parent=1 // pred_check
      _
    $region15: #{net_forward.1} parent=1 // pred_check_branch
      %37 = sbr.rel (0) target = $region17
    $region16: #{net_forward.1} parent=1 // pred_region
      _
    $region17: #{net_forward.1} parent=1 // pred_fallthru
      _
    // Predicated region
    $region18: #{net_forward.1} parent=1 // pred_check
      _
    $region19: #{net_forward.1} parent=1 // pred_check_branch
      %39 = sbr.rel (0) target = $region21
    $region20: #{net_forward.1} parent=1 // pred_region
      _
    $region21: #{net_forward.1} parent=1 // pred_fallthru
      _
    // Predicated region
    $region22: #{net_forward.1} parent=1 // pred_check
      _
    $region23: #{net_forward.1} parent=1 // pred_check_branch
      %41 = sbr.rel (0) target = $region25
    $region24: #{net_forward.1} parent=1 // pred_region
      _
    $region25: #{net_forward.1} parent=1 // pred_fallthru
      _
    // Predicated region
    $region26: #{net_forward.1} parent=1 // pred_check
      _
    $region27: #{net_forward.1} parent=1 // pred_check_branch
      %43 = sbr.rel (0) target = $region29
    $region28: #{net_forward.1} parent=1 // pred_region
      _
    $region29: #{net_forward.1} parent=1 // pred_fallthru
      _
    // Predicated region
    $region30: #{net_forward.1} parent=1 // pred_check
      _
    $region31: #{net_forward.1} parent=1 // pred_check_branch
      %45 = sbr.rel (0) target = $region33
    $region32: #{net_forward.1} parent=1 // pred_region
      _
    $region33: #{net_forward.1} parent=1 // pred_fallthru
      _
    // Predicated region
    $region34: #{net_forward.1} parent=1 // pred_check
      _
    $region35: #{net_forward.1} parent=1 // pred_check_branch
      %47 = sbr.rel (0) target = $region37
    $region36: #{net_forward.1} parent=1 // pred_region
      _
    $region37: #{net_forward.1} parent=1 // pred_fallthru
      _
    // Predicated region
    $region38: #{net_forward.1} parent=1 // pred_check
      _
    $region39: #{net_forward.1} parent=1 // pred_check_branch
      %49 = sbr.rel (0) target = $region41
    $region40: #{net_forward.1} parent=1 // pred_region
      _
    $region41: #{net_forward.1} parent=1 // pred_fallthru
      _
    // Predicated region
    $region42: #{net_forward.1} parent=1 // pred_check
      _
    $region43: #{net_forward.1} parent=1 // pred_check_branch
      %51 = sbr.rel (0) target = $region45
    $region44: #{net_forward.1} parent=1 // pred_region
      _
    $region45: #{net_forward.1} parent=1 // pred_fallthru
      _
    // Predicated region
    $region46: #{net_forward.1} parent=1 // pred_check
      _
    $region47: #{net_forward.1} parent=1 // pred_check_branch
      %53 = sbr.rel (0) target = $region49
    $region48: #{net_forward.1} parent=1 // pred_region
      _
    $region49: #{net_forward.1} parent=1 // pred_fallthru
      _
    // Predicated region
    $region50: #{net_forward.1} parent=1 // pred_check
      _
    $region51: #{net_forward.1} parent=1 // pred_check_branch
      %55 = sbr.rel (0) target = $region53
    $region52: #{net_forward.1} parent=1 // pred_region
      _
    $region53: #{net_forward.1} parent=1 // pred_fallthru
      _
    // Predicated region
    $region54: #{net_forward.1} parent=1 // pred_check
      _
    $region55: #{net_forward.1} parent=1 // pred_check_branch
      %57 = sbr.rel (0) target = $region57
    $region56: #{net_forward.1} parent=1 // pred_region
      _
    $region57: #{net_forward.1} parent=1 // pred_fallthru
      _
    // Predicated region
    $region58: #{net_forward.1} parent=1 // pred_check
      _
    $region59: #{net_forward.1} parent=1 // pred_check_branch
      %59 = sbr.rel (0) target = $region61
    $region60: #{net_forward.1} parent=1 // pred_region
      _
    $region61: #{net_forward.1} parent=1 // pred_fallthru
      _
    // Predicated region
    $region62: #{net_forward.1} parent=1 // pred_check
      _
    $region63: #{net_forward.1} parent=1 // pred_check_branch
      %61 = sbr.rel (0) target = $region65
    $region64: #{net_forward.1} parent=1 // pred_region
      _
    $region65: #{net_forward.1} parent=1 // pred_fallthru
      _
    // Predicated region
    $region66: #{net_forward.1} parent=1 // pred_check
      _
    $region67: #{net_forward.1} parent=1 // pred_check_branch
      %63 = sbr.rel (0) target = $region69
    $region68: #{net_forward.1} parent=1 // pred_region
      _
    $region69: #{net_forward.1} parent=1 // pred_fallthru
      _
    // Predicated region
    $region70: #{net_forward.1} parent=1 // pred_check
      _
    $region71: #{net_forward.1} parent=1 // pred_check_branch
      %65 = sbr.rel (0) target = $region73
    $region72: #{net_forward.1} parent=1 // pred_region
      _
    $region73: #{net_forward.1} parent=1 // pred_fallthru
      _
    // Predicated region
    $region74: #{net_forward.1} parent=1 // pred_check
      _
    $region75: #{net_forward.1} parent=1 // pred_check_branch
      %67 = sbr.rel (0) target = $region77
    $region76: #{net_forward.1} parent=1 // pred_region
      _
    $region77: #{net_forward.1} parent=1 // pred_fallthru
      _
    // Predicated region
    $region78: #{net_forward.1} parent=1 // pred_check
      _
    $region79: #{net_forward.1} parent=1 // pred_check_branch
      %69 = sbr.rel (0) target = $region81
    $region80: #{net_forward.1} parent=1 // pred_region
      _
    $region81: #{net_forward.1} parent=1 // pred_fallthru
      _
    // Predicated region
    $region82: #{net_forward.1} parent=1 // pred_check
      _
    $region83: #{net_forward.1} parent=1 // pred_check_branch
      %71 = sbr.rel (0) target = $region85
    $region84: #{net_forward.1} parent=1 // pred_region
      _
    $region85: #{net_forward.1} parent=1 // pred_fallthru
      _
    // Predicated region
    $region86: #{net_forward.1} parent=1 // pred_check
      _
    $region87: #{net_forward.1} parent=1 // pred_check_branch
      %73 = sbr.rel (0) target = $region89
    $region88: #{net_forward.1} parent=1 // pred_region
      _
    $region89: #{net_forward.1} parent=1 // pred_fallthru
      _
    // Predicated region
    $region90: #{net_forward.1} parent=1 // pred_check
      _
    $region91: #{net_forward.1} parent=1 // pred_check_branch
      %75 = sbr.rel (0) target = $region93
    $region92: #{net_forward.1} parent=1 // pred_region
      _
    $region93: #{net_forward.1} parent=1 // pred_fallthru
      _
    // Predicated region
    $region94: #{net_forward.1} parent=1 // pred_check
      _
    $region95: #{net_forward.1} parent=1 // pred_check_branch
      %77 = sbr.rel (0) target = $region97
    $region96: #{net_forward.1} parent=1 // pred_region
      _
    $region97: #{net_forward.1} parent=1 // pred_fallthru
      _
    %v79 = vld [vmem:[%s0] sm:$0xff]
    %v80 = vld [vmem:[%s0 + $0x8] sm:$0xff]
    %v81 = vld [vmem:[%s0 + $0x10] sm:$0xff]
    %v82 = vld [vmem:[%s0 + $0x18] sm:$0xff]
    %v83 = vld [vmem:[%s0 + $0x20] sm:$0xff]
    %v84 = vld [vmem:[%s0 + $0x28] sm:$0xff]
    %v85 = vld [vmem:[%s0 + $0x30] sm:$0xff]
    %v86 = vld [vmem:[%s0 + $0x38] sm:$0xff]
    %v87 = vld [vmem:[%s0 + $0x40] sm:$0xff]
    %v88 = vld [vmem:[%s0 + $0x48] sm:$0xff]
    %v89 = vld [vmem:[%s0 + $0x50] sm:$0xff]
    %v90 = vld [vmem:[%s0 + $0x58] sm:$0xff]
    %v91 = vld [vmem:[%s0 + $0x60] sm:$0xff]
    %v92 = vld [vmem:[%s0 + $0x68] sm:$0xff]
    %v93 = vld [vmem:[%s0 + $0x70] sm:$0xff]
    %v94 = vld [vmem:[%s0 + $0x78] sm:$0xff]
    %v95 = vld [vmem:[%s0 + $0x80] sm:$0xff]
    %v96 = vld [vmem:[%s0 + $0x88] sm:$0xff]
    %v97 = vld [vmem:[%s0 + $0x90] sm:$0xff]
    %v98 = vld [vmem:[%s0 + $0x98] sm:$0xff]
    %v99 = vld [vmem:[%s0 + $0xa0] sm:$0xff]
    %v100 = vld [vmem:[%s0 + $0xa8] sm:$0xff]
    %v101 = vld [vmem:[%s0 + $0xb0] sm:$0xff]
    %v102 = vld [vmem:[%s0 + $0xb8] sm:$0xff]
    %v103 = vld [vmem:[%s1] sm:$0xff]
    %v104 = vld [vmem:[%s1 + $0x8] sm:$0xff]
    %v105 = vld [vmem:[%s1 + $0x10] sm:$0xff]
    %v106 = vld [vmem:[%s1 + $0x18] sm:$0xff]
    %v107 = vld [vmem:[%s1 + $0x20] sm:$0xff]
    %v108 = vld [vmem:[%s1 + $0x28] sm:$0xff]
    %v109 = vld [vmem:[%s1 + $0x30] sm:$0xff]
    %v110 = vld [vmem:[%s1 + $0x38] sm:$0xff]
    %v111 = vld [vmem:[%s1 + $0x40] sm:$0xff]
    %v112 = vld [vmem:[%s1 + $0x48] sm:$0xff]
    %v113 = vld [vmem:[%s1 + $0x50] sm:$0xff]
    %v114 = vld [vmem:[%s1 + $0x58] sm:$0xff]
    %v115 = vrot.slane %v79, 7
    %v116 = vrot.slane %v80, 7
    %v117 = vrot.slane %v81, 7
    %v118 = vrot.slane %v82, 7
    %v119 = vrot.slane %v83, 7
    %v120 = vrot.slane %v84, 7
    %v121 = vrot.slane %v85, 7
    %v122 = vrot.slane %v86, 7
    %v123 = vrot.slane %v87, 7
    %v124 = vrot.slane %v88, 7
    %v125 = vrot.slane %v89, 7
    %v126 = vrot.slane %v90, 7
    %v127 = vrot.slane %v91, 7
    %v128 = vrot.slane %v92, 7
    %v129 = vrot.slane %v93, 7
    %v130 = vrot.slane %v94, 7
    %v131 = vrot.slane %v95, 7
    %v132 = vrot.slane %v96, 7
    %v133 = vrot.slane %v97, 7
    %v134 = vrot.slane %v98, 7
    %v135 = vrot.slane %v99, 7
    %v136 = vrot.slane %v100, 7
    %v137 = vrot.slane %v101, 7
    %v138 = vrot.slane %v102, 7
    %v139 = vlaneseq
    %v140 = vshrl.u32 %v139, 7
    %vm141 = vcmp.lt.s32.totalorder %v140, 1
    %v142 = vsel %vm141, %v135, %v137
    %v143 = vsel %vm141, %v136, %v138
    %v144 = vsel %vm141, %v133, %v135
    %v145 = vsel %vm141, %v134, %v136
    %v146 = vsel %vm141, %v131, %v133
    %v147 = vsel %vm141, %v132, %v134
    %v148 = vsel %vm141, %v129, %v131
    %v149 = vsel %vm141, %v130, %v132
    %v150 = vsel %vm141, %v127, %v129
    %v151 = vsel %vm141, %v128, %v130
    %v152 = vsel %vm141, %v125, %v127
    %v153 = vsel %vm141, %v126, %v128
    %v154 = vsel %vm141, %v123, %v125
    %v155 = vsel %vm141, %v124, %v126
    %v156 = vsel %vm141, %v121, %v123
    %v157 = vsel %vm141, %v122, %v124
    %v158 = vsel %vm141, %v119, %v121
    %v159 = vsel %vm141, %v120, %v122
    %v160 = vsel %vm141, %v117, %v119
    %v161 = vsel %vm141, %v118, %v120
    %v162 = vsel %vm141, %v115, %v117
    %v163 = vsel %vm141, %v116, %v118
    %v164 = vsel %vm141, %v137, %v115
    %v165 = vsel %vm141, %v138, %v116
    %167 = vset.pattern.permute.xlu0 0
    %168 = vperm.xlu0 %167, %v103
    %v169 = vpop.permute.xlu0 %168
    %172 = vset.pattern.permute.xlu0 0
    %173 = vperm.xlu0 %172, %v104
    %v174 = vpop.permute.xlu0 %173
    %177 = vset.pattern.permute.xlu0 0
    %178 = vperm.xlu0 %177, %v105
    %v179 = vpop.permute.xlu0 %178
    %182 = vset.pattern.permute.xlu0 0
    %183 = vperm.xlu0 %182, %v106
    %v184 = vpop.permute.xlu0 %183
    %187 = vset.pattern.permute.xlu0 0
    %188 = vperm.xlu0 %187, %v107
    %v189 = vpop.permute.xlu0 %188
    %192 = vset.pattern.permute.xlu0 0
    %193 = vperm.xlu0 %192, %v108
    %v194 = vpop.permute.xlu0 %193
    %197 = vset.pattern.permute.xlu0 0
    %198 = vperm.xlu0 %197, %v109
    %v199 = vpop.permute.xlu0 %198
    %202 = vset.pattern.permute.xlu0 0
    %203 = vperm.xlu0 %202, %v110
    %v204 = vpop.permute.xlu0 %203
    %207 = vset.pattern.permute.xlu0 0
    %208 = vperm.xlu0 %207, %v111
    %v209 = vpop.permute.xlu0 %208
    %212 = vset.pattern.permute.xlu0 0
    %213 = vperm.xlu0 %212, %v112
    %v214 = vpop.permute.xlu0 %213
    %217 = vset.pattern.permute.xlu0 0
    %218 = vperm.xlu0 %217, %v113
    %v219 = vpop.permute.xlu0 %218
    %222 = vset.pattern.permute.xlu0 0
    %223 = vperm.xlu0 %222, %v114
    %v224 = vpop.permute.xlu0 %223
    %v226 = vmul.f32 %v164, %v169
    %v227 = vmul.f32 %v165, %v169
    %v228 = vmul.f32 %v162, %v174
    %v229 = vmul.f32 %v163, %v174
    %v230 = vmul.f32 %v160, %v179
    %v231 = vmul.f32 %v161, %v179
    %v232 = vmul.f32 %v158, %v184
    %v233 = vmul.f32 %v159, %v184
    %v234 = vmul.f32 %v156, %v189
    %v235 = vmul.f32 %v157, %v189
    %v236 = vmul.f32 %v154, %v194
    %v237 = vmul.f32 %v155, %v194
    %v238 = vmul.f32 %v152, %v199
    %v239 = vmul.f32 %v153, %v199
    %v240 = vmul.f32 %v150, %v204
    %v241 = vmul.f32 %v151, %v204
    %v242 = vmul.f32 %v148, %v209
    %v243 = vmul.f32 %v149, %v209
    %v244 = vmul.f32 %v146, %v214
    %v245 = vmul.f32 %v147, %v214
    %v246 = vmul.f32 %v144, %v219
    %v247 = vmul.f32 %v145, %v219
    %v248 = vmul.f32 %v142, %v224
    %v249 = vmul.f32 %v143, %v224
    %v250 = vrot.slane %v79, 1
    %v251 = vrot.slane %v80, 1
    %v252 = vrot.slane %v81, 1
    %v253 = vrot.slane %v82, 1
    %v254 = vrot.slane %v83, 1
    %v255 = vrot.slane %v84, 1
    %v256 = vrot.slane %v85, 1
    %v257 = vrot.slane %v86, 1
    %v258 = vrot.slane %v87, 1
    %v259 = vrot.slane %v88, 1
    %v260 = vrot.slane %v89, 1
    %v261 = vrot.slane %v90, 1
    %v262 = vrot.slane %v91, 1
    %v263 = vrot.slane %v92, 1
    %v264 = vrot.slane %v93, 1
    %v265 = vrot.slane %v94, 1
    %v266 = vrot.slane %v95, 1
    %v267 = vrot.slane %v96, 1
    %v268 = vrot.slane %v97, 1
    %v269 = vrot.slane %v98, 1
    %v270 = vrot.slane %v99, 1
    %v271 = vrot.slane %v100, 1
    %v272 = vrot.slane %v101, 1
    %v273 = vrot.slane %v102, 1
    %vm274 = vcmp.lt.s32.totalorder %v140, 7
    %v275 = vsel %vm274, %v270, %v272
    %v276 = vsel %vm274, %v271, %v273
    %v277 = vsel %vm274, %v268, %v270
    %v278 = vsel %vm274, %v269, %v271
    %v279 = vsel %vm274, %v266, %v268
    %v280 = vsel %vm274, %v267, %v269
    %v281 = vsel %vm274, %v264, %v266
    %v282 = vsel %vm274, %v265, %v267
    %v283 = vsel %vm274, %v262, %v264
    %v284 = vsel %vm274, %v263, %v265
    %v285 = vsel %vm274, %v260, %v262
    %v286 = vsel %vm274, %v261, %v263
    %v287 = vsel %vm274, %v258, %v260
    %v288 = vsel %vm274, %v259, %v261
    %v289 = vsel %vm274, %v256, %v258
    %v290 = vsel %vm274, %v257, %v259
    %v291 = vsel %vm274, %v254, %v256
    %v292 = vsel %vm274, %v255, %v257
    %v293 = vsel %vm274, %v252, %v254
    %v294 = vsel %vm274, %v253, %v255
    %v295 = vsel %vm274, %v250, %v252
    %v296 = vsel %vm274, %v251, %v253
    %v297 = vsel %vm274, %v272, %v250
    %v298 = vsel %vm274, %v273, %v251
    %299 = vset.pattern.permute.xlu0 1
    %300 = vperm.xlu0 %299, %v103
    %v301 = vpop.permute.xlu0 %300
    %303 = vset.pattern.permute.xlu0 1
    %304 = vperm.xlu0 %303, %v104
    %v305 = vpop.permute.xlu0 %304
    %307 = vset.pattern.permute.xlu0 1
    %308 = vperm.xlu0 %307, %v105
    %v309 = vpop.permute.xlu0 %308
    %311 = vset.pattern.permute.xlu0 1
    %312 = vperm.xlu0 %311, %v106
    %v313 = vpop.permute.xlu0 %312
    %315 = vset.pattern.permute.xlu0 1
    %316 = vperm.xlu0 %315, %v107
    %v317 = vpop.permute.xlu0 %316
    %319 = vset.pattern.permute.xlu0 1
    %320 = vperm.xlu0 %319, %v108
    %v321 = vpop.permute.xlu0 %320
    %323 = vset.pattern.permute.xlu0 1
    %324 = vperm.xlu0 %323, %v109
    %v325 = vpop.permute.xlu0 %324
    %327 = vset.pattern.permute.xlu0 1
    %328 = vperm.xlu0 %327, %v110
    %v329 = vpop.permute.xlu0 %328
    %331 = vset.pattern.permute.xlu0 1
    %332 = vperm.xlu0 %331, %v111
    %v333 = vpop.permute.xlu0 %332
    %335 = vset.pattern.permute.xlu0 1
    %336 = vperm.xlu0 %335, %v112
    %v337 = vpop.permute.xlu0 %336
    %339 = vset.pattern.permute.xlu0 1
    %340 = vperm.xlu0 %339, %v113
    %v341 = vpop.permute.xlu0 %340
    %343 = vset.pattern.permute.xlu0 1
    %344 = vperm.xlu0 %343, %v114
    %v345 = vpop.permute.xlu0 %344
    %v347 = vmul.f32 %v295, %v301
    %v348 = vmul.f32 %v296, %v301
    %v349 = vmul.f32 %v293, %v305
    %v350 = vmul.f32 %v294, %v305
    %v351 = vmul.f32 %v291, %v309
    %v352 = vmul.f32 %v292, %v309
    %v353 = vmul.f32 %v289, %v313
    %v354 = vmul.f32 %v290, %v313
    %v355 = vmul.f32 %v287, %v317
    %v356 = vmul.f32 %v288, %v317
    %v357 = vmul.f32 %v285, %v321
    %v358 = vmul.f32 %v286, %v321
    %v359 = vmul.f32 %v283, %v325
    %v360 = vmul.f32 %v284, %v325
    %v361 = vmul.f32 %v281, %v329
    %v362 = vmul.f32 %v282, %v329
    %v363 = vmul.f32 %v279, %v333
    %v364 = vmul.f32 %v280, %v333
    %v365 = vmul.f32 %v277, %v337
    %v366 = vmul.f32 %v278, %v337
    %v367 = vmul.f32 %v275, %v341
    %v368 = vmul.f32 %v276, %v341
    %v369 = vmul.f32 %v297, %v345
    %v370 = vmul.f32 %v298, %v345
    %395 = vrot.lane.b32.xlu0 %v79, 16
    %v396 = vpop.permute.xlu0 %395
    %397 = vrot.lane.b32.xlu0 %v80, 16
    %v398 = vpop.permute.xlu0 %397
    %399 = vrot.lane.b32.xlu0 %v81, 16
    %v400 = vpop.permute.xlu0 %399
    %401 = vrot.lane.b32.xlu0 %v82, 16
    %v402 = vpop.permute.xlu0 %401
    %403 = vrot.lane.b32.xlu0 %v83, 16
    %v404 = vpop.permute.xlu0 %403
    %405 = vrot.lane.b32.xlu0 %v84, 16
    %v406 = vpop.permute.xlu0 %405
    %407 = vrot.lane.b32.xlu0 %v85, 16
    %v408 = vpop.permute.xlu0 %407
    %409 = vrot.lane.b32.xlu0 %v86, 16
    %v410 = vpop.permute.xlu0 %409
    %411 = vrot.lane.b32.xlu0 %v87, 16
    %v412 = vpop.permute.xlu0 %411
    %413 = vrot.lane.b32.xlu0 %v88, 16
    %v414 = vpop.permute.xlu0 %413
    %415 = vrot.lane.b32.xlu0 %v89, 16
    %v416 = vpop.permute.xlu0 %415
    %417 = vrot.lane.b32.xlu0 %v90, 16
    %v418 = vpop.permute.xlu0 %417
    %419 = vrot.lane.b32.xlu0 %v91, 16
    %v420 = vpop.permute.xlu0 %419
    %421 = vrot.lane.b32.xlu0 %v92, 16
    %v422 = vpop.permute.xlu0 %421
    %423 = vrot.lane.b32.xlu0 %v93, 16
    %v424 = vpop.permute.xlu0 %423
    %425 = vrot.lane.b32.xlu0 %v94, 16
    %v426 = vpop.permute.xlu0 %425
    %427 = vrot.lane.b32.xlu0 %v95, 16
    %v428 = vpop.permute.xlu0 %427
    %429 = vrot.lane.b32.xlu0 %v96, 16
    %v430 = vpop.permute.xlu0 %429
    %431 = vrot.lane.b32.xlu0 %v97, 16
    %v432 = vpop.permute.xlu0 %431
    %433 = vrot.lane.b32.xlu0 %v98, 16
    %v434 = vpop.permute.xlu0 %433
    %435 = vrot.lane.b32.xlu0 %v99, 16
    %v436 = vpop.permute.xlu0 %435
    %437 = vrot.lane.b32.xlu0 %v100, 16
    %v438 = vpop.permute.xlu0 %437
    %439 = vrot.lane.b32.xlu0 %v101, 16
    %v440 = vpop.permute.xlu0 %439
    %441 = vrot.lane.b32.xlu0 %v102, 16
    %v442 = vpop.permute.xlu0 %441
    %vm443 = vcmask 130048
    %v444 = vsel %vm443, %v396, %v398
    %v445 = vsel %vm443, %v400, %v402
    %v446 = vsel %vm443, %v404, %v406
    %v447 = vsel %vm443, %v408, %v410
    %v448 = vsel %vm443, %v412, %v414
    %v449 = vsel %vm443, %v416, %v418
    %v450 = vsel %vm443, %v420, %v422
    %v451 = vsel %vm443, %v424, %v426
    %v452 = vsel %vm443, %v428, %v430
    %v453 = vsel %vm443, %v432, %v434
    %v454 = vsel %vm443, %v436, %v438
    %v455 = vsel %vm443, %v440, %v442
    %504 = vrot.lane.b32.xlu0 %v347, 32
    %v505 = vpop.permute.xlu0 %504
    %506 = vrot.lane.b32.xlu0 %v348, 32
    %v507 = vpop.permute.xlu0 %506
    %508 = vrot.lane.b32.xlu0 %v349, 32
    %v509 = vpop.permute.xlu0 %508
    %510 = vrot.lane.b32.xlu0 %v350, 32
    %v511 = vpop.permute.xlu0 %510
    %512 = vrot.lane.b32.xlu0 %v351, 32
    %v513 = vpop.permute.xlu0 %512
    %514 = vrot.lane.b32.xlu0 %v352, 32
    %v515 = vpop.permute.xlu0 %514
    %516 = vrot.lane.b32.xlu0 %v353, 32
    %v517 = vpop.permute.xlu0 %516
    %518 = vrot.lane.b32.xlu0 %v354, 32
    %v519 = vpop.permute.xlu0 %518
    %520 = vrot.lane.b32.xlu0 %v355, 32
    %v521 = vpop.permute.xlu0 %520
    %522 = vrot.lane.b32.xlu0 %v356, 32
    %v523 = vpop.permute.xlu0 %522
    %524 = vrot.lane.b32.xlu0 %v357, 32
    %v525 = vpop.permute.xlu0 %524
    %526 = vrot.lane.b32.xlu0 %v358, 32
    %v527 = vpop.permute.xlu0 %526
    %528 = vrot.lane.b32.xlu0 %v359, 32
    %v529 = vpop.permute.xlu0 %528
    %530 = vrot.lane.b32.xlu0 %v360, 32
    %v531 = vpop.permute.xlu0 %530
    %532 = vrot.lane.b32.xlu0 %v361, 32
    %v533 = vpop.permute.xlu0 %532
    %534 = vrot.lane.b32.xlu0 %v362, 32
    %v535 = vpop.permute.xlu0 %534
    %536 = vrot.lane.b32.xlu0 %v363, 32
    %v537 = vpop.permute.xlu0 %536
    %538 = vrot.lane.b32.xlu0 %v364, 32
    %v539 = vpop.permute.xlu0 %538
    %540 = vrot.lane.b32.xlu0 %v365, 32
    %v541 = vpop.permute.xlu0 %540
    %542 = vrot.lane.b32.xlu0 %v366, 32
    %v543 = vpop.permute.xlu0 %542
    %544 = vrot.lane.b32.xlu0 %v367, 32
    %v545 = vpop.permute.xlu0 %544
    %546 = vrot.lane.b32.xlu0 %v368, 32
    %v547 = vpop.permute.xlu0 %546
    %548 = vrot.lane.b32.xlu0 %v369, 32
    %v549 = vpop.permute.xlu0 %548
    %550 = vrot.lane.b32.xlu0 %v370, 32
    %v551 = vpop.permute.xlu0 %550
    %vm552 = vcmask 261120
    %v553 = vsel %vm552, %v505, %v507
    %v554 = vsel %vm552, %v509, %v511
    %v555 = vsel %vm552, %v513, %v515
    %v556 = vsel %vm552, %v517, %v519
    %v557 = vsel %vm552, %v521, %v523
    %v558 = vsel %vm552, %v525, %v527
    %v559 = vsel %vm552, %v529, %v531
    %v560 = vsel %vm552, %v533, %v535
    %v561 = vsel %vm552, %v537, %v539
    %v562 = vsel %vm552, %v541, %v543
    %v563 = vsel %vm552, %v545, %v547
    %v564 = vsel %vm552, %v549, %v551
    %v589 = vsel %vm443, %v227, %v396
    %v590 = vsel %vm443, %v229, %v400
    %v591 = vsel %vm443, %v231, %v404
    %v592 = vsel %vm443, %v233, %v408
    %v593 = vsel %vm443, %v235, %v412
    %v594 = vsel %vm443, %v237, %v416
    %v595 = vsel %vm443, %v239, %v420
    %v596 = vsel %vm443, %v241, %v424
    %v597 = vsel %vm443, %v243, %v428
    %v598 = vsel %vm443, %v245, %v432
    %v599 = vsel %vm443, %v247, %v436
    %v600 = vsel %vm443, %v249, %v440
    %v601 = vsel %vm552, %v444, %v505
    %v602 = vsel %vm552, %v445, %v509
    %v603 = vsel %vm552, %v446, %v513
    %v604 = vsel %vm552, %v447, %v517
    %v605 = vsel %vm552, %v448, %v521
    %v606 = vsel %vm552, %v449, %v525
    %v607 = vsel %vm552, %v450, %v529
    %v608 = vsel %vm552, %v451, %v533
    %v609 = vsel %vm552, %v452, %v537
    %v610 = vsel %vm552, %v453, %v541
    %v611 = vsel %vm552, %v454, %v545
    %v612 = vsel %vm552, %v455, %v549
    %v613 = vpack.c.bf16 %v228, %v226
    %v614 = vpack.c.bf16 %v590, %v589
    %v615 = vpack.c.bf16 %v602, %v601
    %v616 = vpack.c.bf16 %v554, %v553
    %v617 = vpack.c.bf16 %v232, %v230
    %v618 = vpack.c.bf16 %v592, %v591
    %v619 = vpack.c.bf16 %v604, %v603
    %v620 = vpack.c.bf16 %v556, %v555
    %v621 = vpack.c.bf16 %v236, %v234
    %v622 = vpack.c.bf16 %v594, %v593
    %v623 = vpack.c.bf16 %v606, %v605
    %v624 = vpack.c.bf16 %v558, %v557
    %v625 = vpack.c.bf16 %v240, %v238
    %v626 = vpack.c.bf16 %v596, %v595
    %v627 = vpack.c.bf16 %v608, %v607
    %v628 = vpack.c.bf16 %v560, %v559
    %v629 = vpack.c.bf16 %v244, %v242
    %v630 = vpack.c.bf16 %v598, %v597
    %v631 = vpack.c.bf16 %v610, %v609
    %v632 = vpack.c.bf16 %v562, %v561
    %v633 = vpack.c.bf16 %v248, %v246
    %v634 = vpack.c.bf16 %v600, %v599
    %v635 = vpack.c.bf16 %v612, %v611
    %v636 = vpack.c.bf16 %v564, %v563
    %v637 = vld [vmem:[%s2] sm:$0xff]
    %v638 = vld [vmem:[%s2 + $0x8] sm:$0xff]
    %v639 = vld [vmem:[%s2 + $0x10] sm:$0xf]
    %v640 = vld [vmem:[%s2 + $0x14] sm:$0xff]
    %v641 = vld [vmem:[%s2 + $0x1c] sm:$0xff]
    %v642 = vld [vmem:[%s2 + $0x24] sm:$0xf]
    %v643 = vld [vmem:[%s2 + $0x28] sm:$0xff]
    %v644 = vld [vmem:[%s2 + $0x30] sm:$0xff]
    %v645 = vld [vmem:[%s2 + $0x38] sm:$0xf]
    %v646 = vld [vmem:[%s2 + $0x3c] sm:$0xff]
    %v647 = vld [vmem:[%s2 + $0x44] sm:$0xff]
    %v648 = vld [vmem:[%s2 + $0x4c] sm:$0xf]
    %v649 = vld [vmem:[%s2 + $0x50] sm:$0xff]
    %v650 = vld [vmem:[%s2 + $0x58] sm:$0xff]
    %v651 = vld [vmem:[%s2 + $0x60] sm:$0xf]
    %v652 = vld [vmem:[%s2 + $0x64] sm:$0xff]
    %v653 = vld [vmem:[%s2 + $0x6c] sm:$0xff]
    %v654 = vld [vmem:[%s2 + $0x74] sm:$0xf]
    %v655 = vld [vmem:[%s2 + $0x78] sm:$0xff]
    %v656 = vld [vmem:[%s2 + $0x80] sm:$0xff]
    %v657 = vld [vmem:[%s2 + $0x88] sm:$0xf]
    %v658 = vld [vmem:[%s2 + $0x8c] sm:$0xff]
    %v659 = vld [vmem:[%s2 + $0x94] sm:$0xff]
    %v660 = vld [vmem:[%s2 + $0x9c] sm:$0xf]
    %v661 = vld [vmem:[%s2 + $0xa0] sm:$0xff]
    %v662 = vld [vmem:[%s2 + $0xa8] sm:$0xff]
    %v663 = vld [vmem:[%s2 + $0xb0] sm:$0xf]
    %v664 = vld [vmem:[%s2 + $0xb4] sm:$0xff]
    %v665 = vld [vmem:[%s2 + $0xbc] sm:$0xff]
    %v666 = vld [vmem:[%s2 + $0xc4] sm:$0xf]
    %v667 = vld [vmem:[%s2 + $0xc8] sm:$0xff]
    %v668 = vld [vmem:[%s2 + $0xd0] sm:$0xff]
    %v669 = vld [vmem:[%s2 + $0xd8] sm:$0xf]
    %v670 = vld [vmem:[%s2 + $0xdc] sm:$0xff]
    %v671 = vld [vmem:[%s2 + $0xe4] sm:$0xff]
    %v672 = vld [vmem:[%s2 + $0xec] sm:$0xf]
    %v673 = vld [vmem:[%s2 + $0xf0] sm:$0xff]
    %v674 = vld [vmem:[%s2 + $0xf8] sm:$0xff]
    %v675 = vld [vmem:[%s2 + $0x100] sm:$0xf]
    %v676 = vld [vmem:[%s2 + $0x104] sm:$0xff]
    %v677 = vld [vmem:[%s2 + $0x10c] sm:$0xff]
    %v678 = vld [vmem:[%s2 + $0x114] sm:$0xf]
    %v679 = vld [vmem:[%s2 + $0x118] sm:$0xff]
    %v680 = vld [vmem:[%s2 + $0x120] sm:$0xff]
    %v681 = vld [vmem:[%s2 + $0x128] sm:$0xf]
    %v682 = vld [vmem:[%s2 + $0x12c] sm:$0xff]
    %v683 = vld [vmem:[%s2 + $0x134] sm:$0xff]
    %v684 = vld [vmem:[%s2 + $0x13c] sm:$0xf]
    %v685 = vld [vmem:[%s2 + $0x140] sm:$0xff]
    %v686 = vld [vmem:[%s2 + $0x148] sm:$0xff]
    %v687 = vld [vmem:[%s2 + $0x150] sm:$0xf]
    %v688 = vld [vmem:[%s2 + $0x154] sm:$0xff]
    %v689 = vld [vmem:[%s2 + $0x15c] sm:$0xff]
    %v690 = vld [vmem:[%s2 + $0x164] sm:$0xf]
    %v691 = vld [vmem:[%s2 + $0x168] sm:$0xff]
    %v692 = vld [vmem:[%s2 + $0x170] sm:$0xff]
    %v693 = vld [vmem:[%s2 + $0x178] sm:$0xf]
    %v694 = vld [vmem:[%s2 + $0x17c] sm:$0xff]
    %v695 = vld [vmem:[%s2 + $0x184] sm:$0xff]
    %v696 = vld [vmem:[%s2 + $0x18c] sm:$0xf]
    %v697 = vld [vmem:[%s2 + $0x190] sm:$0xff]
    %v698 = vld [vmem:[%s2 + $0x198] sm:$0xff]
    %v699 = vld [vmem:[%s2 + $0x1a0] sm:$0xf]
    %v700 = vld [vmem:[%s2 + $0x1a4] sm:$0xff]
    %v701 = vld [vmem:[%s2 + $0x1ac] sm:$0xff]
    %v702 = vld [vmem:[%s2 + $0x1b4] sm:$0xf]
    %v703 = vld [vmem:[%s2 + $0x1b8] sm:$0xff]
    %v704 = vld [vmem:[%s2 + $0x1c0] sm:$0xff]
    %v705 = vld [vmem:[%s2 + $0x1c8] sm:$0xf]
    %v706 = vld [vmem:[%s2 + $0x1cc] sm:$0xff]
    %v707 = vld [vmem:[%s2 + $0x1d4] sm:$0xff]
    %v708 = vld [vmem:[%s2 + $0x1dc] sm:$0xf]
    %v709 = vld [vmem:[%s2 + $0x1e0] sm:$0xff]
    %v710 = vld [vmem:[%s2 + $0x1e8] sm:$0xff]
    %v711 = vld [vmem:[%s2 + $0x1f0] sm:$0xf]
    %v712 = vld [vmem:[%s2 + $0x1f4] sm:$0xff]
    %v713 = vld [vmem:[%s2 + $0x1fc] sm:$0xff]
    %v714 = vld [vmem:[%s2 + $0x204] sm:$0xf]
    %v715 = vld [vmem:[%s2 + $0x208] sm:$0xff]
    %v716 = vld [vmem:[%s2 + $0x210] sm:$0xff]
    %v717 = vld [vmem:[%s2 + $0x218] sm:$0xf]
    %v718 = vld [vmem:[%s2 + $0x21c] sm:$0xff]
    %v719 = vld [vmem:[%s2 + $0x224] sm:$0xff]
    %v720 = vld [vmem:[%s2 + $0x22c] sm:$0xf]
    %v721 = vld [vmem:[%s2 + $0x230] sm:$0xff]
    %v722 = vld [vmem:[%s2 + $0x238] sm:$0xff]
    %v723 = vld [vmem:[%s2 + $0x240] sm:$0xf]
    %v724 = vld [vmem:[%s2 + $0x244] sm:$0xff]
    %v725 = vld [vmem:[%s2 + $0x24c] sm:$0xff]
    %v726 = vld [vmem:[%s2 + $0x254] sm:$0xf]
    %v727 = vld [vmem:[%s2 + $0x258] sm:$0xff]
    %v728 = vld [vmem:[%s2 + $0x260] sm:$0xff]
    %v729 = vld [vmem:[%s2 + $0x268] sm:$0xf]
    %v730 = vld [vmem:[%s2 + $0x26c] sm:$0xff]
    %v731 = vld [vmem:[%s2 + $0x274] sm:$0xff]
    %v732 = vld [vmem:[%s2 + $0x27c] sm:$0xf]
    %v733 = vld [vmem:[%s2 + $0x280] sm:$0xff]
    %v734 = vld [vmem:[%s2 + $0x288] sm:$0xff]
    %v735 = vld [vmem:[%s2 + $0x290] sm:$0xf]
    %v736 = vld [vmem:[%s2 + $0x294] sm:$0xff]
    %v737 = vld [vmem:[%s2 + $0x29c] sm:$0xff]
    %v738 = vld [vmem:[%s2 + $0x2a4] sm:$0xf]
    %v739 = vld [vmem:[%s2 + $0x2a8] sm:$0xff]
    %v740 = vld [vmem:[%s2 + $0x2b0] sm:$0xff]
    %v741 = vld [vmem:[%s2 + $0x2b8] sm:$0xf]
    %v742 = vld [vmem:[%s2 + $0x2bc] sm:$0xff]
    %v743 = vld [vmem:[%s2 + $0x2c4] sm:$0xff]
    %v744 = vld [vmem:[%s2 + $0x2cc] sm:$0xf]
    %v745 = vld [vmem:[%s2 + $0x2d0] sm:$0xff]
    %v746 = vld [vmem:[%s2 + $0x2d8] sm:$0xff]
    %v747 = vld [vmem:[%s2 + $0x2e0] sm:$0xf]
    %v748 = vld [vmem:[%s2 + $0x2e4] sm:$0xff]
    %v749 = vld [vmem:[%s2 + $0x2ec] sm:$0xff]
    %v750 = vld [vmem:[%s2 + $0x2f4] sm:$0xf]
    %v751 = vld [vmem:[%s2 + $0x2f8] sm:$0xff]
    %v752 = vld [vmem:[%s2 + $0x300] sm:$0xff]
    %v753 = vld [vmem:[%s2 + $0x308] sm:$0xf]
    %v754 = vld [vmem:[%s2 + $0x30c] sm:$0xff]
    %v755 = vld [vmem:[%s2 + $0x314] sm:$0xff]
    %v756 = vld [vmem:[%s2 + $0x31c] sm:$0xf]
    %v757 = vld [vmem:[%s2 + $0x320] sm:$0xff]
    %v758 = vld [vmem:[%s2 + $0x328] sm:$0xff]
    %v759 = vld [vmem:[%s2 + $0x330] sm:$0xf]
    %v760 = vld [vmem:[%s2 + $0x334] sm:$0xff]
    %v761 = vld [vmem:[%s2 + $0x33c] sm:$0xff]
    %v762 = vld [vmem:[%s2 + $0x344] sm:$0xf]
    %v763 = vld [vmem:[%s2 + $0x348] sm:$0xff]
    %v764 = vld [vmem:[%s2 + $0x350] sm:$0xff]
    %v765 = vld [vmem:[%s2 + $0x358] sm:$0xf]
    %v766 = vld [vmem:[%s2 + $0x35c] sm:$0xff]
    %v767 = vld [vmem:[%s2 + $0x364] sm:$0xff]
    %v768 = vld [vmem:[%s2 + $0x36c] sm:$0xf]
    %v769 = vld [vmem:[%s2 + $0x370] sm:$0xff]
    %v770 = vld [vmem:[%s2 + $0x378] sm:$0xff]
    %v771 = vld [vmem:[%s2 + $0x380] sm:$0xf]
    %v772 = vld [vmem:[%s2 + $0x384] sm:$0xff]
    %v773 = vld [vmem:[%s2 + $0x38c] sm:$0xff]
    %v774 = vld [vmem:[%s2 + $0x394] sm:$0xf]
    %v775 = vld [vmem:[%s2 + $0x398] sm:$0xff]
    %v776 = vld [vmem:[%s2 + $0x3a0] sm:$0xff]
    %v777 = vld [vmem:[%s2 + $0x3a8] sm:$0xf]
    %v778 = vld [vmem:[%s2 + $0x3ac] sm:$0xff]
    %v779 = vld [vmem:[%s2 + $0x3b4] sm:$0xff]
    %v780 = vld [vmem:[%s2 + $0x3bc] sm:$0xf]
    %v781 = vld [vmem:[%s2 + $0x3c0] sm:$0xff]
    %v782 = vld [vmem:[%s2 + $0x3c8] sm:$0xff]
    %v783 = vld [vmem:[%s2 + $0x3d0] sm:$0xf]
    %v784 = vld [vmem:[%s2 + $0x3d4] sm:$0xff]
    %v785 = vld [vmem:[%s2 + $0x3dc] sm:$0xff]
    %v786 = vld [vmem:[%s2 + $0x3e4] sm:$0xf]
    %v787 = vld [vmem:[%s2 + $0x3e8] sm:$0xff]
    %v788 = vld [vmem:[%s2 + $0x3f0] sm:$0xff]
    %v789 = vld [vmem:[%s2 + $0x3f8] sm:$0xf]
    %v790 = vld [vmem:[%s2 + $0x3fc] sm:$0xff]
    %v791 = vld [vmem:[%s2 + $0x404] sm:$0xff]
    %v792 = vld [vmem:[%s2 + $0x40c] sm:$0xf]
    %v793 = vld [vmem:[%s2 + $0x410] sm:$0xff]
    %v794 = vld [vmem:[%s2 + $0x418] sm:$0xff]
    %v795 = vld [vmem:[%s2 + $0x420] sm:$0xf]
    %v796 = vld [vmem:[%s2 + $0x424] sm:$0xff]
    %v797 = vld [vmem:[%s2 + $0x42c] sm:$0xff]
    %v798 = vld [vmem:[%s2 + $0x434] sm:$0xf]
    %v961 = vunpack.c.l.b16 %v637
    %v962 = vunpack.c.h.b16 %v637
    %v963 = vunpack.c.l.b16 %v638
    %v964 = vunpack.c.h.b16 %v638
    %v965 = vunpack.c.l.b16 %v639
    %v966 = vunpack.c.l.b16 %v640
    %v967 = vunpack.c.h.b16 %v640
    %v968 = vunpack.c.l.b16 %v641
    %v969 = vunpack.c.h.b16 %v641
    %v970 = vunpack.c.l.b16 %v642
    %v971 = vunpack.c.l.b16 %v643
    %v972 = vunpack.c.h.b16 %v643
    %v973 = vunpack.c.l.b16 %v644
    %v974 = vunpack.c.h.b16 %v644
    %v975 = vunpack.c.l.b16 %v645
    %v976 = vunpack.c.l.b16 %v646
    %v977 = vunpack.c.h.b16 %v646
    %v978 = vunpack.c.l.b16 %v647
    %v979 = vunpack.c.h.b16 %v647
    %v980 = vunpack.c.l.b16 %v648
    %v981 = vunpack.c.l.b16 %v649
    %v982 = vunpack.c.h.b16 %v649
    %v983 = vunpack.c.l.b16 %v650
    %v984 = vunpack.c.h.b16 %v650
    %v985 = vunpack.c.l.b16 %v651
    %v986 = vunpack.c.l.b16 %v652
    %v987 = vunpack.c.h.b16 %v652
    %v988 = vunpack.c.l.b16 %v653
    %v989 = vunpack.c.h.b16 %v653
    %v990 = vunpack.c.l.b16 %v654
    %v991 = vunpack.c.l.b16 %v655
    %v992 = vunpack.c.h.b16 %v655
    %v993 = vunpack.c.l.b16 %v656
    %v994 = vunpack.c.h.b16 %v656
    %v995 = vunpack.c.l.b16 %v657
    %v996 = vunpack.c.l.b16 %v658
    %v997 = vunpack.c.h.b16 %v658
    %v998 = vunpack.c.l.b16 %v659
    %v999 = vunpack.c.h.b16 %v659
    %v1000 = vunpack.c.l.b16 %v660
    %v1001 = vunpack.c.l.b16 %v661
    %v1002 = vunpack.c.h.b16 %v661
    %v1003 = vunpack.c.l.b16 %v662
    %v1004 = vunpack.c.h.b16 %v662
    %v1005 = vunpack.c.l.b16 %v663
    %v1006 = vunpack.c.l.b16 %v664
    %v1007 = vunpack.c.h.b16 %v664
    %v1008 = vunpack.c.l.b16 %v665
    %v1009 = vunpack.c.h.b16 %v665
    %v1010 = vunpack.c.l.b16 %v666
    %v1011 = vunpack.c.l.b16 %v667
    %v1012 = vunpack.c.h.b16 %v667
    %v1013 = vunpack.c.l.b16 %v668
    %v1014 = vunpack.c.h.b16 %v668
    %v1015 = vunpack.c.l.b16 %v669
    %v1016 = vunpack.c.l.b16 %v670
    %v1017 = vunpack.c.h.b16 %v670
    %v1018 = vunpack.c.l.b16 %v671
    %v1019 = vunpack.c.h.b16 %v671
    %v1020 = vunpack.c.l.b16 %v672
    %v1021 = vunpack.c.l.b16 %v673
    %v1022 = vunpack.c.h.b16 %v673
    %v1023 = vunpack.c.l.b16 %v674
    %v1024 = vunpack.c.h.b16 %v674
    %v1025 = vunpack.c.l.b16 %v675
    %v1026 = vunpack.c.l.b16 %v676
    %v1027 = vunpack.c.h.b16 %v676
    %v1028 = vunpack.c.l.b16 %v677
    %v1029 = vunpack.c.h.b16 %v677
    %v1030 = vunpack.c.l.b16 %v678
    %v1031 = vunpack.c.l.b16 %v679
    %v1032 = vunpack.c.h.b16 %v679
    %v1033 = vunpack.c.l.b16 %v680
    %v1034 = vunpack.c.h.b16 %v680
    %v1035 = vunpack.c.l.b16 %v681
    %v1036 = vunpack.c.l.b16 %v682
    %v1037 = vunpack.c.h.b16 %v682
    %v1038 = vunpack.c.l.b16 %v683
    %v1039 = vunpack.c.h.b16 %v683
    %v1040 = vunpack.c.l.b16 %v684
    %v1041 = vunpack.c.l.b16 %v685
    %v1042 = vunpack.c.h.b16 %v685
    %v1043 = vunpack.c.l.b16 %v686
    %v1044 = vunpack.c.h.b16 %v686
    %v1045 = vunpack.c.l.b16 %v687
    %v1046 = vunpack.c.l.b16 %v688
    %v1047 = vunpack.c.h.b16 %v688
    %v1048 = vunpack.c.l.b16 %v689
    %v1049 = vunpack.c.h.b16 %v689
    %v1050 = vunpack.c.l.b16 %v690
    %v1051 = vunpack.c.l.b16 %v691
    %v1052 = vunpack.c.h.b16 %v691
    %v1053 = vunpack.c.l.b16 %v692
    %v1054 = vunpack.c.h.b16 %v692
    %v1055 = vunpack.c.l.b16 %v693
    %v1056 = vunpack.c.l.b16 %v694
    %v1057 = vunpack.c.h.b16 %v694
    %v1058 = vunpack.c.l.b16 %v695
    %v1059 = vunpack.c.h.b16 %v695
    %v1060 = vunpack.c.l.b16 %v696
    %v1061 = vunpack.c.l.b16 %v697
    %v1062 = vunpack.c.h.b16 %v697
    %v1063 = vunpack.c.l.b16 %v698
    %v1064 = vunpack.c.h.b16 %v698
    %v1065 = vunpack.c.l.b16 %v699
    %v1066 = vunpack.c.l.b16 %v700
    %v1067 = vunpack.c.h.b16 %v700
    %v1068 = vunpack.c.l.b16 %v701
    %v1069 = vunpack.c.h.b16 %v701
    %v1070 = vunpack.c.l.b16 %v702
    %v1071 = vunpack.c.l.b16 %v703
    %v1072 = vunpack.c.h.b16 %v703
    %v1073 = vunpack.c.l.b16 %v704
    %v1074 = vunpack.c.h.b16 %v704
    %v1075 = vunpack.c.l.b16 %v705
    %v1076 = vunpack.c.l.b16 %v706
    %v1077 = vunpack.c.h.b16 %v706
    %v1078 = vunpack.c.l.b16 %v707
    %v1079 = vunpack.c.h.b16 %v707
    %v1080 = vunpack.c.l.b16 %v708
    %v1081 = vunpack.c.l.b16 %v709
    %v1082 = vunpack.c.h.b16 %v709
    %v1083 = vunpack.c.l.b16 %v710
    %v1084 = vunpack.c.h.b16 %v710
    %v1085 = vunpack.c.l.b16 %v711
    %v1086 = vunpack.c.l.b16 %v712
    %v1087 = vunpack.c.h.b16 %v712
    %v1088 = vunpack.c.l.b16 %v713
    %v1089 = vunpack.c.h.b16 %v713
    %v1090 = vunpack.c.l.b16 %v714
    %v1091 = vunpack.c.l.b16 %v715
    %v1092 = vunpack.c.h.b16 %v715
    %v1093 = vunpack.c.l.b16 %v716
    %v1094 = vunpack.c.h.b16 %v716
    %v1095 = vunpack.c.l.b16 %v717
    %v1096 = vunpack.c.l.b16 %v718
    %v1097 = vunpack.c.h.b16 %v718
    %v1098 = vunpack.c.l.b16 %v719
    %v1099 = vunpack.c.h.b16 %v719
    %v1100 = vunpack.c.l.b16 %v720
    %v1101 = vunpack.c.l.b16 %v721
    %v1102 = vunpack.c.h.b16 %v721
    %v1103 = vunpack.c.l.b16 %v722
    %v1104 = vunpack.c.h.b16 %v722
    %v1105 = vunpack.c.l.b16 %v723
    %v1106 = vunpack.c.l.b16 %v724
    %v1107 = vunpack.c.h.b16 %v724
    %v1108 = vunpack.c.l.b16 %v725
    %v1109 = vunpack.c.h.b16 %v725
    %v1110 = vunpack.c.l.b16 %v726
    %v1111 = vunpack.c.l.b16 %v727
    %v1112 = vunpack.c.h.b16 %v727
    %v1113 = vunpack.c.l.b16 %v728
    %v1114 = vunpack.c.h.b16 %v728
    %v1115 = vunpack.c.l.b16 %v729
    %v1116 = vunpack.c.l.b16 %v730
    %v1117 = vunpack.c.h.b16 %v730
    %v1118 = vunpack.c.l.b16 %v731
    %v1119 = vunpack.c.h.b16 %v731
    %v1120 = vunpack.c.l.b16 %v732
    %v1121 = vunpack.c.l.b16 %v733
    %v1122 = vunpack.c.h.b16 %v733
    %v1123 = vunpack.c.l.b16 %v734
    %v1124 = vunpack.c.h.b16 %v734
    %v1125 = vunpack.c.l.b16 %v735
    %v1126 = vunpack.c.l.b16 %v736
    %v1127 = vunpack.c.h.b16 %v736
    %v1128 = vunpack.c.l.b16 %v737
    %v1129 = vunpack.c.h.b16 %v737
    %v1130 = vunpack.c.l.b16 %v738
    %v1131 = vunpack.c.l.b16 %v739
    %v1132 = vunpack.c.h.b16 %v739
    %v1133 = vunpack.c.l.b16 %v740
    %v1134 = vunpack.c.h.b16 %v740
    %v1135 = vunpack.c.l.b16 %v741
    %v1136 = vunpack.c.l.b16 %v742
    %v1137 = vunpack.c.h.b16 %v742
    %v1138 = vunpack.c.l.b16 %v743
    %v1139 = vunpack.c.h.b16 %v743
    %v1140 = vunpack.c.l.b16 %v744
    %v1141 = vunpack.c.l.b16 %v745
    %v1142 = vunpack.c.h.b16 %v745
    %v1143 = vunpack.c.l.b16 %v746
    %v1144 = vunpack.c.h.b16 %v746
    %v1145 = vunpack.c.l.b16 %v747
    %v1146 = vunpack.c.l.b16 %v748
    %v1147 = vunpack.c.h.b16 %v748
    %v1148 = vunpack.c.l.b16 %v749
    %v1149 = vunpack.c.h.b16 %v749
    %v1150 = vunpack.c.l.b16 %v750
    %v1151 = vunpack.c.l.b16 %v751
    %v1152 = vunpack.c.h.b16 %v751
    %v1153 = vunpack.c.l.b16 %v752
    %v1154 = vunpack.c.h.b16 %v752
    %v1155 = vunpack.c.l.b16 %v753
    %v1156 = vunpack.c.l.b16 %v754
    %v1157 = vunpack.c.h.b16 %v754
    %v1158 = vunpack.c.l.b16 %v755
    %v1159 = vunpack.c.h.b16 %v755
    %v1160 = vunpack.c.l.b16 %v756
    %v1161 = vunpack.c.l.b16 %v757
    %v1162 = vunpack.c.h.b16 %v757
    %v1163 = vunpack.c.l.b16 %v758
    %v1164 = vunpack.c.h.b16 %v758
    %v1165 = vunpack.c.l.b16 %v759
    %v1166 = vunpack.c.l.b16 %v760
    %v1167 = vunpack.c.h.b16 %v760
    %v1168 = vunpack.c.l.b16 %v761
    %v1169 = vunpack.c.h.b16 %v761
    %v1170 = vunpack.c.l.b16 %v762
    %v1171 = vunpack.c.l.b16 %v763
    %v1172 = vunpack.c.h.b16 %v763
    %v1173 = vunpack.c.l.b16 %v764
    %v1174 = vunpack.c.h.b16 %v764
    %v1175 = vunpack.c.l.b16 %v765
    %v1176 = vunpack.c.l.b16 %v766
    %v1177 = vunpack.c.h.b16 %v766
    %v1178 = vunpack.c.l.b16 %v767
    %v1179 = vunpack.c.h.b16 %v767
    %v1180 = vunpack.c.l.b16 %v768
    %v1181 = vunpack.c.l.b16 %v769
    %v1182 = vunpack.c.h.b16 %v769
    %v1183 = vunpack.c.l.b16 %v770
    %v1184 = vunpack.c.h.b16 %v770
    %v1185 = vunpack.c.l.b16 %v771
    %v1186 = vunpack.c.l.b16 %v772
    %v1187 = vunpack.c.h.b16 %v772
    %v1188 = vunpack.c.l.b16 %v773
    %v1189 = vunpack.c.h.b16 %v773
    %v1190 = vunpack.c.l.b16 %v774
    %v1191 = vunpack.c.l.b16 %v775
    %v1192 = vunpack.c.h.b16 %v775
    %v1193 = vunpack.c.l.b16 %v776
    %v1194 = vunpack.c.h.b16 %v776
    %v1195 = vunpack.c.l.b16 %v777
    %v1196 = vunpack.c.l.b16 %v778
    %v1197 = vunpack.c.h.b16 %v778
    %v1198 = vunpack.c.l.b16 %v779
    %v1199 = vunpack.c.h.b16 %v779
    %v1200 = vunpack.c.l.b16 %v780
    %v1201 = vunpack.c.l.b16 %v781
    %v1202 = vunpack.c.h.b16 %v781
    %v1203 = vunpack.c.l.b16 %v782
    %v1204 = vunpack.c.h.b16 %v782
    %v1205 = vunpack.c.l.b16 %v783
    %v1206 = vunpack.c.l.b16 %v784
    %v1207 = vunpack.c.h.b16 %v784
    %v1208 = vunpack.c.l.b16 %v785
    %v1209 = vunpack.c.h.b16 %v785
    %v1210 = vunpack.c.l.b16 %v786
    %v1211 = vunpack.c.l.b16 %v787
    %v1212 = vunpack.c.h.b16 %v787
    %v1213 = vunpack.c.l.b16 %v788
    %v1214 = vunpack.c.h.b16 %v788
    %v1215 = vunpack.c.l.b16 %v789
    %v1216 = vunpack.c.l.b16 %v790
    %v1217 = vunpack.c.h.b16 %v790
    %v1218 = vunpack.c.l.b16 %v791
    %v1219 = vunpack.c.h.b16 %v791
    %v1220 = vunpack.c.l.b16 %v792
    %v1221 = vunpack.c.l.b16 %v793
    %v1222 = vunpack.c.h.b16 %v793
    %v1223 = vunpack.c.l.b16 %v794
    %v1224 = vunpack.c.h.b16 %v794
    %v1225 = vunpack.c.l.b16 %v795
    %v1226 = vunpack.c.l.b16 %v796
    %v1227 = vunpack.c.h.b16 %v796
    %v1228 = vunpack.c.l.b16 %v797
    %v1229 = vunpack.c.h.b16 %v797
    %v1230 = vunpack.c.l.b16 %v798
    %v1231 = vpack.c.b16 %v966, %v961
    %v1232 = vpack.c.b16 %v967, %v962
    %v1233 = vpack.c.b16 %v968, %v963
    %v1234 = vpack.c.b16 %v969, %v964
    %v1235 = vpack.c.b16 %v970, %v965
    %v1236 = vpack.c.b16 %v976, %v971
    %v1237 = vpack.c.b16 %v977, %v972
    %v1238 = vpack.c.b16 %v978, %v973
    %v1239 = vpack.c.b16 %v979, %v974
    %v1240 = vpack.c.b16 %v980, %v975
    %v1241 = vpack.c.b16 %v986, %v981
    %v1242 = vpack.c.b16 %v987, %v982
    %v1243 = vpack.c.b16 %v988, %v983
    %v1244 = vpack.c.b16 %v989, %v984
    %v1245 = vpack.c.b16 %v990, %v985
    %v1246 = vpack.c.b16 %v996, %v991
    %v1247 = vpack.c.b16 %v997, %v992
    %v1248 = vpack.c.b16 %v998, %v993
    %v1249 = vpack.c.b16 %v999, %v994
    %v1250 = vpack.c.b16 %v1000, %v995
    %v1251 = vpack.c.b16 %v1006, %v1001
    %v1252 = vpack.c.b16 %v1007, %v1002
    %v1253 = vpack.c.b16 %v1008, %v1003
    %v1254 = vpack.c.b16 %v1009, %v1004
    %v1255 = vpack.c.b16 %v1010, %v1005
    %v1256 = vpack.c.b16 %v1016, %v1011
    %v1257 = vpack.c.b16 %v1017, %v1012
    %v1258 = vpack.c.b16 %v1018, %v1013
    %v1259 = vpack.c.b16 %v1019, %v1014
    %v1260 = vpack.c.b16 %v1020, %v1015
    %v1261 = vpack.c.b16 %v1026, %v1021
    %v1262 = vpack.c.b16 %v1027, %v1022
    %v1263 = vpack.c.b16 %v1028, %v1023
    %v1264 = vpack.c.b16 %v1029, %v1024
    %v1265 = vpack.c.b16 %v1030, %v1025
    %v1266 = vpack.c.b16 %v1036, %v1031
    %v1267 = vpack.c.b16 %v1037, %v1032
    %v1268 = vpack.c.b16 %v1038, %v1033
    %v1269 = vpack.c.b16 %v1039, %v1034
    %v1270 = vpack.c.b16 %v1040, %v1035
    %v1271 = vpack.c.b16 %v1046, %v1041
    %v1272 = vpack.c.b16 %v1047, %v1042
    %v1273 = vpack.c.b16 %v1048, %v1043
    %v1274 = vpack.c.b16 %v1049, %v1044
    %v1275 = vpack.c.b16 %v1050, %v1045
    %v1276 = vpack.c.b16 %v1056, %v1051
    %v1277 = vpack.c.b16 %v1057, %v1052
    %v1278 = vpack.c.b16 %v1058, %v1053
    %v1279 = vpack.c.b16 %v1059, %v1054
    %v1280 = vpack.c.b16 %v1060, %v1055
    %v1281 = vpack.c.b16 %v1066, %v1061
    %v1282 = vpack.c.b16 %v1067, %v1062
    %v1283 = vpack.c.b16 %v1068, %v1063
    %v1284 = vpack.c.b16 %v1069, %v1064
    %v1285 = vpack.c.b16 %v1070, %v1065
    %v1286 = vpack.c.b16 %v1076, %v1071
    %v1287 = vpack.c.b16 %v1077, %v1072
    %v1288 = vpack.c.b16 %v1078, %v1073
    %v1289 = vpack.c.b16 %v1079, %v1074
    %v1290 = vpack.c.b16 %v1080, %v1075
    %v1291 = vpack.c.b16 %v1086, %v1081
    %v1292 = vpack.c.b16 %v1087, %v1082
    %v1293 = vpack.c.b16 %v1088, %v1083
    %v1294 = vpack.c.b16 %v1089, %v1084
    %v1295 = vpack.c.b16 %v1090, %v1085
    %v1296 = vpack.c.b16 %v1096, %v1091
    %v1297 = vpack.c.b16 %v1097, %v1092
    %v1298 = vpack.c.b16 %v1098, %v1093
    %v1299 = vpack.c.b16 %v1099, %v1094
    %v1300 = vpack.c.b16 %v1100, %v1095
    %v1301 = vpack.c.b16 %v1106, %v1101
    %v1302 = vpack.c.b16 %v1107, %v1102
    %v1303 = vpack.c.b16 %v1108, %v1103
    %v1304 = vpack.c.b16 %v1109, %v1104
    %v1305 = vpack.c.b16 %v1110, %v1105
    %v1306 = vpack.c.b16 %v1116, %v1111
    %v1307 = vpack.c.b16 %v1117, %v1112
    %v1308 = vpack.c.b16 %v1118, %v1113
    %v1309 = vpack.c.b16 %v1119, %v1114
    %v1310 = vpack.c.b16 %v1120, %v1115
    %v1311 = vpack.c.b16 %v1126, %v1121
    %v1312 = vpack.c.b16 %v1127, %v1122
    %v1313 = vpack.c.b16 %v1128, %v1123
    %v1314 = vpack.c.b16 %v1129, %v1124
    %v1315 = vpack.c.b16 %v1130, %v1125
    %v1316 = vpack.c.b16 %v1136, %v1131
    %v1317 = vpack.c.b16 %v1137, %v1132
    %v1318 = vpack.c.b16 %v1138, %v1133
    %v1319 = vpack.c.b16 %v1139, %v1134
    %v1320 = vpack.c.b16 %v1140, %v1135
    %v1321 = vpack.c.b16 %v1146, %v1141
    %v1322 = vpack.c.b16 %v1147, %v1142
    %v1323 = vpack.c.b16 %v1148, %v1143
    %v1324 = vpack.c.b16 %v1149, %v1144
    %v1325 = vpack.c.b16 %v1150, %v1145
    %v1326 = vpack.c.b16 %v1156, %v1151
    %v1327 = vpack.c.b16 %v1157, %v1152
    %v1328 = vpack.c.b16 %v1158, %v1153
    %v1329 = vpack.c.b16 %v1159, %v1154
    %v1330 = vpack.c.b16 %v1160, %v1155
    %v1331 = vpack.c.b16 %v1166, %v1161
    %v1332 = vpack.c.b16 %v1167, %v1162
    %v1333 = vpack.c.b16 %v1168, %v1163
    %v1334 = vpack.c.b16 %v1169, %v1164
    %v1335 = vpack.c.b16 %v1170, %v1165
    %v1336 = vpack.c.b16 %v1176, %v1171
    %v1337 = vpack.c.b16 %v1177, %v1172
    %v1338 = vpack.c.b16 %v1178, %v1173
    %v1339 = vpack.c.b16 %v1179, %v1174
    %v1340 = vpack.c.b16 %v1180, %v1175
    %v1341 = vpack.c.b16 %v1186, %v1181
    %v1342 = vpack.c.b16 %v1187, %v1182
    %v1343 = vpack.c.b16 %v1188, %v1183
    %v1344 = vpack.c.b16 %v1189, %v1184
    %v1345 = vpack.c.b16 %v1190, %v1185
    %v1346 = vpack.c.b16 %v1196, %v1191
    %v1347 = vpack.c.b16 %v1197, %v1192
    %v1348 = vpack.c.b16 %v1198, %v1193
    %v1349 = vpack.c.b16 %v1199, %v1194
    %v1350 = vpack.c.b16 %v1200, %v1195
    %v1351 = vpack.c.b16 %v1206, %v1201
    %v1352 = vpack.c.b16 %v1207, %v1202
    %v1353 = vpack.c.b16 %v1208, %v1203
    %v1354 = vpack.c.b16 %v1209, %v1204
    %v1355 = vpack.c.b16 %v1210, %v1205
    %v1356 = vpack.c.b16 %v1216, %v1211
    %v1357 = vpack.c.b16 %v1217, %v1212
    %v1358 = vpack.c.b16 %v1218, %v1213
    %v1359 = vpack.c.b16 %v1219, %v1214
    %v1360 = vpack.c.b16 %v1220, %v1215
    %v1361 = vpack.c.b16 %v1226, %v1221
    %v1362 = vpack.c.b16 %v1227, %v1222
    %v1363 = vpack.c.b16 %v1228, %v1223
    %v1364 = vpack.c.b16 %v1229, %v1224
    %v1365 = vpack.c.b16 %v1230, %v1225
    %vm1501 = vcmask 392192
    %v1503 = vsel %vm1501, %v616, 0
    %v1506 = vsel %vm1501, %v620, 0
    %v1509 = vsel %vm1501, %v624, 0
    %v1512 = vsel %vm1501, %v628, 0
    %v1515 = vsel %vm1501, %v632, 0
    %v1518 = vsel %vm1501, %v636, 0
    %1520 = vmatprep.subr.bf16.mxu0 %v1232
    %1521 = vmatpush1.bf16.msra.mxu0 %v1231
    %1522 = vmatprep.subr.bf16.mxu0 %v1237
    %1523 = vmatpush1.bf16.msra.mxu0 %v1236
    %1524 = vmatprep.subr.bf16.mxu0 %v1242
    %1525 = vmatpush1.bf16.msra.mxu0 %v1241
    %1526 = vmatprep.subr.bf16.mxu0 %v1247
    %1527 = vmatpush1.bf16.msra.mxu0 %v1246
    %1528 = vmatprep.subr.bf16.mxu0 %v1252
    %1529 = vmatpush1.bf16.msra.mxu0 %v1251
    %1530 = vmatprep.subr.bf16.mxu0 %v1257
    %1531 = vmatpush1.bf16.msra.mxu0 %v1256
    %1532 = vmatprep.subr.bf16.mxu0 %v1262
    %1533 = vmatpush1.bf16.msra.mxu0 %v1261
    %1534 = vmatprep.subr.bf16.mxu0 %v1267
    %1535 = vmatpush1.bf16.msra.mxu0 %v1266
    %1536 = vmatprep.subr.bf16.mxu0 %v1272
    %1537 = vmatpush1.bf16.msra.mxu0 %v1271
    %1538 = vmatprep.subr.bf16.mxu0 %v1277
    %1539 = vmatpush1.bf16.msra.mxu0 %v1276
    %1540 = vmatprep.subr.bf16.mxu0 %v1282
    %1541 = vmatpush1.bf16.msra.mxu0 %v1281
    %1542 = vmatprep.subr.bf16.mxu0 %v1287
    %1543 = vmatpush1.bf16.msra.mxu0 %v1286
    %1544 = vmatprep.subr.bf16.mxu0 %v1292
    %1545 = vmatpush1.bf16.msra.mxu0 %v1291
    %1546 = vmatprep.subr.bf16.mxu0 %v1297
    %1547 = vmatpush1.bf16.msra.mxu0 %v1296
    %1548 = vmatprep.subr.bf16.mxu0 %v1302
    %1549 = vmatpush1.bf16.msra.mxu0 %v1301
    %1550 = vmatprep.subr.bf16.mxu0 %v1307
    %1551 = vmatpush1.bf16.msra.mxu0 %v1306
    %1552 = vmatprep.mubr.bf16.mxu0 %v614
    %1553 = vmatmul.mubr.bf16.gmra.mrb[0].mxu0 %v613
    %v1554 = vpop.f32.mrb[0].mxu0
    %v1555 = vadd.f32 0.0, %v1554
    %v1556 = vpop.f32.mrb[0].mxu0
    %v1557 = vadd.f32 0.0, %v1556
    %v1558 = vpop.f32.mrb[0].mxu0
    %v1559 = vadd.f32 0.0, %v1558
    %v1560 = vpop.f32.mrb[0].mxu0
    %v1561 = vadd.f32 0.0, %v1560
    %1562 = vmatprep.mubr.bf16.mxu0 %v618
    %1563 = vmatmul.mubr.bf16.gmra.mrb[0].mxu0 %v617
    %v1564 = vpop.f32.mrb[0].mxu0
    %v1565 = vadd.f32 0.0, %v1564
    %v1566 = vpop.f32.mrb[0].mxu0
    %v1567 = vadd.f32 0.0, %v1566
    %v1568 = vpop.f32.mrb[0].mxu0
    %v1569 = vadd.f32 0.0, %v1568
    %v1570 = vpop.f32.mrb[0].mxu0
    %v1571 = vadd.f32 0.0, %v1570
    %1572 = vmatprep.mubr.bf16.mxu0 %v622
    %1573 = vmatmul.mubr.bf16.gmra.mrb[0].mxu0 %v621
    %v1574 = vpop.f32.mrb[0].mxu0
    %v1575 = vadd.f32 0.0, %v1574
    %v1576 = vpop.f32.mrb[0].mxu0
    %v1577 = vadd.f32 0.0, %v1576
    %v1578 = vpop.f32.mrb[0].mxu0
    %v1579 = vadd.f32 0.0, %v1578
    %v1580 = vpop.f32.mrb[0].mxu0
    %v1581 = vadd.f32 0.0, %v1580
    %1582 = vmatprep.mubr.bf16.mxu0 %v626
    %1583 = vmatmul.mubr.bf16.gmra.mrb[0].mxu0 %v625
    %v1584 = vpop.f32.mrb[0].mxu0
    %v1585 = vadd.f32 0.0, %v1584
    %v1586 = vpop.f32.mrb[0].mxu0
    %v1587 = vadd.f32 0.0, %v1586
    %v1588 = vpop.f32.mrb[0].mxu0
    %v1589 = vadd.f32 0.0, %v1588
    %v1590 = vpop.f32.mrb[0].mxu0
    %v1591 = vadd.f32 0.0, %v1590
    %1592 = vmatprep.mubr.bf16.mxu0 %v630
    %1593 = vmatmul.mubr.bf16.gmra.mrb[0].mxu0 %v629
    %v1594 = vpop.f32.mrb[0].mxu0
    %v1595 = vadd.f32 0.0, %v1594
    %v1596 = vpop.f32.mrb[0].mxu0
    %v1597 = vadd.f32 0.0, %v1596
    %v1598 = vpop.f32.mrb[0].mxu0
    %v1599 = vadd.f32 0.0, %v1598
    %v1600 = vpop.f32.mrb[0].mxu0
    %v1601 = vadd.f32 0.0, %v1600
    %1602 = vmatprep.mubr.bf16.mxu0 %v634
    %1603 = vmatmul.mubr.bf16.gmra.mrb[0].mxu0 %v633
    %v1604 = vpop.f32.mrb[0].mxu0
    %v1605 = vadd.f32 0.0, %v1604
    %v1606 = vpop.f32.mrb[0].mxu0
    %v1607 = vadd.f32 0.0, %v1606
    %v1608 = vpop.f32.mrb[0].mxu0
    %v1609 = vadd.f32 0.0, %v1608
    %v1610 = vpop.f32.mrb[0].mxu0
    %v1611 = vadd.f32 0.0, %v1610
    %1612 = vdwg.mxu0
    %1613 = vmatprep.subr.bf16.mxu0 %v1312
    %1614 = vmatpush1.bf16.msra.mxu0 %v1311
    %1615 = vmatprep.subr.bf16.mxu0 %v1317
    %1616 = vmatpush1.bf16.msra.mxu0 %v1316
    %1617 = vmatprep.subr.bf16.mxu0 %v1322
    %1618 = vmatpush1.bf16.msra.mxu0 %v1321
    %1619 = vmatprep.subr.bf16.mxu0 %v1327
    %1620 = vmatpush1.bf16.msra.mxu0 %v1326
    %1621 = vmatprep.subr.bf16.mxu0 %v1332
    %1622 = vmatpush1.bf16.msra.mxu0 %v1331
    %1623 = vmatprep.subr.bf16.mxu0 %v1337
    %1624 = vmatpush1.bf16.msra.mxu0 %v1336
    %1625 = vmatprep.subr.bf16.mxu0 %v1342
    %1626 = vmatpush1.bf16.msra.mxu0 %v1341
    %1627 = vmatprep.subr.bf16.mxu0 %v1347
    %1628 = vmatpush1.bf16.msra.mxu0 %v1346
    %1629 = vmatprep.subr.bf16.mxu0 %v1352
    %1630 = vmatpush1.bf16.msra.mxu0 %v1351
    %1631 = vmatprep.subr.bf16.mxu0 %v1357
    %1632 = vmatpush1.bf16.msra.mxu0 %v1356
    %1633 = vmatprep.subr.bf16.mxu0 %v1362
    %1634 = vmatpush1.bf16.msra.mxu0 %v1361
    %1635 = vmatprep.subr.bf16.mxu0 0
    %1636 = vmatpush1.bf16.msra.mxu0 0
    %1637 = vmatprep.subr.bf16.mxu0 0
    %1638 = vmatpush1.bf16.msra.mxu0 0
    %1639 = vmatprep.subr.bf16.mxu0 0
    %1640 = vmatpush1.bf16.msra.mxu0 0
    %1641 = vmatprep.subr.bf16.mxu0 0
    %1642 = vmatpush1.bf16.msra.mxu0 0
    %1643 = vmatprep.subr.bf16.mxu0 0
    %1644 = vmatpush1.bf16.msra.mxu0 0
    %1645 = vmatprep.mubr.bf16.mxu0 %v1503
    %1646 = vmatmul.mubr.bf16.gmra.mrb[0].mxu0 %v615
    %v1647 = vpop.f32.mrb[0].mxu0
    %v1648 = vadd.f32 %v1555, %v1647
    %v1649 = vpop.f32.mrb[0].mxu0
    %v1650 = vadd.f32 %v1557, %v1649
    %v1651 = vpop.f32.mrb[0].mxu0
    %v1652 = vadd.f32 %v1559, %v1651
    %v1653 = vpop.f32.mrb[0].mxu0
    %v1654 = vadd.f32 %v1561, %v1653
    %1655 = vmatprep.mubr.bf16.mxu0 %v1506
    %1656 = vmatmul.mubr.bf16.gmra.mrb[0].mxu0 %v619
    %v1657 = vpop.f32.mrb[0].mxu0
    %v1658 = vadd.f32 %v1565, %v1657
    %v1659 = vpop.f32.mrb[0].mxu0
    %v1660 = vadd.f32 %v1567, %v1659
    %v1661 = vpop.f32.mrb[0].mxu0
    %v1662 = vadd.f32 %v1569, %v1661
    %v1663 = vpop.f32.mrb[0].mxu0
    %v1664 = vadd.f32 %v1571, %v1663
    %1665 = vmatprep.mubr.bf16.mxu0 %v1509
    %1666 = vmatmul.mubr.bf16.gmra.mrb[0].mxu0 %v623
    %v1667 = vpop.f32.mrb[0].mxu0
    %v1668 = vadd.f32 %v1575, %v1667
    %v1669 = vpop.f32.mrb[0].mxu0
    %v1670 = vadd.f32 %v1577, %v1669
    %v1671 = vpop.f32.mrb[0].mxu0
    %v1672 = vadd.f32 %v1579, %v1671
    %v1673 = vpop.f32.mrb[0].mxu0
    %v1674 = vadd.f32 %v1581, %v1673
    %1675 = vmatprep.mubr.bf16.mxu0 %v1512
    %1676 = vmatmul.mubr.bf16.gmra.mrb[0].mxu0 %v627
    %v1677 = vpop.f32.mrb[0].mxu0
    %v1678 = vadd.f32 %v1585, %v1677
    %v1679 = vpop.f32.mrb[0].mxu0
    %v1680 = vadd.f32 %v1587, %v1679
    %v1681 = vpop.f32.mrb[0].mxu0
    %v1682 = vadd.f32 %v1589, %v1681
    %v1683 = vpop.f32.mrb[0].mxu0
    %v1684 = vadd.f32 %v1591, %v1683
    %1685 = vmatprep.mubr.bf16.mxu0 %v1515
    %1686 = vmatmul.mubr.bf16.gmra.mrb[0].mxu0 %v631
    %v1687 = vpop.f32.mrb[0].mxu0
    %v1688 = vadd.f32 %v1595, %v1687
    %v1689 = vpop.f32.mrb[0].mxu0
    %v1690 = vadd.f32 %v1597, %v1689
    %v1691 = vpop.f32.mrb[0].mxu0
    %v1692 = vadd.f32 %v1599, %v1691
    %v1693 = vpop.f32.mrb[0].mxu0
    %v1694 = vadd.f32 %v1601, %v1693
    %1695 = vmatprep.mubr.bf16.mxu0 %v1518
    %1696 = vmatmul.mubr.bf16.gmra.mrb[0].mxu0 %v635
    %v1697 = vpop.f32.mrb[0].mxu0
    %v1698 = vadd.f32 %v1605, %v1697
    %v1699 = vpop.f32.mrb[0].mxu0
    %v1700 = vadd.f32 %v1607, %v1699
    %v1701 = vpop.f32.mrb[0].mxu0
    %v1702 = vadd.f32 %v1609, %v1701
    %v1703 = vpop.f32.mrb[0].mxu0
    %v1704 = vadd.f32 %v1611, %v1703
    %1705 = vdwg.mxu0
    %1706 = vmatprep.subr.bf16.mxu0 %v1234
    %1707 = vmatpush1.bf16.msra.mxu0 %v1233
    %1708 = vmatprep.subr.bf16.mxu0 %v1239
    %1709 = vmatpush1.bf16.msra.mxu0 %v1238
    %1710 = vmatprep.subr.bf16.mxu0 %v1244
    %1711 = vmatpush1.bf16.msra.mxu0 %v1243
    %1712 = vmatprep.subr.bf16.mxu0 %v1249
    %1713 = vmatpush1.bf16.msra.mxu0 %v1248
    %1714 = vmatprep.subr.bf16.mxu0 %v1254
    %1715 = vmatpush1.bf16.msra.mxu0 %v1253
    %1716 = vmatprep.subr.bf16.mxu0 %v1259
    %1717 = vmatpush1.bf16.msra.mxu0 %v1258
    %1718 = vmatprep.subr.bf16.mxu0 %v1264
    %1719 = vmatpush1.bf16.msra.mxu0 %v1263
    %1720 = vmatprep.subr.bf16.mxu0 %v1269
    %1721 = vmatpush1.bf16.msra.mxu0 %v1268
    %1722 = vmatprep.subr.bf16.mxu0 %v1274
    %1723 = vmatpush1.bf16.msra.mxu0 %v1273
    %1724 = vmatprep.subr.bf16.mxu0 %v1279
    %1725 = vmatpush1.bf16.msra.mxu0 %v1278
    %1726 = vmatprep.subr.bf16.mxu0 %v1284
    %1727 = vmatpush1.bf16.msra.mxu0 %v1283
    %1728 = vmatprep.subr.bf16.mxu0 %v1289
    %1729 = vmatpush1.bf16.msra.mxu0 %v1288
    %1730 = vmatprep.subr.bf16.mxu0 %v1294
    %1731 = vmatpush1.bf16.msra.mxu0 %v1293
    %1732 = vmatprep.subr.bf16.mxu0 %v1299
    %1733 = vmatpush1.bf16.msra.mxu0 %v1298
    %1734 = vmatprep.subr.bf16.mxu0 %v1304
    %1735 = vmatpush1.bf16.msra.mxu0 %v1303
    %1736 = vmatprep.subr.bf16.mxu0 %v1309
    %1737 = vmatpush1.bf16.msra.mxu0 %v1308
    %1738 = vmatprep.mubr.bf16.mxu0 %v614
    %1739 = vmatmul.mubr.bf16.gmra.mrb[0].mxu0 %v613
    %v1740 = vpop.f32.mrb[0].mxu0
    %v1741 = vadd.f32 0.0, %v1740
    %v1742 = vpop.f32.mrb[0].mxu0
    %v1743 = vadd.f32 0.0, %v1742
    %v1744 = vpop.f32.mrb[0].mxu0
    %v1745 = vadd.f32 0.0, %v1744
    %v1746 = vpop.f32.mrb[0].mxu0
    %v1747 = vadd.f32 0.0, %v1746
    %1748 = vmatprep.mubr.bf16.mxu0 %v618
    %1749 = vmatmul.mubr.bf16.gmra.mrb[0].mxu0 %v617
    %v1750 = vpop.f32.mrb[0].mxu0
    %v1751 = vadd.f32 0.0, %v1750
    %v1752 = vpop.f32.mrb[0].mxu0
    %v1753 = vadd.f32 0.0, %v1752
    %v1754 = vpop.f32.mrb[0].mxu0
    %v1755 = vadd.f32 0.0, %v1754
    %v1756 = vpop.f32.mrb[0].mxu0
    %v1757 = vadd.f32 0.0, %v1756
    %1758 = vmatprep.mubr.bf16.mxu0 %v622
    %1759 = vmatmul.mubr.bf16.gmra.mrb[0].mxu0 %v621
    %v1760 = vpop.f32.mrb[0].mxu0
    %v1761 = vadd.f32 0.0, %v1760
    %v1762 = vpop.f32.mrb[0].mxu0
    %v1763 = vadd.f32 0.0, %v1762
    %v1764 = vpop.f32.mrb[0].mxu0
    %v1765 = vadd.f32 0.0, %v1764
    %v1766 = vpop.f32.mrb[0].mxu0
    %v1767 = vadd.f32 0.0, %v1766
    %1768 = vmatprep.mubr.bf16.mxu0 %v626
    %1769 = vmatmul.mubr.bf16.gmra.mrb[0].mxu0 %v625
    %v1770 = vpop.f32.mrb[0].mxu0
    %v1771 = vadd.f32 0.0, %v1770
    %v1772 = vpop.f32.mrb[0].mxu0
    %v1773 = vadd.f32 0.0, %v1772
    %v1774 = vpop.f32.mrb[0].mxu0
    %v1775 = vadd.f32 0.0, %v1774
    %v1776 = vpop.f32.mrb[0].mxu0
    %v1777 = vadd.f32 0.0, %v1776
    %1778 = vmatprep.mubr.bf16.mxu0 %v630
    %1779 = vmatmul.mubr.bf16.gmra.mrb[0].mxu0 %v629
    %v1780 = vpop.f32.mrb[0].mxu0
    %v1781 = vadd.f32 0.0, %v1780
    %v1782 = vpop.f32.mrb[0].mxu0
    %v1783 = vadd.f32 0.0, %v1782
    %v1784 = vpop.f32.mrb[0].mxu0
    %v1785 = vadd.f32 0.0, %v1784
    %v1786 = vpop.f32.mrb[0].mxu0
    %v1787 = vadd.f32 0.0, %v1786
    %1788 = vmatprep.mubr.bf16.mxu0 %v634
    %1789 = vmatmul.mubr.bf16.gmra.mrb[0].mxu0 %v633
    %v1790 = vpop.f32.mrb[0].mxu0
    %v1791 = vadd.f32 0.0, %v1790
    %v1792 = vpop.f32.mrb[0].mxu0
    %v1793 = vadd.f32 0.0, %v1792
    %v1794 = vpop.f32.mrb[0].mxu0
    %v1795 = vadd.f32 0.0, %v1794
    %v1796 = vpop.f32.mrb[0].mxu0
    %v1797 = vadd.f32 0.0, %v1796
    %1798 = vdwg.mxu0
    %1799 = vmatprep.subr.bf16.mxu0 %v1314
    %1800 = vmatpush1.bf16.msra.mxu0 %v1313
    %1801 = vmatprep.subr.bf16.mxu0 %v1319
    %1802 = vmatpush1.bf16.msra.mxu0 %v1318
    %1803 = vmatprep.subr.bf16.mxu0 %v1324
    %1804 = vmatpush1.bf16.msra.mxu0 %v1323
    %1805 = vmatprep.subr.bf16.mxu0 %v1329
    %1806 = vmatpush1.bf16.msra.mxu0 %v1328
    %1807 = vmatprep.subr.bf16.mxu0 %v1334
    %1808 = vmatpush1.bf16.msra.mxu0 %v1333
    %1809 = vmatprep.subr.bf16.mxu0 %v1339
    %1810 = vmatpush1.bf16.msra.mxu0 %v1338
    %1811 = vmatprep.subr.bf16.mxu0 %v1344
    %1812 = vmatpush1.bf16.msra.mxu0 %v1343
    %1813 = vmatprep.subr.bf16.mxu0 %v1349
    %1814 = vmatpush1.bf16.msra.mxu0 %v1348
    %1815 = vmatprep.subr.bf16.mxu0 %v1354
    %1816 = vmatpush1.bf16.msra.mxu0 %v1353
    %1817 = vmatprep.subr.bf16.mxu0 %v1359
    %1818 = vmatpush1.bf16.msra.mxu0 %v1358
    %1819 = vmatprep.subr.bf16.mxu0 %v1364
    %1820 = vmatpush1.bf16.msra.mxu0 %v1363
    %1821 = vmatprep.subr.bf16.mxu0 0
    %1822 = vmatpush1.bf16.msra.mxu0 0
    %1823 = vmatprep.subr.bf16.mxu0 0
    %1824 = vmatpush1.bf16.msra.mxu0 0
    %1825 = vmatprep.subr.bf16.mxu0 0
    %1826 = vmatpush1.bf16.msra.mxu0 0
    %1827 = vmatprep.subr.bf16.mxu0 0
    %1828 = vmatpush1.bf16.msra.mxu0 0
    %1829 = vmatprep.subr.bf16.mxu0 0
    %1830 = vmatpush1.bf16.msra.mxu0 0
    %1831 = vmatprep.mubr.bf16.mxu0 %v1503
    %1832 = vmatmul.mubr.bf16.gmra.mrb[0].mxu0 %v615
    %v1833 = vpop.f32.mrb[0].mxu0
    %v1834 = vadd.f32 %v1741, %v1833
    %v1835 = vpop.f32.mrb[0].mxu0
    %v1836 = vadd.f32 %v1743, %v1835
    %v1837 = vpop.f32.mrb[0].mxu0
    %v1838 = vadd.f32 %v1745, %v1837
    %v1839 = vpop.f32.mrb[0].mxu0
    %v1840 = vadd.f32 %v1747, %v1839
    %1841 = vmatprep.mubr.bf16.mxu0 %v1506
    %1842 = vmatmul.mubr.bf16.gmra.mrb[0].mxu0 %v619
    %v1843 = vpop.f32.mrb[0].mxu0
    %v1844 = vadd.f32 %v1751, %v1843
    %v1845 = vpop.f32.mrb[0].mxu0
    %v1846 = vadd.f32 %v1753, %v1845
    %v1847 = vpop.f32.mrb[0].mxu0
    %v1848 = vadd.f32 %v1755, %v1847
    %v1849 = vpop.f32.mrb[0].mxu0
    %v1850 = vadd.f32 %v1757, %v1849
    %1851 = vmatprep.mubr.bf16.mxu0 %v1509
    %1852 = vmatmul.mubr.bf16.gmra.mrb[0].mxu0 %v623
    %v1853 = vpop.f32.mrb[0].mxu0
    %v1854 = vadd.f32 %v1761, %v1853
    %v1855 = vpop.f32.mrb[0].mxu0
    %v1856 = vadd.f32 %v1763, %v1855
    %v1857 = vpop.f32.mrb[0].mxu0
    %v1858 = vadd.f32 %v1765, %v1857
    %v1859 = vpop.f32.mrb[0].mxu0
    %v1860 = vadd.f32 %v1767, %v1859
    %1861 = vmatprep.mubr.bf16.mxu0 %v1512
    %1862 = vmatmul.mubr.bf16.gmra.mrb[0].mxu0 %v627
    %v1863 = vpop.f32.mrb[0].mxu0
    %v1864 = vadd.f32 %v1771, %v1863
    %v1865 = vpop.f32.mrb[0].mxu0
    %v1866 = vadd.f32 %v1773, %v1865
    %v1867 = vpop.f32.mrb[0].mxu0
    %v1868 = vadd.f32 %v1775, %v1867
    %v1869 = vpop.f32.mrb[0].mxu0
    %v1870 = vadd.f32 %v1777, %v1869
    %1871 = vmatprep.mubr.bf16.mxu0 %v1515
    %1872 = vmatmul.mubr.bf16.gmra.mrb[0].mxu0 %v631
    %v1873 = vpop.f32.mrb[0].mxu0
    %v1874 = vadd.f32 %v1781, %v1873
    %v1875 = vpop.f32.mrb[0].mxu0
    %v1876 = vadd.f32 %v1783, %v1875
    %v1877 = vpop.f32.mrb[0].mxu0
    %v1878 = vadd.f32 %v1785, %v1877
    %v1879 = vpop.f32.mrb[0].mxu0
    %v1880 = vadd.f32 %v1787, %v1879
    %1881 = vmatprep.mubr.bf16.mxu0 %v1518
    %1882 = vmatmul.mubr.bf16.gmra.mrb[0].mxu0 %v635
    %v1883 = vpop.f32.mrb[0].mxu0
    %v1884 = vadd.f32 %v1791, %v1883
    %v1885 = vpop.f32.mrb[0].mxu0
    %v1886 = vadd.f32 %v1793, %v1885
    %v1887 = vpop.f32.mrb[0].mxu0
    %v1888 = vadd.f32 %v1795, %v1887
    %v1889 = vpop.f32.mrb[0].mxu0
    %v1890 = vadd.f32 %v1797, %v1889
    %1891 = vdwg.mxu0
    %1892 = vmatprep.subr.bf16.mxu0 0
    %1893 = vmatpush1.bf16.msra.mxu0 %v1235
    %1894 = vmatprep.subr.bf16.mxu0 0
    %1895 = vmatpush1.bf16.msra.mxu0 %v1240
    %1896 = vmatprep.subr.bf16.mxu0 0
    %1897 = vmatpush1.bf16.msra.mxu0 %v1245
    %1898 = vmatprep.subr.bf16.mxu0 0
    %1899 = vmatpush1.bf16.msra.mxu0 %v1250
    %1900 = vmatprep.subr.bf16.mxu0 0
    %1901 = vmatpush1.bf16.msra.mxu0 %v1255
    %1902 = vmatprep.subr.bf16.mxu0 0
    %1903 = vmatpush1.bf16.msra.mxu0 %v1260
    %1904 = vmatprep.subr.bf16.mxu0 0
    %1905 = vmatpush1.bf16.msra.mxu0 %v1265
    %1906 = vmatprep.subr.bf16.mxu0 0
    %1907 = vmatpush1.bf16.msra.mxu0 %v1270
    %1908 = vmatprep.subr.bf16.mxu0 0
    %1909 = vmatpush1.bf16.msra.mxu0 %v1275
    %1910 = vmatprep.subr.bf16.mxu0 0
    %1911 = vmatpush1.bf16.msra.mxu0 %v1280
    %1912 = vmatprep.subr.bf16.mxu0 0
    %1913 = vmatpush1.bf16.msra.mxu0 %v1285
    %1914 = vmatprep.subr.bf16.mxu0 0
    %1915 = vmatpush1.bf16.msra.mxu0 %v1290
    %1916 = vmatprep.subr.bf16.mxu0 0
    %1917 = vmatpush1.bf16.msra.mxu0 %v1295
    %1918 = vmatprep.subr.bf16.mxu0 0
    %1919 = vmatpush1.bf16.msra.mxu0 %v1300
    %1920 = vmatprep.subr.bf16.mxu0 0
    %1921 = vmatpush1.bf16.msra.mxu0 %v1305
    %1922 = vmatprep.subr.bf16.mxu0 0
    %1923 = vmatpush1.bf16.msra.mxu0 %v1310
    %1924 = vmatprep.mubr.bf16.mxu0 %v614
    %1925 = vmatmul.mubr.bf16.gmra.mrb[0].mxu0 %v613
    %v1926 = vpop.f32.mrb[0].mxu0
    %v1927 = vadd.f32 0.0, %v1926
    %v1928 = vpop.f32.mrb[0].mxu0
    %v1929 = vpop.f32.mrb[0].mxu0
    %v1930 = vadd.f32 0.0, %v1929
    %v1931 = vpop.f32.mrb[0].mxu0
    %1932 = vmatprep.mubr.bf16.mxu0 %v618
    %1933 = vmatmul.mubr.bf16.gmra.mrb[0].mxu0 %v617
    %v1934 = vpop.f32.mrb[0].mxu0
    %v1935 = vadd.f32 0.0, %v1934
    %v1936 = vpop.f32.mrb[0].mxu0
    %v1937 = vpop.f32.mrb[0].mxu0
    %v1938 = vadd.f32 0.0, %v1937
    %v1939 = vpop.f32.mrb[0].mxu0
    %1940 = vmatprep.mubr.bf16.mxu0 %v622
    %1941 = vmatmul.mubr.bf16.gmra.mrb[0].mxu0 %v621
    %v1942 = vpop.f32.mrb[0].mxu0
    %v1943 = vadd.f32 0.0, %v1942
    %v1944 = vpop.f32.mrb[0].mxu0
    %v1945 = vpop.f32.mrb[0].mxu0
    %v1946 = vadd.f32 0.0, %v1945
    %v1947 = vpop.f32.mrb[0].mxu0
    %1948 = vmatprep.mubr.bf16.mxu0 %v626
    %1949 = vmatmul.mubr.bf16.gmra.mrb[0].mxu0 %v625
    %v1950 = vpop.f32.mrb[0].mxu0
    %v1951 = vadd.f32 0.0, %v1950
    %v1952 = vpop.f32.mrb[0].mxu0
    %v1953 = vpop.f32.mrb[0].mxu0
    %v1954 = vadd.f32 0.0, %v1953
    %v1955 = vpop.f32.mrb[0].mxu0
    %1956 = vmatprep.mubr.bf16.mxu0 %v630
    %1957 = vmatmul.mubr.bf16.gmra.mrb[0].mxu0 %v629
    %v1958 = vpop.f32.mrb[0].mxu0
    %v1959 = vadd.f32 0.0, %v1958
    %v1960 = vpop.f32.mrb[0].mxu0
    %v1961 = vpop.f32.mrb[0].mxu0
    %v1962 = vadd.f32 0.0, %v1961
    %v1963 = vpop.f32.mrb[0].mxu0
    %1964 = vmatprep.mubr.bf16.mxu0 %v634
    %1965 = vmatmul.mubr.bf16.gmra.mrb[0].mxu0 %v633
    %v1966 = vpop.f32.mrb[0].mxu0
    %v1967 = vadd.f32 0.0, %v1966
    %v1968 = vpop.f32.mrb[0].mxu0
    %v1969 = vpop.f32.mrb[0].mxu0
    %v1970 = vadd.f32 0.0, %v1969
    %v1971 = vpop.f32.mrb[0].mxu0
    %1972 = vdwg.mxu0
    %1973 = vmatprep.subr.bf16.mxu0 0
    %1974 = vmatpush1.bf16.msra.mxu0 %v1315
    %1975 = vmatprep.subr.bf16.mxu0 0
    %1976 = vmatpush1.bf16.msra.mxu0 %v1320
    %1977 = vmatprep.subr.bf16.mxu0 0
    %1978 = vmatpush1.bf16.msra.mxu0 %v1325
    %1979 = vmatprep.subr.bf16.mxu0 0
    %1980 = vmatpush1.bf16.msra.mxu0 %v1330
    %1981 = vmatprep.subr.bf16.mxu0 0
    %1982 = vmatpush1.bf16.msra.mxu0 %v1335
    %1983 = vmatprep.subr.bf16.mxu0 0
    %1984 = vmatpush1.bf16.msra.mxu0 %v1340
    %1985 = vmatprep.subr.bf16.mxu0 0
    %1986 = vmatpush1.bf16.msra.mxu0 %v1345
    %1987 = vmatprep.subr.bf16.mxu0 0
    %1988 = vmatpush1.bf16.msra.mxu0 %v1350
    %1989 = vmatprep.subr.bf16.mxu0 0
    %1990 = vmatpush1.bf16.msra.mxu0 %v1355
    %1991 = vmatprep.subr.bf16.mxu0 0
    %1992 = vmatpush1.bf16.msra.mxu0 %v1360
    %1993 = vmatprep.subr.bf16.mxu0 0
    %1994 = vmatpush1.bf16.msra.mxu0 %v1365
    %1995 = vmatprep.subr.bf16.mxu0 0
    %1996 = vmatpush1.bf16.msra.mxu0 0
    %1997 = vmatprep.subr.bf16.mxu0 0
    %1998 = vmatpush1.bf16.msra.mxu0 0
    %1999 = vmatprep.subr.bf16.mxu0 0
    %2000 = vmatpush1.bf16.msra.mxu0 0
    %2001 = vmatprep.subr.bf16.mxu0 0
    %2002 = vmatpush1.bf16.msra.mxu0 0
    %2003 = vmatprep.subr.bf16.mxu0 0
    %2004 = vmatpush1.bf16.msra.mxu0 0
    %2005 = vmatprep.mubr.bf16.mxu0 %v1503
    %2006 = vmatmul.mubr.bf16.gmra.mrb[0].mxu0 %v615
    %v2007 = vpop.f32.mrb[0].mxu0
    %v2008 = vadd.f32 %v1927, %v2007
    %v2009 = vpop.f32.mrb[0].mxu0
    %v2010 = vpop.f32.mrb[0].mxu0
    %v2011 = vadd.f32 %v1930, %v2010
    %v2012 = vpop.f32.mrb[0].mxu0
    %2013 = vmatprep.mubr.bf16.mxu0 %v1506
    %2014 = vmatmul.mubr.bf16.gmra.mrb[0].mxu0 %v619
    %v2015 = vpop.f32.mrb[0].mxu0
    %v2016 = vadd.f32 %v1935, %v2015
    %v2017 = vpop.f32.mrb[0].mxu0
    %v2018 = vpop.f32.mrb[0].mxu0
    %v2019 = vadd.f32 %v1938, %v2018
    %v2020 = vpop.f32.mrb[0].mxu0
    %2021 = vmatprep.mubr.bf16.mxu0 %v1509
    %2022 = vmatmul.mubr.bf16.gmra.mrb[0].mxu0 %v623
    %v2023 = vpop.f32.mrb[0].mxu0
    %v2024 = vadd.f32 %v1943, %v2023
    %v2025 = vpop.f32.mrb[0].mxu0
    %v2026 = vpop.f32.mrb[0].mxu0
    %v2027 = vadd.f32 %v1946, %v2026
    %v2028 = vpop.f32.mrb[0].mxu0
    %2029 = vmatprep.mubr.bf16.mxu0 %v1512
    %2030 = vmatmul.mubr.bf16.gmra.mrb[0].mxu0 %v627
    %v2031 = vpop.f32.mrb[0].mxu0
    %v2032 = vadd.f32 %v1951, %v2031
    %v2033 = vpop.f32.mrb[0].mxu0
    %v2034 = vpop.f32.mrb[0].mxu0
    %v2035 = vadd.f32 %v1954, %v2034
    %v2036 = vpop.f32.mrb[0].mxu0
    %2037 = vmatprep.mubr.bf16.mxu0 %v1515
    %2038 = vmatmul.mubr.bf16.gmra.mrb[0].mxu0 %v631
    %v2039 = vpop.f32.mrb[0].mxu0
    %v2040 = vadd.f32 %v1959, %v2039
    %v2041 = vpop.f32.mrb[0].mxu0
    %v2042 = vpop.f32.mrb[0].mxu0
    %v2043 = vadd.f32 %v1962, %v2042
    %v2044 = vpop.f32.mrb[0].mxu0
    %2045 = vmatprep.mubr.bf16.mxu0 %v1518
    %2046 = vmatmul.mubr.bf16.gmra.mrb[0].mxu0 %v635
    %v2047 = vpop.f32.mrb[0].mxu0
    %v2048 = vadd.f32 %v1967, %v2047
    %v2049 = vpop.f32.mrb[0].mxu0
    %v2050 = vpop.f32.mrb[0].mxu0
    %v2051 = vadd.f32 %v1970, %v2050
    %v2052 = vpop.f32.mrb[0].mxu0
    %2053 = vdwg.mxu0
    %v2054 = vld [vmem:[%s3] sm:$0xff]
    %v2055 = vld [vmem:[%s3 + $0x8] sm:$0xff]
    %v2056 = vld [vmem:[%s3 + $0x10] sm:$0xff]
    %v2057 = vld [vmem:[%s3 + $0x18] sm:$0xff]
    %v2058 = vld [vmem:[%s3 + $0x20] sm:$0xff]
    %v2059 = vld [vmem:[%s3 + $0x28] sm:$0xf]
    %v2060 = vld [vmem:[%s3 + $0x30] sm:$0xf]
    %v2061 = vld [vmem:[%s3 + $0x38] sm:$0xf]
    %v2062 = vld [vmem:[%s3 + $0x40] sm:$0xf]
    %v2063 = vld [vmem:[%s3 + $0x48] sm:$0xf]
    %v2064 = vadd.f32 %v1648, %v1652
    %v2065 = vadd.f32 %v2064, %v1658
    %v2066 = vadd.f32 %v2065, %v1662
    %v2067 = vadd.f32 %v2066, %v1668
    %v2068 = vadd.f32 %v2067, %v1672
    %v2069 = vadd.f32 %v2068, %v1678
    %v2070 = vadd.f32 %v2069, %v1682
    %v2071 = vadd.f32 %v2070, %v1688
    %v2072 = vadd.f32 %v2071, %v1692
    %v2073 = vadd.f32 %v2072, %v1698
    %v2074 = vadd.f32 %v2073, %v1702
    %v2075 = vrot.slane %v2074, 4
    %v2076 = vadd.f32 %v2074, %v2075
    %v2077 = vrot.slane %v2076, 2
    %v2078 = vadd.f32 %v2076, %v2077
    %v2079 = vrot.slane %v2078, 1
    %v2080 = vadd.f32 %v2078, %v2079
    %v2081 = vadd.f32 %v1650, %v1654
    %v2082 = vadd.f32 %v2081, %v1660
    %v2083 = vadd.f32 %v2082, %v1664
    %v2084 = vadd.f32 %v2083, %v1670
    %v2085 = vadd.f32 %v2084, %v1674
    %v2086 = vadd.f32 %v2085, %v1680
    %v2087 = vadd.f32 %v2086, %v1684
    %v2088 = vadd.f32 %v2087, %v1690
    %v2089 = vadd.f32 %v2088, %v1694
    %v2090 = vadd.f32 %v2089, %v1700
    %v2091 = vadd.f32 %v2090, %v1704
    %v2092 = vrot.slane %v2091, 4
    %v2093 = vadd.f32 %v2091, %v2092
    %v2094 = vrot.slane %v2093, 2
    %v2095 = vadd.f32 %v2093, %v2094
    %v2096 = vrot.slane %v2095, 1
    %v2097 = vadd.f32 %v2095, %v2096
    %v2098 = vadd.f32 %v1834, %v1838
    %v2099 = vadd.f32 %v2098, %v1844
    %v2100 = vadd.f32 %v2099, %v1848
    %v2101 = vadd.f32 %v2100, %v1854
    %v2102 = vadd.f32 %v2101, %v1858
    %v2103 = vadd.f32 %v2102, %v1864
    %v2104 = vadd.f32 %v2103, %v1868
    %v2105 = vadd.f32 %v2104, %v1874
    %v2106 = vadd.f32 %v2105, %v1878
    %v2107 = vadd.f32 %v2106, %v1884
    %v2108 = vadd.f32 %v2107, %v1888
    %v2109 = vrot.slane %v2108, 4
    %v2110 = vadd.f32 %v2108, %v2109
    %v2111 = vrot.slane %v2110, 2
    %v2112 = vadd.f32 %v2110, %v2111
    %v2113 = vrot.slane %v2112, 1
    %v2114 = vadd.f32 %v2112, %v2113
    %v2115 = vadd.f32 %v1836, %v1840
    %v2116 = vadd.f32 %v2115, %v1846
    %v2117 = vadd.f32 %v2116, %v1850
    %v2118 = vadd.f32 %v2117, %v1856
    %v2119 = vadd.f32 %v2118, %v1860
    %v2120 = vadd.f32 %v2119, %v1866
    %v2121 = vadd.f32 %v2120, %v1870
    %v2122 = vadd.f32 %v2121, %v1876
    %v2123 = vadd.f32 %v2122, %v1880
    %v2124 = vadd.f32 %v2123, %v1886
    %v2125 = vadd.f32 %v2124, %v1890
    %v2126 = vrot.slane %v2125, 4
    %v2127 = vadd.f32 %v2125, %v2126
    %v2128 = vrot.slane %v2127, 2
    %v2129 = vadd.f32 %v2127, %v2128
    %v2130 = vrot.slane %v2129, 1
    %v2131 = vadd.f32 %v2129, %v2130
    %vm2132 = vcmask 523264
    %v2133 = vsel %vm2132, %v2008, 0.0
    %v2134 = vsel %vm2132, %v2011, 0.0
    %v2135 = vadd.f32 %v2133, %v2134
    %v2136 = vsel %vm2132, %v2016, 0.0
    %v2137 = vadd.f32 %v2135, %v2136
    %v2138 = vsel %vm2132, %v2019, 0.0
    %v2139 = vadd.f32 %v2137, %v2138
    %v2140 = vsel %vm2132, %v2024, 0.0
    %v2141 = vadd.f32 %v2139, %v2140
    %v2142 = vsel %vm2132, %v2027, 0.0
    %v2143 = vadd.f32 %v2141, %v2142
    %v2144 = vsel %vm2132, %v2032, 0.0
    %v2145 = vadd.f32 %v2143, %v2144
    %v2146 = vsel %vm2132, %v2035, 0.0
    %v2147 = vadd.f32 %v2145, %v2146
    %v2148 = vsel %vm2132, %v2040, 0.0
    %v2149 = vadd.f32 %v2147, %v2148
    %v2150 = vsel %vm2132, %v2043, 0.0
    %v2151 = vadd.f32 %v2149, %v2150
    %v2152 = vsel %vm2132, %v2048, 0.0
    %v2153 = vadd.f32 %v2151, %v2152
    %v2154 = vsel %vm2132, %v2051, 0.0
    %v2155 = vadd.f32 %v2153, %v2154
    %v2156 = vrot.slane %v2155, 4
    %v2157 = vadd.f32 %v2155, %v2156
    %v2158 = vrot.slane %v2157, 2
    %v2159 = vadd.f32 %v2157, %v2158
    %v2160 = vrot.slane %v2159, 1
    %v2161 = vadd.f32 %v2159, %v2160
    %v2162 = vrcp.pop 96.0
    %v2163 = vmul.f32 %v2080, %v2162
    %v2164 = vmul.f32 %v2097, %v2162
    %v2165 = vmul.f32 %v2114, %v2162
    %v2166 = vmul.f32 %v2131, %v2162
    %v2167 = vmul.f32 %v2161, %v2162
    %v2168 = vmul.f32 %v1648, %v1648
    %v2169 = vmul.f32 %v1650, %v1650
    %v2170 = vmul.f32 %v1834, %v1834
    %v2171 = vmul.f32 %v1836, %v1836
    %v2172 = vmul.f32 %v2008, %v2008
    %v2173 = vmul.f32 %v1652, %v1652
    %v2174 = vmul.f32 %v1654, %v1654
    %v2175 = vmul.f32 %v1838, %v1838
    %v2176 = vmul.f32 %v1840, %v1840
    %v2177 = vmul.f32 %v2011, %v2011
    %v2178 = vmul.f32 %v1658, %v1658
    %v2179 = vmul.f32 %v1660, %v1660
    %v2180 = vmul.f32 %v1844, %v1844
    %v2181 = vmul.f32 %v1846, %v1846
    %v2182 = vmul.f32 %v2016, %v2016
    %v2183 = vmul.f32 %v1662, %v1662
    %v2184 = vmul.f32 %v1664, %v1664
    %v2185 = vmul.f32 %v1848, %v1848
    %v2186 = vmul.f32 %v1850, %v1850
    %v2187 = vmul.f32 %v2019, %v2019
    %v2188 = vmul.f32 %v1668, %v1668
    %v2189 = vmul.f32 %v1670, %v1670
    %v2190 = vmul.f32 %v1854, %v1854
    %v2191 = vmul.f32 %v1856, %v1856
    %v2192 = vmul.f32 %v2024, %v2024
    %v2193 = vmul.f32 %v1672, %v1672
    %v2194 = vmul.f32 %v1674, %v1674
    %v2195 = vmul.f32 %v1858, %v1858
    %v2196 = vmul.f32 %v1860, %v1860
    %v2197 = vmul.f32 %v2027, %v2027
    %v2198 = vmul.f32 %v1678, %v1678
    %v2199 = vmul.f32 %v1680, %v1680
    %v2200 = vmul.f32 %v1864, %v1864
    %v2201 = vmul.f32 %v1866, %v1866
    %v2202 = vmul.f32 %v2032, %v2032
    %v2203 = vmul.f32 %v1682, %v1682
    %v2204 = vmul.f32 %v1684, %v1684
    %v2205 = vmul.f32 %v1868, %v1868
    %v2206 = vmul.f32 %v1870, %v1870
    %v2207 = vmul.f32 %v2035, %v2035
    %v2208 = vmul.f32 %v1688, %v1688
    %v2209 = vmul.f32 %v1690, %v1690
    %v2210 = vmul.f32 %v1874, %v1874
    %v2211 = vmul.f32 %v1876, %v1876
    %v2212 = vmul.f32 %v2040, %v2040
    %v2213 = vmul.f32 %v1692, %v1692
    %v2214 = vmul.f32 %v1694, %v1694
    %v2215 = vmul.f32 %v1878, %v1878
    %v2216 = vmul.f32 %v1880, %v1880
    %v2217 = vmul.f32 %v2043, %v2043
    %v2218 = vmul.f32 %v1698, %v1698
    %v2219 = vmul.f32 %v1700, %v1700
    %v2220 = vmul.f32 %v1884, %v1884
    %v2221 = vmul.f32 %v1886, %v1886
    %v2222 = vmul.f32 %v2048, %v2048
    %v2223 = vmul.f32 %v1702, %v1702
    %v2224 = vmul.f32 %v1704, %v1704
    %v2225 = vmul.f32 %v1888, %v1888
    %v2226 = vmul.f32 %v1890, %v1890
    %v2227 = vmul.f32 %v2051, %v2051
    %v2228 = vadd.f32 %v2168, %v2173
    %v2229 = vadd.f32 %v2228, %v2178
    %v2230 = vadd.f32 %v2229, %v2183
    %v2231 = vadd.f32 %v2230, %v2188
    %v2232 = vadd.f32 %v2231, %v2193
    %v2233 = vadd.f32 %v2232, %v2198
    %v2234 = vadd.f32 %v2233, %v2203
    %v2235 = vadd.f32 %v2234, %v2208
    %v2236 = vadd.f32 %v2235, %v2213
    %v2237 = vadd.f32 %v2236, %v2218
    %v2238 = vadd.f32 %v2237, %v2223
    %v2239 = vrot.slane %v2238, 4
    %v2240 = vadd.f32 %v2238, %v2239
    %v2241 = vrot.slane %v2240, 2
    %v2242 = vadd.f32 %v2240, %v2241
    %v2243 = vrot.slane %v2242, 1
    %v2244 = vadd.f32 %v2242, %v2243
    %v2245 = vadd.f32 %v2169, %v2174
    %v2246 = vadd.f32 %v2245, %v2179
    %v2247 = vadd.f32 %v2246, %v2184
    %v2248 = vadd.f32 %v2247, %v2189
    %v2249 = vadd.f32 %v2248, %v2194
    %v2250 = vadd.f32 %v2249, %v2199
    %v2251 = vadd.f32 %v2250, %v2204
    %v2252 = vadd.f32 %v2251, %v2209
    %v2253 = vadd.f32 %v2252, %v2214
    %v2254 = vadd.f32 %v2253, %v2219
    %v2255 = vadd.f32 %v2254, %v2224
    %v2256 = vrot.slane %v2255, 4
    %v2257 = vadd.f32 %v2255, %v2256
    %v2258 = vrot.slane %v2257, 2
    %v2259 = vadd.f32 %v2257, %v2258
    %v2260 = vrot.slane %v2259, 1
    %v2261 = vadd.f32 %v2259, %v2260
    %v2262 = vadd.f32 %v2170, %v2175
    %v2263 = vadd.f32 %v2262, %v2180
    %v2264 = vadd.f32 %v2263, %v2185
    %v2265 = vadd.f32 %v2264, %v2190
    %v2266 = vadd.f32 %v2265, %v2195
    %v2267 = vadd.f32 %v2266, %v2200
    %v2268 = vadd.f32 %v2267, %v2205
    %v2269 = vadd.f32 %v2268, %v2210
    %v2270 = vadd.f32 %v2269, %v2215
    %v2271 = vadd.f32 %v2270, %v2220
    %v2272 = vadd.f32 %v2271, %v2225
    %v2273 = vrot.slane %v2272, 4
    %v2274 = vadd.f32 %v2272, %v2273
    %v2275 = vrot.slane %v2274, 2
    %v2276 = vadd.f32 %v2274, %v2275
    %v2277 = vrot.slane %v2276, 1
    %v2278 = vadd.f32 %v2276, %v2277
    %v2279 = vadd.f32 %v2171, %v2176
    %v2280 = vadd.f32 %v2279, %v2181
    %v2281 = vadd.f32 %v2280, %v2186
    %v2282 = vadd.f32 %v2281, %v2191
    %v2283 = vadd.f32 %v2282, %v2196
    %v2284 = vadd.f32 %v2283, %v2201
    %v2285 = vadd.f32 %v2284, %v2206
    %v2286 = vadd.f32 %v2285, %v2211
    %v2287 = vadd.f32 %v2286, %v2216
    %v2288 = vadd.f32 %v2287, %v2221
    %v2289 = vadd.f32 %v2288, %v2226
    %v2290 = vrot.slane %v2289, 4
    %v2291 = vadd.f32 %v2289, %v2290
    %v2292 = vrot.slane %v2291, 2
    %v2293 = vadd.f32 %v2291, %v2292
    %v2294 = vrot.slane %v2293, 1
    %v2295 = vadd.f32 %v2293, %v2294
    %v2296 = vsel %vm2132, %v2172, 0.0
    %v2297 = vsel %vm2132, %v2177, 0.0
    %v2298 = vadd.f32 %v2296, %v2297
    %v2299 = vsel %vm2132, %v2182, 0.0
    %v2300 = vadd.f32 %v2298, %v2299
    %v2301 = vsel %vm2132, %v2187, 0.0
    %v2302 = vadd.f32 %v2300, %v2301
    %v2303 = vsel %vm2132, %v2192, 0.0
    %v2304 = vadd.f32 %v2302, %v2303
    %v2305 = vsel %vm2132, %v2197, 0.0
    %v2306 = vadd.f32 %v2304, %v2305
    %v2307 = vsel %vm2132, %v2202, 0.0
    %v2308 = vadd.f32 %v2306, %v2307
    %v2309 = vsel %vm2132, %v2207, 0.0
    %v2310 = vadd.f32 %v2308, %v2309
    %v2311 = vsel %vm2132, %v2212, 0.0
    %v2312 = vadd.f32 %v2310, %v2311
    %v2313 = vsel %vm2132, %v2217, 0.0
    %v2314 = vadd.f32 %v2312, %v2313
    %v2315 = vsel %vm2132, %v2222, 0.0
    %v2316 = vadd.f32 %v2314, %v2315
    %v2317 = vsel %vm2132, %v2227, 0.0
    %v2318 = vadd.f32 %v2316, %v2317
    %v2319 = vrot.slane %v2318, 4
    %v2320 = vadd.f32 %v2318, %v2319
    %v2321 = vrot.slane %v2320, 2
    %v2322 = vadd.f32 %v2320, %v2321
    %v2323 = vrot.slane %v2322, 1
    %v2324 = vadd.f32 %v2322, %v2323
    %v2325 = vmul.f32 %v2244, %v2162
    %v2326 = vmul.f32 %v2261, %v2162
    %v2327 = vmul.f32 %v2278, %v2162
    %v2328 = vmul.f32 %v2295, %v2162
    %v2329 = vmul.f32 %v2324, %v2162
    %vm2330 = vcmask 1040384
    %v2331 = vsel %vm2330, %v2163, %v2325
    %v2332 = vsel %vm2330, %v2164, %v2326
    %v2333 = vsel %vm2330, %v2165, %v2327
    %v2334 = vsel %vm2330, %v2166, %v2328
    %v2335 = vsel %vm2330, %v2167, %v2329
    %v2337 = vsel %vm2132, %v2335, 0
    %v2340 = vsel %vm2132, %v2058, 0
    %v2343 = vsel %vm2132, %v2063, 0
    %2345 = vmatprep.subr.mxu0 %v2055
    %2346 = vmatpush1.xpose.msra.mxu0 %v2054
    %2347 = vmatprep.subr.mxu0 %v2060
    %2348 = vmatpush1.xpose.msra.mxu0 %v2059
    %2349 = vmatprep.subr.mxu0 0.0
    %2350 = vmatpush1.xpose.msra.mxu0 0.0
    %2351 = vmatprep.subr.mxu0 0.0
    %2352 = vmatpush1.xpose.msra.mxu0 0.0
    %2353 = vmatprep.subr.mxu0 0.0
    %2354 = vmatpush1.xpose.msra.mxu0 0.0
    %2355 = vmatprep.subr.mxu0 0.0
    %2356 = vmatpush1.xpose.msra.mxu0 0.0
    %2357 = vmatprep.subr.mxu0 0.0
    %2358 = vmatpush1.xpose.msra.mxu0 0.0
    %2359 = vmatprep.subr.mxu0 0.0
    %2360 = vmatpush1.xpose.msra.mxu0 0.0
    %2361 = vmatprep.subr.mxu0 0.0
    %2362 = vmatpush1.xpose.msra.mxu0 0.0
    %2363 = vmatprep.subr.mxu0 0.0
    %2364 = vmatpush1.xpose.msra.mxu0 0.0
    %2365 = vmatprep.subr.mxu0 0.0
    %2366 = vmatpush1.xpose.msra.mxu0 0.0
    %2367 = vmatprep.subr.mxu0 0.0
    %2368 = vmatpush1.xpose.msra.mxu0 0.0
    %2369 = vmatprep.subr.mxu0 0.0
    %2370 = vmatpush1.xpose.msra.mxu0 0.0
    %2371 = vmatprep.subr.mxu0 0.0
    %2372 = vmatpush1.xpose.msra.mxu0 0.0
    %2373 = vmatprep.subr.mxu0 0.0
    %2374 = vmatpush1.xpose.msra.mxu0 0.0
    %2375 = vmatprep.subr.mxu0 0.0
    %2376 = vmatpush1.xpose.msra.mxu0 0.0
    %2377 = vmatprep.subr.mxu0 0.0
    %2378 = vmatpush1.xpose.msra.mxu0 0.0
    %2379 = vmatprep.subr.mxu0 0.0
    %2380 = vmatpush1.xpose.msra.mxu0 0.0
    %2381 = vmatprep.subr.mxu0 0.0
    %2382 = vmatpush1.xpose.msra.mxu0 0.0
    %2383 = vmatprep.subr.mxu0 0.0
    %2384 = vmatpush1.xpose.msra.mxu0 0.0
    %2385 = vmatprep.subr.mxu0 0.0
    %2386 = vmatpush1.xpose.msra.mxu0 0.0
    %2387 = vmatprep.subr.mxu0 0.0
    %2388 = vmatpush1.xpose.msra.mxu0 0.0
    %2389 = vmatprep.subr.mxu0 0.0
    %2390 = vmatpush1.xpose.msra.mxu0 0.0
    %2391 = vmatprep.subr.mxu0 0.0
    %2392 = vmatpush1.xpose.msra.mxu0 0.0
    %2393 = vmatprep.subr.mxu0 0.0
    %2394 = vmatpush1.xpose.msra.mxu0 0.0
    %2395 = vmatprep.subr.mxu0 0.0
    %2396 = vmatpush1.xpose.msra.mxu0 0.0
    %2397 = vmatprep.subr.mxu0 0.0
    %2398 = vmatpush1.xpose.msra.mxu0 0.0
    %2399 = vmatprep.subr.mxu0 0.0
    %2400 = vmatpush1.xpose.msra.mxu0 0.0
    %2401 = vmatprep.subr.mxu0 0.0
    %2402 = vmatpush1.xpose.msra.mxu0 0.0
    %2403 = vmatprep.subr.mxu0 0.0
    %2404 = vmatpush1.xpose.msra.mxu0 0.0
    %2405 = vmatprep.subr.mxu0 0.0
    %2406 = vmatpush1.xpose.msra.mxu0 0.0
    %2407 = vmatprep.subr.mxu0 0.0
    %2408 = vmatpush1.xpose.msra.mxu0 0.0
    %2409 = vmatprep.mubr.f32.mxu0 %v2332
    %2410 = vmatmul.mubr.f32.gmra.mrb[0].mxu0 %v2331
    %v2411 = vpop.f32.mrb[0].mxu0
    %v2412 = vadd.f32 0.0, %v2411
    %v2413 = vpop.f32.mrb[0].mxu0
    %2414 = vdwg.mxu0
    %2415 = vmatprep.subr.mxu0 %v2057
    %2416 = vmatpush1.xpose.msra.mxu0 %v2056
    %2417 = vmatprep.subr.mxu0 %v2062
    %2418 = vmatpush1.xpose.msra.mxu0 %v2061
    %2419 = vmatprep.subr.mxu0 0.0
    %2420 = vmatpush1.xpose.msra.mxu0 0.0
    %2421 = vmatprep.subr.mxu0 0.0
    %2422 = vmatpush1.xpose.msra.mxu0 0.0
    %2423 = vmatprep.subr.mxu0 0.0
    %2424 = vmatpush1.xpose.msra.mxu0 0.0
    %2425 = vmatprep.subr.mxu0 0.0
    %2426 = vmatpush1.xpose.msra.mxu0 0.0
    %2427 = vmatprep.subr.mxu0 0.0
    %2428 = vmatpush1.xpose.msra.mxu0 0.0
    %2429 = vmatprep.subr.mxu0 0.0
    %2430 = vmatpush1.xpose.msra.mxu0 0.0
    %2431 = vmatprep.subr.mxu0 0.0
    %2432 = vmatpush1.xpose.msra.mxu0 0.0
    %2433 = vmatprep.subr.mxu0 0.0
    %2434 = vmatpush1.xpose.msra.mxu0 0.0
    %2435 = vmatprep.subr.mxu0 0.0
    %2436 = vmatpush1.xpose.msra.mxu0 0.0
    %2437 = vmatprep.subr.mxu0 0.0
    %2438 = vmatpush1.xpose.msra.mxu0 0.0
    %2439 = vmatprep.subr.mxu0 0.0
    %2440 = vmatpush1.xpose.msra.mxu0 0.0
    %2441 = vmatprep.subr.mxu0 0.0
    %2442 = vmatpush1.xpose.msra.mxu0 0.0
    %2443 = vmatprep.subr.mxu0 0.0
    %2444 = vmatpush1.xpose.msra.mxu0 0.0
    %2445 = vmatprep.subr.mxu0 0.0
    %2446 = vmatpush1.xpose.msra.mxu0 0.0
    %2447 = vmatprep.subr.mxu0 0.0
    %2448 = vmatpush1.xpose.msra.mxu0 0.0
    %2449 = vmatprep.subr.mxu0 0.0
    %2450 = vmatpush1.xpose.msra.mxu0 0.0
    %2451 = vmatprep.subr.mxu0 0.0
    %2452 = vmatpush1.xpose.msra.mxu0 0.0
    %2453 = vmatprep.subr.mxu0 0.0
    %2454 = vmatpush1.xpose.msra.mxu0 0.0
    %2455 = vmatprep.subr.mxu0 0.0
    %2456 = vmatpush1.xpose.msra.mxu0 0.0
    %2457 = vmatprep.subr.mxu0 0.0
    %2458 = vmatpush1.xpose.msra.mxu0 0.0
    %2459 = vmatprep.subr.mxu0 0.0
    %2460 = vmatpush1.xpose.msra.mxu0 0.0
    %2461 = vmatprep.subr.mxu0 0.0
    %2462 = vmatpush1.xpose.msra.mxu0 0.0
    %2463 = vmatprep.subr.mxu0 0.0
    %2464 = vmatpush1.xpose.msra.mxu0 0.0
    %2465 = vmatprep.subr.mxu0 0.0
    %2466 = vmatpush1.xpose.msra.mxu0 0.0
    %2467 = vmatprep.subr.mxu0 0.0
    %2468 = vmatpush1.xpose.msra.mxu0 0.0
    %2469 = vmatprep.subr.mxu0 0.0
    %2470 = vmatpush1.xpose.msra.mxu0 0.0
    %2471 = vmatprep.subr.mxu0 0.0
    %2472 = vmatpush1.xpose.msra.mxu0 0.0
    %2473 = vmatprep.subr.mxu0 0.0
    %2474 = vmatpush1.xpose.msra.mxu0 0.0
    %2475 = vmatprep.subr.mxu0 0.0
    %2476 = vmatpush1.xpose.msra.mxu0 0.0
    %2477 = vmatprep.subr.mxu0 0.0
    %2478 = vmatpush1.xpose.msra.mxu0 0.0
    %2479 = vmatprep.mubr.f32.mxu0 %v2334
    %2480 = vmatmul.mubr.f32.gmra.mrb[0].mxu0 %v2333
    %v2481 = vpop.f32.mrb[0].mxu0
    %v2482 = vadd.f32 %v2412, %v2481
    %v2483 = vpop.f32.mrb[0].mxu0
    %2484 = vdwg.mxu0
    %2485 = vmatprep.subr.mxu0 0.0
    %2486 = vmatpush1.xpose.msra.mxu0 %v2340
    %2487 = vmatprep.subr.mxu0 0.0
    %2488 = vmatpush1.xpose.msra.mxu0 %v2343
    %2489 = vmatprep.subr.mxu0 0.0
    %2490 = vmatpush1.xpose.msra.mxu0 0.0
    %2491 = vmatprep.subr.mxu0 0.0
    %2492 = vmatpush1.xpose.msra.mxu0 0.0
    %2493 = vmatprep.subr.mxu0 0.0
    %2494 = vmatpush1.xpose.msra.mxu0 0.0
    %2495 = vmatprep.subr.mxu0 0.0
    %2496 = vmatpush1.xpose.msra.mxu0 0.0
    %2497 = vmatprep.subr.mxu0 0.0
    %2498 = vmatpush1.xpose.msra.mxu0 0.0
    %2499 = vmatprep.subr.mxu0 0.0
    %2500 = vmatpush1.xpose.msra.mxu0 0.0
    %2501 = vmatprep.subr.mxu0 0.0
    %2502 = vmatpush1.xpose.msra.mxu0 0.0
    %2503 = vmatprep.subr.mxu0 0.0
    %2504 = vmatpush1.xpose.msra.mxu0 0.0
    %2505 = vmatprep.subr.mxu0 0.0
    %2506 = vmatpush1.xpose.msra.mxu0 0.0
    %2507 = vmatprep.subr.mxu0 0.0
    %2508 = vmatpush1.xpose.msra.mxu0 0.0
    %2509 = vmatprep.subr.mxu0 0.0
    %2510 = vmatpush1.xpose.msra.mxu0 0.0
    %2511 = vmatprep.subr.mxu0 0.0
    %2512 = vmatpush1.xpose.msra.mxu0 0.0
    %2513 = vmatprep.subr.mxu0 0.0
    %2514 = vmatpush1.xpose.msra.mxu0 0.0
    %2515 = vmatprep.subr.mxu0 0.0
    %2516 = vmatpush1.xpose.msra.mxu0 0.0
    %2517 = vmatprep.subr.mxu0 0.0
    %2518 = vmatpush1.xpose.msra.mxu0 0.0
    %2519 = vmatprep.subr.mxu0 0.0
    %2520 = vmatpush1.xpose.msra.mxu0 0.0
    %2521 = vmatprep.subr.mxu0 0.0
    %2522 = vmatpush1.xpose.msra.mxu0 0.0
    %2523 = vmatprep.subr.mxu0 0.0
    %2524 = vmatpush1.xpose.msra.mxu0 0.0
    %2525 = vmatprep.subr.mxu0 0.0
    %2526 = vmatpush1.xpose.msra.mxu0 0.0
    %2527 = vmatprep.subr.mxu0 0.0
    %2528 = vmatpush1.xpose.msra.mxu0 0.0
    %2529 = vmatprep.subr.mxu0 0.0
    %2530 = vmatpush1.xpose.msra.mxu0 0.0
    %2531 = vmatprep.subr.mxu0 0.0
    %2532 = vmatpush1.xpose.msra.mxu0 0.0
    %2533 = vmatprep.subr.mxu0 0.0
    %2534 = vmatpush1.xpose.msra.mxu0 0.0
    %2535 = vmatprep.subr.mxu0 0.0
    %2536 = vmatpush1.xpose.msra.mxu0 0.0
    %2537 = vmatprep.subr.mxu0 0.0
    %2538 = vmatpush1.xpose.msra.mxu0 0.0
    %2539 = vmatprep.subr.mxu0 0.0
    %2540 = vmatpush1.xpose.msra.mxu0 0.0
    %2541 = vmatprep.subr.mxu0 0.0
    %2542 = vmatpush1.xpose.msra.mxu0 0.0
    %2543 = vmatprep.subr.mxu0 0.0
    %2544 = vmatpush1.xpose.msra.mxu0 0.0
    %2545 = vmatprep.subr.mxu0 0.0
    %2546 = vmatpush1.xpose.msra.mxu0 0.0
    %2547 = vmatprep.subr.mxu0 0.0
    %2548 = vmatpush1.xpose.msra.mxu0 0.0
    %2549 = vmatprep.mubr.f32.mxu0 0.0
    %2550 = vmatmul.mubr.f32.gmra.mrb[0].mxu0 %v2337
    %v2551 = vpop.f32.mrb[0].mxu0
    %v2552 = vadd.f32 %v2482, %v2551
    %v2553 = vpop.f32.mrb[0].mxu0
    %2554 = vdwg.mxu0
    %v2555 = vmul.f32 %v2552, 0.020833334
    %v2556 = vmul.f32 %v2555, %v2555
    %v2558 = vrot.slane %v2556, 7
    %v2560 = vsub.f32 %v2555, %v2558
    %v2561 = vmax.f32 %v2560, 0.0
    %v2562 = vld [vmem:[%s4] sm:$0x1]
    %v2563 = vadd.f32 %v2561, 1e-05
    %v2564 = vrsqrt.pop %v2563
    %v2567 = vunpack.c.l.s4 1966171168
    %v2568 = vunpack.c.0.s8 %v2567
    %v2569 = vlaneseq
    %v2570 = vshrl.u32 %v2569, 7
    %v2571 = vsub.s32 %v2568, %v2570
    %v2572 = vrot.slane %v2564, %v2571
    %v2573 = vcombine.high %v2572, %v2572
    %v2575 = vunpack.c.l.s4 1966171168
    %v2576 = vunpack.c.0.s8 %v2575
    %v2577 = vlaneseq
    %v2578 = vshrl.u32 %v2577, 7
    %v2579 = vsub.s32 %v2576, %v2578
    %v2580 = vrot.slane %v2573, %v2579
    %v2582 = vmul.f32 %v2562, %v2580
    %s2583 = scalar_lea.vmem %s4, 1
    %v2584 = vld [vmem:[%s2583] sm:$0x1]
    %v2585 = vmul.f32 %v2555, %v2582
    %v2586 = vsub.f32 %v2584, %v2585
    %v2588 = vlaneseq
    %v2589 = vshrl.u32 %v2588, 7
    %v2590 = vsub.s32 0, %v2589
    %v2591 = vrot.slane %v2586, %v2590
    %v2593 = vsel %vm2330, %v2582, %v2591
    %vm2594 = vcmask 97280
    %v2596 = vsel %vm2594, %v2593, 0
    %vm2598 = vcmask 1043456
    %v2600 = vsel %vm2598, %v2059, 0
    %v2603 = vsel %vm2598, %v2060, 0
    %v2606 = vsel %vm2598, %v2061, 0
    %v2609 = vsel %vm2598, %v2062, 0
    %v2611 = vsel %vm2598, %v2063, 0
    %2613 = vmatprep.subr.mxu0 %v2055
    %2614 = vmatpush1.msra.mxu0 %v2054
    %2615 = vmatprep.subr.mxu0 %v2603
    %2616 = vmatpush1.msra.mxu0 %v2600
    %2617 = vmatprep.subr.mxu0 0.0
    %2618 = vmatpush1.msra.mxu0 0.0
    %2619 = vmatprep.subr.mxu0 0.0
    %2620 = vmatpush1.msra.mxu0 0.0
    %2621 = vmatprep.subr.mxu0 0.0
    %2622 = vmatpush1.msra.mxu0 0.0
    %2623 = vmatprep.subr.mxu0 0.0
    %2624 = vmatpush1.msra.mxu0 0.0
    %2625 = vmatprep.subr.mxu0 0.0
    %2626 = vmatpush1.msra.mxu0 0.0
    %2627 = vmatprep.subr.mxu0 0.0
    %2628 = vmatpush1.msra.mxu0 0.0
    %2629 = vmatprep.subr.mxu0 0.0
    %2630 = vmatpush1.msra.mxu0 0.0
    %2631 = vmatprep.subr.mxu0 0.0
    %2632 = vmatpush1.msra.mxu0 0.0
    %2633 = vmatprep.subr.mxu0 0.0
    %2634 = vmatpush1.msra.mxu0 0.0
    %2635 = vmatprep.subr.mxu0 0.0
    %2636 = vmatpush1.msra.mxu0 0.0
    %2637 = vmatprep.subr.mxu0 0.0
    %2638 = vmatpush1.msra.mxu0 0.0
    %2639 = vmatprep.subr.mxu0 0.0
    %2640 = vmatpush1.msra.mxu0 0.0
    %2641 = vmatprep.subr.mxu0 0.0
    %2642 = vmatpush1.msra.mxu0 0.0
    %2643 = vmatprep.subr.mxu0 0.0
    %2644 = vmatpush1.msra.mxu0 0.0
    %2645 = vmatprep.subr.mxu0 0.0
    %2646 = vmatpush1.msra.mxu0 0.0
    %2647 = vmatprep.subr.mxu0 0.0
    %2648 = vmatpush1.msra.mxu0 0.0
    %2649 = vmatprep.subr.mxu0 0.0
    %2650 = vmatpush1.msra.mxu0 0.0
    %2651 = vmatprep.subr.mxu0 0.0
    %2652 = vmatpush1.msra.mxu0 0.0
    %2653 = vmatprep.subr.mxu0 0.0
    %2654 = vmatpush1.msra.mxu0 0.0
    %2655 = vmatprep.subr.mxu0 0.0
    %2656 = vmatpush1.msra.mxu0 0.0
    %2657 = vmatprep.subr.mxu0 0.0
    %2658 = vmatpush1.msra.mxu0 0.0
    %2659 = vmatprep.subr.mxu0 0.0
    %2660 = vmatpush1.msra.mxu0 0.0
    %2661 = vmatprep.subr.mxu0 0.0
    %2662 = vmatpush1.msra.mxu0 0.0
    %2663 = vmatprep.subr.mxu0 0.0
    %2664 = vmatpush1.msra.mxu0 0.0
    %2665 = vmatprep.subr.mxu0 0.0
    %2666 = vmatpush1.msra.mxu0 0.0
    %2667 = vmatprep.subr.mxu0 0.0
    %2668 = vmatpush1.msra.mxu0 0.0
    %2669 = vmatprep.subr.mxu0 0.0
    %2670 = vmatpush1.msra.mxu0 0.0
    %2671 = vmatprep.subr.mxu0 0.0
    %2672 = vmatpush1.msra.mxu0 0.0
    %2673 = vmatprep.subr.mxu0 0.0
    %2674 = vmatpush1.msra.mxu0 0.0
    %2675 = vmatprep.subr.mxu0 0.0
    %2676 = vmatpush1.msra.mxu0 0.0
    %2677 = vmatprep.mubr.f32.mxu0 0.0
    %2678 = vmatmul.mubr.f32.gmra.mrb[0].mxu0 %v2596
    %v2679 = vpop.f32.mrb[0].mxu0
    %v2680 = vadd.f32 0.0, %v2679
    %v2681 = vpop.f32.mrb[0].mxu0
    %v2682 = vadd.f32 0.0, %v2681
    %2683 = vdwg.mxu0
    %2684 = vmatprep.subr.mxu0 %v2057
    %2685 = vmatpush1.msra.mxu0 %v2056
    %2686 = vmatprep.subr.mxu0 %v2609
    %2687 = vmatpush1.msra.mxu0 %v2606
    %2688 = vmatprep.subr.mxu0 0.0
    %2689 = vmatpush1.msra.mxu0 0.0
    %2690 = vmatprep.subr.mxu0 0.0
    %2691 = vmatpush1.msra.mxu0 0.0
    %2692 = vmatprep.subr.mxu0 0.0
    %2693 = vmatpush1.msra.mxu0 0.0
    %2694 = vmatprep.subr.mxu0 0.0
    %2695 = vmatpush1.msra.mxu0 0.0
    %2696 = vmatprep.subr.mxu0 0.0
    %2697 = vmatpush1.msra.mxu0 0.0
    %2698 = vmatprep.subr.mxu0 0.0
    %2699 = vmatpush1.msra.mxu0 0.0
    %2700 = vmatprep.subr.mxu0 0.0
    %2701 = vmatpush1.msra.mxu0 0.0
    %2702 = vmatprep.subr.mxu0 0.0
    %2703 = vmatpush1.msra.mxu0 0.0
    %2704 = vmatprep.subr.mxu0 0.0
    %2705 = vmatpush1.msra.mxu0 0.0
    %2706 = vmatprep.subr.mxu0 0.0
    %2707 = vmatpush1.msra.mxu0 0.0
    %2708 = vmatprep.subr.mxu0 0.0
    %2709 = vmatpush1.msra.mxu0 0.0
    %2710 = vmatprep.subr.mxu0 0.0
    %2711 = vmatpush1.msra.mxu0 0.0
    %2712 = vmatprep.subr.mxu0 0.0
    %2713 = vmatpush1.msra.mxu0 0.0
    %2714 = vmatprep.subr.mxu0 0.0
    %2715 = vmatpush1.msra.mxu0 0.0
    %2716 = vmatprep.subr.mxu0 0.0
    %2717 = vmatpush1.msra.mxu0 0.0
    %2718 = vmatprep.subr.mxu0 0.0
    %2719 = vmatpush1.msra.mxu0 0.0
    %2720 = vmatprep.subr.mxu0 0.0
    %2721 = vmatpush1.msra.mxu0 0.0
    %2722 = vmatprep.subr.mxu0 0.0
    %2723 = vmatpush1.msra.mxu0 0.0
    %2724 = vmatprep.subr.mxu0 0.0
    %2725 = vmatpush1.msra.mxu0 0.0
    %2726 = vmatprep.subr.mxu0 0.0
    %2727 = vmatpush1.msra.mxu0 0.0
    %2728 = vmatprep.subr.mxu0 0.0
    %2729 = vmatpush1.msra.mxu0 0.0
    %2730 = vmatprep.subr.mxu0 0.0
    %2731 = vmatpush1.msra.mxu0 0.0
    %2732 = vmatprep.subr.mxu0 0.0
    %2733 = vmatpush1.msra.mxu0 0.0
    %2734 = vmatprep.subr.mxu0 0.0
    %2735 = vmatpush1.msra.mxu0 0.0
    %2736 = vmatprep.subr.mxu0 0.0
    %2737 = vmatpush1.msra.mxu0 0.0
    %2738 = vmatprep.subr.mxu0 0.0
    %2739 = vmatpush1.msra.mxu0 0.0
    %2740 = vmatprep.subr.mxu0 0.0
    %2741 = vmatpush1.msra.mxu0 0.0
    %2742 = vmatprep.subr.mxu0 0.0
    %2743 = vmatpush1.msra.mxu0 0.0
    %2744 = vmatprep.subr.mxu0 0.0
    %2745 = vmatpush1.msra.mxu0 0.0
    %2746 = vmatprep.subr.mxu0 0.0
    %2747 = vmatpush1.msra.mxu0 0.0
    %2748 = vmatprep.mubr.f32.mxu0 0.0
    %2749 = vmatmul.mubr.f32.gmra.mrb[0].mxu0 %v2596
    %v2750 = vpop.f32.mrb[0].mxu0
    %v2751 = vadd.f32 0.0, %v2750
    %v2752 = vpop.f32.mrb[0].mxu0
    %v2753 = vadd.f32 0.0, %v2752
    %2754 = vdwg.mxu0
    %2755 = vmatprep.subr.mxu0 0.0
    %2756 = vmatpush1.msra.mxu0 %v2058
    %2757 = vmatprep.subr.mxu0 0.0
    %2758 = vmatpush1.msra.mxu0 %v2611
    %2759 = vmatprep.subr.mxu0 0.0
    %2760 = vmatpush1.msra.mxu0 0.0
    %2761 = vmatprep.subr.mxu0 0.0
    %2762 = vmatpush1.msra.mxu0 0.0
    %2763 = vmatprep.subr.mxu0 0.0
    %2764 = vmatpush1.msra.mxu0 0.0
    %2765 = vmatprep.subr.mxu0 0.0
    %2766 = vmatpush1.msra.mxu0 0.0
    %2767 = vmatprep.subr.mxu0 0.0
    %2768 = vmatpush1.msra.mxu0 0.0
    %2769 = vmatprep.subr.mxu0 0.0
    %2770 = vmatpush1.msra.mxu0 0.0
    %2771 = vmatprep.subr.mxu0 0.0
    %2772 = vmatpush1.msra.mxu0 0.0
    %2773 = vmatprep.subr.mxu0 0.0
    %2774 = vmatpush1.msra.mxu0 0.0
    %2775 = vmatprep.subr.mxu0 0.0
    %2776 = vmatpush1.msra.mxu0 0.0
    %2777 = vmatprep.subr.mxu0 0.0
    %2778 = vmatpush1.msra.mxu0 0.0
    %2779 = vmatprep.subr.mxu0 0.0
    %2780 = vmatpush1.msra.mxu0 0.0
    %2781 = vmatprep.subr.mxu0 0.0
    %2782 = vmatpush1.msra.mxu0 0.0
    %2783 = vmatprep.subr.mxu0 0.0
    %2784 = vmatpush1.msra.mxu0 0.0
    %2785 = vmatprep.subr.mxu0 0.0
    %2786 = vmatpush1.msra.mxu0 0.0
    %2787 = vmatprep.subr.mxu0 0.0
    %2788 = vmatpush1.msra.mxu0 0.0
    %2789 = vmatprep.subr.mxu0 0.0
    %2790 = vmatpush1.msra.mxu0 0.0
    %2791 = vmatprep.subr.mxu0 0.0
    %2792 = vmatpush1.msra.mxu0 0.0
    %2793 = vmatprep.subr.mxu0 0.0
    %2794 = vmatpush1.msra.mxu0 0.0
    %2795 = vmatprep.subr.mxu0 0.0
    %2796 = vmatpush1.msra.mxu0 0.0
    %2797 = vmatprep.subr.mxu0 0.0
    %2798 = vmatpush1.msra.mxu0 0.0
    %2799 = vmatprep.subr.mxu0 0.0
    %2800 = vmatpush1.msra.mxu0 0.0
    %2801 = vmatprep.subr.mxu0 0.0
    %2802 = vmatpush1.msra.mxu0 0.0
    %2803 = vmatprep.subr.mxu0 0.0
    %2804 = vmatpush1.msra.mxu0 0.0
    %2805 = vmatprep.subr.mxu0 0.0
    %2806 = vmatpush1.msra.mxu0 0.0
    %2807 = vmatprep.subr.mxu0 0.0
    %2808 = vmatpush1.msra.mxu0 0.0
    %2809 = vmatprep.subr.mxu0 0.0
    %2810 = vmatpush1.msra.mxu0 0.0
    %2811 = vmatprep.subr.mxu0 0.0
    %2812 = vmatpush1.msra.mxu0 0.0
    %2813 = vmatprep.subr.mxu0 0.0
    %2814 = vmatpush1.msra.mxu0 0.0
    %2815 = vmatprep.subr.mxu0 0.0
    %2816 = vmatpush1.msra.mxu0 0.0
    %2817 = vmatprep.subr.mxu0 0.0
    %2818 = vmatpush1.msra.mxu0 0.0
    %2819 = vmatprep.mubr.f32.mxu0 0.0
    %2820 = vmatmul.mubr.f32.gmra.mrb[0].mxu0 %v2596
    %v2821 = vpop.f32.mrb[0].mxu0
    %v2822 = vadd.f32 0.0, %v2821
    %v2823 = vpop.f32.mrb[0].mxu0
    %2824 = vdwg.mxu0
    %v2825 = vlaneseq
    %v2826 = vshrl.u32 %v2825, 7
    %v2827 = vsub.s32 0, %v2826
    %v2828 = vrot.slane %v2680, %v2827
    %v2829 = vlaneseq
    %v2830 = vshrl.u32 %v2829, 7
    %v2831 = vsub.s32 0, %v2830
    %v2832 = vrot.slane %v2682, %v2831
    %v2833 = vlaneseq
    %v2834 = vshrl.u32 %v2833, 7
    %v2835 = vsub.s32 0, %v2834
    %v2836 = vrot.slane %v2751, %v2835
    %v2837 = vlaneseq
    %v2838 = vshrl.u32 %v2837, 7
    %v2839 = vsub.s32 0, %v2838
    %v2840 = vrot.slane %v2753, %v2839
    %v2841 = vlaneseq
    %v2842 = vshrl.u32 %v2841, 7
    %v2843 = vsub.s32 0, %v2842
    %v2844 = vrot.slane %v2822, %v2843
    %v2845 = vmul.f32 %v1648, %v2828
    %v2846 = vmul.f32 %v1650, %v2832
    %v2847 = vmul.f32 %v1834, %v2836
    %v2848 = vmul.f32 %v1836, %v2840
    %v2849 = vmul.f32 %v2008, %v2844
    %v2850 = vmul.f32 %v1652, %v2828
    %v2851 = vmul.f32 %v1654, %v2832
    %v2852 = vmul.f32 %v1838, %v2836
    %v2853 = vmul.f32 %v1840, %v2840
    %v2854 = vmul.f32 %v2011, %v2844
    %v2855 = vmul.f32 %v1658, %v2828
    %v2856 = vmul.f32 %v1660, %v2832
    %v2857 = vmul.f32 %v1844, %v2836
    %v2858 = vmul.f32 %v1846, %v2840
    %v2859 = vmul.f32 %v2016, %v2844
    %v2860 = vmul.f32 %v1662, %v2828
    %v2861 = vmul.f32 %v1664, %v2832
    %v2862 = vmul.f32 %v1848, %v2836
    %v2863 = vmul.f32 %v1850, %v2840
    %v2864 = vmul.f32 %v2019, %v2844
    %v2865 = vmul.f32 %v1668, %v2828
    %v2866 = vmul.f32 %v1670, %v2832
    %v2867 = vmul.f32 %v1854, %v2836
    %v2868 = vmul.f32 %v1856, %v2840
    %v2869 = vmul.f32 %v2024, %v2844
    %v2870 = vmul.f32 %v1672, %v2828
    %v2871 = vmul.f32 %v1674, %v2832
    %v2872 = vmul.f32 %v1858, %v2836
    %v2873 = vmul.f32 %v1860, %v2840
    %v2874 = vmul.f32 %v2027, %v2844
    %v2875 = vmul.f32 %v1678, %v2828
    %v2876 = vmul.f32 %v1680, %v2832
    %v2877 = vmul.f32 %v1864, %v2836
    %v2878 = vmul.f32 %v1866, %v2840
    %v2879 = vmul.f32 %v2032, %v2844
    %v2880 = vmul.f32 %v1682, %v2828
    %v2881 = vmul.f32 %v1684, %v2832
    %v2882 = vmul.f32 %v1868, %v2836
    %v2883 = vmul.f32 %v1870, %v2840
    %v2884 = vmul.f32 %v2035, %v2844
    %v2885 = vmul.f32 %v1688, %v2828
    %v2886 = vmul.f32 %v1690, %v2832
    %v2887 = vmul.f32 %v1874, %v2836
    %v2888 = vmul.f32 %v1876, %v2840
    %v2889 = vmul.f32 %v2040, %v2844
    %v2890 = vmul.f32 %v1692, %v2828
    %v2891 = vmul.f32 %v1694, %v2832
    %v2892 = vmul.f32 %v1878, %v2836
    %v2893 = vmul.f32 %v1880, %v2840
    %v2894 = vmul.f32 %v2043, %v2844
    %v2895 = vmul.f32 %v1698, %v2828
    %v2896 = vmul.f32 %v1700, %v2832
    %v2897 = vmul.f32 %v1884, %v2836
    %v2898 = vmul.f32 %v1886, %v2840
    %v2899 = vmul.f32 %v2048, %v2844
    %v2900 = vmul.f32 %v1702, %v2828
    %v2901 = vmul.f32 %v1704, %v2832
    %v2902 = vmul.f32 %v1888, %v2836
    %v2903 = vmul.f32 %v1890, %v2840
    %v2904 = vmul.f32 %v2051, %v2844
    %v2905 = vlaneseq
    %v2906 = vshrl.u32 %v2905, 7
    %v2907 = vsub.s32 1, %v2906
    %v2908 = vrot.slane %v2680, %v2907
    %v2909 = vlaneseq
    %v2910 = vshrl.u32 %v2909, 7
    %v2911 = vsub.s32 1, %v2910
    %v2912 = vrot.slane %v2682, %v2911
    %v2913 = vlaneseq
    %v2914 = vshrl.u32 %v2913, 7
    %v2915 = vsub.s32 1, %v2914
    %v2916 = vrot.slane %v2751, %v2915
    %v2917 = vlaneseq
    %v2918 = vshrl.u32 %v2917, 7
    %v2919 = vsub.s32 1, %v2918
    %v2920 = vrot.slane %v2753, %v2919
    %v2921 = vlaneseq
    %v2922 = vshrl.u32 %v2921, 7
    %v2923 = vsub.s32 1, %v2922
    %v2924 = vrot.slane %v2822, %v2923
    %v2925 = vadd.f32 %v2845, %v2908
    %v2926 = vadd.f32 %v2846, %v2912
    %v2927 = vadd.f32 %v2847, %v2916
    %v2928 = vadd.f32 %v2848, %v2920
    %v2929 = vadd.f32 %v2849, %v2924
    %v2930 = vadd.f32 %v2850, %v2908
    %v2931 = vadd.f32 %v2851, %v2912
    %v2932 = vadd.f32 %v2852, %v2916
    %v2933 = vadd.f32 %v2853, %v2920
    %v2934 = vadd.f32 %v2854, %v2924
    %v2935 = vadd.f32 %v2855, %v2908
    %v2936 = vadd.f32 %v2856, %v2912
    %v2937 = vadd.f32 %v2857, %v2916
    %v2938 = vadd.f32 %v2858, %v2920
    %v2939 = vadd.f32 %v2859, %v2924
    %v2940 = vadd.f32 %v2860, %v2908
    %v2941 = vadd.f32 %v2861, %v2912
    %v2942 = vadd.f32 %v2862, %v2916
    %v2943 = vadd.f32 %v2863, %v2920
    %v2944 = vadd.f32 %v2864, %v2924
    %v2945 = vadd.f32 %v2865, %v2908
    %v2946 = vadd.f32 %v2866, %v2912
    %v2947 = vadd.f32 %v2867, %v2916
    %v2948 = vadd.f32 %v2868, %v2920
    %v2949 = vadd.f32 %v2869, %v2924
    %v2950 = vadd.f32 %v2870, %v2908
    %v2951 = vadd.f32 %v2871, %v2912
    %v2952 = vadd.f32 %v2872, %v2916
    %v2953 = vadd.f32 %v2873, %v2920
    %v2954 = vadd.f32 %v2874, %v2924
    %v2955 = vadd.f32 %v2875, %v2908
    %v2956 = vadd.f32 %v2876, %v2912
    %v2957 = vadd.f32 %v2877, %v2916
    %v2958 = vadd.f32 %v2878, %v2920
    %v2959 = vadd.f32 %v2879, %v2924
    %v2960 = vadd.f32 %v2880, %v2908
    %v2961 = vadd.f32 %v2881, %v2912
    %v2962 = vadd.f32 %v2882, %v2916
    %v2963 = vadd.f32 %v2883, %v2920
    %v2964 = vadd.f32 %v2884, %v2924
    %v2965 = vadd.f32 %v2885, %v2908
    %v2966 = vadd.f32 %v2886, %v2912
    %v2967 = vadd.f32 %v2887, %v2916
    %v2968 = vadd.f32 %v2888, %v2920
    %v2969 = vadd.f32 %v2889, %v2924
    %v2970 = vadd.f32 %v2890, %v2908
    %v2971 = vadd.f32 %v2891, %v2912
    %v2972 = vadd.f32 %v2892, %v2916
    %v2973 = vadd.f32 %v2893, %v2920
    %v2974 = vadd.f32 %v2894, %v2924
    %v2975 = vadd.f32 %v2895, %v2908
    %v2976 = vadd.f32 %v2896, %v2912
    %v2977 = vadd.f32 %v2897, %v2916
    %v2978 = vadd.f32 %v2898, %v2920
    %v2979 = vadd.f32 %v2899, %v2924
    %v2980 = vadd.f32 %v2900, %v2908
    %v2981 = vadd.f32 %v2901, %v2912
    %v2982 = vadd.f32 %v2902, %v2916
    %v2983 = vadd.f32 %v2903, %v2920
    %v2984 = vadd.f32 %v2904, %v2924
    %v2985 = vmax.f32 %v2925, 0.0
    %v2986 = vmax.f32 %v2926, 0.0
    %v2987 = vmax.f32 %v2927, 0.0
    %v2988 = vmax.f32 %v2928, 0.0
    %v2989 = vmax.f32 %v2929, 0.0
    %v2990 = vmax.f32 %v2930, 0.0
    %v2991 = vmax.f32 %v2931, 0.0
    %v2992 = vmax.f32 %v2932, 0.0
    %v2993 = vmax.f32 %v2933, 0.0
    %v2994 = vmax.f32 %v2934, 0.0
    %v2995 = vmax.f32 %v2935, 0.0
    %v2996 = vmax.f32 %v2936, 0.0
    %v2997 = vmax.f32 %v2937, 0.0
    %v2998 = vmax.f32 %v2938, 0.0
    %v2999 = vmax.f32 %v2939, 0.0
    %v3000 = vmax.f32 %v2940, 0.0
    %v3001 = vmax.f32 %v2941, 0.0
    %v3002 = vmax.f32 %v2942, 0.0
    %v3003 = vmax.f32 %v2943, 0.0
    %v3004 = vmax.f32 %v2944, 0.0
    %v3005 = vmax.f32 %v2945, 0.0
    %v3006 = vmax.f32 %v2946, 0.0
    %v3007 = vmax.f32 %v2947, 0.0
    %v3008 = vmax.f32 %v2948, 0.0
    %v3009 = vmax.f32 %v2949, 0.0
    %v3010 = vmax.f32 %v2950, 0.0
    %v3011 = vmax.f32 %v2951, 0.0
    %v3012 = vmax.f32 %v2952, 0.0
    %v3013 = vmax.f32 %v2953, 0.0
    %v3014 = vmax.f32 %v2954, 0.0
    %v3015 = vmax.f32 %v2955, 0.0
    %v3016 = vmax.f32 %v2956, 0.0
    %v3017 = vmax.f32 %v2957, 0.0
    %v3018 = vmax.f32 %v2958, 0.0
    %v3019 = vmax.f32 %v2959, 0.0
    %v3020 = vmax.f32 %v2960, 0.0
    %v3021 = vmax.f32 %v2961, 0.0
    %v3022 = vmax.f32 %v2962, 0.0
    %v3023 = vmax.f32 %v2963, 0.0
    %v3024 = vmax.f32 %v2964, 0.0
    %v3025 = vmax.f32 %v2965, 0.0
    %v3026 = vmax.f32 %v2966, 0.0
    %v3027 = vmax.f32 %v2967, 0.0
    %v3028 = vmax.f32 %v2968, 0.0
    %v3029 = vmax.f32 %v2969, 0.0
    %v3030 = vmax.f32 %v2970, 0.0
    %v3031 = vmax.f32 %v2971, 0.0
    %v3032 = vmax.f32 %v2972, 0.0
    %v3033 = vmax.f32 %v2973, 0.0
    %v3034 = vmax.f32 %v2974, 0.0
    %v3035 = vmax.f32 %v2975, 0.0
    %v3036 = vmax.f32 %v2976, 0.0
    %v3037 = vmax.f32 %v2977, 0.0
    %v3038 = vmax.f32 %v2978, 0.0
    %v3039 = vmax.f32 %v2979, 0.0
    %v3040 = vmax.f32 %v2980, 0.0
    %v3041 = vmax.f32 %v2981, 0.0
    %v3042 = vmax.f32 %v2982, 0.0
    %v3043 = vmax.f32 %v2983, 0.0
    %v3044 = vmax.f32 %v2984, 0.0
    %v3045 = vrot.slane %v2985, 1
    %v3046 = vrot.slane %v2986, 1
    %v3047 = vrot.slane %v2987, 1
    %v3048 = vrot.slane %v2988, 1
    %v3049 = vrot.slane %v2989, 1
    %v3050 = vrot.slane %v2990, 1
    %v3051 = vrot.slane %v2991, 1
    %v3052 = vrot.slane %v2992, 1
    %v3053 = vrot.slane %v2993, 1
    %v3054 = vrot.slane %v2994, 1
    %v3055 = vrot.slane %v2995, 1
    %v3056 = vrot.slane %v2996, 1
    %v3057 = vrot.slane %v2997, 1
    %v3058 = vrot.slane %v2998, 1
    %v3059 = vrot.slane %v2999, 1
    %v3060 = vrot.slane %v3000, 1
    %v3061 = vrot.slane %v3001, 1
    %v3062 = vrot.slane %v3002, 1
    %v3063 = vrot.slane %v3003, 1
    %v3064 = vrot.slane %v3004, 1
    %v3065 = vrot.slane %v3005, 1
    %v3066 = vrot.slane %v3006, 1
    %v3067 = vrot.slane %v3007, 1
    %v3068 = vrot.slane %v3008, 1
    %v3069 = vrot.slane %v3009, 1
    %v3070 = vrot.slane %v3010, 1
    %v3071 = vrot.slane %v3011, 1
    %v3072 = vrot.slane %v3012, 1
    %v3073 = vrot.slane %v3013, 1
    %v3074 = vrot.slane %v3014, 1
    %v3075 = vrot.slane %v3015, 1
    %v3076 = vrot.slane %v3016, 1
    %v3077 = vrot.slane %v3017, 1
    %v3078 = vrot.slane %v3018, 1
    %v3079 = vrot.slane %v3019, 1
    %v3080 = vrot.slane %v3020, 1
    %v3081 = vrot.slane %v3021, 1
    %v3082 = vrot.slane %v3022, 1
    %v3083 = vrot.slane %v3023, 1
    %v3084 = vrot.slane %v3024, 1
    %v3085 = vrot.slane %v3025, 1
    %v3086 = vrot.slane %v3026, 1
    %v3087 = vrot.slane %v3027, 1
    %v3088 = vrot.slane %v3028, 1
    %v3089 = vrot.slane %v3029, 1
    %v3090 = vrot.slane %v3030, 1
    %v3091 = vrot.slane %v3031, 1
    %v3092 = vrot.slane %v3032, 1
    %v3093 = vrot.slane %v3033, 1
    %v3094 = vrot.slane %v3034, 1
    %v3095 = vrot.slane %v3035, 1
    %v3096 = vrot.slane %v3036, 1
    %v3097 = vrot.slane %v3037, 1
    %v3098 = vrot.slane %v3038, 1
    %v3099 = vrot.slane %v3039, 1
    %v3100 = vrot.slane %v3040, 1
    %v3101 = vrot.slane %v3041, 1
    %v3102 = vrot.slane %v3042, 1
    %v3103 = vrot.slane %v3043, 1
    %v3104 = vrot.slane %v3044, 1
    %v3105 = vsel %vm274, %v3095, %v3100
    %v3106 = vsel %vm274, %v3096, %v3101
    %v3107 = vsel %vm274, %v3097, %v3102
    %v3108 = vsel %vm274, %v3098, %v3103
    %v3109 = vsel %vm274, %v3099, %v3104
    %v3110 = vsel %vm274, %v3090, %v3095
    %v3111 = vsel %vm274, %v3091, %v3096
    %v3112 = vsel %vm274, %v3092, %v3097
    %v3113 = vsel %vm274, %v3093, %v3098
    %v3114 = vsel %vm274, %v3094, %v3099
    %v3115 = vsel %vm274, %v3085, %v3090
    %v3116 = vsel %vm274, %v3086, %v3091
    %v3117 = vsel %vm274, %v3087, %v3092
    %v3118 = vsel %vm274, %v3088, %v3093
    %v3119 = vsel %vm274, %v3089, %v3094
    %v3120 = vsel %vm274, %v3080, %v3085
    %v3121 = vsel %vm274, %v3081, %v3086
    %v3122 = vsel %vm274, %v3082, %v3087
    %v3123 = vsel %vm274, %v3083, %v3088
    %v3124 = vsel %vm274, %v3084, %v3089
    %v3125 = vsel %vm274, %v3075, %v3080
    %v3126 = vsel %vm274, %v3076, %v3081
    %v3127 = vsel %vm274, %v3077, %v3082
    %v3128 = vsel %vm274, %v3078, %v3083
    %v3129 = vsel %vm274, %v3079, %v3084
    %v3130 = vsel %vm274, %v3070, %v3075
    %v3131 = vsel %vm274, %v3071, %v3076
    %v3132 = vsel %vm274, %v3072, %v3077
    %v3133 = vsel %vm274, %v3073, %v3078
    %v3134 = vsel %vm274, %v3074, %v3079
    %v3135 = vsel %vm274, %v3065, %v3070
    %v3136 = vsel %vm274, %v3066, %v3071
    %v3137 = vsel %vm274, %v3067, %v3072
    %v3138 = vsel %vm274, %v3068, %v3073
    %v3139 = vsel %vm274, %v3069, %v3074
    %v3140 = vsel %vm274, %v3060, %v3065
    %v3141 = vsel %vm274, %v3061, %v3066
    %v3142 = vsel %vm274, %v3062, %v3067
    %v3143 = vsel %vm274, %v3063, %v3068
    %v3144 = vsel %vm274, %v3064, %v3069
    %v3145 = vsel %vm274, %v3055, %v3060
    %v3146 = vsel %vm274, %v3056, %v3061
    %v3147 = vsel %vm274, %v3057, %v3062
    %v3148 = vsel %vm274, %v3058, %v3063
    %v3149 = vsel %vm274, %v3059, %v3064
    %v3150 = vsel %vm274, %v3050, %v3055
    %v3151 = vsel %vm274, %v3051, %v3056
    %v3152 = vsel %vm274, %v3052, %v3057
    %v3153 = vsel %vm274, %v3053, %v3058
    %v3154 = vsel %vm274, %v3054, %v3059
    %v3155 = vsel %vm274, %v3045, %v3050
    %v3156 = vsel %vm274, %v3046, %v3051
    %v3157 = vsel %vm274, %v3047, %v3052
    %v3158 = vsel %vm274, %v3048, %v3053
    %v3159 = vsel %vm274, %v3049, %v3054
    %v3160 = vsel %vm274, %v3100, %v3045
    %v3161 = vsel %vm274, %v3101, %v3046
    %v3162 = vsel %vm274, %v3102, %v3047
    %v3163 = vsel %vm274, %v3103, %v3048
    %v3164 = vsel %vm274, %v3104, %v3049
    %v3165 = vmax.f32 %v2985, %v3155
    %v3166 = vmax.f32 %v2986, %v3156
    %v3167 = vmax.f32 %v2987, %v3157
    %v3168 = vmax.f32 %v2988, %v3158
    %v3169 = vmax.f32 %v2989, %v3159
    %v3170 = vmax.f32 %v2990, %v3150
    %v3171 = vmax.f32 %v2991, %v3151
    %v3172 = vmax.f32 %v2992, %v3152
    %v3173 = vmax.f32 %v2993, %v3153
    %v3174 = vmax.f32 %v2994, %v3154
    %v3175 = vmax.f32 %v2995, %v3145
    %v3176 = vmax.f32 %v2996, %v3146
    %v3177 = vmax.f32 %v2997, %v3147
    %v3178 = vmax.f32 %v2998, %v3148
    %v3179 = vmax.f32 %v2999, %v3149
    %v3180 = vmax.f32 %v3000, %v3140
    %v3181 = vmax.f32 %v3001, %v3141
    %v3182 = vmax.f32 %v3002, %v3142
    %v3183 = vmax.f32 %v3003, %v3143
    %v3184 = vmax.f32 %v3004, %v3144
    %v3185 = vmax.f32 %v3005, %v3135
    %v3186 = vmax.f32 %v3006, %v3136
    %v3187 = vmax.f32 %v3007, %v3137
    %v3188 = vmax.f32 %v3008, %v3138
    %v3189 = vmax.f32 %v3009, %v3139
    %v3190 = vmax.f32 %v3010, %v3130
    %v3191 = vmax.f32 %v3011, %v3131
    %v3192 = vmax.f32 %v3012, %v3132
    %v3193 = vmax.f32 %v3013, %v3133
    %v3194 = vmax.f32 %v3014, %v3134
    %v3195 = vmax.f32 %v3015, %v3125
    %v3196 = vmax.f32 %v3016, %v3126
    %v3197 = vmax.f32 %v3017, %v3127
    %v3198 = vmax.f32 %v3018, %v3128
    %v3199 = vmax.f32 %v3019, %v3129
    %v3200 = vmax.f32 %v3020, %v3120
    %v3201 = vmax.f32 %v3021, %v3121
    %v3202 = vmax.f32 %v3022, %v3122
    %v3203 = vmax.f32 %v3023, %v3123
    %v3204 = vmax.f32 %v3024, %v3124
    %v3205 = vmax.f32 %v3025, %v3115
    %v3206 = vmax.f32 %v3026, %v3116
    %v3207 = vmax.f32 %v3027, %v3117
    %v3208 = vmax.f32 %v3028, %v3118
    %v3209 = vmax.f32 %v3029, %v3119
    %v3210 = vmax.f32 %v3030, %v3110
    %v3211 = vmax.f32 %v3031, %v3111
    %v3212 = vmax.f32 %v3032, %v3112
    %v3213 = vmax.f32 %v3033, %v3113
    %v3214 = vmax.f32 %v3034, %v3114
    %v3215 = vmax.f32 %v3035, %v3105
    %v3216 = vmax.f32 %v3036, %v3106
    %v3217 = vmax.f32 %v3037, %v3107
    %v3218 = vmax.f32 %v3038, %v3108
    %v3219 = vmax.f32 %v3039, %v3109
    %v3220 = vmax.f32 %v3040, %v3160
    %v3221 = vmax.f32 %v3041, %v3161
    %v3222 = vmax.f32 %v3042, %v3162
    %v3223 = vmax.f32 %v3043, %v3163
    %v3224 = vmax.f32 %v3044, %v3164
    %v3225 = vpack.c.bf16 %v3170, %v3165
    %v3226 = vpack.c.bf16 %v3171, %v3166
    %v3227 = vpack.c.bf16 %v3172, %v3167
    %v3228 = vpack.c.bf16 %v3173, %v3168
    %v3229 = vpack.c.bf16 %v3174, %v3169
    %v3230 = vpack.c.bf16 %v3180, %v3175
    %v3231 = vpack.c.bf16 %v3181, %v3176
    %v3232 = vpack.c.bf16 %v3182, %v3177
    %v3233 = vpack.c.bf16 %v3183, %v3178
    %v3234 = vpack.c.bf16 %v3184, %v3179
    %v3235 = vpack.c.bf16 %v3190, %v3185
    %v3236 = vpack.c.bf16 %v3191, %v3186
    %v3237 = vpack.c.bf16 %v3192, %v3187
    %v3238 = vpack.c.bf16 %v3193, %v3188
    %v3239 = vpack.c.bf16 %v3194, %v3189
    %v3240 = vpack.c.bf16 %v3200, %v3195
    %v3241 = vpack.c.bf16 %v3201, %v3196
    %v3242 = vpack.c.bf16 %v3202, %v3197
    %v3243 = vpack.c.bf16 %v3203, %v3198
    %v3244 = vpack.c.bf16 %v3204, %v3199
    %v3245 = vpack.c.bf16 %v3210, %v3205
    %v3246 = vpack.c.bf16 %v3211, %v3206
    %v3247 = vpack.c.bf16 %v3212, %v3207
    %v3248 = vpack.c.bf16 %v3213, %v3208
    %v3249 = vpack.c.bf16 %v3214, %v3209
    %v3250 = vpack.c.bf16 %v3220, %v3215
    %v3251 = vpack.c.bf16 %v3221, %v3216
    %v3252 = vpack.c.bf16 %v3222, %v3217
    %v3253 = vpack.c.bf16 %v3223, %v3218
    %v3254 = vpack.c.bf16 %v3224, %v3219
    %v3255 = vld [vmem:[%s5] sm:$0xf]
    %v3256 = vld [vmem:[%s5 + $0x4] sm:$0xf]
    %v3257 = vld [vmem:[%s5 + $0x8] sm:$0xf]
    %v3258 = vld [vmem:[%s5 + $0xc] sm:$0xf]
    %v3259 = vld [vmem:[%s5 + $0x10] sm:$0xf]
    %v3260 = vld [vmem:[%s5 + $0x14] sm:$0xf]
    %v3267 = vunpack.c.l.b16 %v3255
    %v3268 = vunpack.c.l.b16 %v3256
    %v3269 = vunpack.c.l.b16 %v3257
    %v3270 = vunpack.c.l.b16 %v3258
    %v3271 = vunpack.c.l.b16 %v3259
    %v3272 = vunpack.c.l.b16 %v3260
    %v3273 = vpack.c.b16 %v3268, %v3267
    %v3274 = vpack.c.b16 %v3270, %v3269
    %v3275 = vpack.c.b16 %v3272, %v3271
    %vm3276 = vcmask 785408
    %v3278 = vsel %vm3276, %v3273, 0
    %v3281 = vsel %vm3276, %v3274, 0
    %v3284 = vsel %vm3276, %v3275, 0
    %3286 = vmatprep.subr.bf16.mxu0 %v3226
    %3287 = vmatpush1.bf16.msra.mxu0 %v3225
    %3288 = vmatprep.subr.bf16.mxu0 %v3231
    %3289 = vmatpush1.bf16.msra.mxu0 %v3230
    %3290 = vmatprep.subr.bf16.mxu0 %v3236
    %3291 = vmatpush1.bf16.msra.mxu0 %v3235
    %3292 = vmatprep.subr.bf16.mxu0 %v3241
    %3293 = vmatpush1.bf16.msra.mxu0 %v3240
    %3294 = vmatprep.subr.bf16.mxu0 %v3246
    %3295 = vmatpush1.bf16.msra.mxu0 %v3245
    %3296 = vmatprep.subr.bf16.mxu0 %v3251
    %3297 = vmatpush1.bf16.msra.mxu0 %v3250
    %3298 = vmatprep.subr.bf16.mxu0 0
    %3299 = vmatpush1.bf16.msra.mxu0 0
    %3300 = vmatprep.subr.bf16.mxu0 0
    %3301 = vmatpush1.bf16.msra.mxu0 0
    %3302 = vmatprep.subr.bf16.mxu0 0
    %3303 = vmatpush1.bf16.msra.mxu0 0
    %3304 = vmatprep.subr.bf16.mxu0 0
    %3305 = vmatpush1.bf16.msra.mxu0 0
    %3306 = vmatprep.subr.bf16.mxu0 0
    %3307 = vmatpush1.bf16.msra.mxu0 0
    %3308 = vmatprep.subr.bf16.mxu0 0
    %3309 = vmatpush1.bf16.msra.mxu0 0
    %3310 = vmatprep.subr.bf16.mxu0 0
    %3311 = vmatpush1.bf16.msra.mxu0 0
    %3312 = vmatprep.subr.bf16.mxu0 0
    %3313 = vmatpush1.bf16.msra.mxu0 0
    %3314 = vmatprep.subr.bf16.mxu0 0
    %3315 = vmatpush1.bf16.msra.mxu0 0
    %3316 = vmatprep.subr.bf16.mxu0 0
    %3317 = vmatpush1.bf16.msra.mxu0 0
    %3318 = vmatprep.mubr.bf16.mxu0 0
    %3319 = vmatmul.mubr.bf16.gmra.mrb[0].mxu0 %v3278
    %v3320 = vpop.f32.mrb[0].mxu0
    %v3321 = vadd.f32 0.0, %v3320
    %v3322 = vpop.f32.mrb[0].mxu0
    %v3323 = vadd.f32 0.0, %v3322
    %v3324 = vpop.f32.mrb[0].mxu0
    %v3325 = vadd.f32 0.0, %v3324
    %v3326 = vpop.f32.mrb[0].mxu0
    %v3327 = vadd.f32 0.0, %v3326
    %3328 = vmatprep.mubr.bf16.mxu0 0
    %3329 = vmatmul.mubr.bf16.gmra.mrb[0].mxu0 %v3281
    %v3330 = vpop.f32.mrb[0].mxu0
    %v3331 = vadd.f32 0.0, %v3330
    %v3332 = vpop.f32.mrb[0].mxu0
    %v3333 = vadd.f32 0.0, %v3332
    %v3334 = vpop.f32.mrb[0].mxu0
    %v3335 = vadd.f32 0.0, %v3334
    %v3336 = vpop.f32.mrb[0].mxu0
    %v3337 = vadd.f32 0.0, %v3336
    %3338 = vmatprep.mubr.bf16.mxu0 0
    %3339 = vmatmul.mubr.bf16.gmra.mrb[0].mxu0 %v3284
    %v3340 = vpop.f32.mrb[0].mxu0
    %v3341 = vadd.f32 0.0, %v3340
    %v3342 = vpop.f32.mrb[0].mxu0
    %v3343 = vadd.f32 0.0, %v3342
    %v3344 = vpop.f32.mrb[0].mxu0
    %v3345 = vadd.f32 0.0, %v3344
    %v3346 = vpop.f32.mrb[0].mxu0
    %v3347 = vadd.f32 0.0, %v3346
    %3348 = vdwg.mxu0
    %3349 = vmatprep.subr.bf16.mxu0 %v3228
    %3350 = vmatpush1.bf16.msra.mxu0 %v3227
    %3351 = vmatprep.subr.bf16.mxu0 %v3233
    %3352 = vmatpush1.bf16.msra.mxu0 %v3232
    %3353 = vmatprep.subr.bf16.mxu0 %v3238
    %3354 = vmatpush1.bf16.msra.mxu0 %v3237
    %3355 = vmatprep.subr.bf16.mxu0 %v3243
    %3356 = vmatpush1.bf16.msra.mxu0 %v3242
    %3357 = vmatprep.subr.bf16.mxu0 %v3248
    %3358 = vmatpush1.bf16.msra.mxu0 %v3247
    %3359 = vmatprep.subr.bf16.mxu0 %v3253
    %3360 = vmatpush1.bf16.msra.mxu0 %v3252
    %3361 = vmatprep.subr.bf16.mxu0 0
    %3362 = vmatpush1.bf16.msra.mxu0 0
    %3363 = vmatprep.subr.bf16.mxu0 0
    %3364 = vmatpush1.bf16.msra.mxu0 0
    %3365 = vmatprep.subr.bf16.mxu0 0
    %3366 = vmatpush1.bf16.msra.mxu0 0
    %3367 = vmatprep.subr.bf16.mxu0 0
    %3368 = vmatpush1.bf16.msra.mxu0 0
    %3369 = vmatprep.subr.bf16.mxu0 0
    %3370 = vmatpush1.bf16.msra.mxu0 0
    %3371 = vmatprep.subr.bf16.mxu0 0
    %3372 = vmatpush1.bf16.msra.mxu0 0
    %3373 = vmatprep.subr.bf16.mxu0 0
    %3374 = vmatpush1.bf16.msra.mxu0 0
    %3375 = vmatprep.subr.bf16.mxu0 0
    %3376 = vmatpush1.bf16.msra.mxu0 0
    %3377 = vmatprep.subr.bf16.mxu0 0
    %3378 = vmatpush1.bf16.msra.mxu0 0
    %3379 = vmatprep.subr.bf16.mxu0 0
    %3380 = vmatpush1.bf16.msra.mxu0 0
    %3381 = vmatprep.mubr.bf16.mxu0 0
    %3382 = vmatmul.mubr.bf16.gmra.mrb[0].mxu0 %v3278
    %v3383 = vpop.f32.mrb[0].mxu0
    %v3384 = vadd.f32 0.0, %v3383
    %v3385 = vpop.f32.mrb[0].mxu0
    %v3386 = vadd.f32 0.0, %v3385
    %v3387 = vpop.f32.mrb[0].mxu0
    %v3388 = vadd.f32 0.0, %v3387
    %v3389 = vpop.f32.mrb[0].mxu0
    %v3390 = vadd.f32 0.0, %v3389
    %3391 = vmatprep.mubr.bf16.mxu0 0
    %3392 = vmatmul.mubr.bf16.gmra.mrb[0].mxu0 %v3281
    %v3393 = vpop.f32.mrb[0].mxu0
    %v3394 = vadd.f32 0.0, %v3393
    %v3395 = vpop.f32.mrb[0].mxu0
    %v3396 = vadd.f32 0.0, %v3395
    %v3397 = vpop.f32.mrb[0].mxu0
    %v3398 = vadd.f32 0.0, %v3397
    %v3399 = vpop.f32.mrb[0].mxu0
    %v3400 = vadd.f32 0.0, %v3399
    %3401 = vmatprep.mubr.bf16.mxu0 0
    %3402 = vmatmul.mubr.bf16.gmra.mrb[0].mxu0 %v3284
    %v3403 = vpop.f32.mrb[0].mxu0
    %v3404 = vadd.f32 0.0, %v3403
    %v3405 = vpop.f32.mrb[0].mxu0
    %v3406 = vadd.f32 0.0, %v3405
    %v3407 = vpop.f32.mrb[0].mxu0
    %v3408 = vadd.f32 0.0, %v3407
    %v3409 = vpop.f32.mrb[0].mxu0
    %v3410 = vadd.f32 0.0, %v3409
    %3411 = vdwg.mxu0
    %3412 = vmatprep.subr.bf16.mxu0 0
    %3413 = vmatpush1.bf16.msra.mxu0 %v3229
    %3414 = vmatprep.subr.bf16.mxu0 0
    %3415 = vmatpush1.bf16.msra.mxu0 %v3234
    %3416 = vmatprep.subr.bf16.mxu0 0
    %3417 = vmatpush1.bf16.msra.mxu0 %v3239
    %3418 = vmatprep.subr.bf16.mxu0 0
    %3419 = vmatpush1.bf16.msra.mxu0 %v3244
    %3420 = vmatprep.subr.bf16.mxu0 0
    %3421 = vmatpush1.bf16.msra.mxu0 %v3249
    %3422 = vmatprep.subr.bf16.mxu0 0
    %3423 = vmatpush1.bf16.msra.mxu0 %v3254
    %3424 = vmatprep.subr.bf16.mxu0 0
    %3425 = vmatpush1.bf16.msra.mxu0 0
    %3426 = vmatprep.subr.bf16.mxu0 0
    %3427 = vmatpush1.bf16.msra.mxu0 0
    %3428 = vmatprep.subr.bf16.mxu0 0
    %3429 = vmatpush1.bf16.msra.mxu0 0
    %3430 = vmatprep.subr.bf16.mxu0 0
    %3431 = vmatpush1.bf16.msra.mxu0 0
    %3432 = vmatprep.subr.bf16.mxu0 0
    %3433 = vmatpush1.bf16.msra.mxu0 0
    %3434 = vmatprep.subr.bf16.mxu0 0
    %3435 = vmatpush1.bf16.msra.mxu0 0
    %3436 = vmatprep.subr.bf16.mxu0 0
    %3437 = vmatpush1.bf16.msra.mxu0 0
    %3438 = vmatprep.subr.bf16.mxu0 0
    %3439 = vmatpush1.bf16.msra.mxu0 0
    %3440 = vmatprep.subr.bf16.mxu0 0
    %3441 = vmatpush1.bf16.msra.mxu0 0
    %3442 = vmatprep.subr.bf16.mxu0 0
    %3443 = vmatpush1.bf16.msra.mxu0 0
    %3444 = vmatprep.mubr.bf16.mxu0 0
    %3445 = vmatmul.mubr.bf16.gmra.mrb[0].mxu0 %v3278
    %v3446 = vpop.f32.mrb[0].mxu0
    %v3447 = vadd.f32 0.0, %v3446
    %v3448 = vpop.f32.mrb[0].mxu0
    %v3449 = vpop.f32.mrb[0].mxu0
    %v3450 = vadd.f32 0.0, %v3449
    %v3451 = vpop.f32.mrb[0].mxu0
    %3452 = vmatprep.mubr.bf16.mxu0 0
    %3453 = vmatmul.mubr.bf16.gmra.mrb[0].mxu0 %v3281
    %v3454 = vpop.f32.mrb[0].mxu0
    %v3455 = vadd.f32 0.0, %v3454
    %v3456 = vpop.f32.mrb[0].mxu0
    %v3457 = vpop.f32.mrb[0].mxu0
    %v3458 = vadd.f32 0.0, %v3457
    %v3459 = vpop.f32.mrb[0].mxu0
    %3460 = vmatprep.mubr.bf16.mxu0 0
    %3461 = vmatmul.mubr.bf16.gmra.mrb[0].mxu0 %v3284
    %v3462 = vpop.f32.mrb[0].mxu0
    %v3463 = vadd.f32 0.0, %v3462
    %v3464 = vpop.f32.mrb[0].mxu0
    %v3465 = vpop.f32.mrb[0].mxu0
    %v3466 = vadd.f32 0.0, %v3465
    %v3467 = vpop.f32.mrb[0].mxu0
    %3468 = vdwg.mxu0
    %v3469 = vpack.c.bf16 %v3325, %v3321
    %v3470 = vpack.c.bf16 %v3327, %v3323
    %v3471 = vpack.c.bf16 %v3388, %v3384
    %v3472 = vpack.c.bf16 %v3390, %v3386
    %v3473 = vpack.c.bf16 %v3450, %v3447
    %v3474 = vpack.c.bf16 %v3335, %v3331
    %v3475 = vpack.c.bf16 %v3337, %v3333
    %v3476 = vpack.c.bf16 %v3398, %v3394
    %v3477 = vpack.c.bf16 %v3400, %v3396
    %v3478 = vpack.c.bf16 %v3458, %v3455
    %v3479 = vpack.c.bf16 %v3345, %v3341
    %v3480 = vpack.c.bf16 %v3347, %v3343
    %v3481 = vpack.c.bf16 %v3408, %v3404
    %v3482 = vpack.c.bf16 %v3410, %v3406
    %v3483 = vpack.c.bf16 %v3466, %v3463
    %v3484 = vld [vmem:[%s6] sm:$0xff]
    %v3485 = vld [vmem:[%s6 + $0x8] sm:$0xf]
    %v3486 = vld [vmem:[%s6 + $0xc] sm:$0xff]
    %v3487 = vld [vmem:[%s6 + $0x14] sm:$0xf]
    %v3488 = vld [vmem:[%s6 + $0x18] sm:$0xff]
    %v3489 = vld [vmem:[%s6 + $0x20] sm:$0xf]
    %v3490 = vld [vmem:[%s6 + $0x24] sm:$0xff]
    %v3491 = vld [vmem:[%s6 + $0x2c] sm:$0xf]
    %v3492 = vld [vmem:[%s6 + $0x30] sm:$0xff]
    %v3493 = vld [vmem:[%s6 + $0x38] sm:$0xf]
    %v3494 = vld [vmem:[%s6 + $0x3c] sm:$0xff]
    %v3495 = vld [vmem:[%s6 + $0x44] sm:$0xf]
    %v3496 = vld [vmem:[%s6 + $0x48] sm:$0xff]
    %v3497 = vld [vmem:[%s6 + $0x50] sm:$0xf]
    %v3498 = vld [vmem:[%s6 + $0x54] sm:$0xff]
    %v3499 = vld [vmem:[%s6 + $0x5c] sm:$0xf]
    %v3500 = vld [vmem:[%s6 + $0x60] sm:$0xff]
    %v3501 = vld [vmem:[%s6 + $0x68] sm:$0xf]
    %v3502 = vld [vmem:[%s6 + $0x6c] sm:$0xff]
    %v3503 = vld [vmem:[%s6 + $0x74] sm:$0xf]
    %v3504 = vld [vmem:[%s6 + $0x78] sm:$0xff]
    %v3505 = vld [vmem:[%s6 + $0x80] sm:$0xf]
    %v3506 = vld [vmem:[%s6 + $0x84] sm:$0xff]
    %v3507 = vld [vmem:[%s6 + $0x8c] sm:$0xf]
    %v3508 = vld [vmem:[%s6 + $0x90] sm:$0xff]
    %v3509 = vld [vmem:[%s6 + $0x98] sm:$0xf]
    %v3510 = vld [vmem:[%s6 + $0x9c] sm:$0xff]
    %v3511 = vld [vmem:[%s6 + $0xa4] sm:$0xf]
    %v3512 = vld [vmem:[%s6 + $0xa8] sm:$0xff]
    %v3513 = vld [vmem:[%s6 + $0xb0] sm:$0xf]
    %v3514 = vld [vmem:[%s6 + $0xb4] sm:$0xff]
    %v3515 = vld [vmem:[%s6 + $0xbc] sm:$0xf]
    %v3516 = vld [vmem:[%s6 + $0xc0] sm:$0xff]
    %v3517 = vld [vmem:[%s6 + $0xc8] sm:$0xf]
    %v3518 = vld [vmem:[%s6 + $0xcc] sm:$0xff]
    %v3519 = vld [vmem:[%s6 + $0xd4] sm:$0xf]
    %v3520 = vld [vmem:[%s6 + $0xd8] sm:$0xff]
    %v3521 = vld [vmem:[%s6 + $0xe0] sm:$0xf]
    %v3522 = vld [vmem:[%s6 + $0xe4] sm:$0xff]
    %v3523 = vld [vmem:[%s6 + $0xec] sm:$0xf]
    %v3524 = vld [vmem:[%s6 + $0xf0] sm:$0xff]
    %v3525 = vld [vmem:[%s6 + $0xf8] sm:$0xf]
    %v3526 = vld [vmem:[%s6 + $0xfc] sm:$0xff]
    %v3527 = vld [vmem:[%s6 + $0x104] sm:$0xf]
    %v3528 = vld [vmem:[%s6 + $0x108] sm:$0xff]
    %v3529 = vld [vmem:[%s6 + $0x110] sm:$0xf]
    %v3530 = vld [vmem:[%s6 + $0x114] sm:$0xff]
    %v3531 = vld [vmem:[%s6 + $0x11c] sm:$0xf]
    %v3532 = vld [vmem:[%s6 + $0x120] sm:$0xff]
    %v3533 = vld [vmem:[%s6 + $0x128] sm:$0xf]
    %v3534 = vld [vmem:[%s6 + $0x12c] sm:$0xff]
    %v3535 = vld [vmem:[%s6 + $0x134] sm:$0xf]
    %v3536 = vld [vmem:[%s6 + $0x138] sm:$0xff]
    %v3537 = vld [vmem:[%s6 + $0x140] sm:$0xf]
    %v3538 = vld [vmem:[%s6 + $0x144] sm:$0xff]
    %v3539 = vld [vmem:[%s6 + $0x14c] sm:$0xf]
    %v3540 = vld [vmem:[%s6 + $0x150] sm:$0xff]
    %v3541 = vld [vmem:[%s6 + $0x158] sm:$0xf]
    %v3542 = vld [vmem:[%s6 + $0x15c] sm:$0xff]
    %v3543 = vld [vmem:[%s6 + $0x164] sm:$0xf]
    %v3544 = vld [vmem:[%s6 + $0x168] sm:$0xff]
    %v3545 = vld [vmem:[%s6 + $0x170] sm:$0xf]
    %v3546 = vld [vmem:[%s6 + $0x174] sm:$0xff]
    %v3547 = vld [vmem:[%s6 + $0x17c] sm:$0xf]
    %v3548 = vld [vmem:[%s6 + $0x180] sm:$0xff]
    %v3549 = vld [vmem:[%s6 + $0x188] sm:$0xf]
    %v3550 = vld [vmem:[%s6 + $0x18c] sm:$0xff]
    %v3551 = vld [vmem:[%s6 + $0x194] sm:$0xf]
    %v3552 = vld [vmem:[%s6 + $0x198] sm:$0xff]
    %v3553 = vld [vmem:[%s6 + $0x1a0] sm:$0xf]
    %v3554 = vld [vmem:[%s6 + $0x1a4] sm:$0xff]
    %v3555 = vld [vmem:[%s6 + $0x1ac] sm:$0xf]
    %v3556 = vld [vmem:[%s6 + $0x1b0] sm:$0xff]
    %v3557 = vld [vmem:[%s6 + $0x1b8] sm:$0xf]
    %v3558 = vld [vmem:[%s6 + $0x1bc] sm:$0xff]
    %v3559 = vld [vmem:[%s6 + $0x1c4] sm:$0xf]
    %v3560 = vld [vmem:[%s6 + $0x1c8] sm:$0xff]
    %v3561 = vld [vmem:[%s6 + $0x1d0] sm:$0xf]
    %v3562 = vld [vmem:[%s6 + $0x1d4] sm:$0xff]
    %v3563 = vld [vmem:[%s6 + $0x1dc] sm:$0xf]
    %v3564 = vld [vmem:[%s6 + $0x1e0] sm:$0xff]
    %v3565 = vld [vmem:[%s6 + $0x1e8] sm:$0xf]
    %v3566 = vld [vmem:[%s6 + $0x1ec] sm:$0xff]
    %v3567 = vld [vmem:[%s6 + $0x1f4] sm:$0xf]
    %v3568 = vld [vmem:[%s6 + $0x1f8] sm:$0xff]
    %v3569 = vld [vmem:[%s6 + $0x200] sm:$0xf]
    %v3570 = vld [vmem:[%s6 + $0x204] sm:$0xff]
    %v3571 = vld [vmem:[%s6 + $0x20c] sm:$0xf]
    %v3572 = vld [vmem:[%s6 + $0x210] sm:$0xff]
    %v3573 = vld [vmem:[%s6 + $0x218] sm:$0xf]
    %v3574 = vld [vmem:[%s6 + $0x21c] sm:$0xff]
    %v3575 = vld [vmem:[%s6 + $0x224] sm:$0xf]
    %v3576 = vld [vmem:[%s6 + $0x228] sm:$0xff]
    %v3577 = vld [vmem:[%s6 + $0x230] sm:$0xf]
    %v3578 = vld [vmem:[%s6 + $0x234] sm:$0xff]
    %v3579 = vld [vmem:[%s6 + $0x23c] sm:$0xf]
    %v3580 = vld [vmem:[%s6 + $0x240] sm:$0xff]
    %v3581 = vld [vmem:[%s6 + $0x248] sm:$0xf]
    %v3582 = vld [vmem:[%s6 + $0x24c] sm:$0xff]
    %v3583 = vld [vmem:[%s6 + $0x254] sm:$0xf]
    %v3584 = vld [vmem:[%s6 + $0x258] sm:$0xff]
    %v3585 = vld [vmem:[%s6 + $0x260] sm:$0xf]
    %v3586 = vld [vmem:[%s6 + $0x264] sm:$0xff]
    %v3587 = vld [vmem:[%s6 + $0x26c] sm:$0xf]
    %v3588 = vld [vmem:[%s6 + $0x270] sm:$0xff]
    %v3589 = vld [vmem:[%s6 + $0x278] sm:$0xf]
    %v3590 = vld [vmem:[%s6 + $0x27c] sm:$0xff]
    %v3591 = vld [vmem:[%s6 + $0x284] sm:$0xf]
    %v3592 = vld [vmem:[%s6 + $0x288] sm:$0xff]
    %v3593 = vld [vmem:[%s6 + $0x290] sm:$0xf]
    %v3594 = vld [vmem:[%s6 + $0x294] sm:$0xff]
    %v3595 = vld [vmem:[%s6 + $0x29c] sm:$0xf]
    %v3596 = vld [vmem:[%s6 + $0x2a0] sm:$0xff]
    %v3597 = vld [vmem:[%s6 + $0x2a8] sm:$0xf]
    %v3598 = vld [vmem:[%s6 + $0x2ac] sm:$0xff]
    %v3599 = vld [vmem:[%s6 + $0x2b4] sm:$0xf]
    %v3600 = vld [vmem:[%s6 + $0x2b8] sm:$0xff]
    %v3601 = vld [vmem:[%s6 + $0x2c0] sm:$0xf]
    %v3602 = vld [vmem:[%s6 + $0x2c4] sm:$0xff]
    %v3603 = vld [vmem:[%s6 + $0x2cc] sm:$0xf]
    %v3604 = vld [vmem:[%s6 + $0x2d0] sm:$0xff]
    %v3605 = vld [vmem:[%s6 + $0x2d8] sm:$0xf]
    %v3606 = vld [vmem:[%s6 + $0x2dc] sm:$0xff]
    %v3607 = vld [vmem:[%s6 + $0x2e4] sm:$0xf]
    %v3608 = vld [vmem:[%s6 + $0x2e8] sm:$0xff]
    %v3609 = vld [vmem:[%s6 + $0x2f0] sm:$0xf]
    %v3610 = vld [vmem:[%s6 + $0x2f4] sm:$0xff]
    %v3611 = vld [vmem:[%s6 + $0x2fc] sm:$0xf]
    %v3612 = vld [vmem:[%s6 + $0x300] sm:$0xff]
    %v3613 = vld [vmem:[%s6 + $0x308] sm:$0xf]
    %v3614 = vld [vmem:[%s6 + $0x30c] sm:$0xff]
    %v3615 = vld [vmem:[%s6 + $0x314] sm:$0xf]
    %v3616 = vld [vmem:[%s6 + $0x318] sm:$0xff]
    %v3617 = vld [vmem:[%s6 + $0x320] sm:$0xf]
    %v3618 = vld [vmem:[%s6 + $0x324] sm:$0xff]
    %v3619 = vld [vmem:[%s6 + $0x32c] sm:$0xf]
    %v3620 = vld [vmem:[%s6 + $0x330] sm:$0xff]
    %v3621 = vld [vmem:[%s6 + $0x338] sm:$0xf]
    %v3622 = vld [vmem:[%s6 + $0x33c] sm:$0xff]
    %v3623 = vld [vmem:[%s6 + $0x344] sm:$0xf]
    %v3624 = vld [vmem:[%s6 + $0x348] sm:$0xff]
    %v3625 = vld [vmem:[%s6 + $0x350] sm:$0xf]
    %v3626 = vld [vmem:[%s6 + $0x354] sm:$0xff]
    %v3627 = vld [vmem:[%s6 + $0x35c] sm:$0xf]
    %v3772 = vunpack.c.l.b16 %v3484
    %v3773 = vunpack.c.h.b16 %v3484
    %v3774 = vunpack.c.l.b16 %v3485
    %v3775 = vunpack.c.l.b16 %v3486
    %v3776 = vunpack.c.h.b16 %v3486
    %v3777 = vunpack.c.l.b16 %v3487
    %v3778 = vunpack.c.l.b16 %v3488
    %v3779 = vunpack.c.h.b16 %v3488
    %v3780 = vunpack.c.l.b16 %v3489
    %v3781 = vunpack.c.l.b16 %v3490
    %v3782 = vunpack.c.h.b16 %v3490
    %v3783 = vunpack.c.l.b16 %v3491
    %v3784 = vunpack.c.l.b16 %v3492
    %v3785 = vunpack.c.h.b16 %v3492
    %v3786 = vunpack.c.l.b16 %v3493
    %v3787 = vunpack.c.l.b16 %v3494
    %v3788 = vunpack.c.h.b16 %v3494
    %v3789 = vunpack.c.l.b16 %v3495
    %v3790 = vunpack.c.l.b16 %v3496
    %v3791 = vunpack.c.h.b16 %v3496
    %v3792 = vunpack.c.l.b16 %v3497
    %v3793 = vunpack.c.l.b16 %v3498
    %v3794 = vunpack.c.h.b16 %v3498
    %v3795 = vunpack.c.l.b16 %v3499
    %v3796 = vunpack.c.l.b16 %v3500
    %v3797 = vunpack.c.h.b16 %v3500
    %v3798 = vunpack.c.l.b16 %v3501
    %v3799 = vunpack.c.l.b16 %v3502
    %v3800 = vunpack.c.h.b16 %v3502
    %v3801 = vunpack.c.l.b16 %v3503
    %v3802 = vunpack.c.l.b16 %v3504
    %v3803 = vunpack.c.h.b16 %v3504
    %v3804 = vunpack.c.l.b16 %v3505
    %v3805 = vunpack.c.l.b16 %v3506
    %v3806 = vunpack.c.h.b16 %v3506
    %v3807 = vunpack.c.l.b16 %v3507
    %v3808 = vunpack.c.l.b16 %v3508
    %v3809 = vunpack.c.h.b16 %v3508
    %v3810 = vunpack.c.l.b16 %v3509
    %v3811 = vunpack.c.l.b16 %v3510
    %v3812 = vunpack.c.h.b16 %v3510
    %v3813 = vunpack.c.l.b16 %v3511
    %v3814 = vunpack.c.l.b16 %v3512
    %v3815 = vunpack.c.h.b16 %v3512
    %v3816 = vunpack.c.l.b16 %v3513
    %v3817 = vunpack.c.l.b16 %v3514
    %v3818 = vunpack.c.h.b16 %v3514
    %v3819 = vunpack.c.l.b16 %v3515
    %v3820 = vunpack.c.l.b16 %v3516
    %v3821 = vunpack.c.h.b16 %v3516
    %v3822 = vunpack.c.l.b16 %v3517
    %v3823 = vunpack.c.l.b16 %v3518
    %v3824 = vunpack.c.h.b16 %v3518
    %v3825 = vunpack.c.l.b16 %v3519
    %v3826 = vunpack.c.l.b16 %v3520
    %v3827 = vunpack.c.h.b16 %v3520
    %v3828 = vunpack.c.l.b16 %v3521
    %v3829 = vunpack.c.l.b16 %v3522
    %v3830 = vunpack.c.h.b16 %v3522
    %v3831 = vunpack.c.l.b16 %v3523
    %v3832 = vunpack.c.l.b16 %v3524
    %v3833 = vunpack.c.h.b16 %v3524
    %v3834 = vunpack.c.l.b16 %v3525
    %v3835 = vunpack.c.l.b16 %v3526
    %v3836 = vunpack.c.h.b16 %v3526
    %v3837 = vunpack.c.l.b16 %v3527
    %v3838 = vunpack.c.l.b16 %v3528
    %v3839 = vunpack.c.h.b16 %v3528
    %v3840 = vunpack.c.l.b16 %v3529
    %v3841 = vunpack.c.l.b16 %v3530
    %v3842 = vunpack.c.h.b16 %v3530
    %v3843 = vunpack.c.l.b16 %v3531
    %v3844 = vunpack.c.l.b16 %v3532
    %v3845 = vunpack.c.h.b16 %v3532
    %v3846 = vunpack.c.l.b16 %v3533
    %v3847 = vunpack.c.l.b16 %v3534
    %v3848 = vunpack.c.h.b16 %v3534
    %v3849 = vunpack.c.l.b16 %v3535
    %v3850 = vunpack.c.l.b16 %v3536
    %v3851 = vunpack.c.h.b16 %v3536
    %v3852 = vunpack.c.l.b16 %v3537
    %v3853 = vunpack.c.l.b16 %v3538
    %v3854 = vunpack.c.h.b16 %v3538
    %v3855 = vunpack.c.l.b16 %v3539
    %v3856 = vunpack.c.l.b16 %v3540
    %v3857 = vunpack.c.h.b16 %v3540
    %v3858 = vunpack.c.l.b16 %v3541
    %v3859 = vunpack.c.l.b16 %v3542
    %v3860 = vunpack.c.h.b16 %v3542
    %v3861 = vunpack.c.l.b16 %v3543
    %v3862 = vunpack.c.l.b16 %v3544
    %v3863 = vunpack.c.h.b16 %v3544
    %v3864 = vunpack.c.l.b16 %v3545
    %v3865 = vunpack.c.l.b16 %v3546
    %v3866 = vunpack.c.h.b16 %v3546
    %v3867 = vunpack.c.l.b16 %v3547
    %v3868 = vunpack.c.l.b16 %v3548
    %v3869 = vunpack.c.h.b16 %v3548
    %v3870 = vunpack.c.l.b16 %v3549
    %v3871 = vunpack.c.l.b16 %v3550
    %v3872 = vunpack.c.h.b16 %v3550
    %v3873 = vunpack.c.l.b16 %v3551
    %v3874 = vunpack.c.l.b16 %v3552
    %v3875 = vunpack.c.h.b16 %v3552
    %v3876 = vunpack.c.l.b16 %v3553
    %v3877 = vunpack.c.l.b16 %v3554
    %v3878 = vunpack.c.h.b16 %v3554
    %v3879 = vunpack.c.l.b16 %v3555
    %v3880 = vunpack.c.l.b16 %v3556
    %v3881 = vunpack.c.h.b16 %v3556
    %v3882 = vunpack.c.l.b16 %v3557
    %v3883 = vunpack.c.l.b16 %v3558
    %v3884 = vunpack.c.h.b16 %v3558
    %v3885 = vunpack.c.l.b16 %v3559
    %v3886 = vunpack.c.l.b16 %v3560
    %v3887 = vunpack.c.h.b16 %v3560
    %v3888 = vunpack.c.l.b16 %v3561
    %v3889 = vunpack.c.l.b16 %v3562
    %v3890 = vunpack.c.h.b16 %v3562
    %v3891 = vunpack.c.l.b16 %v3563
    %v3892 = vunpack.c.l.b16 %v3564
    %v3893 = vunpack.c.h.b16 %v3564
    %v3894 = vunpack.c.l.b16 %v3565
    %v3895 = vunpack.c.l.b16 %v3566
    %v3896 = vunpack.c.h.b16 %v3566
    %v3897 = vunpack.c.l.b16 %v3567
    %v3898 = vunpack.c.l.b16 %v3568
    %v3899 = vunpack.c.h.b16 %v3568
    %v3900 = vunpack.c.l.b16 %v3569
    %v3901 = vunpack.c.l.b16 %v3570
    %v3902 = vunpack.c.h.b16 %v3570
    %v3903 = vunpack.c.l.b16 %v3571
    %v3904 = vunpack.c.l.b16 %v3572
    %v3905 = vunpack.c.h.b16 %v3572
    %v3906 = vunpack.c.l.b16 %v3573
    %v3907 = vunpack.c.l.b16 %v3574
    %v3908 = vunpack.c.h.b16 %v3574
    %v3909 = vunpack.c.l.b16 %v3575
    %v3910 = vunpack.c.l.b16 %v3576
    %v3911 = vunpack.c.h.b16 %v3576
    %v3912 = vunpack.c.l.b16 %v3577
    %v3913 = vunpack.c.l.b16 %v3578
    %v3914 = vunpack.c.h.b16 %v3578
    %v3915 = vunpack.c.l.b16 %v3579
    %v3916 = vunpack.c.l.b16 %v3580
    %v3917 = vunpack.c.h.b16 %v3580
    %v3918 = vunpack.c.l.b16 %v3581
    %v3919 = vunpack.c.l.b16 %v3582
    %v3920 = vunpack.c.h.b16 %v3582
    %v3921 = vunpack.c.l.b16 %v3583
    %v3922 = vunpack.c.l.b16 %v3584
    %v3923 = vunpack.c.h.b16 %v3584
    %v3924 = vunpack.c.l.b16 %v3585
    %v3925 = vunpack.c.l.b16 %v3586
    %v3926 = vunpack.c.h.b16 %v3586
    %v3927 = vunpack.c.l.b16 %v3587
    %v3928 = vunpack.c.l.b16 %v3588
    %v3929 = vunpack.c.h.b16 %v3588
    %v3930 = vunpack.c.l.b16 %v3589
    %v3931 = vunpack.c.l.b16 %v3590
    %v3932 = vunpack.c.h.b16 %v3590
    %v3933 = vunpack.c.l.b16 %v3591
    %v3934 = vunpack.c.l.b16 %v3592
    %v3935 = vunpack.c.h.b16 %v3592
    %v3936 = vunpack.c.l.b16 %v3593
    %v3937 = vunpack.c.l.b16 %v3594
    %v3938 = vunpack.c.h.b16 %v3594
    %v3939 = vunpack.c.l.b16 %v3595
    %v3940 = vunpack.c.l.b16 %v3596
    %v3941 = vunpack.c.h.b16 %v3596
    %v3942 = vunpack.c.l.b16 %v3597
    %v3943 = vunpack.c.l.b16 %v3598
    %v3944 = vunpack.c.h.b16 %v3598
    %v3945 = vunpack.c.l.b16 %v3599
    %v3946 = vunpack.c.l.b16 %v3600
    %v3947 = vunpack.c.h.b16 %v3600
    %v3948 = vunpack.c.l.b16 %v3601
    %v3949 = vunpack.c.l.b16 %v3602
    %v3950 = vunpack.c.h.b16 %v3602
    %v3951 = vunpack.c.l.b16 %v3603
    %v3952 = vunpack.c.l.b16 %v3604
    %v3953 = vunpack.c.h.b16 %v3604
    %v3954 = vunpack.c.l.b16 %v3605
    %v3955 = vunpack.c.l.b16 %v3606
    %v3956 = vunpack.c.h.b16 %v3606
    %v3957 = vunpack.c.l.b16 %v3607
    %v3958 = vunpack.c.l.b16 %v3608
    %v3959 = vunpack.c.h.b16 %v3608
    %v3960 = vunpack.c.l.b16 %v3609
    %v3961 = vunpack.c.l.b16 %v3610
    %v3962 = vunpack.c.h.b16 %v3610
    %v3963 = vunpack.c.l.b16 %v3611
    %v3964 = vunpack.c.l.b16 %v3612
    %v3965 = vunpack.c.h.b16 %v3612
    %v3966 = vunpack.c.l.b16 %v3613
    %v3967 = vunpack.c.l.b16 %v3614
    %v3968 = vunpack.c.h.b16 %v3614
    %v3969 = vunpack.c.l.b16 %v3615
    %v3970 = vunpack.c.l.b16 %v3616
    %v3971 = vunpack.c.h.b16 %v3616
    %v3972 = vunpack.c.l.b16 %v3617
    %v3973 = vunpack.c.l.b16 %v3618
    %v3974 = vunpack.c.h.b16 %v3618
    %v3975 = vunpack.c.l.b16 %v3619
    %v3976 = vunpack.c.l.b16 %v3620
    %v3977 = vunpack.c.h.b16 %v3620
    %v3978 = vunpack.c.l.b16 %v3621
    %v3979 = vunpack.c.l.b16 %v3622
    %v3980 = vunpack.c.h.b16 %v3622
    %v3981 = vunpack.c.l.b16 %v3623
    %v3982 = vunpack.c.l.b16 %v3624
    %v3983 = vunpack.c.h.b16 %v3624
    %v3984 = vunpack.c.l.b16 %v3625
    %v3985 = vunpack.c.l.b16 %v3626
    %v3986 = vunpack.c.h.b16 %v3626
    %v3987 = vunpack.c.l.b16 %v3627
    %v3988 = vpack.c.b16 %v3775, %v3772
    %v3989 = vpack.c.b16 %v3776, %v3773
    %v3990 = vpack.c.b16 %v3777, %v3774
    %v3991 = vpack.c.b16 %v3781, %v3778
    %v3992 = vpack.c.b16 %v3782, %v3779
    %v3993 = vpack.c.b16 %v3783, %v3780
    %v3994 = vpack.c.b16 %v3787, %v3784
    %v3995 = vpack.c.b16 %v3788, %v3785
    %v3996 = vpack.c.b16 %v3789, %v3786
    %v3997 = vpack.c.b16 %v3793, %v3790
    %v3998 = vpack.c.b16 %v3794, %v3791
    %v3999 = vpack.c.b16 %v3795, %v3792
    %v4000 = vpack.c.b16 %v3799, %v3796
    %v4001 = vpack.c.b16 %v3800, %v3797
    %v4002 = vpack.c.b16 %v3801, %v3798
    %v4003 = vpack.c.b16 %v3805, %v3802
    %v4004 = vpack.c.b16 %v3806, %v3803
    %v4005 = vpack.c.b16 %v3807, %v3804
    %v4006 = vpack.c.b16 %v3811, %v3808
    %v4007 = vpack.c.b16 %v3812, %v3809
    %v4008 = vpack.c.b16 %v3813, %v3810
    %v4009 = vpack.c.b16 %v3817, %v3814
    %v4010 = vpack.c.b16 %v3818, %v3815
    %v4011 = vpack.c.b16 %v3819, %v3816
    %v4012 = vpack.c.b16 %v3823, %v3820
    %v4013 = vpack.c.b16 %v3824, %v3821
    %v4014 = vpack.c.b16 %v3825, %v3822
    %v4015 = vpack.c.b16 %v3829, %v3826
    %v4016 = vpack.c.b16 %v3830, %v3827
    %v4017 = vpack.c.b16 %v3831, %v3828
    %v4018 = vpack.c.b16 %v3835, %v3832
    %v4019 = vpack.c.b16 %v3836, %v3833
    %v4020 = vpack.c.b16 %v3837, %v3834
    %v4021 = vpack.c.b16 %v3841, %v3838
    %v4022 = vpack.c.b16 %v3842, %v3839
    %v4023 = vpack.c.b16 %v3843, %v3840
    %v4024 = vpack.c.b16 %v3847, %v3844
    %v4025 = vpack.c.b16 %v3848, %v3845
    %v4026 = vpack.c.b16 %v3849, %v3846
    %v4027 = vpack.c.b16 %v3853, %v3850
    %v4028 = vpack.c.b16 %v3854, %v3851
    %v4029 = vpack.c.b16 %v3855, %v3852
    %v4030 = vpack.c.b16 %v3859, %v3856
    %v4031 = vpack.c.b16 %v3860, %v3857
    %v4032 = vpack.c.b16 %v3861, %v3858
    %v4033 = vpack.c.b16 %v3865, %v3862
    %v4034 = vpack.c.b16 %v3866, %v3863
    %v4035 = vpack.c.b16 %v3867, %v3864
    %v4036 = vpack.c.b16 %v3871, %v3868
    %v4037 = vpack.c.b16 %v3872, %v3869
    %v4038 = vpack.c.b16 %v3873, %v3870
    %v4039 = vpack.c.b16 %v3877, %v3874
    %v4040 = vpack.c.b16 %v3878, %v3875
    %v4041 = vpack.c.b16 %v3879, %v3876
    %v4042 = vpack.c.b16 %v3883, %v3880
    %v4043 = vpack.c.b16 %v3884, %v3881
    %v4044 = vpack.c.b16 %v3885, %v3882
    %v4045 = vpack.c.b16 %v3889, %v3886
    %v4046 = vpack.c.b16 %v3890, %v3887
    %v4047 = vpack.c.b16 %v3891, %v3888
    %v4048 = vpack.c.b16 %v3895, %v3892
    %v4049 = vpack.c.b16 %v3896, %v3893
    %v4050 = vpack.c.b16 %v3897, %v3894
    %v4051 = vpack.c.b16 %v3901, %v3898
    %v4052 = vpack.c.b16 %v3902, %v3899
    %v4053 = vpack.c.b16 %v3903, %v3900
    %v4054 = vpack.c.b16 %v3907, %v3904
    %v4055 = vpack.c.b16 %v3908, %v3905
    %v4056 = vpack.c.b16 %v3909, %v3906
    %v4057 = vpack.c.b16 %v3913, %v3910
    %v4058 = vpack.c.b16 %v3914, %v3911
    %v4059 = vpack.c.b16 %v3915, %v3912
    %v4060 = vpack.c.b16 %v3919, %v3916
    %v4061 = vpack.c.b16 %v3920, %v3917
    %v4062 = vpack.c.b16 %v3921, %v3918
    %v4063 = vpack.c.b16 %v3925, %v3922
    %v4064 = vpack.c.b16 %v3926, %v3923
    %v4065 = vpack.c.b16 %v3927, %v3924
    %v4066 = vpack.c.b16 %v3931, %v3928
    %v4067 = vpack.c.b16 %v3932, %v3929
    %v4068 = vpack.c.b16 %v3933, %v3930
    %v4069 = vpack.c.b16 %v3937, %v3934
    %v4070 = vpack.c.b16 %v3938, %v3935
    %v4071 = vpack.c.b16 %v3939, %v3936
    %v4072 = vpack.c.b16 %v3943, %v3940
    %v4073 = vpack.c.b16 %v3944, %v3941
    %v4074 = vpack.c.b16 %v3945, %v3942
    %v4075 = vpack.c.b16 %v3949, %v3946
    %v4076 = vpack.c.b16 %v3950, %v3947
    %v4077 = vpack.c.b16 %v3951, %v3948
    %v4078 = vpack.c.b16 %v3955, %v3952
    %v4079 = vpack.c.b16 %v3956, %v3953
    %v4080 = vpack.c.b16 %v3957, %v3954
    %v4081 = vpack.c.b16 %v3961, %v3958
    %v4082 = vpack.c.b16 %v3962, %v3959
    %v4083 = vpack.c.b16 %v3963, %v3960
    %v4084 = vpack.c.b16 %v3967, %v3964
    %v4085 = vpack.c.b16 %v3968, %v3965
    %v4086 = vpack.c.b16 %v3969, %v3966
    %v4087 = vpack.c.b16 %v3973, %v3970
    %v4088 = vpack.c.b16 %v3974, %v3971
    %v4089 = vpack.c.b16 %v3975, %v3972
    %v4090 = vpack.c.b16 %v3979, %v3976
    %v4091 = vpack.c.b16 %v3980, %v3977
    %v4092 = vpack.c.b16 %v3981, %v3978
    %v4093 = vpack.c.b16 %v3985, %v3982
    %v4094 = vpack.c.b16 %v3986, %v3983
    %v4095 = vpack.c.b16 %v3987, %v3984
    %v4205 = vsel %vm2132, %v3473, 0
    %v4208 = vsel %vm2132, %v3478, 0
    %v4211 = vsel %vm2132, %v3483, 0
    %4213 = vmatprep.subr.bf16.mxu0 %v3989
    %4214 = vmatpush1.bf16.msra.mxu0 %v3988
    %4215 = vmatprep.subr.bf16.mxu0 %v3992
    %4216 = vmatpush1.bf16.msra.mxu0 %v3991
    %4217 = vmatprep.subr.bf16.mxu0 %v3995
    %4218 = vmatpush1.bf16.msra.mxu0 %v3994
    %4219 = vmatprep.subr.bf16.mxu0 %v3998
    %4220 = vmatpush1.bf16.msra.mxu0 %v3997
    %4221 = vmatprep.subr.bf16.mxu0 %v4001
    %4222 = vmatpush1.bf16.msra.mxu0 %v4000
    %4223 = vmatprep.subr.bf16.mxu0 %v4004
    %4224 = vmatpush1.bf16.msra.mxu0 %v4003
    %4225 = vmatprep.subr.bf16.mxu0 %v4007
    %4226 = vmatpush1.bf16.msra.mxu0 %v4006
    %4227 = vmatprep.subr.bf16.mxu0 %v4010
    %4228 = vmatpush1.bf16.msra.mxu0 %v4009
    %4229 = vmatprep.subr.bf16.mxu0 %v4013
    %4230 = vmatpush1.bf16.msra.mxu0 %v4012
    %4231 = vmatprep.subr.bf16.mxu0 %v4016
    %4232 = vmatpush1.bf16.msra.mxu0 %v4015
    %4233 = vmatprep.subr.bf16.mxu0 %v4019
    %4234 = vmatpush1.bf16.msra.mxu0 %v4018
    %4235 = vmatprep.subr.bf16.mxu0 %v4022
    %4236 = vmatpush1.bf16.msra.mxu0 %v4021
    %4237 = vmatprep.subr.bf16.mxu0 %v4025
    %4238 = vmatpush1.bf16.msra.mxu0 %v4024
    %4239 = vmatprep.subr.bf16.mxu0 %v4028
    %4240 = vmatpush1.bf16.msra.mxu0 %v4027
    %4241 = vmatprep.subr.bf16.mxu0 %v4031
    %4242 = vmatpush1.bf16.msra.mxu0 %v4030
    %4243 = vmatprep.subr.bf16.mxu0 %v4034
    %4244 = vmatpush1.bf16.msra.mxu0 %v4033
    %4245 = vmatprep.mubr.bf16.mxu0 %v3470
    %4246 = vmatmul.mubr.bf16.gmra.mrb[0].mxu0 %v3469
    %v4247 = vpop.f32.mrb[0].mxu0
    %v4248 = vadd.f32 0.0, %v4247
    %v4249 = vpop.f32.mrb[0].mxu0
    %v4250 = vadd.f32 0.0, %v4249
    %v4251 = vpop.f32.mrb[0].mxu0
    %v4252 = vadd.f32 0.0, %v4251
    %v4253 = vpop.f32.mrb[0].mxu0
    %v4254 = vadd.f32 0.0, %v4253
    %4255 = vmatprep.mubr.bf16.mxu0 %v3475
    %4256 = vmatmul.mubr.bf16.gmra.mrb[0].mxu0 %v3474
    %v4257 = vpop.f32.mrb[0].mxu0
    %v4258 = vadd.f32 0.0, %v4257
    %v4259 = vpop.f32.mrb[0].mxu0
    %v4260 = vadd.f32 0.0, %v4259
    %v4261 = vpop.f32.mrb[0].mxu0
    %v4262 = vadd.f32 0.0, %v4261
    %v4263 = vpop.f32.mrb[0].mxu0
    %v4264 = vadd.f32 0.0, %v4263
    %4265 = vmatprep.mubr.bf16.mxu0 %v3480
    %4266 = vmatmul.mubr.bf16.gmra.mrb[0].mxu0 %v3479
    %v4267 = vpop.f32.mrb[0].mxu0
    %v4268 = vadd.f32 0.0, %v4267
    %v4269 = vpop.f32.mrb[0].mxu0
    %v4270 = vadd.f32 0.0, %v4269
    %v4271 = vpop.f32.mrb[0].mxu0
    %v4272 = vadd.f32 0.0, %v4271
    %v4273 = vpop.f32.mrb[0].mxu0
    %v4274 = vadd.f32 0.0, %v4273
    %4275 = vdwg.mxu0
    %4276 = vmatprep.subr.bf16.mxu0 %v4037
    %4277 = vmatpush1.bf16.msra.mxu0 %v4036
    %4278 = vmatprep.subr.bf16.mxu0 %v4040
    %4279 = vmatpush1.bf16.msra.mxu0 %v4039
    %4280 = vmatprep.subr.bf16.mxu0 %v4043
    %4281 = vmatpush1.bf16.msra.mxu0 %v4042
    %4282 = vmatprep.subr.bf16.mxu0 %v4046
    %4283 = vmatpush1.bf16.msra.mxu0 %v4045
    %4284 = vmatprep.subr.bf16.mxu0 %v4049
    %4285 = vmatpush1.bf16.msra.mxu0 %v4048
    %4286 = vmatprep.subr.bf16.mxu0 %v4052
    %4287 = vmatpush1.bf16.msra.mxu0 %v4051
    %4288 = vmatprep.subr.bf16.mxu0 %v4055
    %4289 = vmatpush1.bf16.msra.mxu0 %v4054
    %4290 = vmatprep.subr.bf16.mxu0 %v4058
    %4291 = vmatpush1.bf16.msra.mxu0 %v4057
    %4292 = vmatprep.subr.bf16.mxu0 %v4061
    %4293 = vmatpush1.bf16.msra.mxu0 %v4060
    %4294 = vmatprep.subr.bf16.mxu0 %v4064
    %4295 = vmatpush1.bf16.msra.mxu0 %v4063
    %4296 = vmatprep.subr.bf16.mxu0 %v4067
    %4297 = vmatpush1.bf16.msra.mxu0 %v4066
    %4298 = vmatprep.subr.bf16.mxu0 %v4070
    %4299 = vmatpush1.bf16.msra.mxu0 %v4069
    %4300 = vmatprep.subr.bf16.mxu0 %v4073
    %4301 = vmatpush1.bf16.msra.mxu0 %v4072
    %4302 = vmatprep.subr.bf16.mxu0 %v4076
    %4303 = vmatpush1.bf16.msra.mxu0 %v4075
    %4304 = vmatprep.subr.bf16.mxu0 %v4079
    %4305 = vmatpush1.bf16.msra.mxu0 %v4078
    %4306 = vmatprep.subr.bf16.mxu0 %v4082
    %4307 = vmatpush1.bf16.msra.mxu0 %v4081
    %4308 = vmatprep.mubr.bf16.mxu0 %v3472
    %4309 = vmatmul.mubr.bf16.gmra.mrb[0].mxu0 %v3471
    %v4310 = vpop.f32.mrb[0].mxu0
    %v4311 = vadd.f32 %v4248, %v4310
    %v4312 = vpop.f32.mrb[0].mxu0
    %v4313 = vadd.f32 %v4250, %v4312
    %v4314 = vpop.f32.mrb[0].mxu0
    %v4315 = vadd.f32 %v4252, %v4314
    %v4316 = vpop.f32.mrb[0].mxu0
    %v4317 = vadd.f32 %v4254, %v4316
    %4318 = vmatprep.mubr.bf16.mxu0 %v3477
    %4319 = vmatmul.mubr.bf16.gmra.mrb[0].mxu0 %v3476
    %v4320 = vpop.f32.mrb[0].mxu0
    %v4321 = vadd.f32 %v4258, %v4320
    %v4322 = vpop.f32.mrb[0].mxu0
    %v4323 = vadd.f32 %v4260, %v4322
    %v4324 = vpop.f32.mrb[0].mxu0
    %v4325 = vadd.f32 %v4262, %v4324
    %v4326 = vpop.f32.mrb[0].mxu0
    %v4327 = vadd.f32 %v4264, %v4326
    %4328 = vmatprep.mubr.bf16.mxu0 %v3482
    %4329 = vmatmul.mubr.bf16.gmra.mrb[0].mxu0 %v3481
    %v4330 = vpop.f32.mrb[0].mxu0
    %v4331 = vadd.f32 %v4268, %v4330
    %v4332 = vpop.f32.mrb[0].mxu0
    %v4333 = vadd.f32 %v4270, %v4332
    %v4334 = vpop.f32.mrb[0].mxu0
    %v4335 = vadd.f32 %v4272, %v4334
    %v4336 = vpop.f32.mrb[0].mxu0
    %v4337 = vadd.f32 %v4274, %v4336
    %4338 = vdwg.mxu0
    %4339 = vmatprep.subr.bf16.mxu0 %v4085
    %4340 = vmatpush1.bf16.msra.mxu0 %v4084
    %4341 = vmatprep.subr.bf16.mxu0 %v4088
    %4342 = vmatpush1.bf16.msra.mxu0 %v4087
    %4343 = vmatprep.subr.bf16.mxu0 %v4091
    %4344 = vmatpush1.bf16.msra.mxu0 %v4090
    %4345 = vmatprep.subr.bf16.mxu0 %v4094
    %4346 = vmatpush1.bf16.msra.mxu0 %v4093
    %4347 = vmatprep.subr.bf16.mxu0 0
    %4348 = vmatpush1.bf16.msra.mxu0 0
    %4349 = vmatprep.subr.bf16.mxu0 0
    %4350 = vmatpush1.bf16.msra.mxu0 0
    %4351 = vmatprep.subr.bf16.mxu0 0
    %4352 = vmatpush1.bf16.msra.mxu0 0
    %4353 = vmatprep.subr.bf16.mxu0 0
    %4354 = vmatpush1.bf16.msra.mxu0 0
    %4355 = vmatprep.subr.bf16.mxu0 0
    %4356 = vmatpush1.bf16.msra.mxu0 0
    %4357 = vmatprep.subr.bf16.mxu0 0
    %4358 = vmatpush1.bf16.msra.mxu0 0
    %4359 = vmatprep.subr.bf16.mxu0 0
    %4360 = vmatpush1.bf16.msra.mxu0 0
    %4361 = vmatprep.subr.bf16.mxu0 0
    %4362 = vmatpush1.bf16.msra.mxu0 0
    %4363 = vmatprep.subr.bf16.mxu0 0
    %4364 = vmatpush1.bf16.msra.mxu0 0
    %4365 = vmatprep.subr.bf16.mxu0 0
    %4366 = vmatpush1.bf16.msra.mxu0 0
    %4367 = vmatprep.subr.bf16.mxu0 0
    %4368 = vmatpush1.bf16.msra.mxu0 0
    %4369 = vmatprep.subr.bf16.mxu0 0
    %4370 = vmatpush1.bf16.msra.mxu0 0
    %4371 = vmatprep.mubr.bf16.mxu0 0
    %4372 = vmatmul.mubr.bf16.gmra.mrb[0].mxu0 %v4205
    %v4373 = vpop.f32.mrb[0].mxu0
    %v4374 = vadd.f32 %v4311, %v4373
    %v4375 = vpop.f32.mrb[0].mxu0
    %v4376 = vadd.f32 %v4313, %v4375
    %v4377 = vpop.f32.mrb[0].mxu0
    %v4378 = vadd.f32 %v4315, %v4377
    %v4379 = vpop.f32.mrb[0].mxu0
    %v4380 = vadd.f32 %v4317, %v4379
    %4381 = vmatprep.mubr.bf16.mxu0 0
    %4382 = vmatmul.mubr.bf16.gmra.mrb[0].mxu0 %v4208
    %v4383 = vpop.f32.mrb[0].mxu0
    %v4384 = vadd.f32 %v4321, %v4383
    %v4385 = vpop.f32.mrb[0].mxu0
    %v4386 = vadd.f32 %v4323, %v4385
    %v4387 = vpop.f32.mrb[0].mxu0
    %v4388 = vadd.f32 %v4325, %v4387
    %v4389 = vpop.f32.mrb[0].mxu0
    %v4390 = vadd.f32 %v4327, %v4389
    %4391 = vmatprep.mubr.bf16.mxu0 0
    %4392 = vmatmul.mubr.bf16.gmra.mrb[0].mxu0 %v4211
    %v4393 = vpop.f32.mrb[0].mxu0
    %v4394 = vadd.f32 %v4331, %v4393
    %v4395 = vpop.f32.mrb[0].mxu0
    %v4396 = vadd.f32 %v4333, %v4395
    %v4397 = vpop.f32.mrb[0].mxu0
    %v4398 = vadd.f32 %v4335, %v4397
    %v4399 = vpop.f32.mrb[0].mxu0
    %v4400 = vadd.f32 %v4337, %v4399
    %4401 = vdwg.mxu0
    %4402 = vmatprep.subr.bf16.mxu0 0
    %4403 = vmatpush1.bf16.msra.mxu0 %v3990
    %4404 = vmatprep.subr.bf16.mxu0 0
    %4405 = vmatpush1.bf16.msra.mxu0 %v3993
    %4406 = vmatprep.subr.bf16.mxu0 0
    %4407 = vmatpush1.bf16.msra.mxu0 %v3996
    %4408 = vmatprep.subr.bf16.mxu0 0
    %4409 = vmatpush1.bf16.msra.mxu0 %v3999
    %4410 = vmatprep.subr.bf16.mxu0 0
    %4411 = vmatpush1.bf16.msra.mxu0 %v4002
    %4412 = vmatprep.subr.bf16.mxu0 0
    %4413 = vmatpush1.bf16.msra.mxu0 %v4005
    %4414 = vmatprep.subr.bf16.mxu0 0
    %4415 = vmatpush1.bf16.msra.mxu0 %v4008
    %4416 = vmatprep.subr.bf16.mxu0 0
    %4417 = vmatpush1.bf16.msra.mxu0 %v4011
    %4418 = vmatprep.subr.bf16.mxu0 0
    %4419 = vmatpush1.bf16.msra.mxu0 %v4014
    %4420 = vmatprep.subr.bf16.mxu0 0
    %4421 = vmatpush1.bf16.msra.mxu0 %v4017
    %4422 = vmatprep.subr.bf16.mxu0 0
    %4423 = vmatpush1.bf16.msra.mxu0 %v4020
    %4424 = vmatprep.subr.bf16.mxu0 0
    %4425 = vmatpush1.bf16.msra.mxu0 %v4023
    %4426 = vmatprep.subr.bf16.mxu0 0
    %4427 = vmatpush1.bf16.msra.mxu0 %v4026
    %4428 = vmatprep.subr.bf16.mxu0 0
    %4429 = vmatpush1.bf16.msra.mxu0 %v4029
    %4430 = vmatprep.subr.bf16.mxu0 0
    %4431 = vmatpush1.bf16.msra.mxu0 %v4032
    %4432 = vmatprep.subr.bf16.mxu0 0
    %4433 = vmatpush1.bf16.msra.mxu0 %v4035
    %4434 = vmatprep.mubr.bf16.mxu0 %v3470
    %4435 = vmatmul.mubr.bf16.gmra.mrb[0].mxu0 %v3469
    %v4436 = vpop.f32.mrb[0].mxu0
    %v4437 = vadd.f32 0.0, %v4436
    %v4438 = vpop.f32.mrb[0].mxu0
    %v4439 = vpop.f32.mrb[0].mxu0
    %v4440 = vadd.f32 0.0, %v4439
    %v4441 = vpop.f32.mrb[0].mxu0
    %4442 = vmatprep.mubr.bf16.mxu0 %v3475
    %4443 = vmatmul.mubr.bf16.gmra.mrb[0].mxu0 %v3474
    %v4444 = vpop.f32.mrb[0].mxu0
    %v4445 = vadd.f32 0.0, %v4444
    %v4446 = vpop.f32.mrb[0].mxu0
    %v4447 = vpop.f32.mrb[0].mxu0
    %v4448 = vadd.f32 0.0, %v4447
    %v4449 = vpop.f32.mrb[0].mxu0
    %4450 = vmatprep.mubr.bf16.mxu0 %v3480
    %4451 = vmatmul.mubr.bf16.gmra.mrb[0].mxu0 %v3479
    %v4452 = vpop.f32.mrb[0].mxu0
    %v4453 = vadd.f32 0.0, %v4452
    %v4454 = vpop.f32.mrb[0].mxu0
    %v4455 = vpop.f32.mrb[0].mxu0
    %v4456 = vadd.f32 0.0, %v4455
    %v4457 = vpop.f32.mrb[0].mxu0
    %4458 = vdwg.mxu0
    %4459 = vmatprep.subr.bf16.mxu0 0
    %4460 = vmatpush1.bf16.msra.mxu0 %v4038
    %4461 = vmatprep.subr.bf16.mxu0 0
    %4462 = vmatpush1.bf16.msra.mxu0 %v4041
    %4463 = vmatprep.subr.bf16.mxu0 0
    %4464 = vmatpush1.bf16.msra.mxu0 %v4044
    %4465 = vmatprep.subr.bf16.mxu0 0
    %4466 = vmatpush1.bf16.msra.mxu0 %v4047
    %4467 = vmatprep.subr.bf16.mxu0 0
    %4468 = vmatpush1.bf16.msra.mxu0 %v4050
    %4469 = vmatprep.subr.bf16.mxu0 0
    %4470 = vmatpush1.bf16.msra.mxu0 %v4053
    %4471 = vmatprep.subr.bf16.mxu0 0
    %4472 = vmatpush1.bf16.msra.mxu0 %v4056
    %4473 = vmatprep.subr.bf16.mxu0 0
    %4474 = vmatpush1.bf16.msra.mxu0 %v4059
    %4475 = vmatprep.subr.bf16.mxu0 0
    %4476 = vmatpush1.bf16.msra.mxu0 %v4062
    %4477 = vmatprep.subr.bf16.mxu0 0
    %4478 = vmatpush1.bf16.msra.mxu0 %v4065
    %4479 = vmatprep.subr.bf16.mxu0 0
    %4480 = vmatpush1.bf16.msra.mxu0 %v4068
    %4481 = vmatprep.subr.bf16.mxu0 0
    %4482 = vmatpush1.bf16.msra.mxu0 %v4071
    %4483 = vmatprep.subr.bf16.mxu0 0
    %4484 = vmatpush1.bf16.msra.mxu0 %v4074
    %4485 = vmatprep.subr.bf16.mxu0 0
    %4486 = vmatpush1.bf16.msra.mxu0 %v4077
    %4487 = vmatprep.subr.bf16.mxu0 0
    %4488 = vmatpush1.bf16.msra.mxu0 %v4080
    %4489 = vmatprep.subr.bf16.mxu0 0
    %4490 = vmatpush1.bf16.msra.mxu0 %v4083
    %4491 = vmatprep.mubr.bf16.mxu0 %v3472
    %4492 = vmatmul.mubr.bf16.gmra.mrb[0].mxu0 %v3471
    %v4493 = vpop.f32.mrb[0].mxu0
    %v4494 = vadd.f32 %v4437, %v4493
    %v4495 = vpop.f32.mrb[0].mxu0
    %v4496 = vpop.f32.mrb[0].mxu0
    %v4497 = vadd.f32 %v4440, %v4496
    %v4498 = vpop.f32.mrb[0].mxu0
    %4499 = vmatprep.mubr.bf16.mxu0 %v3477
    %4500 = vmatmul.mubr.bf16.gmra.mrb[0].mxu0 %v3476
    %v4501 = vpop.f32.mrb[0].mxu0
    %v4502 = vadd.f32 %v4445, %v4501
    %v4503 = vpop.f32.mrb[0].mxu0
    %v4504 = vpop.f32.mrb[0].mxu0
    %v4505 = vadd.f32 %v4448, %v4504
    %v4506 = vpop.f32.mrb[0].mxu0
    %4507 = vmatprep.mubr.bf16.mxu0 %v3482
    %4508 = vmatmul.mubr.bf16.gmra.mrb[0].mxu0 %v3481
    %v4509 = vpop.f32.mrb[0].mxu0
    %v4510 = vadd.f32 %v4453, %v4509
    %v4511 = vpop.f32.mrb[0].mxu0
    %v4512 = vpop.f32.mrb[0].mxu0
    %v4513 = vadd.f32 %v4456, %v4512
    %v4514 = vpop.f32.mrb[0].mxu0
    %4515 = vdwg.mxu0
    %4516 = vmatprep.subr.bf16.mxu0 0
    %4517 = vmatpush1.bf16.msra.mxu0 %v4086
    %4518 = vmatprep.subr.bf16.mxu0 0
    %4519 = vmatpush1.bf16.msra.mxu0 %v4089
    %4520 = vmatprep.subr.bf16.mxu0 0
    %4521 = vmatpush1.bf16.msra.mxu0 %v4092
    %4522 = vmatprep.subr.bf16.mxu0 0
    %4523 = vmatpush1.bf16.msra.mxu0 %v4095
    %4524 = vmatprep.subr.bf16.mxu0 0
    %4525 = vmatpush1.bf16.msra.mxu0 0
    %4526 = vmatprep.subr.bf16.mxu0 0
    %4527 = vmatpush1.bf16.msra.mxu0 0
    %4528 = vmatprep.subr.bf16.mxu0 0
    %4529 = vmatpush1.bf16.msra.mxu0 0
    %4530 = vmatprep.subr.bf16.mxu0 0
    %4531 = vmatpush1.bf16.msra.mxu0 0
    %4532 = vmatprep.subr.bf16.mxu0 0
    %4533 = vmatpush1.bf16.msra.mxu0 0
    %4534 = vmatprep.subr.bf16.mxu0 0
    %4535 = vmatpush1.bf16.msra.mxu0 0
    %4536 = vmatprep.subr.bf16.mxu0 0
    %4537 = vmatpush1.bf16.msra.mxu0 0
    %4538 = vmatprep.subr.bf16.mxu0 0
    %4539 = vmatpush1.bf16.msra.mxu0 0
    %4540 = vmatprep.subr.bf16.mxu0 0
    %4541 = vmatpush1.bf16.msra.mxu0 0
    %4542 = vmatprep.subr.bf16.mxu0 0
    %4543 = vmatpush1.bf16.msra.mxu0 0
    %4544 = vmatprep.subr.bf16.mxu0 0
    %4545 = vmatpush1.bf16.msra.mxu0 0
    %4546 = vmatprep.subr.bf16.mxu0 0
    %4547 = vmatpush1.bf16.msra.mxu0 0
    %4548 = vmatprep.mubr.bf16.mxu0 0
    %4549 = vmatmul.mubr.bf16.gmra.mrb[0].mxu0 %v4205
    %v4550 = vpop.f32.mrb[0].mxu0
    %v4551 = vadd.f32 %v4494, %v4550
    %v4552 = vpop.f32.mrb[0].mxu0
    %v4553 = vpop.f32.mrb[0].mxu0
    %v4554 = vadd.f32 %v4497, %v4553
    %v4555 = vpop.f32.mrb[0].mxu0
    %4556 = vmatprep.mubr.bf16.mxu0 0
    %4557 = vmatmul.mubr.bf16.gmra.mrb[0].mxu0 %v4208
    %v4558 = vpop.f32.mrb[0].mxu0
    %v4559 = vadd.f32 %v4502, %v4558
    %v4560 = vpop.f32.mrb[0].mxu0
    %v4561 = vpop.f32.mrb[0].mxu0
    %v4562 = vadd.f32 %v4505, %v4561
    %v4563 = vpop.f32.mrb[0].mxu0
    %4564 = vmatprep.mubr.bf16.mxu0 0
    %4565 = vmatmul.mubr.bf16.gmra.mrb[0].mxu0 %v4211
    %v4566 = vpop.f32.mrb[0].mxu0
    %v4567 = vadd.f32 %v4510, %v4566
    %v4568 = vpop.f32.mrb[0].mxu0
    %v4569 = vpop.f32.mrb[0].mxu0
    %v4570 = vadd.f32 %v4513, %v4569
    %v4571 = vpop.f32.mrb[0].mxu0
    %4572 = vdwg.mxu0
    %s4573 = scalar_lea.vmem %s6, 864
    %v4574 = vld [vmem:[%s4573] sm:$0xff]
    %v4575 = vld [vmem:[%s4573 + $0x8] sm:$0xf]
    %v4576 = vld [vmem:[%s4573 + $0xc] sm:$0xff]
    %v4577 = vld [vmem:[%s4573 + $0x14] sm:$0xf]
    %v4578 = vld [vmem:[%s4573 + $0x18] sm:$0xff]
    %v4579 = vld [vmem:[%s4573 + $0x20] sm:$0xf]
    %v4580 = vld [vmem:[%s4573 + $0x24] sm:$0xff]
    %v4581 = vld [vmem:[%s4573 + $0x2c] sm:$0xf]
    %v4582 = vld [vmem:[%s4573 + $0x30] sm:$0xff]
    %v4583 = vld [vmem:[%s4573 + $0x38] sm:$0xf]
    %v4584 = vld [vmem:[%s4573 + $0x3c] sm:$0xff]
    %v4585 = vld [vmem:[%s4573 + $0x44] sm:$0xf]
    %v4586 = vld [vmem:[%s4573 + $0x48] sm:$0xff]
    %v4587 = vld [vmem:[%s4573 + $0x50] sm:$0xf]
    %v4588 = vld [vmem:[%s4573 + $0x54] sm:$0xff]
    %v4589 = vld [vmem:[%s4573 + $0x5c] sm:$0xf]
    %v4590 = vld [vmem:[%s4573 + $0x60] sm:$0xff]
    %v4591 = vld [vmem:[%s4573 + $0x68] sm:$0xf]
    %v4592 = vld [vmem:[%s4573 + $0x6c] sm:$0xff]
    %v4593 = vld [vmem:[%s4573 + $0x74] sm:$0xf]
    %v4594 = vld [vmem:[%s4573 + $0x78] sm:$0xff]
    %v4595 = vld [vmem:[%s4573 + $0x80] sm:$0xf]
    %v4596 = vld [vmem:[%s4573 + $0x84] sm:$0xff]
    %v4597 = vld [vmem:[%s4573 + $0x8c] sm:$0xf]
    %v4598 = vld [vmem:[%s4573 + $0x90] sm:$0xff]
    %v4599 = vld [vmem:[%s4573 + $0x98] sm:$0xf]
    %v4600 = vld [vmem:[%s4573 + $0x9c] sm:$0xff]
    %v4601 = vld [vmem:[%s4573 + $0xa4] sm:$0xf]
    %v4602 = vld [vmem:[%s4573 + $0xa8] sm:$0xff]
    %v4603 = vld [vmem:[%s4573 + $0xb0] sm:$0xf]
    %v4604 = vld [vmem:[%s4573 + $0xb4] sm:$0xff]
    %v4605 = vld [vmem:[%s4573 + $0xbc] sm:$0xf]
    %v4606 = vld [vmem:[%s4573 + $0xc0] sm:$0xff]
    %v4607 = vld [vmem:[%s4573 + $0xc8] sm:$0xf]
    %v4608 = vld [vmem:[%s4573 + $0xcc] sm:$0xff]
    %v4609 = vld [vmem:[%s4573 + $0xd4] sm:$0xf]
    %v4610 = vld [vmem:[%s4573 + $0xd8] sm:$0xff]
    %v4611 = vld [vmem:[%s4573 + $0xe0] sm:$0xf]
    %v4612 = vld [vmem:[%s4573 + $0xe4] sm:$0xff]
    %v4613 = vld [vmem:[%s4573 + $0xec] sm:$0xf]
    %v4614 = vld [vmem:[%s4573 + $0xf0] sm:$0xff]
    %v4615 = vld [vmem:[%s4573 + $0xf8] sm:$0xf]
    %v4616 = vld [vmem:[%s4573 + $0xfc] sm:$0xff]
    %v4617 = vld [vmem:[%s4573 + $0x104] sm:$0xf]
    %v4618 = vld [vmem:[%s4573 + $0x108] sm:$0xff]
    %v4619 = vld [vmem:[%s4573 + $0x110] sm:$0xf]
    %v4620 = vld [vmem:[%s4573 + $0x114] sm:$0xff]
    %v4621 = vld [vmem:[%s4573 + $0x11c] sm:$0xf]
    %v4622 = vld [vmem:[%s4573 + $0x120] sm:$0xff]
    %v4623 = vld [vmem:[%s4573 + $0x128] sm:$0xf]
    %v4624 = vld [vmem:[%s4573 + $0x12c] sm:$0xff]
    %v4625 = vld [vmem:[%s4573 + $0x134] sm:$0xf]
    %v4626 = vld [vmem:[%s4573 + $0x138] sm:$0xff]
    %v4627 = vld [vmem:[%s4573 + $0x140] sm:$0xf]
    %v4628 = vld [vmem:[%s4573 + $0x144] sm:$0xff]
    %v4629 = vld [vmem:[%s4573 + $0x14c] sm:$0xf]
    %v4630 = vld [vmem:[%s4573 + $0x150] sm:$0xff]
    %v4631 = vld [vmem:[%s4573 + $0x158] sm:$0xf]
    %v4632 = vld [vmem:[%s4573 + $0x15c] sm:$0xff]
    %v4633 = vld [vmem:[%s4573 + $0x164] sm:$0xf]
    %v4634 = vld [vmem:[%s4573 + $0x168] sm:$0xff]
    %v4635 = vld [vmem:[%s4573 + $0x170] sm:$0xf]
    %v4636 = vld [vmem:[%s4573 + $0x174] sm:$0xff]
    %v4637 = vld [vmem:[%s4573 + $0x17c] sm:$0xf]
    %v4638 = vld [vmem:[%s4573 + $0x180] sm:$0xff]
    %v4639 = vld [vmem:[%s4573 + $0x188] sm:$0xf]
    %v4640 = vld [vmem:[%s4573 + $0x18c] sm:$0xff]
    %v4641 = vld [vmem:[%s4573 + $0x194] sm:$0xf]
    %v4642 = vld [vmem:[%s4573 + $0x198] sm:$0xff]
    %v4643 = vld [vmem:[%s4573 + $0x1a0] sm:$0xf]
    %v4644 = vld [vmem:[%s4573 + $0x1a4] sm:$0xff]
    %v4645 = vld [vmem:[%s4573 + $0x1ac] sm:$0xf]
    %v4646 = vld [vmem:[%s4573 + $0x1b0] sm:$0xff]
    %v4647 = vld [vmem:[%s4573 + $0x1b8] sm:$0xf]
    %v4648 = vld [vmem:[%s4573 + $0x1bc] sm:$0xff]
    %v4649 = vld [vmem:[%s4573 + $0x1c4] sm:$0xf]
    %v4650 = vld [vmem:[%s4573 + $0x1c8] sm:$0xff]
    %v4651 = vld [vmem:[%s4573 + $0x1d0] sm:$0xf]
    %v4652 = vld [vmem:[%s4573 + $0x1d4] sm:$0xff]
    %v4653 = vld [vmem:[%s4573 + $0x1dc] sm:$0xf]
    %v4654 = vld [vmem:[%s4573 + $0x1e0] sm:$0xff]
    %v4655 = vld [vmem:[%s4573 + $0x1e8] sm:$0xf]
    %v4656 = vld [vmem:[%s4573 + $0x1ec] sm:$0xff]
    %v4657 = vld [vmem:[%s4573 + $0x1f4] sm:$0xf]
    %v4658 = vld [vmem:[%s4573 + $0x1f8] sm:$0xff]
    %v4659 = vld [vmem:[%s4573 + $0x200] sm:$0xf]
    %v4660 = vld [vmem:[%s4573 + $0x204] sm:$0xff]
    %v4661 = vld [vmem:[%s4573 + $0x20c] sm:$0xf]
    %v4662 = vld [vmem:[%s4573 + $0x210] sm:$0xff]
    %v4663 = vld [vmem:[%s4573 + $0x218] sm:$0xf]
    %v4664 = vld [vmem:[%s4573 + $0x21c] sm:$0xff]
    %v4665 = vld [vmem:[%s4573 + $0x224] sm:$0xf]
    %v4666 = vld [vmem:[%s4573 + $0x228] sm:$0xff]
    %v4667 = vld [vmem:[%s4573 + $0x230] sm:$0xf]
    %v4668 = vld [vmem:[%s4573 + $0x234] sm:$0xff]
    %v4669 = vld [vmem:[%s4573 + $0x23c] sm:$0xf]
    %v4670 = vld [vmem:[%s4573 + $0x240] sm:$0xff]
    %v4671 = vld [vmem:[%s4573 + $0x248] sm:$0xf]
    %v4672 = vld [vmem:[%s4573 + $0x24c] sm:$0xff]
    %v4673 = vld [vmem:[%s4573 + $0x254] sm:$0xf]
    %v4674 = vld [vmem:[%s4573 + $0x258] sm:$0xff]
    %v4675 = vld [vmem:[%s4573 + $0x260] sm:$0xf]
    %v4676 = vld [vmem:[%s4573 + $0x264] sm:$0xff]
    %v4677 = vld [vmem:[%s4573 + $0x26c] sm:$0xf]
    %v4678 = vld [vmem:[%s4573 + $0x270] sm:$0xff]
    %v4679 = vld [vmem:[%s4573 + $0x278] sm:$0xf]
    %v4680 = vld [vmem:[%s4573 + $0x27c] sm:$0xff]
    %v4681 = vld [vmem:[%s4573 + $0x284] sm:$0xf]
    %v4682 = vld [vmem:[%s4573 + $0x288] sm:$0xff]
    %v4683 = vld [vmem:[%s4573 + $0x290] sm:$0xf]
    %v4684 = vld [vmem:[%s4573 + $0x294] sm:$0xff]
    %v4685 = vld [vmem:[%s4573 + $0x29c] sm:$0xf]
    %v4686 = vld [vmem:[%s4573 + $0x2a0] sm:$0xff]
    %v4687 = vld [vmem:[%s4573 + $0x2a8] sm:$0xf]
    %v4688 = vld [vmem:[%s4573 + $0x2ac] sm:$0xff]
    %v4689 = vld [vmem:[%s4573 + $0x2b4] sm:$0xf]
    %v4690 = vld [vmem:[%s4573 + $0x2b8] sm:$0xff]
    %v4691 = vld [vmem:[%s4573 + $0x2c0] sm:$0xf]
    %v4692 = vld [vmem:[%s4573 + $0x2c4] sm:$0xff]
    %v4693 = vld [vmem:[%s4573 + $0x2cc] sm:$0xf]
    %v4694 = vld [vmem:[%s4573 + $0x2d0] sm:$0xff]
    %v4695 = vld [vmem:[%s4573 + $0x2d8] sm:$0xf]
    %v4696 = vld [vmem:[%s4573 + $0x2dc] sm:$0xff]
    %v4697 = vld [vmem:[%s4573 + $0x2e4] sm:$0xf]
    %v4698 = vld [vmem:[%s4573 + $0x2e8] sm:$0xff]
    %v4699 = vld [vmem:[%s4573 + $0x2f0] sm:$0xf]
    %v4700 = vld [vmem:[%s4573 + $0x2f4] sm:$0xff]
    %v4701 = vld [vmem:[%s4573 + $0x2fc] sm:$0xf]
    %v4702 = vld [vmem:[%s4573 + $0x300] sm:$0xff]
    %v4703 = vld [vmem:[%s4573 + $0x308] sm:$0xf]
    %v4704 = vld [vmem:[%s4573 + $0x30c] sm:$0xff]
    %v4705 = vld [vmem:[%s4573 + $0x314] sm:$0xf]
    %v4706 = vld [vmem:[%s4573 + $0x318] sm:$0xff]
    %v4707 = vld [vmem:[%s4573 + $0x320] sm:$0xf]
    %v4708 = vld [vmem:[%s4573 + $0x324] sm:$0xff]
    %v4709 = vld [vmem:[%s4573 + $0x32c] sm:$0xf]
    %v4710 = vld [vmem:[%s4573 + $0x330] sm:$0xff]
    %v4711 = vld [vmem:[%s4573 + $0x338] sm:$0xf]
    %v4712 = vld [vmem:[%s4573 + $0x33c] sm:$0xff]
    %v4713 = vld [vmem:[%s4573 + $0x344] sm:$0xf]
    %v4714 = vld [vmem:[%s4573 + $0x348] sm:$0xff]
    %v4715 = vld [vmem:[%s4573 + $0x350] sm:$0xf]
    %v4716 = vld [vmem:[%s4573 + $0x354] sm:$0xff]
    %v4717 = vld [vmem:[%s4573 + $0x35c] sm:$0xf]
    %v4862 = vunpack.c.l.b16 %v4574
    %v4863 = vunpack.c.h.b16 %v4574
    %v4864 = vunpack.c.l.b16 %v4575
    %v4865 = vunpack.c.l.b16 %v4576
    %v4866 = vunpack.c.h.b16 %v4576
    %v4867 = vunpack.c.l.b16 %v4577
    %v4868 = vunpack.c.l.b16 %v4578
    %v4869 = vunpack.c.h.b16 %v4578
    %v4870 = vunpack.c.l.b16 %v4579
    %v4871 = vunpack.c.l.b16 %v4580
    %v4872 = vunpack.c.h.b16 %v4580
    %v4873 = vunpack.c.l.b16 %v4581
    %v4874 = vunpack.c.l.b16 %v4582
    %v4875 = vunpack.c.h.b16 %v4582
    %v4876 = vunpack.c.l.b16 %v4583
    %v4877 = vunpack.c.l.b16 %v4584
    %v4878 = vunpack.c.h.b16 %v4584
    %v4879 = vunpack.c.l.b16 %v4585
    %v4880 = vunpack.c.l.b16 %v4586
    %v4881 = vunpack.c.h.b16 %v4586
    %v4882 = vunpack.c.l.b16 %v4587
    %v4883 = vunpack.c.l.b16 %v4588
    %v4884 = vunpack.c.h.b16 %v4588
    %v4885 = vunpack.c.l.b16 %v4589
    %v4886 = vunpack.c.l.b16 %v4590
    %v4887 = vunpack.c.h.b16 %v4590
    %v4888 = vunpack.c.l.b16 %v4591
    %v4889 = vunpack.c.l.b16 %v4592
    %v4890 = vunpack.c.h.b16 %v4592
    %v4891 = vunpack.c.l.b16 %v4593
    %v4892 = vunpack.c.l.b16 %v4594
    %v4893 = vunpack.c.h.b16 %v4594
    %v4894 = vunpack.c.l.b16 %v4595
    %v4895 = vunpack.c.l.b16 %v4596
    %v4896 = vunpack.c.h.b16 %v4596
    %v4897 = vunpack.c.l.b16 %v4597
    %v4898 = vunpack.c.l.b16 %v4598
    %v4899 = vunpack.c.h.b16 %v4598
    %v4900 = vunpack.c.l.b16 %v4599
    %v4901 = vunpack.c.l.b16 %v4600
    %v4902 = vunpack.c.h.b16 %v4600
    %v4903 = vunpack.c.l.b16 %v4601
    %v4904 = vunpack.c.l.b16 %v4602
    %v4905 = vunpack.c.h.b16 %v4602
    %v4906 = vunpack.c.l.b16 %v4603
    %v4907 = vunpack.c.l.b16 %v4604
    %v4908 = vunpack.c.h.b16 %v4604
    %v4909 = vunpack.c.l.b16 %v4605
    %v4910 = vunpack.c.l.b16 %v4606
    %v4911 = vunpack.c.h.b16 %v4606
    %v4912 = vunpack.c.l.b16 %v4607
    %v4913 = vunpack.c.l.b16 %v4608
    %v4914 = vunpack.c.h.b16 %v4608
    %v4915 = vunpack.c.l.b16 %v4609
    %v4916 = vunpack.c.l.b16 %v4610
    %v4917 = vunpack.c.h.b16 %v4610
    %v4918 = vunpack.c.l.b16 %v4611
    %v4919 = vunpack.c.l.b16 %v4612
    %v4920 = vunpack.c.h.b16 %v4612
    %v4921 = vunpack.c.l.b16 %v4613
    %v4922 = vunpack.c.l.b16 %v4614
    %v4923 = vunpack.c.h.b16 %v4614
    %v4924 = vunpack.c.l.b16 %v4615
    %v4925 = vunpack.c.l.b16 %v4616
    %v4926 = vunpack.c.h.b16 %v4616
    %v4927 = vunpack.c.l.b16 %v4617
    %v4928 = vunpack.c.l.b16 %v4618
    %v4929 = vunpack.c.h.b16 %v4618
    %v4930 = vunpack.c.l.b16 %v4619
    %v4931 = vunpack.c.l.b16 %v4620
    %v4932 = vunpack.c.h.b16 %v4620
    %v4933 = vunpack.c.l.b16 %v4621
    %v4934 = vunpack.c.l.b16 %v4622
    %v4935 = vunpack.c.h.b16 %v4622
    %v4936 = vunpack.c.l.b16 %v4623
    %v4937 = vunpack.c.l.b16 %v4624
    %v4938 = vunpack.c.h.b16 %v4624
    %v4939 = vunpack.c.l.b16 %v4625
    %v4940 = vunpack.c.l.b16 %v4626
    %v4941 = vunpack.c.h.b16 %v4626
    %v4942 = vunpack.c.l.b16 %v4627
    %v4943 = vunpack.c.l.b16 %v4628
    %v4944 = vunpack.c.h.b16 %v4628
    %v4945 = vunpack.c.l.b16 %v4629
    %v4946 = vunpack.c.l.b16 %v4630
    %v4947 = vunpack.c.h.b16 %v4630
    %v4948 = vunpack.c.l.b16 %v4631
    %v4949 = vunpack.c.l.b16 %v4632
    %v4950 = vunpack.c.h.b16 %v4632
    %v4951 = vunpack.c.l.b16 %v4633
    %v4952 = vunpack.c.l.b16 %v4634
    %v4953 = vunpack.c.h.b16 %v4634
    %v4954 = vunpack.c.l.b16 %v4635
    %v4955 = vunpack.c.l.b16 %v4636
    %v4956 = vunpack.c.h.b16 %v4636
    %v4957 = vunpack.c.l.b16 %v4637
    %v4958 = vunpack.c.l.b16 %v4638
    %v4959 = vunpack.c.h.b16 %v4638
    %v4960 = vunpack.c.l.b16 %v4639
    %v4961 = vunpack.c.l.b16 %v4640
    %v4962 = vunpack.c.h.b16 %v4640
    %v4963 = vunpack.c.l.b16 %v4641
    %v4964 = vunpack.c.l.b16 %v4642
    %v4965 = vunpack.c.h.b16 %v4642
    %v4966 = vunpack.c.l.b16 %v4643
    %v4967 = vunpack.c.l.b16 %v4644
    %v4968 = vunpack.c.h.b16 %v4644
    %v4969 = vunpack.c.l.b16 %v4645
    %v4970 = vunpack.c.l.b16 %v4646
    %v4971 = vunpack.c.h.b16 %v4646
    %v4972 = vunpack.c.l.b16 %v4647
    %v4973 = vunpack.c.l.b16 %v4648
    %v4974 = vunpack.c.h.b16 %v4648
    %v4975 = vunpack.c.l.b16 %v4649
    %v4976 = vunpack.c.l.b16 %v4650
    %v4977 = vunpack.c.h.b16 %v4650
    %v4978 = vunpack.c.l.b16 %v4651
    %v4979 = vunpack.c.l.b16 %v4652
    %v4980 = vunpack.c.h.b16 %v4652
    %v4981 = vunpack.c.l.b16 %v4653
    %v4982 = vunpack.c.l.b16 %v4654
    %v4983 = vunpack.c.h.b16 %v4654
    %v4984 = vunpack.c.l.b16 %v4655
    %v4985 = vunpack.c.l.b16 %v4656
    %v4986 = vunpack.c.h.b16 %v4656
    %v4987 = vunpack.c.l.b16 %v4657
    %v4988 = vunpack.c.l.b16 %v4658
    %v4989 = vunpack.c.h.b16 %v4658
    %v4990 = vunpack.c.l.b16 %v4659
    %v4991 = vunpack.c.l.b16 %v4660
    %v4992 = vunpack.c.h.b16 %v4660
    %v4993 = vunpack.c.l.b16 %v4661
    %v4994 = vunpack.c.l.b16 %v4662
    %v4995 = vunpack.c.h.b16 %v4662
    %v4996 = vunpack.c.l.b16 %v4663
    %v4997 = vunpack.c.l.b16 %v4664
    %v4998 = vunpack.c.h.b16 %v4664
    %v4999 = vunpack.c.l.b16 %v4665
    %v5000 = vunpack.c.l.b16 %v4666
    %v5001 = vunpack.c.h.b16 %v4666
    %v5002 = vunpack.c.l.b16 %v4667
    %v5003 = vunpack.c.l.b16 %v4668
    %v5004 = vunpack.c.h.b16 %v4668
    %v5005 = vunpack.c.l.b16 %v4669
    %v5006 = vunpack.c.l.b16 %v4670
    %v5007 = vunpack.c.h.b16 %v4670
    %v5008 = vunpack.c.l.b16 %v4671
    %v5009 = vunpack.c.l.b16 %v4672
    %v5010 = vunpack.c.h.b16 %v4672
    %v5011 = vunpack.c.l.b16 %v4673
    %v5012 = vunpack.c.l.b16 %v4674
    %v5013 = vunpack.c.h.b16 %v4674
    %v5014 = vunpack.c.l.b16 %v4675
    %v5015 = vunpack.c.l.b16 %v4676
    %v5016 = vunpack.c.h.b16 %v4676
    %v5017 = vunpack.c.l.b16 %v4677
    %v5018 = vunpack.c.l.b16 %v4678
    %v5019 = vunpack.c.h.b16 %v4678
    %v5020 = vunpack.c.l.b16 %v4679
    %v5021 = vunpack.c.l.b16 %v4680
    %v5022 = vunpack.c.h.b16 %v4680
    %v5023 = vunpack.c.l.b16 %v4681
    %v5024 = vunpack.c.l.b16 %v4682
    %v5025 = vunpack.c.h.b16 %v4682
    %v5026 = vunpack.c.l.b16 %v4683
    %v5027 = vunpack.c.l.b16 %v4684
    %v5028 = vunpack.c.h.b16 %v4684
    %v5029 = vunpack.c.l.b16 %v4685
    %v5030 = vunpack.c.l.b16 %v4686
    %v5031 = vunpack.c.h.b16 %v4686
    %v5032 = vunpack.c.l.b16 %v4687
    %v5033 = vunpack.c.l.b16 %v4688
    %v5034 = vunpack.c.h.b16 %v4688
    %v5035 = vunpack.c.l.b16 %v4689
    %v5036 = vunpack.c.l.b16 %v4690
    %v5037 = vunpack.c.h.b16 %v4690
    %v5038 = vunpack.c.l.b16 %v4691
    %v5039 = vunpack.c.l.b16 %v4692
    %v5040 = vunpack.c.h.b16 %v4692
    %v5041 = vunpack.c.l.b16 %v4693
    %v5042 = vunpack.c.l.b16 %v4694
    %v5043 = vunpack.c.h.b16 %v4694
    %v5044 = vunpack.c.l.b16 %v4695
    %v5045 = vunpack.c.l.b16 %v4696
    %v5046 = vunpack.c.h.b16 %v4696
    %v5047 = vunpack.c.l.b16 %v4697
    %v5048 = vunpack.c.l.b16 %v4698
    %v5049 = vunpack.c.h.b16 %v4698
    %v5050 = vunpack.c.l.b16 %v4699
    %v5051 = vunpack.c.l.b16 %v4700
    %v5052 = vunpack.c.h.b16 %v4700
    %v5053 = vunpack.c.l.b16 %v4701
    %v5054 = vunpack.c.l.b16 %v4702
    %v5055 = vunpack.c.h.b16 %v4702
    %v5056 = vunpack.c.l.b16 %v4703
    %v5057 = vunpack.c.l.b16 %v4704
    %v5058 = vunpack.c.h.b16 %v4704
    %v5059 = vunpack.c.l.b16 %v4705
    %v5060 = vunpack.c.l.b16 %v4706
    %v5061 = vunpack.c.h.b16 %v4706
    %v5062 = vunpack.c.l.b16 %v4707
    %v5063 = vunpack.c.l.b16 %v4708
    %v5064 = vunpack.c.h.b16 %v4708
    %v5065 = vunpack.c.l.b16 %v4709
    %v5066 = vunpack.c.l.b16 %v4710
    %v5067 = vunpack.c.h.b16 %v4710
    %v5068 = vunpack.c.l.b16 %v4711
    %v5069 = vunpack.c.l.b16 %v4712
    %v5070 = vunpack.c.h.b16 %v4712
    %v5071 = vunpack.c.l.b16 %v4713
    %v5072 = vunpack.c.l.b16 %v4714
    %v5073 = vunpack.c.h.b16 %v4714
    %v5074 = vunpack.c.l.b16 %v4715
    %v5075 = vunpack.c.l.b16 %v4716
    %v5076 = vunpack.c.h.b16 %v4716
    %v5077 = vunpack.c.l.b16 %v4717
    %v5078 = vpack.c.b16 %v4865, %v4862
    %v5079 = vpack.c.b16 %v4866, %v4863
    %v5080 = vpack.c.b16 %v4867, %v4864
    %v5081 = vpack.c.b16 %v4871, %v4868
    %v5082 = vpack.c.b16 %v4872, %v4869
    %v5083 = vpack.c.b16 %v4873, %v4870
    %v5084 = vpack.c.b16 %v4877, %v4874
    %v5085 = vpack.c.b16 %v4878, %v4875
    %v5086 = vpack.c.b16 %v4879, %v4876
    %v5087 = vpack.c.b16 %v4883, %v4880
    %v5088 = vpack.c.b16 %v4884, %v4881
    %v5089 = vpack.c.b16 %v4885, %v4882
    %v5090 = vpack.c.b16 %v4889, %v4886
    %v5091 = vpack.c.b16 %v4890, %v4887
    %v5092 = vpack.c.b16 %v4891, %v4888
    %v5093 = vpack.c.b16 %v4895, %v4892
    %v5094 = vpack.c.b16 %v4896, %v4893
    %v5095 = vpack.c.b16 %v4897, %v4894
    %v5096 = vpack.c.b16 %v4901, %v4898
    %v5097 = vpack.c.b16 %v4902, %v4899
    %v5098 = vpack.c.b16 %v4903, %v4900
    %v5099 = vpack.c.b16 %v4907, %v4904
    %v5100 = vpack.c.b16 %v4908, %v4905
    %v5101 = vpack.c.b16 %v4909, %v4906
    %v5102 = vpack.c.b16 %v4913, %v4910
    %v5103 = vpack.c.b16 %v4914, %v4911
    %v5104 = vpack.c.b16 %v4915, %v4912
    %v5105 = vpack.c.b16 %v4919, %v4916
    %v5106 = vpack.c.b16 %v4920, %v4917
    %v5107 = vpack.c.b16 %v4921, %v4918
    %v5108 = vpack.c.b16 %v4925, %v4922
    %v5109 = vpack.c.b16 %v4926, %v4923
    %v5110 = vpack.c.b16 %v4927, %v4924
    %v5111 = vpack.c.b16 %v4931, %v4928
    %v5112 = vpack.c.b16 %v4932, %v4929
    %v5113 = vpack.c.b16 %v4933, %v4930
    %v5114 = vpack.c.b16 %v4937, %v4934
    %v5115 = vpack.c.b16 %v4938, %v4935
    %v5116 = vpack.c.b16 %v4939, %v4936
    %v5117 = vpack.c.b16 %v4943, %v4940
    %v5118 = vpack.c.b16 %v4944, %v4941
    %v5119 = vpack.c.b16 %v4945, %v4942
    %v5120 = vpack.c.b16 %v4949, %v4946
    %v5121 = vpack.c.b16 %v4950, %v4947
    %v5122 = vpack.c.b16 %v4951, %v4948
    %v5123 = vpack.c.b16 %v4955, %v4952
    %v5124 = vpack.c.b16 %v4956, %v4953
    %v5125 = vpack.c.b16 %v4957, %v4954
    %v5126 = vpack.c.b16 %v4961, %v4958
    %v5127 = vpack.c.b16 %v4962, %v4959
    %v5128 = vpack.c.b16 %v4963, %v4960
    %v5129 = vpack.c.b16 %v4967, %v4964
    %v5130 = vpack.c.b16 %v4968, %v4965
    %v5131 = vpack.c.b16 %v4969, %v4966
    %v5132 = vpack.c.b16 %v4973, %v4970
    %v5133 = vpack.c.b16 %v4974, %v4971
    %v5134 = vpack.c.b16 %v4975, %v4972
    %v5135 = vpack.c.b16 %v4979, %v4976
    %v5136 = vpack.c.b16 %v4980, %v4977
    %v5137 = vpack.c.b16 %v4981, %v4978
    %v5138 = vpack.c.b16 %v4985, %v4982
    %v5139 = vpack.c.b16 %v4986, %v4983
    %v5140 = vpack.c.b16 %v4987, %v4984
    %v5141 = vpack.c.b16 %v4991, %v4988
    %v5142 = vpack.c.b16 %v4992, %v4989
    %v5143 = vpack.c.b16 %v4993, %v4990
    %v5144 = vpack.c.b16 %v4997, %v4994
    %v5145 = vpack.c.b16 %v4998, %v4995
    %v5146 = vpack.c.b16 %v4999, %v4996
    %v5147 = vpack.c.b16 %v5003, %v5000
    %v5148 = vpack.c.b16 %v5004, %v5001
    %v5149 = vpack.c.b16 %v5005, %v5002
    %v5150 = vpack.c.b16 %v5009, %v5006
    %v5151 = vpack.c.b16 %v5010, %v5007
    %v5152 = vpack.c.b16 %v5011, %v5008
    %v5153 = vpack.c.b16 %v5015, %v5012
    %v5154 = vpack.c.b16 %v5016, %v5013
    %v5155 = vpack.c.b16 %v5017, %v5014
    %v5156 = vpack.c.b16 %v5021, %v5018
    %v5157 = vpack.c.b16 %v5022, %v5019
    %v5158 = vpack.c.b16 %v5023, %v5020
    %v5159 = vpack.c.b16 %v5027, %v5024
    %v5160 = vpack.c.b16 %v5028, %v5025
    %v5161 = vpack.c.b16 %v5029, %v5026
    %v5162 = vpack.c.b16 %v5033, %v5030
    %v5163 = vpack.c.b16 %v5034, %v5031
    %v5164 = vpack.c.b16 %v5035, %v5032
    %v5165 = vpack.c.b16 %v5039, %v5036
    %v5166 = vpack.c.b16 %v5040, %v5037
    %v5167 = vpack.c.b16 %v5041, %v5038
    %v5168 = vpack.c.b16 %v5045, %v5042
    %v5169 = vpack.c.b16 %v5046, %v5043
    %v5170 = vpack.c.b16 %v5047, %v5044
    %v5171 = vpack.c.b16 %v5051, %v5048
    %v5172 = vpack.c.b16 %v5052, %v5049
    %v5173 = vpack.c.b16 %v5053, %v5050
    %v5174 = vpack.c.b16 %v5057, %v5054
    %v5175 = vpack.c.b16 %v5058, %v5055
    %v5176 = vpack.c.b16 %v5059, %v5056
    %v5177 = vpack.c.b16 %v5063, %v5060
    %v5178 = vpack.c.b16 %v5064, %v5061
    %v5179 = vpack.c.b16 %v5065, %v5062
    %v5180 = vpack.c.b16 %v5069, %v5066
    %v5181 = vpack.c.b16 %v5070, %v5067
    %v5182 = vpack.c.b16 %v5071, %v5068
    %v5183 = vpack.c.b16 %v5075, %v5072
    %v5184 = vpack.c.b16 %v5076, %v5073
    %v5185 = vpack.c.b16 %v5077, %v5074
    %5294 = vmatprep.subr.bf16.mxu0 %v5079
    %5295 = vmatpush1.bf16.msra.mxu0 %v5078
    %5296 = vmatprep.subr.bf16.mxu0 %v5082
    %5297 = vmatpush1.bf16.msra.mxu0 %v5081
    %5298 = vmatprep.subr.bf16.mxu0 %v5085
    %5299 = vmatpush1.bf16.msra.mxu0 %v5084
    %5300 = vmatprep.subr.bf16.mxu0 %v5088
    %5301 = vmatpush1.bf16.msra.mxu0 %v5087
    %5302 = vmatprep.subr.bf16.mxu0 %v5091
    %5303 = vmatpush1.bf16.msra.mxu0 %v5090
    %5304 = vmatprep.subr.bf16.mxu0 %v5094
    %5305 = vmatpush1.bf16.msra.mxu0 %v5093
    %5306 = vmatprep.subr.bf16.mxu0 %v5097
    %5307 = vmatpush1.bf16.msra.mxu0 %v5096
    %5308 = vmatprep.subr.bf16.mxu0 %v5100
    %5309 = vmatpush1.bf16.msra.mxu0 %v5099
    %5310 = vmatprep.subr.bf16.mxu0 %v5103
    %5311 = vmatpush1.bf16.msra.mxu0 %v5102
    %5312 = vmatprep.subr.bf16.mxu0 %v5106
    %5313 = vmatpush1.bf16.msra.mxu0 %v5105
    %5314 = vmatprep.subr.bf16.mxu0 %v5109
    %5315 = vmatpush1.bf16.msra.mxu0 %v5108
    %5316 = vmatprep.subr.bf16.mxu0 %v5112
    %5317 = vmatpush1.bf16.msra.mxu0 %v5111
    %5318 = vmatprep.subr.bf16.mxu0 %v5115
    %5319 = vmatpush1.bf16.msra.mxu0 %v5114
    %5320 = vmatprep.subr.bf16.mxu0 %v5118
    %5321 = vmatpush1.bf16.msra.mxu0 %v5117
    %5322 = vmatprep.subr.bf16.mxu0 %v5121
    %5323 = vmatpush1.bf16.msra.mxu0 %v5120
    %5324 = vmatprep.subr.bf16.mxu0 %v5124
    %5325 = vmatpush1.bf16.msra.mxu0 %v5123
    %5326 = vmatprep.mubr.bf16.mxu0 %v3470
    %5327 = vmatmul.mubr.bf16.gmra.mrb[0].mxu0 %v3469
    %v5328 = vpop.f32.mrb[0].mxu0
    %v5329 = vadd.f32 0.0, %v5328
    %v5330 = vpop.f32.mrb[0].mxu0
    %v5331 = vadd.f32 0.0, %v5330
    %v5332 = vpop.f32.mrb[0].mxu0
    %v5333 = vadd.f32 0.0, %v5332
    %v5334 = vpop.f32.mrb[0].mxu0
    %v5335 = vadd.f32 0.0, %v5334
    %5336 = vmatprep.mubr.bf16.mxu0 %v3475
    %5337 = vmatmul.mubr.bf16.gmra.mrb[0].mxu0 %v3474
    %v5338 = vpop.f32.mrb[0].mxu0
    %v5339 = vadd.f32 0.0, %v5338
    %v5340 = vpop.f32.mrb[0].mxu0
    %v5341 = vadd.f32 0.0, %v5340
    %v5342 = vpop.f32.mrb[0].mxu0
    %v5343 = vadd.f32 0.0, %v5342
    %v5344 = vpop.f32.mrb[0].mxu0
    %v5345 = vadd.f32 0.0, %v5344
    %5346 = vmatprep.mubr.bf16.mxu0 %v3480
    %5347 = vmatmul.mubr.bf16.gmra.mrb[0].mxu0 %v3479
    %v5348 = vpop.f32.mrb[0].mxu0
    %v5349 = vadd.f32 0.0, %v5348
    %v5350 = vpop.f32.mrb[0].mxu0
    %v5351 = vadd.f32 0.0, %v5350
    %v5352 = vpop.f32.mrb[0].mxu0
    %v5353 = vadd.f32 0.0, %v5352
    %v5354 = vpop.f32.mrb[0].mxu0
    %v5355 = vadd.f32 0.0, %v5354
    %5356 = vdwg.mxu0
    %5357 = vmatprep.subr.bf16.mxu0 %v5127
    %5358 = vmatpush1.bf16.msra.mxu0 %v5126
    %5359 = vmatprep.subr.bf16.mxu0 %v5130
    %5360 = vmatpush1.bf16.msra.mxu0 %v5129
    %5361 = vmatprep.subr.bf16.mxu0 %v5133
    %5362 = vmatpush1.bf16.msra.mxu0 %v5132
    %5363 = vmatprep.subr.bf16.mxu0 %v5136
    %5364 = vmatpush1.bf16.msra.mxu0 %v5135
    %5365 = vmatprep.subr.bf16.mxu0 %v5139
    %5366 = vmatpush1.bf16.msra.mxu0 %v5138
    %5367 = vmatprep.subr.bf16.mxu0 %v5142
    %5368 = vmatpush1.bf16.msra.mxu0 %v5141
    %5369 = vmatprep.subr.bf16.mxu0 %v5145
    %5370 = vmatpush1.bf16.msra.mxu0 %v5144
    %5371 = vmatprep.subr.bf16.mxu0 %v5148
    %5372 = vmatpush1.bf16.msra.mxu0 %v5147
    %5373 = vmatprep.subr.bf16.mxu0 %v5151
    %5374 = vmatpush1.bf16.msra.mxu0 %v5150
    %5375 = vmatprep.subr.bf16.mxu0 %v5154
    %5376 = vmatpush1.bf16.msra.mxu0 %v5153
    %5377 = vmatprep.subr.bf16.mxu0 %v5157
    %5378 = vmatpush1.bf16.msra.mxu0 %v5156
    %5379 = vmatprep.subr.bf16.mxu0 %v5160
    %5380 = vmatpush1.bf16.msra.mxu0 %v5159
    %5381 = vmatprep.subr.bf16.mxu0 %v5163
    %5382 = vmatpush1.bf16.msra.mxu0 %v5162
    %5383 = vmatprep.subr.bf16.mxu0 %v5166
    %5384 = vmatpush1.bf16.msra.mxu0 %v5165
    %5385 = vmatprep.subr.bf16.mxu0 %v5169
    %5386 = vmatpush1.bf16.msra.mxu0 %v5168
    %5387 = vmatprep.subr.bf16.mxu0 %v5172
    %5388 = vmatpush1.bf16.msra.mxu0 %v5171
    %5389 = vmatprep.mubr.bf16.mxu0 %v3472
    %5390 = vmatmul.mubr.bf16.gmra.mrb[0].mxu0 %v3471
    %v5391 = vpop.f32.mrb[0].mxu0
    %v5392 = vadd.f32 %v5329, %v5391
    %v5393 = vpop.f32.mrb[0].mxu0
    %v5394 = vadd.f32 %v5331, %v5393
    %v5395 = vpop.f32.mrb[0].mxu0
    %v5396 = vadd.f32 %v5333, %v5395
    %v5397 = vpop.f32.mrb[0].mxu0
    %v5398 = vadd.f32 %v5335, %v5397
    %5399 = vmatprep.mubr.bf16.mxu0 %v3477
    %5400 = vmatmul.mubr.bf16.gmra.mrb[0].mxu0 %v3476
    %v5401 = vpop.f32.mrb[0].mxu0
    %v5402 = vadd.f32 %v5339, %v5401
    %v5403 = vpop.f32.mrb[0].mxu0
    %v5404 = vadd.f32 %v5341, %v5403
    %v5405 = vpop.f32.mrb[0].mxu0
    %v5406 = vadd.f32 %v5343, %v5405
    %v5407 = vpop.f32.mrb[0].mxu0
    %v5408 = vadd.f32 %v5345, %v5407
    %5409 = vmatprep.mubr.bf16.mxu0 %v3482
    %5410 = vmatmul.mubr.bf16.gmra.mrb[0].mxu0 %v3481
    %v5411 = vpop.f32.mrb[0].mxu0
    %v5412 = vadd.f32 %v5349, %v5411
    %v5413 = vpop.f32.mrb[0].mxu0
    %v5414 = vadd.f32 %v5351, %v5413
    %v5415 = vpop.f32.mrb[0].mxu0
    %v5416 = vadd.f32 %v5353, %v5415
    %v5417 = vpop.f32.mrb[0].mxu0
    %v5418 = vadd.f32 %v5355, %v5417
    %5419 = vdwg.mxu0
    %5420 = vmatprep.subr.bf16.mxu0 %v5175
    %5421 = vmatpush1.bf16.msra.mxu0 %v5174
    %5422 = vmatprep.subr.bf16.mxu0 %v5178
    %5423 = vmatpush1.bf16.msra.mxu0 %v5177
    %5424 = vmatprep.subr.bf16.mxu0 %v5181
    %5425 = vmatpush1.bf16.msra.mxu0 %v5180
    %5426 = vmatprep.subr.bf16.mxu0 %v5184
    %5427 = vmatpush1.bf16.msra.mxu0 %v5183
    %5428 = vmatprep.subr.bf16.mxu0 0
    %5429 = vmatpush1.bf16.msra.mxu0 0
    %5430 = vmatprep.subr.bf16.mxu0 0
    %5431 = vmatpush1.bf16.msra.mxu0 0
    %5432 = vmatprep.subr.bf16.mxu0 0
    %5433 = vmatpush1.bf16.msra.mxu0 0
    %5434 = vmatprep.subr.bf16.mxu0 0
    %5435 = vmatpush1.bf16.msra.mxu0 0
    %5436 = vmatprep.subr.bf16.mxu0 0
    %5437 = vmatpush1.bf16.msra.mxu0 0
    %5438 = vmatprep.subr.bf16.mxu0 0
    %5439 = vmatpush1.bf16.msra.mxu0 0
    %5440 = vmatprep.subr.bf16.mxu0 0
    %5441 = vmatpush1.bf16.msra.mxu0 0
    %5442 = vmatprep.subr.bf16.mxu0 0
    %5443 = vmatpush1.bf16.msra.mxu0 0
    %5444 = vmatprep.subr.bf16.mxu0 0
    %5445 = vmatpush1.bf16.msra.mxu0 0
    %5446 = vmatprep.subr.bf16.mxu0 0
    %5447 = vmatpush1.bf16.msra.mxu0 0
    %5448 = vmatprep.subr.bf16.mxu0 0
    %5449 = vmatpush1.bf16.msra.mxu0 0
    %5450 = vmatprep.subr.bf16.mxu0 0
    %5451 = vmatpush1.bf16.msra.mxu0 0
    %5452 = vmatprep.mubr.bf16.mxu0 0
    %5453 = vmatmul.mubr.bf16.gmra.mrb[0].mxu0 %v4205
    %v5454 = vpop.f32.mrb[0].mxu0
    %v5455 = vadd.f32 %v5392, %v5454
    %v5456 = vpop.f32.mrb[0].mxu0
    %v5457 = vadd.f32 %v5394, %v5456
    %v5458 = vpop.f32.mrb[0].mxu0
    %v5459 = vadd.f32 %v5396, %v5458
    %v5460 = vpop.f32.mrb[0].mxu0
    %v5461 = vadd.f32 %v5398, %v5460
    %5462 = vmatprep.mubr.bf16.mxu0 0
    %5463 = vmatmul.mubr.bf16.gmra.mrb[0].mxu0 %v4208
    %v5464 = vpop.f32.mrb[0].mxu0
    %v5465 = vadd.f32 %v5402, %v5464
    %v5466 = vpop.f32.mrb[0].mxu0
    %v5467 = vadd.f32 %v5404, %v5466
    %v5468 = vpop.f32.mrb[0].mxu0
    %v5469 = vadd.f32 %v5406, %v5468
    %v5470 = vpop.f32.mrb[0].mxu0
    %v5471 = vadd.f32 %v5408, %v5470
    %5472 = vmatprep.mubr.bf16.mxu0 0
    %5473 = vmatmul.mubr.bf16.gmra.mrb[0].mxu0 %v4211
    %v5474 = vpop.f32.mrb[0].mxu0
    %v5475 = vadd.f32 %v5412, %v5474
    %v5476 = vpop.f32.mrb[0].mxu0
    %v5477 = vadd.f32 %v5414, %v5476
    %v5478 = vpop.f32.mrb[0].mxu0
    %v5479 = vadd.f32 %v5416, %v5478
    %v5480 = vpop.f32.mrb[0].mxu0
    %v5481 = vadd.f32 %v5418, %v5480
    %5482 = vdwg.mxu0
    %5483 = vmatprep.subr.bf16.mxu0 0
    %5484 = vmatpush1.bf16.msra.mxu0 %v5080
    %5485 = vmatprep.subr.bf16.mxu0 0
    %5486 = vmatpush1.bf16.msra.mxu0 %v5083
    %5487 = vmatprep.subr.bf16.mxu0 0
    %5488 = vmatpush1.bf16.msra.mxu0 %v5086
    %5489 = vmatprep.subr.bf16.mxu0 0
    %5490 = vmatpush1.bf16.msra.mxu0 %v5089
    %5491 = vmatprep.subr.bf16.mxu0 0
    %5492 = vmatpush1.bf16.msra.mxu0 %v5092
    %5493 = vmatprep.subr.bf16.mxu0 0
    %5494 = vmatpush1.bf16.msra.mxu0 %v5095
    %5495 = vmatprep.subr.bf16.mxu0 0
    %5496 = vmatpush1.bf16.msra.mxu0 %v5098
    %5497 = vmatprep.subr.bf16.mxu0 0
    %5498 = vmatpush1.bf16.msra.mxu0 %v5101
    %5499 = vmatprep.subr.bf16.mxu0 0
    %5500 = vmatpush1.bf16.msra.mxu0 %v5104
    %5501 = vmatprep.subr.bf16.mxu0 0
    %5502 = vmatpush1.bf16.msra.mxu0 %v5107
    %5503 = vmatprep.subr.bf16.mxu0 0
    %5504 = vmatpush1.bf16.msra.mxu0 %v5110
    %5505 = vmatprep.subr.bf16.mxu0 0
    %5506 = vmatpush1.bf16.msra.mxu0 %v5113
    %5507 = vmatprep.subr.bf16.mxu0 0
    %5508 = vmatpush1.bf16.msra.mxu0 %v5116
    %5509 = vmatprep.subr.bf16.mxu0 0
    %5510 = vmatpush1.bf16.msra.mxu0 %v5119
    %5511 = vmatprep.subr.bf16.mxu0 0
    %5512 = vmatpush1.bf16.msra.mxu0 %v5122
    %5513 = vmatprep.subr.bf16.mxu0 0
    %5514 = vmatpush1.bf16.msra.mxu0 %v5125
    %5515 = vmatprep.mubr.bf16.mxu0 %v3470
    %5516 = vmatmul.mubr.bf16.gmra.mrb[0].mxu0 %v3469
    %v5517 = vpop.f32.mrb[0].mxu0
    %v5518 = vadd.f32 0.0, %v5517
    %v5519 = vpop.f32.mrb[0].mxu0
    %v5520 = vpop.f32.mrb[0].mxu0
    %v5521 = vadd.f32 0.0, %v5520
    %v5522 = vpop.f32.mrb[0].mxu0
    %5523 = vmatprep.mubr.bf16.mxu0 %v3475
    %5524 = vmatmul.mubr.bf16.gmra.mrb[0].mxu0 %v3474
    %v5525 = vpop.f32.mrb[0].mxu0
    %v5526 = vadd.f32 0.0, %v5525
    %v5527 = vpop.f32.mrb[0].mxu0
    %v5528 = vpop.f32.mrb[0].mxu0
    %v5529 = vadd.f32 0.0, %v5528
    %v5530 = vpop.f32.mrb[0].mxu0
    %5531 = vmatprep.mubr.bf16.mxu0 %v3480
    %5532 = vmatmul.mubr.bf16.gmra.mrb[0].mxu0 %v3479
    %v5533 = vpop.f32.mrb[0].mxu0
    %v5534 = vadd.f32 0.0, %v5533
    %v5535 = vpop.f32.mrb[0].mxu0
    %v5536 = vpop.f32.mrb[0].mxu0
    %v5537 = vadd.f32 0.0, %v5536
    %v5538 = vpop.f32.mrb[0].mxu0
    %5539 = vdwg.mxu0
    %5540 = vmatprep.subr.bf16.mxu0 0
    %5541 = vmatpush1.bf16.msra.mxu0 %v5128
    %5542 = vmatprep.subr.bf16.mxu0 0
    %5543 = vmatpush1.bf16.msra.mxu0 %v5131
    %5544 = vmatprep.subr.bf16.mxu0 0
    %5545 = vmatpush1.bf16.msra.mxu0 %v5134
    %5546 = vmatprep.subr.bf16.mxu0 0
    %5547 = vmatpush1.bf16.msra.mxu0 %v5137
    %5548 = vmatprep.subr.bf16.mxu0 0
    %5549 = vmatpush1.bf16.msra.mxu0 %v5140
    %5550 = vmatprep.subr.bf16.mxu0 0
    %5551 = vmatpush1.bf16.msra.mxu0 %v5143
    %5552 = vmatprep.subr.bf16.mxu0 0
    %5553 = vmatpush1.bf16.msra.mxu0 %v5146
    %5554 = vmatprep.subr.bf16.mxu0 0
    %5555 = vmatpush1.bf16.msra.mxu0 %v5149
    %5556 = vmatprep.subr.bf16.mxu0 0
    %5557 = vmatpush1.bf16.msra.mxu0 %v5152
    %5558 = vmatprep.subr.bf16.mxu0 0
    %5559 = vmatpush1.bf16.msra.mxu0 %v5155
    %5560 = vmatprep.subr.bf16.mxu0 0
    %5561 = vmatpush1.bf16.msra.mxu0 %v5158
    %5562 = vmatprep.subr.bf16.mxu0 0
    %5563 = vmatpush1.bf16.msra.mxu0 %v5161
    %5564 = vmatprep.subr.bf16.mxu0 0
    %5565 = vmatpush1.bf16.msra.mxu0 %v5164
    %5566 = vmatprep.subr.bf16.mxu0 0
    %5567 = vmatpush1.bf16.msra.mxu0 %v5167
    %5568 = vmatprep.subr.bf16.mxu0 0
    %5569 = vmatpush1.bf16.msra.mxu0 %v5170
    %5570 = vmatprep.subr.bf16.mxu0 0
    %5571 = vmatpush1.bf16.msra.mxu0 %v5173
    %5572 = vmatprep.mubr.bf16.mxu0 %v3472
    %5573 = vmatmul.mubr.bf16.gmra.mrb[0].mxu0 %v3471
    %v5574 = vpop.f32.mrb[0].mxu0
    %v5575 = vadd.f32 %v5518, %v5574
    %v5576 = vpop.f32.mrb[0].mxu0
    %v5577 = vpop.f32.mrb[0].mxu0
    %v5578 = vadd.f32 %v5521, %v5577
    %v5579 = vpop.f32.mrb[0].mxu0
    %5580 = vmatprep.mubr.bf16.mxu0 %v3477
    %5581 = vmatmul.mubr.bf16.gmra.mrb[0].mxu0 %v3476
    %v5582 = vpop.f32.mrb[0].mxu0
    %v5583 = vadd.f32 %v5526, %v5582
    %v5584 = vpop.f32.mrb[0].mxu0
    %v5585 = vpop.f32.mrb[0].mxu0
    %v5586 = vadd.f32 %v5529, %v5585
    %v5587 = vpop.f32.mrb[0].mxu0
    %5588 = vmatprep.mubr.bf16.mxu0 %v3482
    %5589 = vmatmul.mubr.bf16.gmra.mrb[0].mxu0 %v3481
    %v5590 = vpop.f32.mrb[0].mxu0
    %v5591 = vadd.f32 %v5534, %v5590
    %v5592 = vpop.f32.mrb[0].mxu0
    %v5593 = vpop.f32.mrb[0].mxu0
    %v5594 = vadd.f32 %v5537, %v5593
    %v5595 = vpop.f32.mrb[0].mxu0
    %5596 = vdwg.mxu0
    %5597 = vmatprep.subr.bf16.mxu0 0
    %5598 = vmatpush1.bf16.msra.mxu0 %v5176
    %5599 = vmatprep.subr.bf16.mxu0 0
    %5600 = vmatpush1.bf16.msra.mxu0 %v5179
    %5601 = vmatprep.subr.bf16.mxu0 0
    %5602 = vmatpush1.bf16.msra.mxu0 %v5182
    %5603 = vmatprep.subr.bf16.mxu0 0
    %5604 = vmatpush1.bf16.msra.mxu0 %v5185
    %5605 = vmatprep.subr.bf16.mxu0 0
    %5606 = vmatpush1.bf16.msra.mxu0 0
    %5607 = vmatprep.subr.bf16.mxu0 0
    %5608 = vmatpush1.bf16.msra.mxu0 0
    %5609 = vmatprep.subr.bf16.mxu0 0
    %5610 = vmatpush1.bf16.msra.mxu0 0
    %5611 = vmatprep.subr.bf16.mxu0 0
    %5612 = vmatpush1.bf16.msra.mxu0 0
    %5613 = vmatprep.subr.bf16.mxu0 0
    %5614 = vmatpush1.bf16.msra.mxu0 0
    %5615 = vmatprep.subr.bf16.mxu0 0
    %5616 = vmatpush1.bf16.msra.mxu0 0
    %5617 = vmatprep.subr.bf16.mxu0 0
    %5618 = vmatpush1.bf16.msra.mxu0 0
    %5619 = vmatprep.subr.bf16.mxu0 0
    %5620 = vmatpush1.bf16.msra.mxu0 0
    %5621 = vmatprep.subr.bf16.mxu0 0
    %5622 = vmatpush1.bf16.msra.mxu0 0
    %5623 = vmatprep.subr.bf16.mxu0 0
    %5624 = vmatpush1.bf16.msra.mxu0 0
    %5625 = vmatprep.subr.bf16.mxu0 0
    %5626 = vmatpush1.bf16.msra.mxu0 0
    %5627 = vmatprep.subr.bf16.mxu0 0
    %5628 = vmatpush1.bf16.msra.mxu0 0
    %5629 = vmatprep.mubr.bf16.mxu0 0
    %5630 = vmatmul.mubr.bf16.gmra.mrb[0].mxu0 %v4205
    %v5631 = vpop.f32.mrb[0].mxu0
    %v5632 = vadd.f32 %v5575, %v5631
    %v5633 = vpop.f32.mrb[0].mxu0
    %v5634 = vpop.f32.mrb[0].mxu0
    %v5635 = vadd.f32 %v5578, %v5634
    %v5636 = vpop.f32.mrb[0].mxu0
    %5637 = vmatprep.mubr.bf16.mxu0 0
    %5638 = vmatmul.mubr.bf16.gmra.mrb[0].mxu0 %v4208
    %v5639 = vpop.f32.mrb[0].mxu0
    %v5640 = vadd.f32 %v5583, %v5639
    %v5641 = vpop.f32.mrb[0].mxu0
    %v5642 = vpop.f32.mrb[0].mxu0
    %v5643 = vadd.f32 %v5586, %v5642
    %v5644 = vpop.f32.mrb[0].mxu0
    %5645 = vmatprep.mubr.bf16.mxu0 0
    %5646 = vmatmul.mubr.bf16.gmra.mrb[0].mxu0 %v4211
    %v5647 = vpop.f32.mrb[0].mxu0
    %v5648 = vadd.f32 %v5591, %v5647
    %v5649 = vpop.f32.mrb[0].mxu0
    %v5650 = vpop.f32.mrb[0].mxu0
    %v5651 = vadd.f32 %v5594, %v5650
    %v5652 = vpop.f32.mrb[0].mxu0
    %5653 = vdwg.mxu0
    %v5654 = vmax.f32 %v4374, %v5455
    %v5655 = vmax.f32 %v4376, %v5457
    %v5656 = vmax.f32 %v4551, %v5632
    %v5657 = vmax.f32 %v4378, %v5459
    %v5658 = vmax.f32 %v4380, %v5461
    %v5659 = vmax.f32 %v4554, %v5635
    %v5660 = vmax.f32 %v4384, %v5465
    %v5661 = vmax.f32 %v4386, %v5467
    %v5662 = vmax.f32 %v4559, %v5640
    %v5663 = vmax.f32 %v4388, %v5469
    %v5664 = vmax.f32 %v4390, %v5471
    %v5665 = vmax.f32 %v4562, %v5643
    %v5666 = vmax.f32 %v4394, %v5475
    %v5667 = vmax.f32 %v4396, %v5477
    %v5668 = vmax.f32 %v4567, %v5648
    %v5669 = vmax.f32 %v4398, %v5479
    %v5670 = vmax.f32 %v4400, %v5481
    %v5671 = vmax.f32 %v4570, %v5651
    %v5672 = vld [vmem:[%s7] sm:$0xff]
    %v5673 = vld [vmem:[%s7 + $0x8] sm:$0xff]
    %v5674 = vld [vmem:[%s7 + $0x10] sm:$0xff]
    %v5675 = vld [vmem:[%s7 + $0x18] sm:$0xff]
    %v5676 = vld [vmem:[%s7 + $0x20] sm:$0xff]
    %v5677 = vld [vmem:[%s7 + $0x28] sm:$0xff]
    %v5678 = vrot.slane %v5654, 7
    %v5679 = vrot.slane %v5655, 7
    %v5680 = vrot.slane %v5656, 7
    %v5681 = vrot.slane %v5657, 7
    %v5682 = vrot.slane %v5658, 7
    %v5683 = vrot.slane %v5659, 7
    %v5684 = vrot.slane %v5660, 7
    %v5685 = vrot.slane %v5661, 7
    %v5686 = vrot.slane %v5662, 7
    %v5687 = vrot.slane %v5663, 7
    %v5688 = vrot.slane %v5664, 7
    %v5689 = vrot.slane %v5665, 7
    %v5690 = vrot.slane %v5666, 7
    %v5691 = vrot.slane %v5667, 7
    %v5692 = vrot.slane %v5668, 7
    %v5693 = vrot.slane %v5669, 7
    %v5694 = vrot.slane %v5670, 7
    %v5695 = vrot.slane %v5671, 7
    %v5696 = vsel %vm141, %v5690, %v5693
    %v5697 = vsel %vm141, %v5691, %v5694
    %v5698 = vsel %vm141, %v5692, %v5695
    %v5699 = vsel %vm141, %v5687, %v5690
    %v5700 = vsel %vm141, %v5688, %v5691
    %v5701 = vsel %vm141, %v5689, %v5692
    %v5702 = vsel %vm141, %v5684, %v5687
    %v5703 = vsel %vm141, %v5685, %v5688
    %v5704 = vsel %vm141, %v5686, %v5689
    %v5705 = vsel %vm141, %v5681, %v5684
    %v5706 = vsel %vm141, %v5682, %v5685
    %v5707 = vsel %vm141, %v5683, %v5686
    %v5708 = vsel %vm141, %v5678, %v5681
    %v5709 = vsel %vm141, %v5679, %v5682
    %v5710 = vsel %vm141, %v5680, %v5683
    %v5711 = vsel %vm141, %v5693, %v5678
    %v5712 = vsel %vm141, %v5694, %v5679
    %v5713 = vsel %vm141, %v5695, %v5680
    %5715 = vset.pattern.permute.xlu0 0
    %5716 = vperm.xlu0 %5715, %v5672
    %v5717 = vpop.permute.xlu0 %5716
    %5720 = vset.pattern.permute.xlu0 0
    %5721 = vperm.xlu0 %5720, %v5673
    %v5722 = vpop.permute.xlu0 %5721
    %5725 = vset.pattern.permute.xlu0 0
    %5726 = vperm.xlu0 %5725, %v5674
    %v5727 = vpop.permute.xlu0 %5726
    %5730 = vset.pattern.permute.xlu0 0
    %5731 = vperm.xlu0 %5730, %v5675
    %v5732 = vpop.permute.xlu0 %5731
    %5735 = vset.pattern.permute.xlu0 0
    %5736 = vperm.xlu0 %5735, %v5676
    %v5737 = vpop.permute.xlu0 %5736
    %5740 = vset.pattern.permute.xlu0 0
    %5741 = vperm.xlu0 %5740, %v5677
    %v5742 = vpop.permute.xlu0 %5741
    %v5744 = vmul.f32 %v5711, %v5717
    %v5745 = vmul.f32 %v5712, %v5717
    %v5746 = vmul.f32 %v5713, %v5717
    %v5747 = vmul.f32 %v5708, %v5722
    %v5748 = vmul.f32 %v5709, %v5722
    %v5749 = vmul.f32 %v5710, %v5722
    %v5750 = vmul.f32 %v5705, %v5727
    %v5751 = vmul.f32 %v5706, %v5727
    %v5752 = vmul.f32 %v5707, %v5727
    %v5753 = vmul.f32 %v5702, %v5732
    %v5754 = vmul.f32 %v5703, %v5732
    %v5755 = vmul.f32 %v5704, %v5732
    %v5756 = vmul.f32 %v5699, %v5737
    %v5757 = vmul.f32 %v5700, %v5737
    %v5758 = vmul.f32 %v5701, %v5737
    %v5759 = vmul.f32 %v5696, %v5742
    %v5760 = vmul.f32 %v5697, %v5742
    %v5761 = vmul.f32 %v5698, %v5742
    %v5762 = vrot.slane %v5654, 1
    %v5763 = vrot.slane %v5655, 1
    %v5764 = vrot.slane %v5656, 1
    %v5765 = vrot.slane %v5657, 1
    %v5766 = vrot.slane %v5658, 1
    %v5767 = vrot.slane %v5659, 1
    %v5768 = vrot.slane %v5660, 1
    %v5769 = vrot.slane %v5661, 1
    %v5770 = vrot.slane %v5662, 1
    %v5771 = vrot.slane %v5663, 1
    %v5772 = vrot.slane %v5664, 1
    %v5773 = vrot.slane %v5665, 1
    %v5774 = vrot.slane %v5666, 1
    %v5775 = vrot.slane %v5667, 1
    %v5776 = vrot.slane %v5668, 1
    %v5777 = vrot.slane %v5669, 1
    %v5778 = vrot.slane %v5670, 1
    %v5779 = vrot.slane %v5671, 1
    %v5780 = vsel %vm274, %v5774, %v5777
    %v5781 = vsel %vm274, %v5775, %v5778
    %v5782 = vsel %vm274, %v5776, %v5779
    %v5783 = vsel %vm274, %v5771, %v5774
    %v5784 = vsel %vm274, %v5772, %v5775
    %v5785 = vsel %vm274, %v5773, %v5776
    %v5786 = vsel %vm274, %v5768, %v5771
    %v5787 = vsel %vm274, %v5769, %v5772
    %v5788 = vsel %vm274, %v5770, %v5773
    %v5789 = vsel %vm274, %v5765, %v5768
    %v5790 = vsel %vm274, %v5766, %v5769
    %v5791 = vsel %vm274, %v5767, %v5770
    %v5792 = vsel %vm274, %v5762, %v5765
    %v5793 = vsel %vm274, %v5763, %v5766
    %v5794 = vsel %vm274, %v5764, %v5767
    %v5795 = vsel %vm274, %v5777, %v5762
    %v5796 = vsel %vm274, %v5778, %v5763
    %v5797 = vsel %vm274, %v5779, %v5764
    %5798 = vset.pattern.permute.xlu0 1
    %5799 = vperm.xlu0 %5798, %v5672
    %v5800 = vpop.permute.xlu0 %5799
    %5802 = vset.pattern.permute.xlu0 1
    %5803 = vperm.xlu0 %5802, %v5673
    %v5804 = vpop.permute.xlu0 %5803
    %5806 = vset.pattern.permute.xlu0 1
    %5807 = vperm.xlu0 %5806, %v5674
    %v5808 = vpop.permute.xlu0 %5807
    %5810 = vset.pattern.permute.xlu0 1
    %5811 = vperm.xlu0 %5810, %v5675
    %v5812 = vpop.permute.xlu0 %5811
    %5814 = vset.pattern.permute.xlu0 1
    %5815 = vperm.xlu0 %5814, %v5676
    %v5816 = vpop.permute.xlu0 %5815
    %5818 = vset.pattern.permute.xlu0 1
    %5819 = vperm.xlu0 %5818, %v5677
    %v5820 = vpop.permute.xlu0 %5819
    %v5822 = vmul.f32 %v5792, %v5800
    %v5823 = vmul.f32 %v5793, %v5800
    %v5824 = vmul.f32 %v5794, %v5800
    %v5825 = vmul.f32 %v5789, %v5804
    %v5826 = vmul.f32 %v5790, %v5804
    %v5827 = vmul.f32 %v5791, %v5804
    %v5828 = vmul.f32 %v5786, %v5808
    %v5829 = vmul.f32 %v5787, %v5808
    %v5830 = vmul.f32 %v5788, %v5808
    %v5831 = vmul.f32 %v5783, %v5812
    %v5832 = vmul.f32 %v5784, %v5812
    %v5833 = vmul.f32 %v5785, %v5812
    %v5834 = vmul.f32 %v5780, %v5816
    %v5835 = vmul.f32 %v5781, %v5816
    %v5836 = vmul.f32 %v5782, %v5816
    %v5837 = vmul.f32 %v5795, %v5820
    %v5838 = vmul.f32 %v5796, %v5820
    %v5839 = vmul.f32 %v5797, %v5820
    %5858 = vrot.lane.b32.xlu0 %v5654, 32
    %v5859 = vpop.permute.xlu0 %5858
    %5860 = vrot.lane.b32.xlu0 %v5655, 32
    %v5861 = vpop.permute.xlu0 %5860
    %5862 = vrot.lane.b32.xlu0 %v5656, 32
    %v5863 = vpop.permute.xlu0 %5862
    %5864 = vrot.lane.b32.xlu0 %v5657, 32
    %v5865 = vpop.permute.xlu0 %5864
    %5866 = vrot.lane.b32.xlu0 %v5658, 32
    %v5867 = vpop.permute.xlu0 %5866
    %5868 = vrot.lane.b32.xlu0 %v5659, 32
    %v5869 = vpop.permute.xlu0 %5868
    %5870 = vrot.lane.b32.xlu0 %v5660, 32
    %v5871 = vpop.permute.xlu0 %5870
    %5872 = vrot.lane.b32.xlu0 %v5661, 32
    %v5873 = vpop.permute.xlu0 %5872
    %5874 = vrot.lane.b32.xlu0 %v5662, 32
    %v5875 = vpop.permute.xlu0 %5874
    %5876 = vrot.lane.b32.xlu0 %v5663, 32
    %v5877 = vpop.permute.xlu0 %5876
    %5878 = vrot.lane.b32.xlu0 %v5664, 32
    %v5879 = vpop.permute.xlu0 %5878
    %5880 = vrot.lane.b32.xlu0 %v5665, 32
    %v5881 = vpop.permute.xlu0 %5880
    %5882 = vrot.lane.b32.xlu0 %v5666, 32
    %v5883 = vpop.permute.xlu0 %5882
    %5884 = vrot.lane.b32.xlu0 %v5667, 32
    %v5885 = vpop.permute.xlu0 %5884
    %5886 = vrot.lane.b32.xlu0 %v5668, 32
    %v5887 = vpop.permute.xlu0 %5886
    %5888 = vrot.lane.b32.xlu0 %v5669, 32
    %v5889 = vpop.permute.xlu0 %5888
    %5890 = vrot.lane.b32.xlu0 %v5670, 32
    %v5891 = vpop.permute.xlu0 %5890
    %5892 = vrot.lane.b32.xlu0 %v5671, 32
    %v5893 = vpop.permute.xlu0 %5892
    %v5894 = vsel %vm552, %v5859, %v5861
    %v5895 = vsel %vm552, %v5861, %v5863
    %v5896 = vsel %vm552, %v5865, %v5867
    %v5897 = vsel %vm552, %v5867, %v5869
    %v5898 = vsel %vm552, %v5871, %v5873
    %v5899 = vsel %vm552, %v5873, %v5875
    %v5900 = vsel %vm552, %v5877, %v5879
    %v5901 = vsel %vm552, %v5879, %v5881
    %v5902 = vsel %vm552, %v5883, %v5885
    %v5903 = vsel %vm552, %v5885, %v5887
    %v5904 = vsel %vm552, %v5889, %v5891
    %v5905 = vsel %vm552, %v5891, %v5893
    %5942 = vrot.lane.b32.xlu0 %v5822, 64
    %v5943 = vpop.permute.xlu0 %5942
    %5944 = vrot.lane.b32.xlu0 %v5823, 64
    %v5945 = vpop.permute.xlu0 %5944
    %5946 = vrot.lane.b32.xlu0 %v5824, 64
    %v5947 = vpop.permute.xlu0 %5946
    %5948 = vrot.lane.b32.xlu0 %v5825, 64
    %v5949 = vpop.permute.xlu0 %5948
    %5950 = vrot.lane.b32.xlu0 %v5826, 64
    %v5951 = vpop.permute.xlu0 %5950
    %5952 = vrot.lane.b32.xlu0 %v5827, 64
    %v5953 = vpop.permute.xlu0 %5952
    %5954 = vrot.lane.b32.xlu0 %v5828, 64
    %v5955 = vpop.permute.xlu0 %5954
    %5956 = vrot.lane.b32.xlu0 %v5829, 64
    %v5957 = vpop.permute.xlu0 %5956
    %5958 = vrot.lane.b32.xlu0 %v5830, 64
    %v5959 = vpop.permute.xlu0 %5958
    %5960 = vrot.lane.b32.xlu0 %v5831, 64
    %v5961 = vpop.permute.xlu0 %5960
    %5962 = vrot.lane.b32.xlu0 %v5832, 64
    %v5963 = vpop.permute.xlu0 %5962
    %5964 = vrot.lane.b32.xlu0 %v5833, 64
    %v5965 = vpop.permute.xlu0 %5964
    %5966 = vrot.lane.b32.xlu0 %v5834, 64
    %v5967 = vpop.permute.xlu0 %5966
    %5968 = vrot.lane.b32.xlu0 %v5835, 64
    %v5969 = vpop.permute.xlu0 %5968
    %5970 = vrot.lane.b32.xlu0 %v5836, 64
    %v5971 = vpop.permute.xlu0 %5970
    %5972 = vrot.lane.b32.xlu0 %v5837, 64
    %v5973 = vpop.permute.xlu0 %5972
    %5974 = vrot.lane.b32.xlu0 %v5838, 64
    %v5975 = vpop.permute.xlu0 %5974
    %5976 = vrot.lane.b32.xlu0 %v5839, 64
    %v5977 = vpop.permute.xlu0 %5976
    %v5978 = vsel %vm2132, %v5943, %v5945
    %v5979 = vsel %vm2132, %v5945, %v5947
    %v5980 = vsel %vm2132, %v5949, %v5951
    %v5981 = vsel %vm2132, %v5951, %v5953
    %v5982 = vsel %vm2132, %v5955, %v5957
    %v5983 = vsel %vm2132, %v5957, %v5959
    %v5984 = vsel %vm2132, %v5961, %v5963
    %v5985 = vsel %vm2132, %v5963, %v5965
    %v5986 = vsel %vm2132, %v5967, %v5969
    %v5987 = vsel %vm2132, %v5969, %v5971
    %v5988 = vsel %vm2132, %v5973, %v5975
    %v5989 = vsel %vm2132, %v5975, %v5977
    %v6008 = vsel %vm552, %v5746, %v5859
    %v6009 = vsel %vm552, %v5749, %v5865
    %v6010 = vsel %vm552, %v5752, %v5871
    %v6011 = vsel %vm552, %v5755, %v5877
    %v6012 = vsel %vm552, %v5758, %v5883
    %v6013 = vsel %vm552, %v5761, %v5889
    %v6014 = vsel %vm2132, %v5895, %v5943
    %v6015 = vsel %vm2132, %v5897, %v5949
    %v6016 = vsel %vm2132, %v5899, %v5955
    %v6017 = vsel %vm2132, %v5901, %v5961
    %v6018 = vsel %vm2132, %v5903, %v5967
    %v6019 = vsel %vm2132, %v5905, %v5973
    %v6020 = vpack.c.bf16 %v5747, %v5744
    %v6021 = vpack.c.bf16 %v5748, %v5745
    %v6022 = vpack.c.bf16 %v6009, %v6008
    %v6023 = vpack.c.bf16 %v5896, %v5894
    %v6024 = vpack.c.bf16 %v6015, %v6014
    %v6025 = vpack.c.bf16 %v5980, %v5978
    %v6026 = vpack.c.bf16 %v5981, %v5979
    %v6027 = vpack.c.bf16 %v5753, %v5750
    %v6028 = vpack.c.bf16 %v5754, %v5751
    %v6029 = vpack.c.bf16 %v6011, %v6010
    %v6030 = vpack.c.bf16 %v5900, %v5898
    %v6031 = vpack.c.bf16 %v6017, %v6016
    %v6032 = vpack.c.bf16 %v5984, %v5982
    %v6033 = vpack.c.bf16 %v5985, %v5983
    %v6034 = vpack.c.bf16 %v5759, %v5756
    %v6035 = vpack.c.bf16 %v5760, %v5757
    %v6036 = vpack.c.bf16 %v6013, %v6012
    %v6037 = vpack.c.bf16 %v5904, %v5902
    %v6038 = vpack.c.bf16 %v6019, %v6018
    %v6039 = vpack.c.bf16 %v5988, %v5986
    %v6040 = vpack.c.bf16 %v5989, %v5987
    %v6041 = vld [vmem:[%s8] sm:$0xff]
    %v6042 = vld [vmem:[%s8 + $0x8] sm:$0xf]
    %v6043 = vld [vmem:[%s8 + $0xc] sm:$0xff]
    %v6044 = vld [vmem:[%s8 + $0x14] sm:$0xf]
    %v6045 = vld [vmem:[%s8 + $0x18] sm:$0xff]
    %v6046 = vld [vmem:[%s8 + $0x20] sm:$0xf]
    %v6047 = vld [vmem:[%s8 + $0x24] sm:$0xff]
    %v6048 = vld [vmem:[%s8 + $0x2c] sm:$0xf]
    %v6049 = vld [vmem:[%s8 + $0x30] sm:$0xff]
    %v6050 = vld [vmem:[%s8 + $0x38] sm:$0xf]
    %v6051 = vld [vmem:[%s8 + $0x3c] sm:$0xff]
    %v6052 = vld [vmem:[%s8 + $0x44] sm:$0xf]
    %v6053 = vld [vmem:[%s8 + $0x48] sm:$0xff]
    %v6054 = vld [vmem:[%s8 + $0x50] sm:$0xf]
    %v6055 = vld [vmem:[%s8 + $0x54] sm:$0xff]
    %v6056 = vld [vmem:[%s8 + $0x5c] sm:$0xf]
    %v6057 = vld [vmem:[%s8 + $0x60] sm:$0xff]
    %v6058 = vld [vmem:[%s8 + $0x68] sm:$0xf]
    %v6059 = vld [vmem:[%s8 + $0x6c] sm:$0xff]
    %v6060 = vld [vmem:[%s8 + $0x74] sm:$0xf]
    %v6061 = vld [vmem:[%s8 + $0x78] sm:$0xff]
    %v6062 = vld [vmem:[%s8 + $0x80] sm:$0xf]
    %v6063 = vld [vmem:[%s8 + $0x84] sm:$0xff]
    %v6064 = vld [vmem:[%s8 + $0x8c] sm:$0xf]
    %v6065 = vld [vmem:[%s8 + $0x90] sm:$0xff]
    %v6066 = vld [vmem:[%s8 + $0x98] sm:$0xf]
    %v6067 = vld [vmem:[%s8 + $0x9c] sm:$0xff]
    %v6068 = vld [vmem:[%s8 + $0xa4] sm:$0xf]
    %v6069 = vld [vmem:[%s8 + $0xa8] sm:$0xff]
    %v6070 = vld [vmem:[%s8 + $0xb0] sm:$0xf]
    %v6071 = vld [vmem:[%s8 + $0xb4] sm:$0xff]
    %v6072 = vld [vmem:[%s8 + $0xbc] sm:$0xf]
    %v6073 = vld [vmem:[%s8 + $0xc0] sm:$0xff]
    %v6074 = vld [vmem:[%s8 + $0xc8] sm:$0xf]
    %v6075 = vld [vmem:[%s8 + $0xcc] sm:$0xff]
    %v6076 = vld [vmem:[%s8 + $0xd4] sm:$0xf]
    %v6077 = vld [vmem:[%s8 + $0xd8] sm:$0xff]
    %v6078 = vld [vmem:[%s8 + $0xe0] sm:$0xf]
    %v6079 = vld [vmem:[%s8 + $0xe4] sm:$0xff]
    %v6080 = vld [vmem:[%s8 + $0xec] sm:$0xf]
    %v6081 = vld [vmem:[%s8 + $0xf0] sm:$0xff]
    %v6082 = vld [vmem:[%s8 + $0xf8] sm:$0xf]
    %v6083 = vld [vmem:[%s8 + $0xfc] sm:$0xff]
    %v6084 = vld [vmem:[%s8 + $0x104] sm:$0xf]
    %v6085 = vld [vmem:[%s8 + $0x108] sm:$0xff]
    %v6086 = vld [vmem:[%s8 + $0x110] sm:$0xf]
    %v6087 = vld [vmem:[%s8 + $0x114] sm:$0xff]
    %v6088 = vld [vmem:[%s8 + $0x11c] sm:$0xf]
    %v6089 = vld [vmem:[%s8 + $0x120] sm:$0xff]
    %v6090 = vld [vmem:[%s8 + $0x128] sm:$0xf]
    %v6091 = vld [vmem:[%s8 + $0x12c] sm:$0xff]
    %v6092 = vld [vmem:[%s8 + $0x134] sm:$0xf]
    %v6093 = vld [vmem:[%s8 + $0x138] sm:$0xff]
    %v6094 = vld [vmem:[%s8 + $0x140] sm:$0xf]
    %v6095 = vld [vmem:[%s8 + $0x144] sm:$0xff]
    %v6096 = vld [vmem:[%s8 + $0x14c] sm:$0xf]
    %v6097 = vld [vmem:[%s8 + $0x150] sm:$0xff]
    %v6098 = vld [vmem:[%s8 + $0x158] sm:$0xf]
    %v6099 = vld [vmem:[%s8 + $0x15c] sm:$0xff]
    %v6100 = vld [vmem:[%s8 + $0x164] sm:$0xf]
    %v6101 = vld [vmem:[%s8 + $0x168] sm:$0xff]
    %v6102 = vld [vmem:[%s8 + $0x170] sm:$0xf]
    %v6103 = vld [vmem:[%s8 + $0x174] sm:$0xff]
    %v6104 = vld [vmem:[%s8 + $0x17c] sm:$0xf]
    %v6105 = vld [vmem:[%s8 + $0x180] sm:$0xff]
    %v6106 = vld [vmem:[%s8 + $0x188] sm:$0xf]
    %v6107 = vld [vmem:[%s8 + $0x18c] sm:$0xff]
    %v6108 = vld [vmem:[%s8 + $0x194] sm:$0xf]
    %v6109 = vld [vmem:[%s8 + $0x198] sm:$0xff]
    %v6110 = vld [vmem:[%s8 + $0x1a0] sm:$0xf]
    %v6111 = vld [vmem:[%s8 + $0x1a4] sm:$0xff]
    %v6112 = vld [vmem:[%s8 + $0x1ac] sm:$0xf]
    %v6113 = vld [vmem:[%s8 + $0x1b0] sm:$0xff]
    %v6114 = vld [vmem:[%s8 + $0x1b8] sm:$0xf]
    %v6115 = vld [vmem:[%s8 + $0x1bc] sm:$0xff]
    %v6116 = vld [vmem:[%s8 + $0x1c4] sm:$0xf]
    %v6117 = vld [vmem:[%s8 + $0x1c8] sm:$0xff]
    %v6118 = vld [vmem:[%s8 + $0x1d0] sm:$0xf]
    %v6119 = vld [vmem:[%s8 + $0x1d4] sm:$0xff]
    %v6120 = vld [vmem:[%s8 + $0x1dc] sm:$0xf]
    %v6121 = vld [vmem:[%s8 + $0x1e0] sm:$0xff]
    %v6122 = vld [vmem:[%s8 + $0x1e8] sm:$0xf]
    %v6123 = vld [vmem:[%s8 + $0x1ec] sm:$0xff]
    %v6124 = vld [vmem:[%s8 + $0x1f4] sm:$0xf]
    %v6125 = vld [vmem:[%s8 + $0x1f8] sm:$0xff]
    %v6126 = vld [vmem:[%s8 + $0x200] sm:$0xf]
    %v6127 = vld [vmem:[%s8 + $0x204] sm:$0xff]
    %v6128 = vld [vmem:[%s8 + $0x20c] sm:$0xf]
    %v6129 = vld [vmem:[%s8 + $0x210] sm:$0xff]
    %v6130 = vld [vmem:[%s8 + $0x218] sm:$0xf]
    %v6131 = vld [vmem:[%s8 + $0x21c] sm:$0xff]
    %v6132 = vld [vmem:[%s8 + $0x224] sm:$0xf]
    %v6133 = vld [vmem:[%s8 + $0x228] sm:$0xff]
    %v6134 = vld [vmem:[%s8 + $0x230] sm:$0xf]
    %v6135 = vld [vmem:[%s8 + $0x234] sm:$0xff]
    %v6136 = vld [vmem:[%s8 + $0x23c] sm:$0xf]
    %v6137 = vld [vmem:[%s8 + $0x240] sm:$0xff]
    %v6138 = vld [vmem:[%s8 + $0x248] sm:$0xf]
    %v6139 = vld [vmem:[%s8 + $0x24c] sm:$0xff]
    %v6140 = vld [vmem:[%s8 + $0x254] sm:$0xf]
    %v6141 = vld [vmem:[%s8 + $0x258] sm:$0xff]
    %v6142 = vld [vmem:[%s8 + $0x260] sm:$0xf]
    %v6143 = vld [vmem:[%s8 + $0x264] sm:$0xff]
    %v6144 = vld [vmem:[%s8 + $0x26c] sm:$0xf]
    %v6145 = vld [vmem:[%s8 + $0x270] sm:$0xff]
    %v6146 = vld [vmem:[%s8 + $0x278] sm:$0xf]
    %v6147 = vld [vmem:[%s8 + $0x27c] sm:$0xff]
    %v6148 = vld [vmem:[%s8 + $0x284] sm:$0xf]
    %v6149 = vld [vmem:[%s8 + $0x288] sm:$0xff]
    %v6150 = vld [vmem:[%s8 + $0x290] sm:$0xf]
    %v6151 = vld [vmem:[%s8 + $0x294] sm:$0xff]
    %v6152 = vld [vmem:[%s8 + $0x29c] sm:$0xf]
    %v6153 = vld [vmem:[%s8 + $0x2a0] sm:$0xff]
    %v6154 = vld [vmem:[%s8 + $0x2a8] sm:$0xf]
    %v6155 = vld [vmem:[%s8 + $0x2ac] sm:$0xff]
    %v6156 = vld [vmem:[%s8 + $0x2b4] sm:$0xf]
    %v6157 = vld [vmem:[%s8 + $0x2b8] sm:$0xff]
    %v6158 = vld [vmem:[%s8 + $0x2c0] sm:$0xf]
    %v6159 = vld [vmem:[%s8 + $0x2c4] sm:$0xff]
    %v6160 = vld [vmem:[%s8 + $0x2cc] sm:$0xf]
    %v6161 = vld [vmem:[%s8 + $0x2d0] sm:$0xff]
    %v6162 = vld [vmem:[%s8 + $0x2d8] sm:$0xf]
    %v6163 = vld [vmem:[%s8 + $0x2dc] sm:$0xff]
    %v6164 = vld [vmem:[%s8 + $0x2e4] sm:$0xf]
    %v6165 = vld [vmem:[%s8 + $0x2e8] sm:$0xff]
    %v6166 = vld [vmem:[%s8 + $0x2f0] sm:$0xf]
    %v6167 = vld [vmem:[%s8 + $0x2f4] sm:$0xff]
    %v6168 = vld [vmem:[%s8 + $0x2fc] sm:$0xf]
    %v6169 = vld [vmem:[%s8 + $0x300] sm:$0xff]
    %v6170 = vld [vmem:[%s8 + $0x308] sm:$0xf]
    %v6171 = vld [vmem:[%s8 + $0x30c] sm:$0xff]
    %v6172 = vld [vmem:[%s8 + $0x314] sm:$0xf]
    %v6173 = vld [vmem:[%s8 + $0x318] sm:$0xff]
    %v6174 = vld [vmem:[%s8 + $0x320] sm:$0xf]
    %v6175 = vld [vmem:[%s8 + $0x324] sm:$0xff]
    %v6176 = vld [vmem:[%s8 + $0x32c] sm:$0xf]
    %v6177 = vld [vmem:[%s8 + $0x330] sm:$0xff]
    %v6178 = vld [vmem:[%s8 + $0x338] sm:$0xf]
    %v6179 = vld [vmem:[%s8 + $0x33c] sm:$0xff]
    %v6180 = vld [vmem:[%s8 + $0x344] sm:$0xf]
    %v6181 = vld [vmem:[%s8 + $0x348] sm:$0xff]
    %v6182 = vld [vmem:[%s8 + $0x350] sm:$0xf]
    %v6183 = vld [vmem:[%s8 + $0x354] sm:$0xff]
    %v6184 = vld [vmem:[%s8 + $0x35c] sm:$0xf]
    %v6185 = vld [vmem:[%s8 + $0x360] sm:$0xff]
    %v6186 = vld [vmem:[%s8 + $0x368] sm:$0xf]
    %v6187 = vld [vmem:[%s8 + $0x36c] sm:$0xff]
    %v6188 = vld [vmem:[%s8 + $0x374] sm:$0xf]
    %v6189 = vld [vmem:[%s8 + $0x378] sm:$0xff]
    %v6190 = vld [vmem:[%s8 + $0x380] sm:$0xf]
    %v6191 = vld [vmem:[%s8 + $0x384] sm:$0xff]
    %v6192 = vld [vmem:[%s8 + $0x38c] sm:$0xf]
    %v6193 = vld [vmem:[%s8 + $0x390] sm:$0xff]
    %v6194 = vld [vmem:[%s8 + $0x398] sm:$0xf]
    %v6195 = vld [vmem:[%s8 + $0x39c] sm:$0xff]
    %v6196 = vld [vmem:[%s8 + $0x3a4] sm:$0xf]
    %v6197 = vld [vmem:[%s8 + $0x3a8] sm:$0xff]
    %v6198 = vld [vmem:[%s8 + $0x3b0] sm:$0xf]
    %v6199 = vld [vmem:[%s8 + $0x3b4] sm:$0xff]
    %v6200 = vld [vmem:[%s8 + $0x3bc] sm:$0xf]
    %v6201 = vld [vmem:[%s8 + $0x3c0] sm:$0xff]
    %v6202 = vld [vmem:[%s8 + $0x3c8] sm:$0xf]
    %v6203 = vld [vmem:[%s8 + $0x3cc] sm:$0xff]
    %v6204 = vld [vmem:[%s8 + $0x3d4] sm:$0xf]
    %v6205 = vld [vmem:[%s8 + $0x3d8] sm:$0xff]
    %v6206 = vld [vmem:[%s8 + $0x3e0] sm:$0xf]
    %v6207 = vld [vmem:[%s8 + $0x3e4] sm:$0xff]
    %v6208 = vld [vmem:[%s8 + $0x3ec] sm:$0xf]
    %v6209 = vld [vmem:[%s8 + $0x3f0] sm:$0xff]
    %v6210 = vld [vmem:[%s8 + $0x3f8] sm:$0xf]
    %v6211 = vld [vmem:[%s8 + $0x3fc] sm:$0xff]
    %v6212 = vld [vmem:[%s8 + $0x404] sm:$0xf]
    %v6213 = vld [vmem:[%s8 + $0x408] sm:$0xff]
    %v6214 = vld [vmem:[%s8 + $0x410] sm:$0xf]
    %v6215 = vld [vmem:[%s8 + $0x414] sm:$0xff]
    %v6216 = vld [vmem:[%s8 + $0x41c] sm:$0xf]
    %v6217 = vld [vmem:[%s8 + $0x420] sm:$0xff]
    %v6218 = vld [vmem:[%s8 + $0x428] sm:$0xf]
    %v6219 = vld [vmem:[%s8 + $0x42c] sm:$0xff]
    %v6220 = vld [vmem:[%s8 + $0x434] sm:$0xf]
    %v6221 = vld [vmem:[%s8 + $0x438] sm:$0xff]
    %v6222 = vld [vmem:[%s8 + $0x440] sm:$0xf]
    %v6223 = vld [vmem:[%s8 + $0x444] sm:$0xff]
    %v6224 = vld [vmem:[%s8 + $0x44c] sm:$0xf]
    %v6225 = vld [vmem:[%s8 + $0x450] sm:$0xff]
    %v6226 = vld [vmem:[%s8 + $0x458] sm:$0xf]
    %v6227 = vld [vmem:[%s8 + $0x45c] sm:$0xff]
    %v6228 = vld [vmem:[%s8 + $0x464] sm:$0xf]
    %v6229 = vld [vmem:[%s8 + $0x468] sm:$0xff]
    %v6230 = vld [vmem:[%s8 + $0x470] sm:$0xf]
    %v6231 = vld [vmem:[%s8 + $0x474] sm:$0xff]
    %v6232 = vld [vmem:[%s8 + $0x47c] sm:$0xf]
    %v6233 = vld [vmem:[%s8 + $0x480] sm:$0xff]
    %v6234 = vld [vmem:[%s8 + $0x488] sm:$0xf]
    %v6235 = vld [vmem:[%s8 + $0x48c] sm:$0xff]
    %v6236 = vld [vmem:[%s8 + $0x494] sm:$0xf]
    %v6237 = vld [vmem:[%s8 + $0x498] sm:$0xff]
    %v6238 = vld [vmem:[%s8 + $0x4a0] sm:$0xf]
    %v6239 = vld [vmem:[%s8 + $0x4a4] sm:$0xff]
    %v6240 = vld [vmem:[%s8 + $0x4ac] sm:$0xf]
    %v6241 = vld [vmem:[%s8 + $0x4b0] sm:$0xff]
    %v6242 = vld [vmem:[%s8 + $0x4b8] sm:$0xf]
    %v6243 = vld [vmem:[%s8 + $0x4bc] sm:$0xff]
    %v6244 = vld [vmem:[%s8 + $0x4c4] sm:$0xf]
    %v6245 = vld [vmem:[%s8 + $0x4c8] sm:$0xff]
    %v6246 = vld [vmem:[%s8 + $0x4d0] sm:$0xf]
    %v6247 = vld [vmem:[%s8 + $0x4d4] sm:$0xff]
    %v6248 = vld [vmem:[%s8 + $0x4dc] sm:$0xf]
    %v6249 = vld [vmem:[%s8 + $0x4e0] sm:$0xff]
    %v6250 = vld [vmem:[%s8 + $0x4e8] sm:$0xf]
    %v6251 = vld [vmem:[%s8 + $0x4ec] sm:$0xff]
    %v6252 = vld [vmem:[%s8 + $0x4f4] sm:$0xf]
    %v6253 = vld [vmem:[%s8 + $0x4f8] sm:$0xff]
    %v6254 = vld [vmem:[%s8 + $0x500] sm:$0xf]
    %v6255 = vld [vmem:[%s8 + $0x504] sm:$0xff]
    %v6256 = vld [vmem:[%s8 + $0x50c] sm:$0xf]
    %v6473 = vunpack.c.l.b16 %v6041
    %v6474 = vunpack.c.h.b16 %v6041
    %v6475 = vunpack.c.l.b16 %v6042
    %v6476 = vunpack.c.l.b16 %v6043
    %v6477 = vunpack.c.h.b16 %v6043
    %v6478 = vunpack.c.l.b16 %v6044
    %v6479 = vunpack.c.l.b16 %v6045
    %v6480 = vunpack.c.h.b16 %v6045
    %v6481 = vunpack.c.l.b16 %v6046
    %v6482 = vunpack.c.l.b16 %v6047
    %v6483 = vunpack.c.h.b16 %v6047
    %v6484 = vunpack.c.l.b16 %v6048
    %v6485 = vunpack.c.l.b16 %v6049
    %v6486 = vunpack.c.h.b16 %v6049
    %v6487 = vunpack.c.l.b16 %v6050
    %v6488 = vunpack.c.l.b16 %v6051
    %v6489 = vunpack.c.h.b16 %v6051
    %v6490 = vunpack.c.l.b16 %v6052
    %v6491 = vunpack.c.l.b16 %v6053
    %v6492 = vunpack.c.h.b16 %v6053
    %v6493 = vunpack.c.l.b16 %v6054
    %v6494 = vunpack.c.l.b16 %v6055
    %v6495 = vunpack.c.h.b16 %v6055
    %v6496 = vunpack.c.l.b16 %v6056
    %v6497 = vunpack.c.l.b16 %v6057
    %v6498 = vunpack.c.h.b16 %v6057
    %v6499 = vunpack.c.l.b16 %v6058
    %v6500 = vunpack.c.l.b16 %v6059
    %v6501 = vunpack.c.h.b16 %v6059
    %v6502 = vunpack.c.l.b16 %v6060
    %v6503 = vunpack.c.l.b16 %v6061
    %v6504 = vunpack.c.h.b16 %v6061
    %v6505 = vunpack.c.l.b16 %v6062
    %v6506 = vunpack.c.l.b16 %v6063
    %v6507 = vunpack.c.h.b16 %v6063
    %v6508 = vunpack.c.l.b16 %v6064
    %v6509 = vunpack.c.l.b16 %v6065
    %v6510 = vunpack.c.h.b16 %v6065
    %v6511 = vunpack.c.l.b16 %v6066
    %v6512 = vunpack.c.l.b16 %v6067
    %v6513 = vunpack.c.h.b16 %v6067
    %v6514 = vunpack.c.l.b16 %v6068
    %v6515 = vunpack.c.l.b16 %v6069
    %v6516 = vunpack.c.h.b16 %v6069
    %v6517 = vunpack.c.l.b16 %v6070
    %v6518 = vunpack.c.l.b16 %v6071
    %v6519 = vunpack.c.h.b16 %v6071
    %v6520 = vunpack.c.l.b16 %v6072
    %v6521 = vunpack.c.l.b16 %v6073
    %v6522 = vunpack.c.h.b16 %v6073
    %v6523 = vunpack.c.l.b16 %v6074
    %v6524 = vunpack.c.l.b16 %v6075
    %v6525 = vunpack.c.h.b16 %v6075
    %v6526 = vunpack.c.l.b16 %v6076
    %v6527 = vunpack.c.l.b16 %v6077
    %v6528 = vunpack.c.h.b16 %v6077
    %v6529 = vunpack.c.l.b16 %v6078
    %v6530 = vunpack.c.l.b16 %v6079
    %v6531 = vunpack.c.h.b16 %v6079
    %v6532 = vunpack.c.l.b16 %v6080
    %v6533 = vunpack.c.l.b16 %v6081
    %v6534 = vunpack.c.h.b16 %v6081
    %v6535 = vunpack.c.l.b16 %v6082
    %v6536 = vunpack.c.l.b16 %v6083
    %v6537 = vunpack.c.h.b16 %v6083
    %v6538 = vunpack.c.l.b16 %v6084
    %v6539 = vunpack.c.l.b16 %v6085
    %v6540 = vunpack.c.h.b16 %v6085
    %v6541 = vunpack.c.l.b16 %v6086
    %v6542 = vunpack.c.l.b16 %v6087
    %v6543 = vunpack.c.h.b16 %v6087
    %v6544 = vunpack.c.l.b16 %v6088
    %v6545 = vunpack.c.l.b16 %v6089
    %v6546 = vunpack.c.h.b16 %v6089
    %v6547 = vunpack.c.l.b16 %v6090
    %v6548 = vunpack.c.l.b16 %v6091
    %v6549 = vunpack.c.h.b16 %v6091
    %v6550 = vunpack.c.l.b16 %v6092
    %v6551 = vunpack.c.l.b16 %v6093
    %v6552 = vunpack.c.h.b16 %v6093
    %v6553 = vunpack.c.l.b16 %v6094
    %v6554 = vunpack.c.l.b16 %v6095
    %v6555 = vunpack.c.h.b16 %v6095
    %v6556 = vunpack.c.l.b16 %v6096
    %v6557 = vunpack.c.l.b16 %v6097
    %v6558 = vunpack.c.h.b16 %v6097
    %v6559 = vunpack.c.l.b16 %v6098
    %v6560 = vunpack.c.l.b16 %v6099
    %v6561 = vunpack.c.h.b16 %v6099
    %v6562 = vunpack.c.l.b16 %v6100
    %v6563 = vunpack.c.l.b16 %v6101
    %v6564 = vunpack.c.h.b16 %v6101
    %v6565 = vunpack.c.l.b16 %v6102
    %v6566 = vunpack.c.l.b16 %v6103
    %v6567 = vunpack.c.h.b16 %v6103
    %v6568 = vunpack.c.l.b16 %v6104
    %v6569 = vunpack.c.l.b16 %v6105
    %v6570 = vunpack.c.h.b16 %v6105
    %v6571 = vunpack.c.l.b16 %v6106
    %v6572 = vunpack.c.l.b16 %v6107
    %v6573 = vunpack.c.h.b16 %v6107
    %v6574 = vunpack.c.l.b16 %v6108
    %v6575 = vunpack.c.l.b16 %v6109
    %v6576 = vunpack.c.h.b16 %v6109
    %v6577 = vunpack.c.l.b16 %v6110
    %v6578 = vunpack.c.l.b16 %v6111
    %v6579 = vunpack.c.h.b16 %v6111
    %v6580 = vunpack.c.l.b16 %v6112
    %v6581 = vunpack.c.l.b16 %v6113
    %v6582 = vunpack.c.h.b16 %v6113
    %v6583 = vunpack.c.l.b16 %v6114
    %v6584 = vunpack.c.l.b16 %v6115
    %v6585 = vunpack.c.h.b16 %v6115
    %v6586 = vunpack.c.l.b16 %v6116
    %v6587 = vunpack.c.l.b16 %v6117
    %v6588 = vunpack.c.h.b16 %v6117
    %v6589 = vunpack.c.l.b16 %v6118
    %v6590 = vunpack.c.l.b16 %v6119
    %v6591 = vunpack.c.h.b16 %v6119
    %v6592 = vunpack.c.l.b16 %v6120
    %v6593 = vunpack.c.l.b16 %v6121
    %v6594 = vunpack.c.h.b16 %v6121
    %v6595 = vunpack.c.l.b16 %v6122
    %v6596 = vunpack.c.l.b16 %v6123
    %v6597 = vunpack.c.h.b16 %v6123
    %v6598 = vunpack.c.l.b16 %v6124
    %v6599 = vunpack.c.l.b16 %v6125
    %v6600 = vunpack.c.h.b16 %v6125
    %v6601 = vunpack.c.l.b16 %v6126
    %v6602 = vunpack.c.l.b16 %v6127
    %v6603 = vunpack.c.h.b16 %v6127
    %v6604 = vunpack.c.l.b16 %v6128
    %v6605 = vunpack.c.l.b16 %v6129
    %v6606 = vunpack.c.h.b16 %v6129
    %v6607 = vunpack.c.l.b16 %v6130
    %v6608 = vunpack.c.l.b16 %v6131
    %v6609 = vunpack.c.h.b16 %v6131
    %v6610 = vunpack.c.l.b16 %v6132
    %v6611 = vunpack.c.l.b16 %v6133
    %v6612 = vunpack.c.h.b16 %v6133
    %v6613 = vunpack.c.l.b16 %v6134
    %v6614 = vunpack.c.l.b16 %v6135
    %v6615 = vunpack.c.h.b16 %v6135
    %v6616 = vunpack.c.l.b16 %v6136
    %v6617 = vunpack.c.l.b16 %v6137
    %v6618 = vunpack.c.h.b16 %v6137
    %v6619 = vunpack.c.l.b16 %v6138
    %v6620 = vunpack.c.l.b16 %v6139
    %v6621 = vunpack.c.h.b16 %v6139
    %v6622 = vunpack.c.l.b16 %v6140
    %v6623 = vunpack.c.l.b16 %v6141
    %v6624 = vunpack.c.h.b16 %v6141
    %v6625 = vunpack.c.l.b16 %v6142
    %v6626 = vunpack.c.l.b16 %v6143
    %v6627 = vunpack.c.h.b16 %v6143
    %v6628 = vunpack.c.l.b16 %v6144
    %v6629 = vunpack.c.l.b16 %v6145
    %v6630 = vunpack.c.h.b16 %v6145
    %v6631 = vunpack.c.l.b16 %v6146
    %v6632 = vunpack.c.l.b16 %v6147
    %v6633 = vunpack.c.h.b16 %v6147
    %v6634 = vunpack.c.l.b16 %v6148
    %v6635 = vunpack.c.l.b16 %v6149
    %v6636 = vunpack.c.h.b16 %v6149
    %v6637 = vunpack.c.l.b16 %v6150
    %v6638 = vunpack.c.l.b16 %v6151
    %v6639 = vunpack.c.h.b16 %v6151
    %v6640 = vunpack.c.l.b16 %v6152
    %v6641 = vunpack.c.l.b16 %v6153
    %v6642 = vunpack.c.h.b16 %v6153
    %v6643 = vunpack.c.l.b16 %v6154
    %v6644 = vunpack.c.l.b16 %v6155
    %v6645 = vunpack.c.h.b16 %v6155
    %v6646 = vunpack.c.l.b16 %v6156
    %v6647 = vunpack.c.l.b16 %v6157
    %v6648 = vunpack.c.h.b16 %v6157
    %v6649 = vunpack.c.l.b16 %v6158
    %v6650 = vunpack.c.l.b16 %v6159
    %v6651 = vunpack.c.h.b16 %v6159
    %v6652 = vunpack.c.l.b16 %v6160
    %v6653 = vunpack.c.l.b16 %v6161
    %v6654 = vunpack.c.h.b16 %v6161
    %v6655 = vunpack.c.l.b16 %v6162
    %v6656 = vunpack.c.l.b16 %v6163
    %v6657 = vunpack.c.h.b16 %v6163
    %v6658 = vunpack.c.l.b16 %v6164
    %v6659 = vunpack.c.l.b16 %v6165
    %v6660 = vunpack.c.h.b16 %v6165
    %v6661 = vunpack.c.l.b16 %v6166
    %v6662 = vunpack.c.l.b16 %v6167
    %v6663 = vunpack.c.h.b16 %v6167
    %v6664 = vunpack.c.l.b16 %v6168
    %v6665 = vunpack.c.l.b16 %v6169
    %v6666 = vunpack.c.h.b16 %v6169
    %v6667 = vunpack.c.l.b16 %v6170
    %v6668 = vunpack.c.l.b16 %v6171
    %v6669 = vunpack.c.h.b16 %v6171
    %v6670 = vunpack.c.l.b16 %v6172
    %v6671 = vunpack.c.l.b16 %v6173
    %v6672 = vunpack.c.h.b16 %v6173
    %v6673 = vunpack.c.l.b16 %v6174
    %v6674 = vunpack.c.l.b16 %v6175
    %v6675 = vunpack.c.h.b16 %v6175
    %v6676 = vunpack.c.l.b16 %v6176
    %v6677 = vunpack.c.l.b16 %v6177
    %v6678 = vunpack.c.h.b16 %v6177
    %v6679 = vunpack.c.l.b16 %v6178
    %v6680 = vunpack.c.l.b16 %v6179
    %v6681 = vunpack.c.h.b16 %v6179
    %v6682 = vunpack.c.l.b16 %v6180
    %v6683 = vunpack.c.l.b16 %v6181
    %v6684 = vunpack.c.h.b16 %v6181
    %v6685 = vunpack.c.l.b16 %v6182
    %v6686 = vunpack.c.l.b16 %v6183
    %v6687 = vunpack.c.h.b16 %v6183
    %v6688 = vunpack.c.l.b16 %v6184
    %v6689 = vunpack.c.l.b16 %v6185
    %v6690 = vunpack.c.h.b16 %v6185
    %v6691 = vunpack.c.l.b16 %v6186
    %v6692 = vunpack.c.l.b16 %v6187
    %v6693 = vunpack.c.h.b16 %v6187
    %v6694 = vunpack.c.l.b16 %v6188
    %v6695 = vunpack.c.l.b16 %v6189
    %v6696 = vunpack.c.h.b16 %v6189
    %v6697 = vunpack.c.l.b16 %v6190
    %v6698 = vunpack.c.l.b16 %v6191
    %v6699 = vunpack.c.h.b16 %v6191
    %v6700 = vunpack.c.l.b16 %v6192
    %v6701 = vunpack.c.l.b16 %v6193
    %v6702 = vunpack.c.h.b16 %v6193
    %v6703 = vunpack.c.l.b16 %v6194
    %v6704 = vunpack.c.l.b16 %v6195
    %v6705 = vunpack.c.h.b16 %v6195
    %v6706 = vunpack.c.l.b16 %v6196
    %v6707 = vunpack.c.l.b16 %v6197
    %v6708 = vunpack.c.h.b16 %v6197
    %v6709 = vunpack.c.l.b16 %v6198
    %v6710 = vunpack.c.l.b16 %v6199
    %v6711 = vunpack.c.h.b16 %v6199
    %v6712 = vunpack.c.l.b16 %v6200
    %v6713 = vunpack.c.l.b16 %v6201
    %v6714 = vunpack.c.h.b16 %v6201
    %v6715 = vunpack.c.l.b16 %v6202
    %v6716 = vunpack.c.l.b16 %v6203
    %v6717 = vunpack.c.h.b16 %v6203
    %v6718 = vunpack.c.l.b16 %v6204
    %v6719 = vunpack.c.l.b16 %v6205
    %v6720 = vunpack.c.h.b16 %v6205
    %v6721 = vunpack.c.l.b16 %v6206
    %v6722 = vunpack.c.l.b16 %v6207
    %v6723 = vunpack.c.h.b16 %v6207
    %v6724 = vunpack.c.l.b16 %v6208
    %v6725 = vunpack.c.l.b16 %v6209
    %v6726 = vunpack.c.h.b16 %v6209
    %v6727 = vunpack.c.l.b16 %v6210
    %v6728 = vunpack.c.l.b16 %v6211
    %v6729 = vunpack.c.h.b16 %v6211
    %v6730 = vunpack.c.l.b16 %v6212
    %v6731 = vunpack.c.l.b16 %v6213
    %v6732 = vunpack.c.h.b16 %v6213
    %v6733 = vunpack.c.l.b16 %v6214
    %v6734 = vunpack.c.l.b16 %v6215
    %v6735 = vunpack.c.h.b16 %v6215
    %v6736 = vunpack.c.l.b16 %v6216
    %v6737 = vunpack.c.l.b16 %v6217
    %v6738 = vunpack.c.h.b16 %v6217
    %v6739 = vunpack.c.l.b16 %v6218
    %v6740 = vunpack.c.l.b16 %v6219
    %v6741 = vunpack.c.h.b16 %v6219
    %v6742 = vunpack.c.l.b16 %v6220
    %v6743 = vunpack.c.l.b16 %v6221
    %v6744 = vunpack.c.h.b16 %v6221
    %v6745 = vunpack.c.l.b16 %v6222
    %v6746 = vunpack.c.l.b16 %v6223
    %v6747 = vunpack.c.h.b16 %v6223
    %v6748 = vunpack.c.l.b16 %v6224
    %v6749 = vunpack.c.l.b16 %v6225
    %v6750 = vunpack.c.h.b16 %v6225
    %v6751 = vunpack.c.l.b16 %v6226
    %v6752 = vunpack.c.l.b16 %v6227
    %v6753 = vunpack.c.h.b16 %v6227
    %v6754 = vunpack.c.l.b16 %v6228
    %v6755 = vunpack.c.l.b16 %v6229
    %v6756 = vunpack.c.h.b16 %v6229
    %v6757 = vunpack.c.l.b16 %v6230
    %v6758 = vunpack.c.l.b16 %v6231
    %v6759 = vunpack.c.h.b16 %v6231
    %v6760 = vunpack.c.l.b16 %v6232
    %v6761 = vunpack.c.l.b16 %v6233
    %v6762 = vunpack.c.h.b16 %v6233
    %v6763 = vunpack.c.l.b16 %v6234
    %v6764 = vunpack.c.l.b16 %v6235
    %v6765 = vunpack.c.h.b16 %v6235
    %v6766 = vunpack.c.l.b16 %v6236
    %v6767 = vunpack.c.l.b16 %v6237
    %v6768 = vunpack.c.h.b16 %v6237
    %v6769 = vunpack.c.l.b16 %v6238
    %v6770 = vunpack.c.l.b16 %v6239
    %v6771 = vunpack.c.h.b16 %v6239
    %v6772 = vunpack.c.l.b16 %v6240
    %v6773 = vunpack.c.l.b16 %v6241
    %v6774 = vunpack.c.h.b16 %v6241
    %v6775 = vunpack.c.l.b16 %v6242
    %v6776 = vunpack.c.l.b16 %v6243
    %v6777 = vunpack.c.h.b16 %v6243
    %v6778 = vunpack.c.l.b16 %v6244
    %v6779 = vunpack.c.l.b16 %v6245
    %v6780 = vunpack.c.h.b16 %v6245
    %v6781 = vunpack.c.l.b16 %v6246
    %v6782 = vunpack.c.l.b16 %v6247
    %v6783 = vunpack.c.h.b16 %v6247
    %v6784 = vunpack.c.l.b16 %v6248
    %v6785 = vunpack.c.l.b16 %v6249
    %v6786 = vunpack.c.h.b16 %v6249
    %v6787 = vunpack.c.l.b16 %v6250
    %v6788 = vunpack.c.l.b16 %v6251
    %v6789 = vunpack.c.h.b16 %v6251
    %v6790 = vunpack.c.l.b16 %v6252
    %v6791 = vunpack.c.l.b16 %v6253
    %v6792 = vunpack.c.h.b16 %v6253
    %v6793 = vunpack.c.l.b16 %v6254
    %v6794 = vunpack.c.l.b16 %v6255
    %v6795 = vunpack.c.h.b16 %v6255
    %v6796 = vunpack.c.l.b16 %v6256
    %v6797 = vpack.c.b16 %v6476, %v6473
    %v6798 = vpack.c.b16 %v6477, %v6474
    %v6799 = vpack.c.b16 %v6478, %v6475
    %v6800 = vpack.c.b16 %v6482, %v6479
    %v6801 = vpack.c.b16 %v6483, %v6480
    %v6802 = vpack.c.b16 %v6484, %v6481
    %v6803 = vpack.c.b16 %v6488, %v6485
    %v6804 = vpack.c.b16 %v6489, %v6486
    %v6805 = vpack.c.b16 %v6490, %v6487
    %v6806 = vpack.c.b16 %v6494, %v6491
    %v6807 = vpack.c.b16 %v6495, %v6492
    %v6808 = vpack.c.b16 %v6496, %v6493
    %v6809 = vpack.c.b16 %v6500, %v6497
    %v6810 = vpack.c.b16 %v6501, %v6498
    %v6811 = vpack.c.b16 %v6502, %v6499
    %v6812 = vpack.c.b16 %v6506, %v6503
    %v6813 = vpack.c.b16 %v6507, %v6504
    %v6814 = vpack.c.b16 %v6508, %v6505
    %v6815 = vpack.c.b16 %v6512, %v6509
    %v6816 = vpack.c.b16 %v6513, %v6510
    %v6817 = vpack.c.b16 %v6514, %v6511
    %v6818 = vpack.c.b16 %v6518, %v6515
    %v6819 = vpack.c.b16 %v6519, %v6516
    %v6820 = vpack.c.b16 %v6520, %v6517
    %v6821 = vpack.c.b16 %v6524, %v6521
    %v6822 = vpack.c.b16 %v6525, %v6522
    %v6823 = vpack.c.b16 %v6526, %v6523
    %v6824 = vpack.c.b16 %v6530, %v6527
    %v6825 = vpack.c.b16 %v6531, %v6528
    %v6826 = vpack.c.b16 %v6532, %v6529
    %v6827 = vpack.c.b16 %v6536, %v6533
    %v6828 = vpack.c.b16 %v6537, %v6534
    %v6829 = vpack.c.b16 %v6538, %v6535
    %v6830 = vpack.c.b16 %v6542, %v6539
    %v6831 = vpack.c.b16 %v6543, %v6540
    %v6832 = vpack.c.b16 %v6544, %v6541
    %v6833 = vpack.c.b16 %v6548, %v6545
    %v6834 = vpack.c.b16 %v6549, %v6546
    %v6835 = vpack.c.b16 %v6550, %v6547
    %v6836 = vpack.c.b16 %v6554, %v6551
    %v6837 = vpack.c.b16 %v6555, %v6552
    %v6838 = vpack.c.b16 %v6556, %v6553
    %v6839 = vpack.c.b16 %v6560, %v6557
    %v6840 = vpack.c.b16 %v6561, %v6558
    %v6841 = vpack.c.b16 %v6562, %v6559
    %v6842 = vpack.c.b16 %v6566, %v6563
    %v6843 = vpack.c.b16 %v6567, %v6564
    %v6844 = vpack.c.b16 %v6568, %v6565
    %v6845 = vpack.c.b16 %v6572, %v6569
    %v6846 = vpack.c.b16 %v6573, %v6570
    %v6847 = vpack.c.b16 %v6574, %v6571
    %v6848 = vpack.c.b16 %v6578, %v6575
    %v6849 = vpack.c.b16 %v6579, %v6576
    %v6850 = vpack.c.b16 %v6580, %v6577
    %v6851 = vpack.c.b16 %v6584, %v6581
    %v6852 = vpack.c.b16 %v6585, %v6582
    %v6853 = vpack.c.b16 %v6586, %v6583
    %v6854 = vpack.c.b16 %v6590, %v6587
    %v6855 = vpack.c.b16 %v6591, %v6588
    %v6856 = vpack.c.b16 %v6592, %v6589
    %v6857 = vpack.c.b16 %v6596, %v6593
    %v6858 = vpack.c.b16 %v6597, %v6594
    %v6859 = vpack.c.b16 %v6598, %v6595
    %v6860 = vpack.c.b16 %v6602, %v6599
    %v6861 = vpack.c.b16 %v6603, %v6600
    %v6862 = vpack.c.b16 %v6604, %v6601
    %v6863 = vpack.c.b16 %v6608, %v6605
    %v6864 = vpack.c.b16 %v6609, %v6606
    %v6865 = vpack.c.b16 %v6610, %v6607
    %v6866 = vpack.c.b16 %v6614, %v6611
    %v6867 = vpack.c.b16 %v6615, %v6612
    %v6868 = vpack.c.b16 %v6616, %v6613
    %v6869 = vpack.c.b16 %v6620, %v6617
    %v6870 = vpack.c.b16 %v6621, %v6618
    %v6871 = vpack.c.b16 %v6622, %v6619
    %v6872 = vpack.c.b16 %v6626, %v6623
    %v6873 = vpack.c.b16 %v6627, %v6624
    %v6874 = vpack.c.b16 %v6628, %v6625
    %v6875 = vpack.c.b16 %v6632, %v6629
    %v6876 = vpack.c.b16 %v6633, %v6630
    %v6877 = vpack.c.b16 %v6634, %v6631
    %v6878 = vpack.c.b16 %v6638, %v6635
    %v6879 = vpack.c.b16 %v6639, %v6636
    %v6880 = vpack.c.b16 %v6640, %v6637
    %v6881 = vpack.c.b16 %v6644, %v6641
    %v6882 = vpack.c.b16 %v6645, %v6642
    %v6883 = vpack.c.b16 %v6646, %v6643
    %v6884 = vpack.c.b16 %v6650, %v6647
    %v6885 = vpack.c.b16 %v6651, %v6648
    %v6886 = vpack.c.b16 %v6652, %v6649
    %v6887 = vpack.c.b16 %v6656, %v6653
    %v6888 = vpack.c.b16 %v6657, %v6654
    %v6889 = vpack.c.b16 %v6658, %v6655
    %v6890 = vpack.c.b16 %v6662, %v6659
    %v6891 = vpack.c.b16 %v6663, %v6660
    %v6892 = vpack.c.b16 %v6664, %v6661
    %v6893 = vpack.c.b16 %v6668, %v6665
    %v6894 = vpack.c.b16 %v6669, %v6666
    %v6895 = vpack.c.b16 %v6670, %v6667
    %v6896 = vpack.c.b16 %v6674, %v6671
    %v6897 = vpack.c.b16 %v6675, %v6672
    %v6898 = vpack.c.b16 %v6676, %v6673
    %v6899 = vpack.c.b16 %v6680, %v6677
    %v6900 = vpack.c.b16 %v6681, %v6678
    %v6901 = vpack.c.b16 %v6682, %v6679
    %v6902 = vpack.c.b16 %v6686, %v6683
    %v6903 = vpack.c.b16 %v6687, %v6684
    %v6904 = vpack.c.b16 %v6688, %v6685
    %v6905 = vpack.c.b16 %v6692, %v6689
    %v6906 = vpack.c.b16 %v6693, %v6690
    %v6907 = vpack.c.b16 %v6694, %v6691
    %v6908 = vpack.c.b16 %v6698, %v6695
    %v6909 = vpack.c.b16 %v6699, %v6696
    %v6910 = vpack.c.b16 %v6700, %v6697
    %v6911 = vpack.c.b16 %v6704, %v6701
    %v6912 = vpack.c.b16 %v6705, %v6702
    %v6913 = vpack.c.b16 %v6706, %v6703
    %v6914 = vpack.c.b16 %v6710, %v6707
    %v6915 = vpack.c.b16 %v6711, %v6708
    %v6916 = vpack.c.b16 %v6712, %v6709
    %v6917 = vpack.c.b16 %v6716, %v6713
    %v6918 = vpack.c.b16 %v6717, %v6714
    %v6919 = vpack.c.b16 %v6718, %v6715
    %v6920 = vpack.c.b16 %v6722, %v6719
    %v6921 = vpack.c.b16 %v6723, %v6720
    %v6922 = vpack.c.b16 %v6724, %v6721
    %v6923 = vpack.c.b16 %v6728, %v6725
    %v6924 = vpack.c.b16 %v6729, %v6726
    %v6925 = vpack.c.b16 %v6730, %v6727
    %v6926 = vpack.c.b16 %v6734, %v6731
    %v6927 = vpack.c.b16 %v6735, %v6732
    %v6928 = vpack.c.b16 %v6736, %v6733
    %v6929 = vpack.c.b16 %v6740, %v6737
    %v6930 = vpack.c.b16 %v6741, %v6738
    %v6931 = vpack.c.b16 %v6742, %v6739
    %v6932 = vpack.c.b16 %v6746, %v6743
    %v6933 = vpack.c.b16 %v6747, %v6744
    %v6934 = vpack.c.b16 %v6748, %v6745
    %v6935 = vpack.c.b16 %v6752, %v6749
    %v6936 = vpack.c.b16 %v6753, %v6750
    %v6937 = vpack.c.b16 %v6754, %v6751
    %v6938 = vpack.c.b16 %v6758, %v6755
    %v6939 = vpack.c.b16 %v6759, %v6756
    %v6940 = vpack.c.b16 %v6760, %v6757
    %v6941 = vpack.c.b16 %v6764, %v6761
    %v6942 = vpack.c.b16 %v6765, %v6762
    %v6943 = vpack.c.b16 %v6766, %v6763
    %v6944 = vpack.c.b16 %v6770, %v6767
    %v6945 = vpack.c.b16 %v6771, %v6768
    %v6946 = vpack.c.b16 %v6772, %v6769
    %v6947 = vpack.c.b16 %v6776, %v6773
    %v6948 = vpack.c.b16 %v6777, %v6774
    %v6949 = vpack.c.b16 %v6778, %v6775
    %v6950 = vpack.c.b16 %v6782, %v6779
    %v6951 = vpack.c.b16 %v6783, %v6780
    %v6952 = vpack.c.b16 %v6784, %v6781
    %v6953 = vpack.c.b16 %v6788, %v6785
    %v6954 = vpack.c.b16 %v6789, %v6786
    %v6955 = vpack.c.b16 %v6790, %v6787
    %v6956 = vpack.c.b16 %v6794, %v6791
    %v6957 = vpack.c.b16 %v6795, %v6792
    %v6958 = vpack.c.b16 %v6796, %v6793
    %v7122 = vsel %vm3276, %v6026, 0
    %v7125 = vsel %vm3276, %v6033, 0
    %v7128 = vsel %vm3276, %v6040, 0
    %7130 = vmatprep.subr.bf16.mxu0 %v6798
    %7131 = vmatpush1.bf16.msra.mxu0 %v6797
    %7132 = vmatprep.subr.bf16.mxu0 %v6801
    %7133 = vmatpush1.bf16.msra.mxu0 %v6800
    %7134 = vmatprep.subr.bf16.mxu0 %v6804
    %7135 = vmatpush1.bf16.msra.mxu0 %v6803
    %7136 = vmatprep.subr.bf16.mxu0 %v6807
    %7137 = vmatpush1.bf16.msra.mxu0 %v6806
    %7138 = vmatprep.subr.bf16.mxu0 %v6810
    %7139 = vmatpush1.bf16.msra.mxu0 %v6809
    %7140 = vmatprep.subr.bf16.mxu0 %v6813
    %7141 = vmatpush1.bf16.msra.mxu0 %v6812
    %7142 = vmatprep.subr.bf16.mxu0 %v6816
    %7143 = vmatpush1.bf16.msra.mxu0 %v6815
    %7144 = vmatprep.subr.bf16.mxu0 %v6819
    %7145 = vmatpush1.bf16.msra.mxu0 %v6818
    %7146 = vmatprep.subr.bf16.mxu0 %v6822
    %7147 = vmatpush1.bf16.msra.mxu0 %v6821
    %7148 = vmatprep.subr.bf16.mxu0 %v6825
    %7149 = vmatpush1.bf16.msra.mxu0 %v6824
    %7150 = vmatprep.subr.bf16.mxu0 %v6828
    %7151 = vmatpush1.bf16.msra.mxu0 %v6827
    %7152 = vmatprep.subr.bf16.mxu0 %v6831
    %7153 = vmatpush1.bf16.msra.mxu0 %v6830
    %7154 = vmatprep.subr.bf16.mxu0 %v6834
    %7155 = vmatpush1.bf16.msra.mxu0 %v6833
    %7156 = vmatprep.subr.bf16.mxu0 %v6837
    %7157 = vmatpush1.bf16.msra.mxu0 %v6836
    %7158 = vmatprep.subr.bf16.mxu0 %v6840
    %7159 = vmatpush1.bf16.msra.mxu0 %v6839
    %7160 = vmatprep.subr.bf16.mxu0 %v6843
    %7161 = vmatpush1.bf16.msra.mxu0 %v6842
    %7162 = vmatprep.mubr.bf16.mxu0 %v6021
    %7163 = vmatmul.mubr.bf16.gmra.mrb[0].mxu0 %v6020
    %v7164 = vpop.f32.mrb[0].mxu0
    %v7165 = vadd.f32 0.0, %v7164
    %v7166 = vpop.f32.mrb[0].mxu0
    %v7167 = vadd.f32 0.0, %v7166
    %v7168 = vpop.f32.mrb[0].mxu0
    %v7169 = vadd.f32 0.0, %v7168
    %v7170 = vpop.f32.mrb[0].mxu0
    %v7171 = vadd.f32 0.0, %v7170
    %7172 = vmatprep.mubr.bf16.mxu0 %v6028
    %7173 = vmatmul.mubr.bf16.gmra.mrb[0].mxu0 %v6027
    %v7174 = vpop.f32.mrb[0].mxu0
    %v7175 = vadd.f32 0.0, %v7174
    %v7176 = vpop.f32.mrb[0].mxu0
    %v7177 = vadd.f32 0.0, %v7176
    %v7178 = vpop.f32.mrb[0].mxu0
    %v7179 = vadd.f32 0.0, %v7178
    %v7180 = vpop.f32.mrb[0].mxu0
    %v7181 = vadd.f32 0.0, %v7180
    %7182 = vmatprep.mubr.bf16.mxu0 %v6035
    %7183 = vmatmul.mubr.bf16.gmra.mrb[0].mxu0 %v6034
    %v7184 = vpop.f32.mrb[0].mxu0
    %v7185 = vadd.f32 0.0, %v7184
    %v7186 = vpop.f32.mrb[0].mxu0
    %v7187 = vadd.f32 0.0, %v7186
    %v7188 = vpop.f32.mrb[0].mxu0
    %v7189 = vadd.f32 0.0, %v7188
    %v7190 = vpop.f32.mrb[0].mxu0
    %v7191 = vadd.f32 0.0, %v7190
    %7192 = vdwg.mxu0
    %7193 = vmatprep.subr.bf16.mxu0 %v6846
    %7194 = vmatpush1.bf16.msra.mxu0 %v6845
    %7195 = vmatprep.subr.bf16.mxu0 %v6849
    %7196 = vmatpush1.bf16.msra.mxu0 %v6848
    %7197 = vmatprep.subr.bf16.mxu0 %v6852
    %7198 = vmatpush1.bf16.msra.mxu0 %v6851
    %7199 = vmatprep.subr.bf16.mxu0 %v6855
    %7200 = vmatpush1.bf16.msra.mxu0 %v6854
    %7201 = vmatprep.subr.bf16.mxu0 %v6858
    %7202 = vmatpush1.bf16.msra.mxu0 %v6857
    %7203 = vmatprep.subr.bf16.mxu0 %v6861
    %7204 = vmatpush1.bf16.msra.mxu0 %v6860
    %7205 = vmatprep.subr.bf16.mxu0 %v6864
    %7206 = vmatpush1.bf16.msra.mxu0 %v6863
    %7207 = vmatprep.subr.bf16.mxu0 %v6867
    %7208 = vmatpush1.bf16.msra.mxu0 %v6866
    %7209 = vmatprep.subr.bf16.mxu0 %v6870
    %7210 = vmatpush1.bf16.msra.mxu0 %v6869
    %7211 = vmatprep.subr.bf16.mxu0 %v6873
    %7212 = vmatpush1.bf16.msra.mxu0 %v6872
    %7213 = vmatprep.subr.bf16.mxu0 %v6876
    %7214 = vmatpush1.bf16.msra.mxu0 %v6875
    %7215 = vmatprep.subr.bf16.mxu0 %v6879
    %7216 = vmatpush1.bf16.msra.mxu0 %v6878
    %7217 = vmatprep.subr.bf16.mxu0 %v6882
    %7218 = vmatpush1.bf16.msra.mxu0 %v6881
    %7219 = vmatprep.subr.bf16.mxu0 %v6885
    %7220 = vmatpush1.bf16.msra.mxu0 %v6884
    %7221 = vmatprep.subr.bf16.mxu0 %v6888
    %7222 = vmatpush1.bf16.msra.mxu0 %v6887
    %7223 = vmatprep.subr.bf16.mxu0 %v6891
    %7224 = vmatpush1.bf16.msra.mxu0 %v6890
    %7225 = vmatprep.mubr.bf16.mxu0 %v6023
    %7226 = vmatmul.mubr.bf16.gmra.mrb[0].mxu0 %v6022
    %v7227 = vpop.f32.mrb[0].mxu0
    %v7228 = vadd.f32 %v7165, %v7227
    %v7229 = vpop.f32.mrb[0].mxu0
    %v7230 = vadd.f32 %v7167, %v7229
    %v7231 = vpop.f32.mrb[0].mxu0
    %v7232 = vadd.f32 %v7169, %v7231
    %v7233 = vpop.f32.mrb[0].mxu0
    %v7234 = vadd.f32 %v7171, %v7233
    %7235 = vmatprep.mubr.bf16.mxu0 %v6030
    %7236 = vmatmul.mubr.bf16.gmra.mrb[0].mxu0 %v6029
    %v7237 = vpop.f32.mrb[0].mxu0
    %v7238 = vadd.f32 %v7175, %v7237
    %v7239 = vpop.f32.mrb[0].mxu0
    %v7240 = vadd.f32 %v7177, %v7239
    %v7241 = vpop.f32.mrb[0].mxu0
    %v7242 = vadd.f32 %v7179, %v7241
    %v7243 = vpop.f32.mrb[0].mxu0
    %v7244 = vadd.f32 %v7181, %v7243
    %7245 = vmatprep.mubr.bf16.mxu0 %v6037
    %7246 = vmatmul.mubr.bf16.gmra.mrb[0].mxu0 %v6036
    %v7247 = vpop.f32.mrb[0].mxu0
    %v7248 = vadd.f32 %v7185, %v7247
    %v7249 = vpop.f32.mrb[0].mxu0
    %v7250 = vadd.f32 %v7187, %v7249
    %v7251 = vpop.f32.mrb[0].mxu0
    %v7252 = vadd.f32 %v7189, %v7251
    %v7253 = vpop.f32.mrb[0].mxu0
    %v7254 = vadd.f32 %v7191, %v7253
    %7255 = vdwg.mxu0
    %7256 = vmatprep.subr.bf16.mxu0 %v6894
    %7257 = vmatpush1.bf16.msra.mxu0 %v6893
    %7258 = vmatprep.subr.bf16.mxu0 %v6897
    %7259 = vmatpush1.bf16.msra.mxu0 %v6896
    %7260 = vmatprep.subr.bf16.mxu0 %v6900
    %7261 = vmatpush1.bf16.msra.mxu0 %v6899
    %7262 = vmatprep.subr.bf16.mxu0 %v6903
    %7263 = vmatpush1.bf16.msra.mxu0 %v6902
    %7264 = vmatprep.subr.bf16.mxu0 %v6906
    %7265 = vmatpush1.bf16.msra.mxu0 %v6905
    %7266 = vmatprep.subr.bf16.mxu0 %v6909
    %7267 = vmatpush1.bf16.msra.mxu0 %v6908
    %7268 = vmatprep.subr.bf16.mxu0 %v6912
    %7269 = vmatpush1.bf16.msra.mxu0 %v6911
    %7270 = vmatprep.subr.bf16.mxu0 %v6915
    %7271 = vmatpush1.bf16.msra.mxu0 %v6914
    %7272 = vmatprep.subr.bf16.mxu0 %v6918
    %7273 = vmatpush1.bf16.msra.mxu0 %v6917
    %7274 = vmatprep.subr.bf16.mxu0 %v6921
    %7275 = vmatpush1.bf16.msra.mxu0 %v6920
    %7276 = vmatprep.subr.bf16.mxu0 %v6924
    %7277 = vmatpush1.bf16.msra.mxu0 %v6923
    %7278 = vmatprep.subr.bf16.mxu0 %v6927
    %7279 = vmatpush1.bf16.msra.mxu0 %v6926
    %7280 = vmatprep.subr.bf16.mxu0 %v6930
    %7281 = vmatpush1.bf16.msra.mxu0 %v6929
    %7282 = vmatprep.subr.bf16.mxu0 %v6933
    %7283 = vmatpush1.bf16.msra.mxu0 %v6932
    %7284 = vmatprep.subr.bf16.mxu0 %v6936
    %7285 = vmatpush1.bf16.msra.mxu0 %v6935
    %7286 = vmatprep.subr.bf16.mxu0 %v6939
    %7287 = vmatpush1.bf16.msra.mxu0 %v6938
    %7288 = vmatprep.mubr.bf16.mxu0 %v6025
    %7289 = vmatmul.mubr.bf16.gmra.mrb[0].mxu0 %v6024
    %v7290 = vpop.f32.mrb[0].mxu0
    %v7291 = vadd.f32 %v7228, %v7290
    %v7292 = vpop.f32.mrb[0].mxu0
    %v7293 = vadd.f32 %v7230, %v7292
    %v7294 = vpop.f32.mrb[0].mxu0
    %v7295 = vadd.f32 %v7232, %v7294
    %v7296 = vpop.f32.mrb[0].mxu0
    %v7297 = vadd.f32 %v7234, %v7296
    %7298 = vmatprep.mubr.bf16.mxu0 %v6032
    %7299 = vmatmul.mubr.bf16.gmra.mrb[0].mxu0 %v6031
    %v7300 = vpop.f32.mrb[0].mxu0
    %v7301 = vadd.f32 %v7238, %v7300
    %v7302 = vpop.f32.mrb[0].mxu0
    %v7303 = vadd.f32 %v7240, %v7302
    %v7304 = vpop.f32.mrb[0].mxu0
    %v7305 = vadd.f32 %v7242, %v7304
    %v7306 = vpop.f32.mrb[0].mxu0
    %v7307 = vadd.f32 %v7244, %v7306
    %7308 = vmatprep.mubr.bf16.mxu0 %v6039
    %7309 = vmatmul.mubr.bf16.gmra.mrb[0].mxu0 %v6038
    %v7310 = vpop.f32.mrb[0].mxu0
    %v7311 = vadd.f32 %v7248, %v7310
    %v7312 = vpop.f32.mrb[0].mxu0
    %v7313 = vadd.f32 %v7250, %v7312
    %v7314 = vpop.f32.mrb[0].mxu0
    %v7315 = vadd.f32 %v7252, %v7314
    %v7316 = vpop.f32.mrb[0].mxu0
    %v7317 = vadd.f32 %v7254, %v7316
    %7318 = vdwg.mxu0
    %7319 = vmatprep.subr.bf16.mxu0 %v6942
    %7320 = vmatpush1.bf16.msra.mxu0 %v6941
    %7321 = vmatprep.subr.bf16.mxu0 %v6945
    %7322 = vmatpush1.bf16.msra.mxu0 %v6944
    %7323 = vmatprep.subr.bf16.mxu0 %v6948
    %7324 = vmatpush1.bf16.msra.mxu0 %v6947
    %7325 = vmatprep.subr.bf16.mxu0 %v6951
    %7326 = vmatpush1.bf16.msra.mxu0 %v6950
    %7327 = vmatprep.subr.bf16.mxu0 %v6954
    %7328 = vmatpush1.bf16.msra.mxu0 %v6953
    %7329 = vmatprep.subr.bf16.mxu0 %v6957
    %7330 = vmatpush1.bf16.msra.mxu0 %v6956
    %7331 = vmatprep.subr.bf16.mxu0 0
    %7332 = vmatpush1.bf16.msra.mxu0 0
    %7333 = vmatprep.subr.bf16.mxu0 0
    %7334 = vmatpush1.bf16.msra.mxu0 0
    %7335 = vmatprep.subr.bf16.mxu0 0
    %7336 = vmatpush1.bf16.msra.mxu0 0
    %7337 = vmatprep.subr.bf16.mxu0 0
    %7338 = vmatpush1.bf16.msra.mxu0 0
    %7339 = vmatprep.subr.bf16.mxu0 0
    %7340 = vmatpush1.bf16.msra.mxu0 0
    %7341 = vmatprep.subr.bf16.mxu0 0
    %7342 = vmatpush1.bf16.msra.mxu0 0
    %7343 = vmatprep.subr.bf16.mxu0 0
    %7344 = vmatpush1.bf16.msra.mxu0 0
    %7345 = vmatprep.subr.bf16.mxu0 0
    %7346 = vmatpush1.bf16.msra.mxu0 0
    %7347 = vmatprep.subr.bf16.mxu0 0
    %7348 = vmatpush1.bf16.msra.mxu0 0
    %7349 = vmatprep.subr.bf16.mxu0 0
    %7350 = vmatpush1.bf16.msra.mxu0 0
    %7351 = vmatprep.mubr.bf16.mxu0 0
    %7352 = vmatmul.mubr.bf16.gmra.mrb[0].mxu0 %v7122
    %v7353 = vpop.f32.mrb[0].mxu0
    %v7354 = vadd.f32 %v7291, %v7353
    %v7355 = vpop.f32.mrb[0].mxu0
    %v7356 = vadd.f32 %v7293, %v7355
    %v7357 = vpop.f32.mrb[0].mxu0
    %v7358 = vadd.f32 %v7295, %v7357
    %v7359 = vpop.f32.mrb[0].mxu0
    %v7360 = vadd.f32 %v7297, %v7359
    %7361 = vmatprep.mubr.bf16.mxu0 0
    %7362 = vmatmul.mubr.bf16.gmra.mrb[0].mxu0 %v7125
    %v7363 = vpop.f32.mrb[0].mxu0
    %v7364 = vadd.f32 %v7301, %v7363
    %v7365 = vpop.f32.mrb[0].mxu0
    %v7366 = vadd.f32 %v7303, %v7365
    %v7367 = vpop.f32.mrb[0].mxu0
    %v7368 = vadd.f32 %v7305, %v7367
    %v7369 = vpop.f32.mrb[0].mxu0
    %v7370 = vadd.f32 %v7307, %v7369
    %7371 = vmatprep.mubr.bf16.mxu0 0
    %7372 = vmatmul.mubr.bf16.gmra.mrb[0].mxu0 %v7128
    %v7373 = vpop.f32.mrb[0].mxu0
    %v7374 = vadd.f32 %v7311, %v7373
    %v7375 = vpop.f32.mrb[0].mxu0
    %v7376 = vadd.f32 %v7313, %v7375
    %v7377 = vpop.f32.mrb[0].mxu0
    %v7378 = vadd.f32 %v7315, %v7377
    %v7379 = vpop.f32.mrb[0].mxu0
    %v7380 = vadd.f32 %v7317, %v7379
    %7381 = vdwg.mxu0
    %7382 = vmatprep.subr.bf16.mxu0 0
    %7383 = vmatpush1.bf16.msra.mxu0 %v6799
    %7384 = vmatprep.subr.bf16.mxu0 0
    %7385 = vmatpush1.bf16.msra.mxu0 %v6802
    %7386 = vmatprep.subr.bf16.mxu0 0
    %7387 = vmatpush1.bf16.msra.mxu0 %v6805
    %7388 = vmatprep.subr.bf16.mxu0 0
    %7389 = vmatpush1.bf16.msra.mxu0 %v6808
    %7390 = vmatprep.subr.bf16.mxu0 0
    %7391 = vmatpush1.bf16.msra.mxu0 %v6811
    %7392 = vmatprep.subr.bf16.mxu0 0
    %7393 = vmatpush1.bf16.msra.mxu0 %v6814
    %7394 = vmatprep.subr.bf16.mxu0 0
    %7395 = vmatpush1.bf16.msra.mxu0 %v6817
    %7396 = vmatprep.subr.bf16.mxu0 0
    %7397 = vmatpush1.bf16.msra.mxu0 %v6820
    %7398 = vmatprep.subr.bf16.mxu0 0
    %7399 = vmatpush1.bf16.msra.mxu0 %v6823
    %7400 = vmatprep.subr.bf16.mxu0 0
    %7401 = vmatpush1.bf16.msra.mxu0 %v6826
    %7402 = vmatprep.subr.bf16.mxu0 0
    %7403 = vmatpush1.bf16.msra.mxu0 %v6829
    %7404 = vmatprep.subr.bf16.mxu0 0
    %7405 = vmatpush1.bf16.msra.mxu0 %v6832
    %7406 = vmatprep.subr.bf16.mxu0 0
    %7407 = vmatpush1.bf16.msra.mxu0 %v6835
    %7408 = vmatprep.subr.bf16.mxu0 0
    %7409 = vmatpush1.bf16.msra.mxu0 %v6838
    %7410 = vmatprep.subr.bf16.mxu0 0
    %7411 = vmatpush1.bf16.msra.mxu0 %v6841
    %7412 = vmatprep.subr.bf16.mxu0 0
    %7413 = vmatpush1.bf16.msra.mxu0 %v6844
    %7414 = vmatprep.mubr.bf16.mxu0 %v6021
    %7415 = vmatmul.mubr.bf16.gmra.mrb[0].mxu0 %v6020
    %v7416 = vpop.f32.mrb[0].mxu0
    %v7417 = vadd.f32 0.0, %v7416
    %v7418 = vpop.f32.mrb[0].mxu0
    %v7419 = vpop.f32.mrb[0].mxu0
    %v7420 = vadd.f32 0.0, %v7419
    %v7421 = vpop.f32.mrb[0].mxu0
    %7422 = vmatprep.mubr.bf16.mxu0 %v6028
    %7423 = vmatmul.mubr.bf16.gmra.mrb[0].mxu0 %v6027
    %v7424 = vpop.f32.mrb[0].mxu0
    %v7425 = vadd.f32 0.0, %v7424
    %v7426 = vpop.f32.mrb[0].mxu0
    %v7427 = vpop.f32.mrb[0].mxu0
    %v7428 = vadd.f32 0.0, %v7427
    %v7429 = vpop.f32.mrb[0].mxu0
    %7430 = vmatprep.mubr.bf16.mxu0 %v6035
    %7431 = vmatmul.mubr.bf16.gmra.mrb[0].mxu0 %v6034
    %v7432 = vpop.f32.mrb[0].mxu0
    %v7433 = vadd.f32 0.0, %v7432
    %v7434 = vpop.f32.mrb[0].mxu0
    %v7435 = vpop.f32.mrb[0].mxu0
    %v7436 = vadd.f32 0.0, %v7435
    %v7437 = vpop.f32.mrb[0].mxu0
    %7438 = vdwg.mxu0
    %7439 = vmatprep.subr.bf16.mxu0 0
    %7440 = vmatpush1.bf16.msra.mxu0 %v6847
    %7441 = vmatprep.subr.bf16.mxu0 0
    %7442 = vmatpush1.bf16.msra.mxu0 %v6850
    %7443 = vmatprep.subr.bf16.mxu0 0
    %7444 = vmatpush1.bf16.msra.mxu0 %v6853
    %7445 = vmatprep.subr.bf16.mxu0 0
    %7446 = vmatpush1.bf16.msra.mxu0 %v6856
    %7447 = vmatprep.subr.bf16.mxu0 0
    %7448 = vmatpush1.bf16.msra.mxu0 %v6859
    %7449 = vmatprep.subr.bf16.mxu0 0
    %7450 = vmatpush1.bf16.msra.mxu0 %v6862
    %7451 = vmatprep.subr.bf16.mxu0 0
    %7452 = vmatpush1.bf16.msra.mxu0 %v6865
    %7453 = vmatprep.subr.bf16.mxu0 0
    %7454 = vmatpush1.bf16.msra.mxu0 %v6868
    %7455 = vmatprep.subr.bf16.mxu0 0
    %7456 = vmatpush1.bf16.msra.mxu0 %v6871
    %7457 = vmatprep.subr.bf16.mxu0 0
    %7458 = vmatpush1.bf16.msra.mxu0 %v6874
    %7459 = vmatprep.subr.bf16.mxu0 0
    %7460 = vmatpush1.bf16.msra.mxu0 %v6877
    %7461 = vmatprep.subr.bf16.mxu0 0
    %7462 = vmatpush1.bf16.msra.mxu0 %v6880
    %7463 = vmatprep.subr.bf16.mxu0 0
    %7464 = vmatpush1.bf16.msra.mxu0 %v6883
    %7465 = vmatprep.subr.bf16.mxu0 0
    %7466 = vmatpush1.bf16.msra.mxu0 %v6886
    %7467 = vmatprep.subr.bf16.mxu0 0
    %7468 = vmatpush1.bf16.msra.mxu0 %v6889
    %7469 = vmatprep.subr.bf16.mxu0 0
    %7470 = vmatpush1.bf16.msra.mxu0 %v6892
    %7471 = vmatprep.mubr.bf16.mxu0 %v6023
    %7472 = vmatmul.mubr.bf16.gmra.mrb[0].mxu0 %v6022
    %v7473 = vpop.f32.mrb[0].mxu0
    %v7474 = vadd.f32 %v7417, %v7473
    %v7475 = vpop.f32.mrb[0].mxu0
    %v7476 = vpop.f32.mrb[0].mxu0
    %v7477 = vadd.f32 %v7420, %v7476
    %v7478 = vpop.f32.mrb[0].mxu0
    %7479 = vmatprep.mubr.bf16.mxu0 %v6030
    %7480 = vmatmul.mubr.bf16.gmra.mrb[0].mxu0 %v6029
    %v7481 = vpop.f32.mrb[0].mxu0
    %v7482 = vadd.f32 %v7425, %v7481
    %v7483 = vpop.f32.mrb[0].mxu0
    %v7484 = vpop.f32.mrb[0].mxu0
    %v7485 = vadd.f32 %v7428, %v7484
    %v7486 = vpop.f32.mrb[0].mxu0
    %7487 = vmatprep.mubr.bf16.mxu0 %v6037
    %7488 = vmatmul.mubr.bf16.gmra.mrb[0].mxu0 %v6036
    %v7489 = vpop.f32.mrb[0].mxu0
    %v7490 = vadd.f32 %v7433, %v7489
    %v7491 = vpop.f32.mrb[0].mxu0
    %v7492 = vpop.f32.mrb[0].mxu0
    %v7493 = vadd.f32 %v7436, %v7492
    %v7494 = vpop.f32.mrb[0].mxu0
    %7495 = vdwg.mxu0
    %7496 = vmatprep.subr.bf16.mxu0 0
    %7497 = vmatpush1.bf16.msra.mxu0 %v6895
    %7498 = vmatprep.subr.bf16.mxu0 0
    %7499 = vmatpush1.bf16.msra.mxu0 %v6898
    %7500 = vmatprep.subr.bf16.mxu0 0
    %7501 = vmatpush1.bf16.msra.mxu0 %v6901
    %7502 = vmatprep.subr.bf16.mxu0 0
    %7503 = vmatpush1.bf16.msra.mxu0 %v6904
    %7504 = vmatprep.subr.bf16.mxu0 0
    %7505 = vmatpush1.bf16.msra.mxu0 %v6907
    %7506 = vmatprep.subr.bf16.mxu0 0
    %7507 = vmatpush1.bf16.msra.mxu0 %v6910
    %7508 = vmatprep.subr.bf16.mxu0 0
    %7509 = vmatpush1.bf16.msra.mxu0 %v6913
    %7510 = vmatprep.subr.bf16.mxu0 0
    %7511 = vmatpush1.bf16.msra.mxu0 %v6916
    %7512 = vmatprep.subr.bf16.mxu0 0
    %7513 = vmatpush1.bf16.msra.mxu0 %v6919
    %7514 = vmatprep.subr.bf16.mxu0 0
    %7515 = vmatpush1.bf16.msra.mxu0 %v6922
    %7516 = vmatprep.subr.bf16.mxu0 0
    %7517 = vmatpush1.bf16.msra.mxu0 %v6925
    %7518 = vmatprep.subr.bf16.mxu0 0
    %7519 = vmatpush1.bf16.msra.mxu0 %v6928
    %7520 = vmatprep.subr.bf16.mxu0 0
    %7521 = vmatpush1.bf16.msra.mxu0 %v6931
    %7522 = vmatprep.subr.bf16.mxu0 0
    %7523 = vmatpush1.bf16.msra.mxu0 %v6934
    %7524 = vmatprep.subr.bf16.mxu0 0
    %7525 = vmatpush1.bf16.msra.mxu0 %v6937
    %7526 = vmatprep.subr.bf16.mxu0 0
    %7527 = vmatpush1.bf16.msra.mxu0 %v6940
    %7528 = vmatprep.mubr.bf16.mxu0 %v6025
    %7529 = vmatmul.mubr.bf16.gmra.mrb[0].mxu0 %v6024
    %v7530 = vpop.f32.mrb[0].mxu0
    %v7531 = vadd.f32 %v7474, %v7530
    %v7532 = vpop.f32.mrb[0].mxu0
    %v7533 = vpop.f32.mrb[0].mxu0
    %v7534 = vadd.f32 %v7477, %v7533
    %v7535 = vpop.f32.mrb[0].mxu0
    %7536 = vmatprep.mubr.bf16.mxu0 %v6032
    %7537 = vmatmul.mubr.bf16.gmra.mrb[0].mxu0 %v6031
    %v7538 = vpop.f32.mrb[0].mxu0
    %v7539 = vadd.f32 %v7482, %v7538
    %v7540 = vpop.f32.mrb[0].mxu0
    %v7541 = vpop.f32.mrb[0].mxu0
    %v7542 = vadd.f32 %v7485, %v7541
    %v7543 = vpop.f32.mrb[0].mxu0
    %7544 = vmatprep.mubr.bf16.mxu0 %v6039
    %7545 = vmatmul.mubr.bf16.gmra.mrb[0].mxu0 %v6038
    %v7546 = vpop.f32.mrb[0].mxu0
    %v7547 = vadd.f32 %v7490, %v7546
    %v7548 = vpop.f32.mrb[0].mxu0
    %v7549 = vpop.f32.mrb[0].mxu0
    %v7550 = vadd.f32 %v7493, %v7549
    %v7551 = vpop.f32.mrb[0].mxu0
    %7552 = vdwg.mxu0
    %7553 = vmatprep.subr.bf16.mxu0 0
    %7554 = vmatpush1.bf16.msra.mxu0 %v6943
    %7555 = vmatprep.subr.bf16.mxu0 0
    %7556 = vmatpush1.bf16.msra.mxu0 %v6946
    %7557 = vmatprep.subr.bf16.mxu0 0
    %7558 = vmatpush1.bf16.msra.mxu0 %v6949
    %7559 = vmatprep.subr.bf16.mxu0 0
    %7560 = vmatpush1.bf16.msra.mxu0 %v6952
    %7561 = vmatprep.subr.bf16.mxu0 0
    %7562 = vmatpush1.bf16.msra.mxu0 %v6955
    %7563 = vmatprep.subr.bf16.mxu0 0
    %7564 = vmatpush1.bf16.msra.mxu0 %v6958
    %7565 = vmatprep.subr.bf16.mxu0 0
    %7566 = vmatpush1.bf16.msra.mxu0 0
    %7567 = vmatprep.subr.bf16.mxu0 0
    %7568 = vmatpush1.bf16.msra.mxu0 0
    %7569 = vmatprep.subr.bf16.mxu0 0
    %7570 = vmatpush1.bf16.msra.mxu0 0
    %7571 = vmatprep.subr.bf16.mxu0 0
    %7572 = vmatpush1.bf16.msra.mxu0 0
    %7573 = vmatprep.subr.bf16.mxu0 0
    %7574 = vmatpush1.bf16.msra.mxu0 0
    %7575 = vmatprep.subr.bf16.mxu0 0
    %7576 = vmatpush1.bf16.msra.mxu0 0
    %7577 = vmatprep.subr.bf16.mxu0 0
    %7578 = vmatpush1.bf16.msra.mxu0 0
    %7579 = vmatprep.subr.bf16.mxu0 0
    %7580 = vmatpush1.bf16.msra.mxu0 0
    %7581 = vmatprep.subr.bf16.mxu0 0
    %7582 = vmatpush1.bf16.msra.mxu0 0
    %7583 = vmatprep.subr.bf16.mxu0 0
    %7584 = vmatpush1.bf16.msra.mxu0 0
    %7585 = vmatprep.mubr.bf16.mxu0 0
    %7586 = vmatmul.mubr.bf16.gmra.mrb[0].mxu0 %v7122
    %v7587 = vpop.f32.mrb[0].mxu0
    %v7588 = vadd.f32 %v7531, %v7587
    %v7589 = vpop.f32.mrb[0].mxu0
    %v7590 = vpop.f32.mrb[0].mxu0
    %v7591 = vadd.f32 %v7534, %v7590
    %v7592 = vpop.f32.mrb[0].mxu0
    %7593 = vmatprep.mubr.bf16.mxu0 0
    %7594 = vmatmul.mubr.bf16.gmra.mrb[0].mxu0 %v7125
    %v7595 = vpop.f32.mrb[0].mxu0
    %v7596 = vadd.f32 %v7539, %v7595
    %v7597 = vpop.f32.mrb[0].mxu0
    %v7598 = vpop.f32.mrb[0].mxu0
    %v7599 = vadd.f32 %v7542, %v7598
    %v7600 = vpop.f32.mrb[0].mxu0
    %7601 = vmatprep.mubr.bf16.mxu0 0
    %7602 = vmatmul.mubr.bf16.gmra.mrb[0].mxu0 %v7128
    %v7603 = vpop.f32.mrb[0].mxu0
    %v7604 = vadd.f32 %v7547, %v7603
    %v7605 = vpop.f32.mrb[0].mxu0
    %v7606 = vpop.f32.mrb[0].mxu0
    %v7607 = vadd.f32 %v7550, %v7606
    %v7608 = vpop.f32.mrb[0].mxu0
    %7609 = vdwg.mxu0
    %v7610 = vld [vmem:[%s9] sm:$0xff]
    %v7611 = vld [vmem:[%s9 + $0x8] sm:$0xff]
    %v7612 = vld [vmem:[%s9 + $0x10] sm:$0xff]
    %v7613 = vld [vmem:[%s9 + $0x18] sm:$0xf]
    %v7614 = vld [vmem:[%s9 + $0x20] sm:$0xf]
    %v7615 = vld [vmem:[%s9 + $0x28] sm:$0xf]
    %v7616 = vadd.f32 %v7354, %v7358
    %v7617 = vadd.f32 %v7616, %v7364
    %v7618 = vadd.f32 %v7617, %v7368
    %v7619 = vadd.f32 %v7618, %v7374
    %v7620 = vadd.f32 %v7619, %v7378
    %v7621 = vrot.slane %v7620, 4
    %v7622 = vadd.f32 %v7620, %v7621
    %v7623 = vrot.slane %v7622, 2
    %v7624 = vadd.f32 %v7622, %v7623
    %v7625 = vrot.slane %v7624, 1
    %v7626 = vadd.f32 %v7624, %v7625
    %v7627 = vadd.f32 %v7356, %v7360
    %v7628 = vadd.f32 %v7627, %v7366
    %v7629 = vadd.f32 %v7628, %v7370
    %v7630 = vadd.f32 %v7629, %v7376
    %v7631 = vadd.f32 %v7630, %v7380
    %v7632 = vrot.slane %v7631, 4
    %v7633 = vadd.f32 %v7631, %v7632
    %v7634 = vrot.slane %v7633, 2
    %v7635 = vadd.f32 %v7633, %v7634
    %v7636 = vrot.slane %v7635, 1
    %v7637 = vadd.f32 %v7635, %v7636
    %v7638 = vsel %vm552, %v7588, 0.0
    %v7639 = vsel %vm552, %v7591, 0.0
    %v7640 = vadd.f32 %v7638, %v7639
    %v7641 = vsel %vm552, %v7596, 0.0
    %v7642 = vadd.f32 %v7640, %v7641
    %v7643 = vsel %vm552, %v7599, 0.0
    %v7644 = vadd.f32 %v7642, %v7643
    %v7645 = vsel %vm552, %v7604, 0.0
    %v7646 = vadd.f32 %v7644, %v7645
    %v7647 = vsel %vm552, %v7607, 0.0
    %v7648 = vadd.f32 %v7646, %v7647
    %v7649 = vrot.slane %v7648, 4
    %v7650 = vadd.f32 %v7648, %v7649
    %v7651 = vrot.slane %v7650, 2
    %v7652 = vadd.f32 %v7650, %v7651
    %v7653 = vrot.slane %v7652, 1
    %v7654 = vadd.f32 %v7652, %v7653
    %v7655 = vrcp.pop 48.0
    %v7656 = vmul.f32 %v7626, %v7655
    %v7657 = vmul.f32 %v7637, %v7655
    %v7658 = vmul.f32 %v7654, %v7655
    %v7659 = vmul.f32 %v7354, %v7354
    %v7660 = vmul.f32 %v7356, %v7356
    %v7661 = vmul.f32 %v7588, %v7588
    %v7662 = vmul.f32 %v7358, %v7358
    %v7663 = vmul.f32 %v7360, %v7360
    %v7664 = vmul.f32 %v7591, %v7591
    %v7665 = vmul.f32 %v7364, %v7364
    %v7666 = vmul.f32 %v7366, %v7366
    %v7667 = vmul.f32 %v7596, %v7596
    %v7668 = vmul.f32 %v7368, %v7368
    %v7669 = vmul.f32 %v7370, %v7370
    %v7670 = vmul.f32 %v7599, %v7599
    %v7671 = vmul.f32 %v7374, %v7374
    %v7672 = vmul.f32 %v7376, %v7376
    %v7673 = vmul.f32 %v7604, %v7604
    %v7674 = vmul.f32 %v7378, %v7378
    %v7675 = vmul.f32 %v7380, %v7380
    %v7676 = vmul.f32 %v7607, %v7607
    %v7677 = vadd.f32 %v7659, %v7662
    %v7678 = vadd.f32 %v7677, %v7665
    %v7679 = vadd.f32 %v7678, %v7668
    %v7680 = vadd.f32 %v7679, %v7671
    %v7681 = vadd.f32 %v7680, %v7674
    %v7682 = vrot.slane %v7681, 4
    %v7683 = vadd.f32 %v7681, %v7682
    %v7684 = vrot.slane %v7683, 2
    %v7685 = vadd.f32 %v7683, %v7684
    %v7686 = vrot.slane %v7685, 1
    %v7687 = vadd.f32 %v7685, %v7686
    %v7688 = vadd.f32 %v7660, %v7663
    %v7689 = vadd.f32 %v7688, %v7666
    %v7690 = vadd.f32 %v7689, %v7669
    %v7691 = vadd.f32 %v7690, %v7672
    %v7692 = vadd.f32 %v7691, %v7675
    %v7693 = vrot.slane %v7692, 4
    %v7694 = vadd.f32 %v7692, %v7693
    %v7695 = vrot.slane %v7694, 2
    %v7696 = vadd.f32 %v7694, %v7695
    %v7697 = vrot.slane %v7696, 1
    %v7698 = vadd.f32 %v7696, %v7697
    %v7699 = vsel %vm552, %v7661, 0.0
    %v7700 = vsel %vm552, %v7664, 0.0
    %v7701 = vadd.f32 %v7699, %v7700
    %v7702 = vsel %vm552, %v7667, 0.0
    %v7703 = vadd.f32 %v7701, %v7702
    %v7704 = vsel %vm552, %v7670, 0.0
    %v7705 = vadd.f32 %v7703, %v7704
    %v7706 = vsel %vm552, %v7673, 0.0
    %v7707 = vadd.f32 %v7705, %v7706
    %v7708 = vsel %vm552, %v7676, 0.0
    %v7709 = vadd.f32 %v7707, %v7708
    %v7710 = vrot.slane %v7709, 4
    %v7711 = vadd.f32 %v7709, %v7710
    %v7712 = vrot.slane %v7711, 2
    %v7713 = vadd.f32 %v7711, %v7712
    %v7714 = vrot.slane %v7713, 1
    %v7715 = vadd.f32 %v7713, %v7714
    %v7716 = vmul.f32 %v7687, %v7655
    %v7717 = vmul.f32 %v7698, %v7655
    %v7718 = vmul.f32 %v7715, %v7655
    %v7719 = vsel %vm2330, %v7656, %v7716
    %v7720 = vsel %vm2330, %v7657, %v7717
    %v7721 = vsel %vm2330, %v7658, %v7718
    %v7723 = vsel %vm552, %v7721, 0
    %v7726 = vsel %vm552, %v7612, 0
    %v7729 = vsel %vm552, %v7615, 0
    %7731 = vmatprep.subr.mxu0 %v7611
    %7732 = vmatpush1.xpose.msra.mxu0 %v7610
    %7733 = vmatprep.subr.mxu0 %v7614
    %7734 = vmatpush1.xpose.msra.mxu0 %v7613
    %7735 = vmatprep.subr.mxu0 0.0
    %7736 = vmatpush1.xpose.msra.mxu0 0.0
    %7737 = vmatprep.subr.mxu0 0.0
    %7738 = vmatpush1.xpose.msra.mxu0 0.0
    %7739 = vmatprep.subr.mxu0 0.0
    %7740 = vmatpush1.xpose.msra.mxu0 0.0
    %7741 = vmatprep.subr.mxu0 0.0
    %7742 = vmatpush1.xpose.msra.mxu0 0.0
    %7743 = vmatprep.subr.mxu0 0.0
    %7744 = vmatpush1.xpose.msra.mxu0 0.0
    %7745 = vmatprep.subr.mxu0 0.0
    %7746 = vmatpush1.xpose.msra.mxu0 0.0
    %7747 = vmatprep.subr.mxu0 0.0
    %7748 = vmatpush1.xpose.msra.mxu0 0.0
    %7749 = vmatprep.subr.mxu0 0.0
    %7750 = vmatpush1.xpose.msra.mxu0 0.0
    %7751 = vmatprep.subr.mxu0 0.0
    %7752 = vmatpush1.xpose.msra.mxu0 0.0
    %7753 = vmatprep.subr.mxu0 0.0
    %7754 = vmatpush1.xpose.msra.mxu0 0.0
    %7755 = vmatprep.subr.mxu0 0.0
    %7756 = vmatpush1.xpose.msra.mxu0 0.0
    %7757 = vmatprep.subr.mxu0 0.0
    %7758 = vmatpush1.xpose.msra.mxu0 0.0
    %7759 = vmatprep.subr.mxu0 0.0
    %7760 = vmatpush1.xpose.msra.mxu0 0.0
    %7761 = vmatprep.subr.mxu0 0.0
    %7762 = vmatpush1.xpose.msra.mxu0 0.0
    %7763 = vmatprep.subr.mxu0 0.0
    %7764 = vmatpush1.xpose.msra.mxu0 0.0
    %7765 = vmatprep.subr.mxu0 0.0
    %7766 = vmatpush1.xpose.msra.mxu0 0.0
    %7767 = vmatprep.subr.mxu0 0.0
    %7768 = vmatpush1.xpose.msra.mxu0 0.0
    %7769 = vmatprep.subr.mxu0 0.0
    %7770 = vmatpush1.xpose.msra.mxu0 0.0
    %7771 = vmatprep.subr.mxu0 0.0
    %7772 = vmatpush1.xpose.msra.mxu0 0.0
    %7773 = vmatprep.subr.mxu0 0.0
    %7774 = vmatpush1.xpose.msra.mxu0 0.0
    %7775 = vmatprep.subr.mxu0 0.0
    %7776 = vmatpush1.xpose.msra.mxu0 0.0
    %7777 = vmatprep.subr.mxu0 0.0
    %7778 = vmatpush1.xpose.msra.mxu0 0.0
    %7779 = vmatprep.subr.mxu0 0.0
    %7780 = vmatpush1.xpose.msra.mxu0 0.0
    %7781 = vmatprep.subr.mxu0 0.0
    %7782 = vmatpush1.xpose.msra.mxu0 0.0
    %7783 = vmatprep.subr.mxu0 0.0
    %7784 = vmatpush1.xpose.msra.mxu0 0.0
    %7785 = vmatprep.subr.mxu0 0.0
    %7786 = vmatpush1.xpose.msra.mxu0 0.0
    %7787 = vmatprep.subr.mxu0 0.0
    %7788 = vmatpush1.xpose.msra.mxu0 0.0
    %7789 = vmatprep.subr.mxu0 0.0
    %7790 = vmatpush1.xpose.msra.mxu0 0.0
    %7791 = vmatprep.subr.mxu0 0.0
    %7792 = vmatpush1.xpose.msra.mxu0 0.0
    %7793 = vmatprep.subr.mxu0 0.0
    %7794 = vmatpush1.xpose.msra.mxu0 0.0
    %7795 = vmatprep.mubr.f32.mxu0 %v7720
    %7796 = vmatmul.mubr.f32.gmra.mrb[0].mxu0 %v7719
    %v7797 = vpop.f32.mrb[0].mxu0
    %v7798 = vadd.f32 0.0, %v7797
    %v7799 = vpop.f32.mrb[0].mxu0
    %7800 = vdwg.mxu0
    %7801 = vmatprep.subr.mxu0 0.0
    %7802 = vmatpush1.xpose.msra.mxu0 %v7726
    %7803 = vmatprep.subr.mxu0 0.0
    %7804 = vmatpush1.xpose.msra.mxu0 %v7729
    %7805 = vmatprep.subr.mxu0 0.0
    %7806 = vmatpush1.xpose.msra.mxu0 0.0
    %7807 = vmatprep.subr.mxu0 0.0
    %7808 = vmatpush1.xpose.msra.mxu0 0.0
    %7809 = vmatprep.subr.mxu0 0.0
    %7810 = vmatpush1.xpose.msra.mxu0 0.0
    %7811 = vmatprep.subr.mxu0 0.0
    %7812 = vmatpush1.xpose.msra.mxu0 0.0
    %7813 = vmatprep.subr.mxu0 0.0
    %7814 = vmatpush1.xpose.msra.mxu0 0.0
    %7815 = vmatprep.subr.mxu0 0.0
    %7816 = vmatpush1.xpose.msra.mxu0 0.0
    %7817 = vmatprep.subr.mxu0 0.0
    %7818 = vmatpush1.xpose.msra.mxu0 0.0
    %7819 = vmatprep.subr.mxu0 0.0
    %7820 = vmatpush1.xpose.msra.mxu0 0.0
    %7821 = vmatprep.subr.mxu0 0.0
    %7822 = vmatpush1.xpose.msra.mxu0 0.0
    %7823 = vmatprep.subr.mxu0 0.0
    %7824 = vmatpush1.xpose.msra.mxu0 0.0
    %7825 = vmatprep.subr.mxu0 0.0
    %7826 = vmatpush1.xpose.msra.mxu0 0.0
    %7827 = vmatprep.subr.mxu0 0.0
    %7828 = vmatpush1.xpose.msra.mxu0 0.0
    %7829 = vmatprep.subr.mxu0 0.0
    %7830 = vmatpush1.xpose.msra.mxu0 0.0
    %7831 = vmatprep.subr.mxu0 0.0
    %7832 = vmatpush1.xpose.msra.mxu0 0.0
    %7833 = vmatprep.subr.mxu0 0.0
    %7834 = vmatpush1.xpose.msra.mxu0 0.0
    %7835 = vmatprep.subr.mxu0 0.0
    %7836 = vmatpush1.xpose.msra.mxu0 0.0
    %7837 = vmatprep.subr.mxu0 0.0
    %7838 = vmatpush1.xpose.msra.mxu0 0.0
    %7839 = vmatprep.subr.mxu0 0.0
    %7840 = vmatpush1.xpose.msra.mxu0 0.0
    %7841 = vmatprep.subr.mxu0 0.0
    %7842 = vmatpush1.xpose.msra.mxu0 0.0
    %7843 = vmatprep.subr.mxu0 0.0
    %7844 = vmatpush1.xpose.msra.mxu0 0.0
    %7845 = vmatprep.subr.mxu0 0.0
    %7846 = vmatpush1.xpose.msra.mxu0 0.0
    %7847 = vmatprep.subr.mxu0 0.0
    %7848 = vmatpush1.xpose.msra.mxu0 0.0
    %7849 = vmatprep.subr.mxu0 0.0
    %7850 = vmatpush1.xpose.msra.mxu0 0.0
    %7851 = vmatprep.subr.mxu0 0.0
    %7852 = vmatpush1.xpose.msra.mxu0 0.0
    %7853 = vmatprep.subr.mxu0 0.0
    %7854 = vmatpush1.xpose.msra.mxu0 0.0
    %7855 = vmatprep.subr.mxu0 0.0
    %7856 = vmatpush1.xpose.msra.mxu0 0.0
    %7857 = vmatprep.subr.mxu0 0.0
    %7858 = vmatpush1.xpose.msra.mxu0 0.0
    %7859 = vmatprep.subr.mxu0 0.0
    %7860 = vmatpush1.xpose.msra.mxu0 0.0
    %7861 = vmatprep.subr.mxu0 0.0
    %7862 = vmatpush1.xpose.msra.mxu0 0.0
    %7863 = vmatprep.subr.mxu0 0.0
    %7864 = vmatpush1.xpose.msra.mxu0 0.0
    %7865 = vmatprep.mubr.f32.mxu0 0.0
    %7866 = vmatmul.mubr.f32.gmra.mrb[0].mxu0 %v7723
    %v7867 = vpop.f32.mrb[0].mxu0
    %v7868 = vadd.f32 %v7798, %v7867
    %v7869 = vpop.f32.mrb[0].mxu0
    %7870 = vdwg.mxu0
    %v7871 = vmul.f32 %v7868, 0.041666668
    %v7872 = vmul.f32 %v7871, %v7871
    %v7874 = vrot.slane %v7872, 7
    %v7876 = vsub.f32 %v7871, %v7874
    %v7877 = vmax.f32 %v7876, 0.0
    %v7878 = vld [vmem:[%s10] sm:$0x1]
    %v7879 = vadd.f32 %v7877, 1e-05
    %v7880 = vrsqrt.pop %v7879
    %v7883 = vunpack.c.l.s4 1966171168
    %v7884 = vunpack.c.0.s8 %v7883
    %v7885 = vlaneseq
    %v7886 = vshrl.u32 %v7885, 7
    %v7887 = vsub.s32 %v7884, %v7886
    %v7888 = vrot.slane %v7880, %v7887
    %v7889 = vcombine.high %v7888, %v7888
    %v7891 = vunpack.c.l.s4 1966171168
    %v7892 = vunpack.c.0.s8 %v7891
    %v7893 = vlaneseq
    %v7894 = vshrl.u32 %v7893, 7
    %v7895 = vsub.s32 %v7892, %v7894
    %v7896 = vrot.slane %v7889, %v7895
    %v7898 = vmul.f32 %v7878, %v7896
    %s7899 = scalar_lea.vmem %s10, 1
    %v7900 = vld [vmem:[%s7899] sm:$0x1]
    %v7901 = vmul.f32 %v7871, %v7898
    %v7902 = vsub.f32 %v7900, %v7901
    %v7904 = vlaneseq
    %v7905 = vshrl.u32 %v7904, 7
    %v7906 = vsub.s32 0, %v7905
    %v7907 = vrot.slane %v7902, %v7906
    %v7909 = vsel %vm2330, %v7898, %v7907
    %v7911 = vsel %vm2594, %v7909, 0
    %v7914 = vsel %vm2598, %v7613, 0
    %v7917 = vsel %vm2598, %v7614, 0
    %v7919 = vsel %vm2598, %v7615, 0
    %7921 = vmatprep.subr.mxu0 %v7611
    %7922 = vmatpush1.msra.mxu0 %v7610
    %7923 = vmatprep.subr.mxu0 %v7917
    %7924 = vmatpush1.msra.mxu0 %v7914
    %7925 = vmatprep.subr.mxu0 0.0
    %7926 = vmatpush1.msra.mxu0 0.0
    %7927 = vmatprep.subr.mxu0 0.0
    %7928 = vmatpush1.msra.mxu0 0.0
    %7929 = vmatprep.subr.mxu0 0.0
    %7930 = vmatpush1.msra.mxu0 0.0
    %7931 = vmatprep.subr.mxu0 0.0
    %7932 = vmatpush1.msra.mxu0 0.0
    %7933 = vmatprep.subr.mxu0 0.0
    %7934 = vmatpush1.msra.mxu0 0.0
    %7935 = vmatprep.subr.mxu0 0.0
    %7936 = vmatpush1.msra.mxu0 0.0
    %7937 = vmatprep.subr.mxu0 0.0
    %7938 = vmatpush1.msra.mxu0 0.0
    %7939 = vmatprep.subr.mxu0 0.0
    %7940 = vmatpush1.msra.mxu0 0.0
    %7941 = vmatprep.subr.mxu0 0.0
    %7942 = vmatpush1.msra.mxu0 0.0
    %7943 = vmatprep.subr.mxu0 0.0
    %7944 = vmatpush1.msra.mxu0 0.0
    %7945 = vmatprep.subr.mxu0 0.0
    %7946 = vmatpush1.msra.mxu0 0.0
    %7947 = vmatprep.subr.mxu0 0.0
    %7948 = vmatpush1.msra.mxu0 0.0
    %7949 = vmatprep.subr.mxu0 0.0
    %7950 = vmatpush1.msra.mxu0 0.0
    %7951 = vmatprep.subr.mxu0 0.0
    %7952 = vmatpush1.msra.mxu0 0.0
    %7953 = vmatprep.subr.mxu0 0.0
    %7954 = vmatpush1.msra.mxu0 0.0
    %7955 = vmatprep.subr.mxu0 0.0
    %7956 = vmatpush1.msra.mxu0 0.0
    %7957 = vmatprep.subr.mxu0 0.0
    %7958 = vmatpush1.msra.mxu0 0.0
    %7959 = vmatprep.subr.mxu0 0.0
    %7960 = vmatpush1.msra.mxu0 0.0
    %7961 = vmatprep.subr.mxu0 0.0
    %7962 = vmatpush1.msra.mxu0 0.0
    %7963 = vmatprep.subr.mxu0 0.0
    %7964 = vmatpush1.msra.mxu0 0.0
    %7965 = vmatprep.subr.mxu0 0.0
    %7966 = vmatpush1.msra.mxu0 0.0
    %7967 = vmatprep.subr.mxu0 0.0
    %7968 = vmatpush1.msra.mxu0 0.0
    %7969 = vmatprep.subr.mxu0 0.0
    %7970 = vmatpush1.msra.mxu0 0.0
    %7971 = vmatprep.subr.mxu0 0.0
    %7972 = vmatpush1.msra.mxu0 0.0
    %7973 = vmatprep.subr.mxu0 0.0
    %7974 = vmatpush1.msra.mxu0 0.0
    %7975 = vmatprep.subr.mxu0 0.0
    %7976 = vmatpush1.msra.mxu0 0.0
    %7977 = vmatprep.subr.mxu0 0.0
    %7978 = vmatpush1.msra.mxu0 0.0
    %7979 = vmatprep.subr.mxu0 0.0
    %7980 = vmatpush1.msra.mxu0 0.0
    %7981 = vmatprep.subr.mxu0 0.0
    %7982 = vmatpush1.msra.mxu0 0.0
    %7983 = vmatprep.subr.mxu0 0.0
    %7984 = vmatpush1.msra.mxu0 0.0
    %7985 = vmatprep.mubr.f32.mxu0 0.0
    %7986 = vmatmul.mubr.f32.gmra.mrb[0].mxu0 %v7911
    %v7987 = vpop.f32.mrb[0].mxu0
    %v7988 = vadd.f32 0.0, %v7987
    %v7989 = vpop.f32.mrb[0].mxu0
    %v7990 = vadd.f32 0.0, %v7989
    %7991 = vdwg.mxu0
    %7992 = vmatprep.subr.mxu0 0.0
    %7993 = vmatpush1.msra.mxu0 %v7612
    %7994 = vmatprep.subr.mxu0 0.0
    %7995 = vmatpush1.msra.mxu0 %v7919
    %7996 = vmatprep.subr.mxu0 0.0
    %7997 = vmatpush1.msra.mxu0 0.0
    %7998 = vmatprep.subr.mxu0 0.0
    %7999 = vmatpush1.msra.mxu0 0.0
    %8000 = vmatprep.subr.mxu0 0.0
    %8001 = vmatpush1.msra.mxu0 0.0
    %8002 = vmatprep.subr.mxu0 0.0
    %8003 = vmatpush1.msra.mxu0 0.0
    %8004 = vmatprep.subr.mxu0 0.0
    %8005 = vmatpush1.msra.mxu0 0.0
    %8006 = vmatprep.subr.mxu0 0.0
    %8007 = vmatpush1.msra.mxu0 0.0
    %8008 = vmatprep.subr.mxu0 0.0
    %8009 = vmatpush1.msra.mxu0 0.0
    %8010 = vmatprep.subr.mxu0 0.0
    %8011 = vmatpush1.msra.mxu0 0.0
    %8012 = vmatprep.subr.mxu0 0.0
    %8013 = vmatpush1.msra.mxu0 0.0
    %8014 = vmatprep.subr.mxu0 0.0
    %8015 = vmatpush1.msra.mxu0 0.0
    %8016 = vmatprep.subr.mxu0 0.0
    %8017 = vmatpush1.msra.mxu0 0.0
    %8018 = vmatprep.subr.mxu0 0.0
    %8019 = vmatpush1.msra.mxu0 0.0
    %8020 = vmatprep.subr.mxu0 0.0
    %8021 = vmatpush1.msra.mxu0 0.0
    %8022 = vmatprep.subr.mxu0 0.0
    %8023 = vmatpush1.msra.mxu0 0.0
    %8024 = vmatprep.subr.mxu0 0.0
    %8025 = vmatpush1.msra.mxu0 0.0
    %8026 = vmatprep.subr.mxu0 0.0
    %8027 = vmatpush1.msra.mxu0 0.0
    %8028 = vmatprep.subr.mxu0 0.0
    %8029 = vmatpush1.msra.mxu0 0.0
    %8030 = vmatprep.subr.mxu0 0.0
    %8031 = vmatpush1.msra.mxu0 0.0
    %8032 = vmatprep.subr.mxu0 0.0
    %8033 = vmatpush1.msra.mxu0 0.0
    %8034 = vmatprep.subr.mxu0 0.0
    %8035 = vmatpush1.msra.mxu0 0.0
    %8036 = vmatprep.subr.mxu0 0.0
    %8037 = vmatpush1.msra.mxu0 0.0
    %8038 = vmatprep.subr.mxu0 0.0
    %8039 = vmatpush1.msra.mxu0 0.0
    %8040 = vmatprep.subr.mxu0 0.0
    %8041 = vmatpush1.msra.mxu0 0.0
    %8042 = vmatprep.subr.mxu0 0.0
    %8043 = vmatpush1.msra.mxu0 0.0
    %8044 = vmatprep.subr.mxu0 0.0
    %8045 = vmatpush1.msra.mxu0 0.0
    %8046 = vmatprep.subr.mxu0 0.0
    %8047 = vmatpush1.msra.mxu0 0.0
    %8048 = vmatprep.subr.mxu0 0.0
    %8049 = vmatpush1.msra.mxu0 0.0
    %8050 = vmatprep.subr.mxu0 0.0
    %8051 = vmatpush1.msra.mxu0 0.0
    %8052 = vmatprep.subr.mxu0 0.0
    %8053 = vmatpush1.msra.mxu0 0.0
    %8054 = vmatprep.subr.mxu0 0.0
    %8055 = vmatpush1.msra.mxu0 0.0
    %8056 = vmatprep.mubr.f32.mxu0 0.0
    %8057 = vmatmul.mubr.f32.gmra.mrb[0].mxu0 %v7911
    %v8058 = vpop.f32.mrb[0].mxu0
    %v8059 = vadd.f32 0.0, %v8058
    %v8060 = vpop.f32.mrb[0].mxu0
    %8061 = vdwg.mxu0
    %v8062 = vlaneseq
    %v8063 = vshrl.u32 %v8062, 7
    %v8064 = vsub.s32 0, %v8063
    %v8065 = vrot.slane %v7988, %v8064
    %v8066 = vlaneseq
    %v8067 = vshrl.u32 %v8066, 7
    %v8068 = vsub.s32 0, %v8067
    %v8069 = vrot.slane %v7990, %v8068
    %v8070 = vlaneseq
    %v8071 = vshrl.u32 %v8070, 7
    %v8072 = vsub.s32 0, %v8071
    %v8073 = vrot.slane %v8059, %v8072
    %v8074 = vmul.f32 %v7354, %v8065
    %v8075 = vmul.f32 %v7356, %v8069
    %v8076 = vmul.f32 %v7588, %v8073
    %v8077 = vmul.f32 %v7358, %v8065
    %v8078 = vmul.f32 %v7360, %v8069
    %v8079 = vmul.f32 %v7591, %v8073
    %v8080 = vmul.f32 %v7364, %v8065
    %v8081 = vmul.f32 %v7366, %v8069
    %v8082 = vmul.f32 %v7596, %v8073
    %v8083 = vmul.f32 %v7368, %v8065
    %v8084 = vmul.f32 %v7370, %v8069
    %v8085 = vmul.f32 %v7599, %v8073
    %v8086 = vmul.f32 %v7374, %v8065
    %v8087 = vmul.f32 %v7376, %v8069
    %v8088 = vmul.f32 %v7604, %v8073
    %v8089 = vmul.f32 %v7378, %v8065
    %v8090 = vmul.f32 %v7380, %v8069
    %v8091 = vmul.f32 %v7607, %v8073
    %v8092 = vlaneseq
    %v8093 = vshrl.u32 %v8092, 7
    %v8094 = vsub.s32 1, %v8093
    %v8095 = vrot.slane %v7988, %v8094
    %v8096 = vlaneseq
    %v8097 = vshrl.u32 %v8096, 7
    %v8098 = vsub.s32 1, %v8097
    %v8099 = vrot.slane %v7990, %v8098
    %v8100 = vlaneseq
    %v8101 = vshrl.u32 %v8100, 7
    %v8102 = vsub.s32 1, %v8101
    %v8103 = vrot.slane %v8059, %v8102
    %v8104 = vadd.f32 %v8074, %v8095
    %v8105 = vadd.f32 %v8075, %v8099
    %v8106 = vadd.f32 %v8076, %v8103
    %v8107 = vadd.f32 %v8077, %v8095
    %v8108 = vadd.f32 %v8078, %v8099
    %v8109 = vadd.f32 %v8079, %v8103
    %v8110 = vadd.f32 %v8080, %v8095
    %v8111 = vadd.f32 %v8081, %v8099
    %v8112 = vadd.f32 %v8082, %v8103
    %v8113 = vadd.f32 %v8083, %v8095
    %v8114 = vadd.f32 %v8084, %v8099
    %v8115 = vadd.f32 %v8085, %v8103
    %v8116 = vadd.f32 %v8086, %v8095
    %v8117 = vadd.f32 %v8087, %v8099
    %v8118 = vadd.f32 %v8088, %v8103
    %v8119 = vadd.f32 %v8089, %v8095
    %v8120 = vadd.f32 %v8090, %v8099
    %v8121 = vadd.f32 %v8091, %v8103
    %v8122 = vmax.f32 %v8104, 0.0
    %v8123 = vmax.f32 %v8105, 0.0
    %v8124 = vmax.f32 %v8106, 0.0
    %v8125 = vmax.f32 %v8107, 0.0
    %v8126 = vmax.f32 %v8108, 0.0
    %v8127 = vmax.f32 %v8109, 0.0
    %v8128 = vmax.f32 %v8110, 0.0
    %v8129 = vmax.f32 %v8111, 0.0
    %v8130 = vmax.f32 %v8112, 0.0
    %v8131 = vmax.f32 %v8113, 0.0
    %v8132 = vmax.f32 %v8114, 0.0
    %v8133 = vmax.f32 %v8115, 0.0
    %v8134 = vmax.f32 %v8116, 0.0
    %v8135 = vmax.f32 %v8117, 0.0
    %v8136 = vmax.f32 %v8118, 0.0
    %v8137 = vmax.f32 %v8119, 0.0
    %v8138 = vmax.f32 %v8120, 0.0
    %v8139 = vmax.f32 %v8121, 0.0
    %v8140 = vrot.slane %v8122, 1
    %v8141 = vrot.slane %v8123, 1
    %v8142 = vrot.slane %v8124, 1
    %v8143 = vrot.slane %v8125, 1
    %v8144 = vrot.slane %v8126, 1
    %v8145 = vrot.slane %v8127, 1
    %v8146 = vrot.slane %v8128, 1
    %v8147 = vrot.slane %v8129, 1
    %v8148 = vrot.slane %v8130, 1
    %v8149 = vrot.slane %v8131, 1
    %v8150 = vrot.slane %v8132, 1
    %v8151 = vrot.slane %v8133, 1
    %v8152 = vrot.slane %v8134, 1
    %v8153 = vrot.slane %v8135, 1
    %v8154 = vrot.slane %v8136, 1
    %v8155 = vrot.slane %v8137, 1
    %v8156 = vrot.slane %v8138, 1
    %v8157 = vrot.slane %v8139, 1
    %v8158 = vsel %vm274, %v8152, %v8155
    %v8159 = vsel %vm274, %v8153, %v8156
    %v8160 = vsel %vm274, %v8154, %v8157
    %v8161 = vsel %vm274, %v8149, %v8152
    %v8162 = vsel %vm274, %v8150, %v8153
    %v8163 = vsel %vm274, %v8151, %v8154
    %v8164 = vsel %vm274, %v8146, %v8149
    %v8165 = vsel %vm274, %v8147, %v8150
    %v8166 = vsel %vm274, %v8148, %v8151
    %v8167 = vsel %vm274, %v8143, %v8146
    %v8168 = vsel %vm274, %v8144, %v8147
    %v8169 = vsel %vm274, %v8145, %v8148
    %v8170 = vsel %vm274, %v8140, %v8143
    %v8171 = vsel %vm274, %v8141, %v8144
    %v8172 = vsel %vm274, %v8142, %v8145
    %v8173 = vsel %vm274, %v8155, %v8140
    %v8174 = vsel %vm274, %v8156, %v8141
    %v8175 = vsel %vm274, %v8157, %v8142
    %v8176 = vmax.f32 %v8122, %v8170
    %v8177 = vmax.f32 %v8123, %v8171
    %v8178 = vmax.f32 %v8124, %v8172
    %v8179 = vmax.f32 %v8125, %v8167
    %v8180 = vmax.f32 %v8126, %v8168
    %v8181 = vmax.f32 %v8127, %v8169
    %v8182 = vmax.f32 %v8128, %v8164
    %v8183 = vmax.f32 %v8129, %v8165
    %v8184 = vmax.f32 %v8130, %v8166
    %v8185 = vmax.f32 %v8131, %v8161
    %v8186 = vmax.f32 %v8132, %v8162
    %v8187 = vmax.f32 %v8133, %v8163
    %v8188 = vmax.f32 %v8134, %v8158
    %v8189 = vmax.f32 %v8135, %v8159
    %v8190 = vmax.f32 %v8136, %v8160
    %v8191 = vmax.f32 %v8137, %v8173
    %v8192 = vmax.f32 %v8138, %v8174
    %v8193 = vmax.f32 %v8139, %v8175
    %v8194 = vpack.c.bf16 %v8179, %v8176
    %v8195 = vpack.c.bf16 %v8180, %v8177
    %v8196 = vpack.c.bf16 %v8181, %v8178
    %v8197 = vpack.c.bf16 %v8185, %v8182
    %v8198 = vpack.c.bf16 %v8186, %v8183
    %v8199 = vpack.c.bf16 %v8187, %v8184
    %v8200 = vpack.c.bf16 %v8191, %v8188
    %v8201 = vpack.c.bf16 %v8192, %v8189
    %v8202 = vpack.c.bf16 %v8193, %v8190
    %v8203 = vld [vmem:[%s11] sm:$0xf]
    %v8204 = vld [vmem:[%s11 + $0x4] sm:$0xf]
    %v8205 = vld [vmem:[%s11 + $0x8] sm:$0xf]
    %v8209 = vunpack.c.l.b16 %v8203
    %v8210 = vunpack.c.l.b16 %v8204
    %v8211 = vunpack.c.l.b16 %v8205
    %v8212 = vpack.c.b16 %v8210, %v8209
    %v8213 = vpack.c.b16 %v8211, %v8211
    %v8215 = vsel %vm1501, %v8212, 0
    %v8218 = vsel %vm1501, %v8213, 0
    %8220 = vmatprep.subr.bf16.mxu0 %v8195
    %8221 = vmatpush1.bf16.msra.mxu0 %v8194
    %8222 = vmatprep.subr.bf16.mxu0 %v8198
    %8223 = vmatpush1.bf16.msra.mxu0 %v8197
    %8224 = vmatprep.subr.bf16.mxu0 %v8201
    %8225 = vmatpush1.bf16.msra.mxu0 %v8200
    %8226 = vmatprep.subr.bf16.mxu0 0
    %8227 = vmatpush1.bf16.msra.mxu0 0
    %8228 = vmatprep.subr.bf16.mxu0 0
    %8229 = vmatpush1.bf16.msra.mxu0 0
    %8230 = vmatprep.subr.bf16.mxu0 0
    %8231 = vmatpush1.bf16.msra.mxu0 0
    %8232 = vmatprep.subr.bf16.mxu0 0
    %8233 = vmatpush1.bf16.msra.mxu0 0
    %8234 = vmatprep.subr.bf16.mxu0 0
    %8235 = vmatpush1.bf16.msra.mxu0 0
    %8236 = vmatprep.subr.bf16.mxu0 0
    %8237 = vmatpush1.bf16.msra.mxu0 0
    %8238 = vmatprep.subr.bf16.mxu0 0
    %8239 = vmatpush1.bf16.msra.mxu0 0
    %8240 = vmatprep.subr.bf16.mxu0 0
    %8241 = vmatpush1.bf16.msra.mxu0 0
    %8242 = vmatprep.subr.bf16.mxu0 0
    %8243 = vmatpush1.bf16.msra.mxu0 0
    %8244 = vmatprep.subr.bf16.mxu0 0
    %8245 = vmatpush1.bf16.msra.mxu0 0
    %8246 = vmatprep.subr.bf16.mxu0 0
    %8247 = vmatpush1.bf16.msra.mxu0 0
    %8248 = vmatprep.subr.bf16.mxu0 0
    %8249 = vmatpush1.bf16.msra.mxu0 0
    %8250 = vmatprep.subr.bf16.mxu0 0
    %8251 = vmatpush1.bf16.msra.mxu0 0
    %8252 = vmatprep.mubr.bf16.mxu0 0
    %8253 = vmatmul.mubr.bf16.gmra.mrb[0].mxu0 %v8215
    %v8254 = vpop.f32.mrb[0].mxu0
    %v8255 = vadd.f32 0.0, %v8254
    %v8256 = vpop.f32.mrb[0].mxu0
    %v8257 = vadd.f32 0.0, %v8256
    %v8258 = vpop.f32.mrb[0].mxu0
    %v8259 = vadd.f32 0.0, %v8258
    %v8260 = vpop.f32.mrb[0].mxu0
    %v8261 = vadd.f32 0.0, %v8260
    %8262 = vmatprep.mubr.bf16.mxu0 0
    %8263 = vmatmul.mubr.bf16.gmra.mrb[0].mxu0 %v8218
    %v8264 = vpop.f32.mrb[0].mxu0
    %v8265 = vadd.f32 0.0, %v8264
    %v8266 = vpop.f32.mrb[0].mxu0
    %v8267 = vadd.f32 0.0, %v8266
    %v8268 = vpop.f32.mrb[0].mxu0
    %v8269 = vpop.f32.mrb[0].mxu0
    %8270 = vdwg.mxu0
    %8271 = vmatprep.subr.bf16.mxu0 0
    %8272 = vmatpush1.bf16.msra.mxu0 %v8196
    %8273 = vmatprep.subr.bf16.mxu0 0
    %8274 = vmatpush1.bf16.msra.mxu0 %v8199
    %8275 = vmatprep.subr.bf16.mxu0 0
    %8276 = vmatpush1.bf16.msra.mxu0 %v8202
    %8277 = vmatprep.subr.bf16.mxu0 0
    %8278 = vmatpush1.bf16.msra.mxu0 0
    %8279 = vmatprep.subr.bf16.mxu0 0
    %8280 = vmatpush1.bf16.msra.mxu0 0
    %8281 = vmatprep.subr.bf16.mxu0 0
    %8282 = vmatpush1.bf16.msra.mxu0 0
    %8283 = vmatprep.subr.bf16.mxu0 0
    %8284 = vmatpush1.bf16.msra.mxu0 0
    %8285 = vmatprep.subr.bf16.mxu0 0
    %8286 = vmatpush1.bf16.msra.mxu0 0
    %8287 = vmatprep.subr.bf16.mxu0 0
    %8288 = vmatpush1.bf16.msra.mxu0 0
    %8289 = vmatprep.subr.bf16.mxu0 0
    %8290 = vmatpush1.bf16.msra.mxu0 0
    %8291 = vmatprep.subr.bf16.mxu0 0
    %8292 = vmatpush1.bf16.msra.mxu0 0
    %8293 = vmatprep.subr.bf16.mxu0 0
    %8294 = vmatpush1.bf16.msra.mxu0 0
    %8295 = vmatprep.subr.bf16.mxu0 0
    %8296 = vmatpush1.bf16.msra.mxu0 0
    %8297 = vmatprep.subr.bf16.mxu0 0
    %8298 = vmatpush1.bf16.msra.mxu0 0
    %8299 = vmatprep.subr.bf16.mxu0 0
    %8300 = vmatpush1.bf16.msra.mxu0 0
    %8301 = vmatprep.subr.bf16.mxu0 0
    %8302 = vmatpush1.bf16.msra.mxu0 0
    %8303 = vmatprep.mubr.bf16.mxu0 0
    %8304 = vmatmul.mubr.bf16.gmra.mrb[0].mxu0 %v8215
    %v8305 = vpop.f32.mrb[0].mxu0
    %v8306 = vadd.f32 0.0, %v8305
    %v8307 = vpop.f32.mrb[0].mxu0
    %v8308 = vpop.f32.mrb[0].mxu0
    %v8309 = vadd.f32 0.0, %v8308
    %v8310 = vpop.f32.mrb[0].mxu0
    %8311 = vmatprep.mubr.bf16.mxu0 0
    %8312 = vmatmul.mubr.bf16.gmra.mrb[0].mxu0 %v8218
    %v8313 = vpop.f32.mrb[0].mxu0
    %v8314 = vadd.f32 0.0, %v8313
    %v8315 = vpop.f32.mrb[0].mxu0
    %v8316 = vpop.f32.mrb[0].mxu0
    %v8317 = vpop.f32.mrb[0].mxu0
    %8318 = vdwg.mxu0
    %v8319 = vpack.c.bf16 %v8259, %v8255
    %v8320 = vpack.c.bf16 %v8261, %v8257
    %v8321 = vpack.c.bf16 %v8309, %v8306
    %v8322 = vpack.c.bf16 %v8265, %v8265
    %v8323 = vpack.c.bf16 %v8267, %v8267
    %v8324 = vpack.c.bf16 %v8314, %v8314
    %v8325 = vld [vmem:[%s12] sm:$0xff]
    %v8326 = vld [vmem:[%s12 + $0x8] sm:$0xff]
    %v8327 = vld [vmem:[%s12 + $0x10] sm:$0xff]
    %v8328 = vld [vmem:[%s12 + $0x18] sm:$0xff]
    %v8329 = vld [vmem:[%s12 + $0x20] sm:$0xff]
    %v8330 = vld [vmem:[%s12 + $0x28] sm:$0xff]
    %v8331 = vld [vmem:[%s12 + $0x30] sm:$0xff]
    %v8332 = vld [vmem:[%s12 + $0x38] sm:$0xff]
    %v8333 = vld [vmem:[%s12 + $0x40] sm:$0xff]
    %v8334 = vld [vmem:[%s12 + $0x48] sm:$0xff]
    %v8335 = vld [vmem:[%s12 + $0x50] sm:$0xff]
    %v8336 = vld [vmem:[%s12 + $0x58] sm:$0xff]
    %v8337 = vld [vmem:[%s12 + $0x60] sm:$0xff]
    %v8338 = vld [vmem:[%s12 + $0x68] sm:$0xff]
    %v8339 = vld [vmem:[%s12 + $0x70] sm:$0xff]
    %v8340 = vld [vmem:[%s12 + $0x78] sm:$0xff]
    %v8341 = vld [vmem:[%s12 + $0x80] sm:$0xff]
    %v8342 = vld [vmem:[%s12 + $0x88] sm:$0xff]
    %v8343 = vld [vmem:[%s12 + $0x90] sm:$0xff]
    %v8344 = vld [vmem:[%s12 + $0x98] sm:$0xff]
    %v8345 = vld [vmem:[%s12 + $0xa0] sm:$0xff]
    %v8346 = vld [vmem:[%s12 + $0xa8] sm:$0xff]
    %v8347 = vld [vmem:[%s12 + $0xb0] sm:$0xff]
    %v8348 = vld [vmem:[%s12 + $0xb8] sm:$0xff]
    %v8349 = vld [vmem:[%s12 + $0xc0] sm:$0xff]
    %v8350 = vld [vmem:[%s12 + $0xc8] sm:$0xff]
    %v8351 = vld [vmem:[%s12 + $0xd0] sm:$0xff]
    %v8352 = vld [vmem:[%s12 + $0xd8] sm:$0xff]
    %v8353 = vld [vmem:[%s12 + $0xe0] sm:$0xff]
    %v8354 = vld [vmem:[%s12 + $0xe8] sm:$0xff]
    %v8355 = vld [vmem:[%s12 + $0xf0] sm:$0xff]
    %v8356 = vld [vmem:[%s12 + $0xf8] sm:$0xff]
    %v8357 = vld [vmem:[%s12 + $0x100] sm:$0xff]
    %v8358 = vld [vmem:[%s12 + $0x108] sm:$0xff]
    %v8359 = vld [vmem:[%s12 + $0x110] sm:$0xff]
    %v8360 = vld [vmem:[%s12 + $0x118] sm:$0xff]
    %v8397 = vunpack.c.l.b16 %v8325
    %v8398 = vunpack.c.h.b16 %v8325
    %v8399 = vunpack.c.l.b16 %v8326
    %v8400 = vunpack.c.h.b16 %v8326
    %v8401 = vunpack.c.l.b16 %v8327
    %v8402 = vunpack.c.h.b16 %v8327
    %v8403 = vunpack.c.l.b16 %v8328
    %v8404 = vunpack.c.h.b16 %v8328
    %v8405 = vunpack.c.l.b16 %v8329
    %v8406 = vunpack.c.h.b16 %v8329
    %v8407 = vunpack.c.l.b16 %v8330
    %v8408 = vunpack.c.h.b16 %v8330
    %v8409 = vunpack.c.l.b16 %v8331
    %v8410 = vunpack.c.h.b16 %v8331
    %v8411 = vunpack.c.l.b16 %v8332
    %v8412 = vunpack.c.h.b16 %v8332
    %v8413 = vunpack.c.l.b16 %v8333
    %v8414 = vunpack.c.h.b16 %v8333
    %v8415 = vunpack.c.l.b16 %v8334
    %v8416 = vunpack.c.h.b16 %v8334
    %v8417 = vunpack.c.l.b16 %v8335
    %v8418 = vunpack.c.h.b16 %v8335
    %v8419 = vunpack.c.l.b16 %v8336
    %v8420 = vunpack.c.h.b16 %v8336
    %v8421 = vunpack.c.l.b16 %v8337
    %v8422 = vunpack.c.h.b16 %v8337
    %v8423 = vunpack.c.l.b16 %v8338
    %v8424 = vunpack.c.h.b16 %v8338
    %v8425 = vunpack.c.l.b16 %v8339
    %v8426 = vunpack.c.h.b16 %v8339
    %v8427 = vunpack.c.l.b16 %v8340
    %v8428 = vunpack.c.h.b16 %v8340
    %v8429 = vunpack.c.l.b16 %v8341
    %v8430 = vunpack.c.h.b16 %v8341
    %v8431 = vunpack.c.l.b16 %v8342
    %v8432 = vunpack.c.h.b16 %v8342
    %v8433 = vunpack.c.l.b16 %v8343
    %v8434 = vunpack.c.h.b16 %v8343
    %v8435 = vunpack.c.l.b16 %v8344
    %v8436 = vunpack.c.h.b16 %v8344
    %v8437 = vunpack.c.l.b16 %v8345
    %v8438 = vunpack.c.h.b16 %v8345
    %v8439 = vunpack.c.l.b16 %v8346
    %v8440 = vunpack.c.h.b16 %v8346
    %v8441 = vunpack.c.l.b16 %v8347
    %v8442 = vunpack.c.h.b16 %v8347
    %v8443 = vunpack.c.l.b16 %v8348
    %v8444 = vunpack.c.h.b16 %v8348
    %v8445 = vunpack.c.l.b16 %v8349
    %v8446 = vunpack.c.h.b16 %v8349
    %v8447 = vunpack.c.l.b16 %v8350
    %v8448 = vunpack.c.h.b16 %v8350
    %v8449 = vunpack.c.l.b16 %v8351
    %v8450 = vunpack.c.h.b16 %v8351
    %v8451 = vunpack.c.l.b16 %v8352
    %v8452 = vunpack.c.h.b16 %v8352
    %v8453 = vunpack.c.l.b16 %v8353
    %v8454 = vunpack.c.h.b16 %v8353
    %v8455 = vunpack.c.l.b16 %v8354
    %v8456 = vunpack.c.h.b16 %v8354
    %v8457 = vunpack.c.l.b16 %v8355
    %v8458 = vunpack.c.h.b16 %v8355
    %v8459 = vunpack.c.l.b16 %v8356
    %v8460 = vunpack.c.h.b16 %v8356
    %v8461 = vunpack.c.l.b16 %v8357
    %v8462 = vunpack.c.h.b16 %v8357
    %v8463 = vunpack.c.l.b16 %v8358
    %v8464 = vunpack.c.h.b16 %v8358
    %v8465 = vunpack.c.l.b16 %v8359
    %v8466 = vunpack.c.h.b16 %v8359
    %v8467 = vunpack.c.l.b16 %v8360
    %v8468 = vunpack.c.h.b16 %v8360
    %v8469 = vpack.c.b16 %v8399, %v8397
    %v8470 = vpack.c.b16 %v8400, %v8398
    %v8471 = vpack.c.b16 %v8403, %v8401
    %v8472 = vpack.c.b16 %v8404, %v8402
    %v8473 = vpack.c.b16 %v8407, %v8405
    %v8474 = vpack.c.b16 %v8408, %v8406
    %v8475 = vpack.c.b16 %v8411, %v8409
    %v8476 = vpack.c.b16 %v8412, %v8410
    %v8477 = vpack.c.b16 %v8415, %v8413
    %v8478 = vpack.c.b16 %v8416, %v8414
    %v8479 = vpack.c.b16 %v8419, %v8417
    %v8480 = vpack.c.b16 %v8420, %v8418
    %v8481 = vpack.c.b16 %v8423, %v8421
    %v8482 = vpack.c.b16 %v8424, %v8422
    %v8483 = vpack.c.b16 %v8427, %v8425
    %v8484 = vpack.c.b16 %v8428, %v8426
    %v8485 = vpack.c.b16 %v8431, %v8429
    %v8486 = vpack.c.b16 %v8432, %v8430
    %v8487 = vpack.c.b16 %v8435, %v8433
    %v8488 = vpack.c.b16 %v8436, %v8434
    %v8489 = vpack.c.b16 %v8439, %v8437
    %v8490 = vpack.c.b16 %v8440, %v8438
    %v8491 = vpack.c.b16 %v8443, %v8441
    %v8492 = vpack.c.b16 %v8444, %v8442
    %v8493 = vpack.c.b16 %v8447, %v8445
    %v8494 = vpack.c.b16 %v8448, %v8446
    %v8495 = vpack.c.b16 %v8451, %v8449
    %v8496 = vpack.c.b16 %v8452, %v8450
    %v8497 = vpack.c.b16 %v8455, %v8453
    %v8498 = vpack.c.b16 %v8456, %v8454
    %v8499 = vpack.c.b16 %v8459, %v8457
    %v8500 = vpack.c.b16 %v8460, %v8458
    %v8501 = vpack.c.b16 %v8463, %v8461
    %v8502 = vpack.c.b16 %v8464, %v8462
    %v8503 = vpack.c.b16 %v8467, %v8465
    %v8504 = vpack.c.b16 %v8468, %v8466
    %v8542 = vsel %vm552, %v8321, 0
    %v8545 = vsel %vm552, %v8324, 0
    %8547 = vmatprep.subr.bf16.mxu0 %v8470
    %8548 = vmatpush1.bf16.msra.mxu0 %v8469
    %8549 = vmatprep.subr.bf16.mxu0 %v8472
    %8550 = vmatpush1.bf16.msra.mxu0 %v8471
    %8551 = vmatprep.subr.bf16.mxu0 %v8474
    %8552 = vmatpush1.bf16.msra.mxu0 %v8473
    %8553 = vmatprep.subr.bf16.mxu0 %v8476
    %8554 = vmatpush1.bf16.msra.mxu0 %v8475
    %8555 = vmatprep.subr.bf16.mxu0 %v8478
    %8556 = vmatpush1.bf16.msra.mxu0 %v8477
    %8557 = vmatprep.subr.bf16.mxu0 %v8480
    %8558 = vmatpush1.bf16.msra.mxu0 %v8479
    %8559 = vmatprep.subr.bf16.mxu0 %v8482
    %8560 = vmatpush1.bf16.msra.mxu0 %v8481
    %8561 = vmatprep.subr.bf16.mxu0 %v8484
    %8562 = vmatpush1.bf16.msra.mxu0 %v8483
    %8563 = vmatprep.subr.bf16.mxu0 %v8486
    %8564 = vmatpush1.bf16.msra.mxu0 %v8485
    %8565 = vmatprep.subr.bf16.mxu0 %v8488
    %8566 = vmatpush1.bf16.msra.mxu0 %v8487
    %8567 = vmatprep.subr.bf16.mxu0 %v8490
    %8568 = vmatpush1.bf16.msra.mxu0 %v8489
    %8569 = vmatprep.subr.bf16.mxu0 %v8492
    %8570 = vmatpush1.bf16.msra.mxu0 %v8491
    %8571 = vmatprep.subr.bf16.mxu0 %v8494
    %8572 = vmatpush1.bf16.msra.mxu0 %v8493
    %8573 = vmatprep.subr.bf16.mxu0 %v8496
    %8574 = vmatpush1.bf16.msra.mxu0 %v8495
    %8575 = vmatprep.subr.bf16.mxu0 %v8498
    %8576 = vmatpush1.bf16.msra.mxu0 %v8497
    %8577 = vmatprep.subr.bf16.mxu0 %v8500
    %8578 = vmatpush1.bf16.msra.mxu0 %v8499
    %8579 = vmatprep.mubr.bf16.mxu0 %v8320
    %8580 = vmatmul.mubr.bf16.gmra.mrb[0].mxu0 %v8319
    %v8581 = vpop.f32.mrb[0].mxu0
    %v8582 = vadd.f32 0.0, %v8581
    %v8583 = vpop.f32.mrb[0].mxu0
    %v8584 = vadd.f32 0.0, %v8583
    %v8585 = vpop.f32.mrb[0].mxu0
    %v8586 = vadd.f32 0.0, %v8585
    %v8587 = vpop.f32.mrb[0].mxu0
    %v8588 = vadd.f32 0.0, %v8587
    %8589 = vmatprep.mubr.bf16.mxu0 %v8323
    %8590 = vmatmul.mubr.bf16.gmra.mrb[0].mxu0 %v8322
    %v8591 = vpop.f32.mrb[0].mxu0
    %v8592 = vadd.f32 0.0, %v8591
    %v8593 = vpop.f32.mrb[0].mxu0
    %v8594 = vadd.f32 0.0, %v8593
    %v8595 = vpop.f32.mrb[0].mxu0
    %v8596 = vpop.f32.mrb[0].mxu0
    %8597 = vdwg.mxu0
    %8598 = vmatprep.subr.bf16.mxu0 %v8502
    %8599 = vmatpush1.bf16.msra.mxu0 %v8501
    %8600 = vmatprep.subr.bf16.mxu0 %v8504
    %8601 = vmatpush1.bf16.msra.mxu0 %v8503
    %8602 = vmatprep.subr.bf16.mxu0 0
    %8603 = vmatpush1.bf16.msra.mxu0 0
    %8604 = vmatprep.subr.bf16.mxu0 0
    %8605 = vmatpush1.bf16.msra.mxu0 0
    %8606 = vmatprep.subr.bf16.mxu0 0
    %8607 = vmatpush1.bf16.msra.mxu0 0
    %8608 = vmatprep.subr.bf16.mxu0 0
    %8609 = vmatpush1.bf16.msra.mxu0 0
    %8610 = vmatprep.subr.bf16.mxu0 0
    %8611 = vmatpush1.bf16.msra.mxu0 0
    %8612 = vmatprep.subr.bf16.mxu0 0
    %8613 = vmatpush1.bf16.msra.mxu0 0
    %8614 = vmatprep.subr.bf16.mxu0 0
    %8615 = vmatpush1.bf16.msra.mxu0 0
    %8616 = vmatprep.subr.bf16.mxu0 0
    %8617 = vmatpush1.bf16.msra.mxu0 0
    %8618 = vmatprep.subr.bf16.mxu0 0
    %8619 = vmatpush1.bf16.msra.mxu0 0
    %8620 = vmatprep.subr.bf16.mxu0 0
    %8621 = vmatpush1.bf16.msra.mxu0 0
    %8622 = vmatprep.subr.bf16.mxu0 0
    %8623 = vmatpush1.bf16.msra.mxu0 0
    %8624 = vmatprep.subr.bf16.mxu0 0
    %8625 = vmatpush1.bf16.msra.mxu0 0
    %8626 = vmatprep.subr.bf16.mxu0 0
    %8627 = vmatpush1.bf16.msra.mxu0 0
    %8628 = vmatprep.subr.bf16.mxu0 0
    %8629 = vmatpush1.bf16.msra.mxu0 0
    %8630 = vmatprep.mubr.bf16.mxu0 0
    %8631 = vmatmul.mubr.bf16.gmra.mrb[0].mxu0 %v8542
    %v8632 = vpop.f32.mrb[0].mxu0
    %v8633 = vadd.f32 %v8582, %v8632
    %v8634 = vpop.f32.mrb[0].mxu0
    %v8635 = vadd.f32 %v8584, %v8634
    %v8636 = vpop.f32.mrb[0].mxu0
    %v8637 = vadd.f32 %v8586, %v8636
    %v8638 = vpop.f32.mrb[0].mxu0
    %v8639 = vadd.f32 %v8588, %v8638
    %8640 = vmatprep.mubr.bf16.mxu0 0
    %8641 = vmatmul.mubr.bf16.gmra.mrb[0].mxu0 %v8545
    %v8642 = vpop.f32.mrb[0].mxu0
    %v8643 = vadd.f32 %v8592, %v8642
    %v8644 = vpop.f32.mrb[0].mxu0
    %v8645 = vadd.f32 %v8594, %v8644
    %v8646 = vpop.f32.mrb[0].mxu0
    %v8647 = vpop.f32.mrb[0].mxu0
    %8648 = vdwg.mxu0
    %s8649 = scalar_lea.vmem %s12, 288
    %v8650 = vld [vmem:[%s8649] sm:$0xff]
    %v8651 = vld [vmem:[%s8649 + $0x8] sm:$0xff]
    %v8652 = vld [vmem:[%s8649 + $0x10] sm:$0xff]
    %v8653 = vld [vmem:[%s8649 + $0x18] sm:$0xff]
    %v8654 = vld [vmem:[%s8649 + $0x20] sm:$0xff]
    %v8655 = vld [vmem:[%s8649 + $0x28] sm:$0xff]
    %v8656 = vld [vmem:[%s8649 + $0x30] sm:$0xff]
    %v8657 = vld [vmem:[%s8649 + $0x38] sm:$0xff]
    %v8658 = vld [vmem:[%s8649 + $0x40] sm:$0xff]
    %v8659 = vld [vmem:[%s8649 + $0x48] sm:$0xff]
    %v8660 = vld [vmem:[%s8649 + $0x50] sm:$0xff]
    %v8661 = vld [vmem:[%s8649 + $0x58] sm:$0xff]
    %v8662 = vld [vmem:[%s8649 + $0x60] sm:$0xff]
    %v8663 = vld [vmem:[%s8649 + $0x68] sm:$0xff]
    %v8664 = vld [vmem:[%s8649 + $0x70] sm:$0xff]
    %v8665 = vld [vmem:[%s8649 + $0x78] sm:$0xff]
    %v8666 = vld [vmem:[%s8649 + $0x80] sm:$0xff]
    %v8667 = vld [vmem:[%s8649 + $0x88] sm:$0xff]
    %v8668 = vld [vmem:[%s8649 + $0x90] sm:$0xff]
    %v8669 = vld [vmem:[%s8649 + $0x98] sm:$0xff]
    %v8670 = vld [vmem:[%s8649 + $0xa0] sm:$0xff]
    %v8671 = vld [vmem:[%s8649 + $0xa8] sm:$0xff]
    %v8672 = vld [vmem:[%s8649 + $0xb0] sm:$0xff]
    %v8673 = vld [vmem:[%s8649 + $0xb8] sm:$0xff]
    %v8674 = vld [vmem:[%s8649 + $0xc0] sm:$0xff]
    %v8675 = vld [vmem:[%s8649 + $0xc8] sm:$0xff]
    %v8676 = vld [vmem:[%s8649 + $0xd0] sm:$0xff]
    %v8677 = vld [vmem:[%s8649 + $0xd8] sm:$0xff]
    %v8678 = vld [vmem:[%s8649 + $0xe0] sm:$0xff]
    %v8679 = vld [vmem:[%s8649 + $0xe8] sm:$0xff]
    %v8680 = vld [vmem:[%s8649 + $0xf0] sm:$0xff]
    %v8681 = vld [vmem:[%s8649 + $0xf8] sm:$0xff]
    %v8682 = vld [vmem:[%s8649 + $0x100] sm:$0xff]
    %v8683 = vld [vmem:[%s8649 + $0x108] sm:$0xff]
    %v8684 = vld [vmem:[%s8649 + $0x110] sm:$0xff]
    %v8685 = vld [vmem:[%s8649 + $0x118] sm:$0xff]
    %v8722 = vunpack.c.l.b16 %v8650
    %v8723 = vunpack.c.h.b16 %v8650
    %v8724 = vunpack.c.l.b16 %v8651
    %v8725 = vunpack.c.h.b16 %v8651
    %v8726 = vunpack.c.l.b16 %v8652
    %v8727 = vunpack.c.h.b16 %v8652
    %v8728 = vunpack.c.l.b16 %v8653
    %v8729 = vunpack.c.h.b16 %v8653
    %v8730 = vunpack.c.l.b16 %v8654
    %v8731 = vunpack.c.h.b16 %v8654
    %v8732 = vunpack.c.l.b16 %v8655
    %v8733 = vunpack.c.h.b16 %v8655
    %v8734 = vunpack.c.l.b16 %v8656
    %v8735 = vunpack.c.h.b16 %v8656
    %v8736 = vunpack.c.l.b16 %v8657
    %v8737 = vunpack.c.h.b16 %v8657
    %v8738 = vunpack.c.l.b16 %v8658
    %v8739 = vunpack.c.h.b16 %v8658
    %v8740 = vunpack.c.l.b16 %v8659
    %v8741 = vunpack.c.h.b16 %v8659
    %v8742 = vunpack.c.l.b16 %v8660
    %v8743 = vunpack.c.h.b16 %v8660
    %v8744 = vunpack.c.l.b16 %v8661
    %v8745 = vunpack.c.h.b16 %v8661
    %v8746 = vunpack.c.l.b16 %v8662
    %v8747 = vunpack.c.h.b16 %v8662
    %v8748 = vunpack.c.l.b16 %v8663
    %v8749 = vunpack.c.h.b16 %v8663
    %v8750 = vunpack.c.l.b16 %v8664
    %v8751 = vunpack.c.h.b16 %v8664
    %v8752 = vunpack.c.l.b16 %v8665
    %v8753 = vunpack.c.h.b16 %v8665
    %v8754 = vunpack.c.l.b16 %v8666
    %v8755 = vunpack.c.h.b16 %v8666
    %v8756 = vunpack.c.l.b16 %v8667
    %v8757 = vunpack.c.h.b16 %v8667
    %v8758 = vunpack.c.l.b16 %v8668
    %v8759 = vunpack.c.h.b16 %v8668
    %v8760 = vunpack.c.l.b16 %v8669
    %v8761 = vunpack.c.h.b16 %v8669
    %v8762 = vunpack.c.l.b16 %v8670
    %v8763 = vunpack.c.h.b16 %v8670
    %v8764 = vunpack.c.l.b16 %v8671
    %v8765 = vunpack.c.h.b16 %v8671
    %v8766 = vunpack.c.l.b16 %v8672
    %v8767 = vunpack.c.h.b16 %v8672
    %v8768 = vunpack.c.l.b16 %v8673
    %v8769 = vunpack.c.h.b16 %v8673
    %v8770 = vunpack.c.l.b16 %v8674
    %v8771 = vunpack.c.h.b16 %v8674
    %v8772 = vunpack.c.l.b16 %v8675
    %v8773 = vunpack.c.h.b16 %v8675
    %v8774 = vunpack.c.l.b16 %v8676
    %v8775 = vunpack.c.h.b16 %v8676
    %v8776 = vunpack.c.l.b16 %v8677
    %v8777 = vunpack.c.h.b16 %v8677
    %v8778 = vunpack.c.l.b16 %v8678
    %v8779 = vunpack.c.h.b16 %v8678
    %v8780 = vunpack.c.l.b16 %v8679
    %v8781 = vunpack.c.h.b16 %v8679
    %v8782 = vunpack.c.l.b16 %v8680
    %v8783 = vunpack.c.h.b16 %v8680
    %v8784 = vunpack.c.l.b16 %v8681
    %v8785 = vunpack.c.h.b16 %v8681
    %v8786 = vunpack.c.l.b16 %v8682
    %v8787 = vunpack.c.h.b16 %v8682
    %v8788 = vunpack.c.l.b16 %v8683
    %v8789 = vunpack.c.h.b16 %v8683
    %v8790 = vunpack.c.l.b16 %v8684
    %v8791 = vunpack.c.h.b16 %v8684
    %v8792 = vunpack.c.l.b16 %v8685
    %v8793 = vunpack.c.h.b16 %v8685
    %v8794 = vpack.c.b16 %v8724, %v8722
    %v8795 = vpack.c.b16 %v8725, %v8723
    %v8796 = vpack.c.b16 %v8728, %v8726
    %v8797 = vpack.c.b16 %v8729, %v8727
    %v8798 = vpack.c.b16 %v8732, %v8730
    %v8799 = vpack.c.b16 %v8733, %v8731
    %v8800 = vpack.c.b16 %v8736, %v8734
    %v8801 = vpack.c.b16 %v8737, %v8735
    %v8802 = vpack.c.b16 %v8740, %v8738
    %v8803 = vpack.c.b16 %v8741, %v8739
    %v8804 = vpack.c.b16 %v8744, %v8742
    %v8805 = vpack.c.b16 %v8745, %v8743
    %v8806 = vpack.c.b16 %v8748, %v8746
    %v8807 = vpack.c.b16 %v8749, %v8747
    %v8808 = vpack.c.b16 %v8752, %v8750
    %v8809 = vpack.c.b16 %v8753, %v8751
    %v8810 = vpack.c.b16 %v8756, %v8754
    %v8811 = vpack.c.b16 %v8757, %v8755
    %v8812 = vpack.c.b16 %v8760, %v8758
    %v8813 = vpack.c.b16 %v8761, %v8759
    %v8814 = vpack.c.b16 %v8764, %v8762
    %v8815 = vpack.c.b16 %v8765, %v8763
    %v8816 = vpack.c.b16 %v8768, %v8766
    %v8817 = vpack.c.b16 %v8769, %v8767
    %v8818 = vpack.c.b16 %v8772, %v8770
    %v8819 = vpack.c.b16 %v8773, %v8771
    %v8820 = vpack.c.b16 %v8776, %v8774
    %v8821 = vpack.c.b16 %v8777, %v8775
    %v8822 = vpack.c.b16 %v8780, %v8778
    %v8823 = vpack.c.b16 %v8781, %v8779
    %v8824 = vpack.c.b16 %v8784, %v8782
    %v8825 = vpack.c.b16 %v8785, %v8783
    %v8826 = vpack.c.b16 %v8788, %v8786
    %v8827 = vpack.c.b16 %v8789, %v8787
    %v8828 = vpack.c.b16 %v8792, %v8790
    %v8829 = vpack.c.b16 %v8793, %v8791
    %8866 = vmatprep.subr.bf16.mxu0 %v8795
    %8867 = vmatpush1.bf16.msra.mxu0 %v8794
    %8868 = vmatprep.subr.bf16.mxu0 %v8797
    %8869 = vmatpush1.bf16.msra.mxu0 %v8796
    %8870 = vmatprep.subr.bf16.mxu0 %v8799
    %8871 = vmatpush1.bf16.msra.mxu0 %v8798
    %8872 = vmatprep.subr.bf16.mxu0 %v8801
    %8873 = vmatpush1.bf16.msra.mxu0 %v8800
    %8874 = vmatprep.subr.bf16.mxu0 %v8803
    %8875 = vmatpush1.bf16.msra.mxu0 %v8802
    %8876 = vmatprep.subr.bf16.mxu0 %v8805
    %8877 = vmatpush1.bf16.msra.mxu0 %v8804
    %8878 = vmatprep.subr.bf16.mxu0 %v8807
    %8879 = vmatpush1.bf16.msra.mxu0 %v8806
    %8880 = vmatprep.subr.bf16.mxu0 %v8809
    %8881 = vmatpush1.bf16.msra.mxu0 %v8808
    %8882 = vmatprep.subr.bf16.mxu0 %v8811
    %8883 = vmatpush1.bf16.msra.mxu0 %v8810
    %8884 = vmatprep.subr.bf16.mxu0 %v8813
    %8885 = vmatpush1.bf16.msra.mxu0 %v8812
    %8886 = vmatprep.subr.bf16.mxu0 %v8815
    %8887 = vmatpush1.bf16.msra.mxu0 %v8814
    %8888 = vmatprep.subr.bf16.mxu0 %v8817
    %8889 = vmatpush1.bf16.msra.mxu0 %v8816
    %8890 = vmatprep.subr.bf16.mxu0 %v8819
    %8891 = vmatpush1.bf16.msra.mxu0 %v8818
    %8892 = vmatprep.subr.bf16.mxu0 %v8821
    %8893 = vmatpush1.bf16.msra.mxu0 %v8820
    %8894 = vmatprep.subr.bf16.mxu0 %v8823
    %8895 = vmatpush1.bf16.msra.mxu0 %v8822
    %8896 = vmatprep.subr.bf16.mxu0 %v8825
    %8897 = vmatpush1.bf16.msra.mxu0 %v8824
    %8898 = vmatprep.mubr.bf16.mxu0 %v8320
    %8899 = vmatmul.mubr.bf16.gmra.mrb[0].mxu0 %v8319
    %v8900 = vpop.f32.mrb[0].mxu0
    %v8901 = vadd.f32 0.0, %v8900
    %v8902 = vpop.f32.mrb[0].mxu0
    %v8903 = vadd.f32 0.0, %v8902
    %v8904 = vpop.f32.mrb[0].mxu0
    %v8905 = vadd.f32 0.0, %v8904
    %v8906 = vpop.f32.mrb[0].mxu0
    %v8907 = vadd.f32 0.0, %v8906
    %8908 = vmatprep.mubr.bf16.mxu0 %v8323
    %8909 = vmatmul.mubr.bf16.gmra.mrb[0].mxu0 %v8322
    %v8910 = vpop.f32.mrb[0].mxu0
    %v8911 = vadd.f32 0.0, %v8910
    %v8912 = vpop.f32.mrb[0].mxu0
    %v8913 = vadd.f32 0.0, %v8912
    %v8914 = vpop.f32.mrb[0].mxu0
    %v8915 = vpop.f32.mrb[0].mxu0
    %8916 = vdwg.mxu0
    %8917 = vmatprep.subr.bf16.mxu0 %v8827
    %8918 = vmatpush1.bf16.msra.mxu0 %v8826
    %8919 = vmatprep.subr.bf16.mxu0 %v8829
    %8920 = vmatpush1.bf16.msra.mxu0 %v8828
    %8921 = vmatprep.subr.bf16.mxu0 0
    %8922 = vmatpush1.bf16.msra.mxu0 0
    %8923 = vmatprep.subr.bf16.mxu0 0
    %8924 = vmatpush1.bf16.msra.mxu0 0
    %8925 = vmatprep.subr.bf16.mxu0 0
    %8926 = vmatpush1.bf16.msra.mxu0 0
    %8927 = vmatprep.subr.bf16.mxu0 0
    %8928 = vmatpush1.bf16.msra.mxu0 0
    %8929 = vmatprep.subr.bf16.mxu0 0
    %8930 = vmatpush1.bf16.msra.mxu0 0
    %8931 = vmatprep.subr.bf16.mxu0 0
    %8932 = vmatpush1.bf16.msra.mxu0 0
    %8933 = vmatprep.subr.bf16.mxu0 0
    %8934 = vmatpush1.bf16.msra.mxu0 0
    %8935 = vmatprep.subr.bf16.mxu0 0
    %8936 = vmatpush1.bf16.msra.mxu0 0
    %8937 = vmatprep.subr.bf16.mxu0 0
    %8938 = vmatpush1.bf16.msra.mxu0 0
    %8939 = vmatprep.subr.bf16.mxu0 0
    %8940 = vmatpush1.bf16.msra.mxu0 0
    %8941 = vmatprep.subr.bf16.mxu0 0
    %8942 = vmatpush1.bf16.msra.mxu0 0
    %8943 = vmatprep.subr.bf16.mxu0 0
    %8944 = vmatpush1.bf16.msra.mxu0 0
    %8945 = vmatprep.subr.bf16.mxu0 0
    %8946 = vmatpush1.bf16.msra.mxu0 0
    %8947 = vmatprep.subr.bf16.mxu0 0
    %8948 = vmatpush1.bf16.msra.mxu0 0
    %8949 = vmatprep.mubr.bf16.mxu0 0
    %8950 = vmatmul.mubr.bf16.gmra.mrb[0].mxu0 %v8542
    %v8951 = vpop.f32.mrb[0].mxu0
    %v8952 = vadd.f32 %v8901, %v8951
    %v8953 = vpop.f32.mrb[0].mxu0
    %v8954 = vadd.f32 %v8903, %v8953
    %v8955 = vpop.f32.mrb[0].mxu0
    %v8956 = vadd.f32 %v8905, %v8955
    %v8957 = vpop.f32.mrb[0].mxu0
    %v8958 = vadd.f32 %v8907, %v8957
    %8959 = vmatprep.mubr.bf16.mxu0 0
    %8960 = vmatmul.mubr.bf16.gmra.mrb[0].mxu0 %v8545
    %v8961 = vpop.f32.mrb[0].mxu0
    %v8962 = vadd.f32 %v8911, %v8961
    %v8963 = vpop.f32.mrb[0].mxu0
    %v8964 = vadd.f32 %v8913, %v8963
    %v8965 = vpop.f32.mrb[0].mxu0
    %v8966 = vpop.f32.mrb[0].mxu0
    %8967 = vdwg.mxu0
    %v8968 = vmax.f32 %v8633, %v8952
    %v8969 = vmax.f32 %v8635, %v8954
    %v8970 = vmax.f32 %v8637, %v8956
    %v8971 = vmax.f32 %v8639, %v8958
    %v8972 = vmax.f32 %v8643, %v8962
    %v8973 = vmax.f32 %v8645, %v8964
    %v8974 = vld [vmem:[%s13] sm:$0xff]
    %v8975 = vld [vmem:[%s13 + $0x8] sm:$0xff]
    %v8976 = vld [vmem:[%s13 + $0x10] sm:$0xff]
    %v8977 = vrot.slane %v8968, 7
    %v8978 = vrot.slane %v8969, 7
    %v8979 = vrot.slane %v8970, 7
    %v8980 = vrot.slane %v8971, 7
    %v8981 = vrot.slane %v8972, 7
    %v8982 = vrot.slane %v8973, 7
    %v8983 = vsel %vm141, %v8979, %v8981
    %v8984 = vsel %vm141, %v8980, %v8982
    %v8985 = vsel %vm141, %v8977, %v8979
    %v8986 = vsel %vm141, %v8978, %v8980
    %v8987 = vsel %vm141, %v8981, %v8977
    %v8988 = vsel %vm141, %v8982, %v8978
    %8990 = vset.pattern.permute.xlu0 0
    %8991 = vperm.xlu0 %8990, %v8974
    %v8992 = vpop.permute.xlu0 %8991
    %8995 = vset.pattern.permute.xlu0 0
    %8996 = vperm.xlu0 %8995, %v8975
    %v8997 = vpop.permute.xlu0 %8996
    %9000 = vset.pattern.permute.xlu0 0
    %9001 = vperm.xlu0 %9000, %v8976
    %v9002 = vpop.permute.xlu0 %9001
    %v9004 = vmul.f32 %v8987, %v8992
    %v9005 = vmul.f32 %v8988, %v8992
    %v9006 = vmul.f32 %v8985, %v8997
    %v9007 = vmul.f32 %v8986, %v8997
    %v9008 = vmul.f32 %v8983, %v9002
    %v9009 = vmul.f32 %v8984, %v9002
    %v9010 = vrot.slane %v8968, 1
    %v9011 = vrot.slane %v8969, 1
    %v9012 = vrot.slane %v8970, 1
    %v9013 = vrot.slane %v8971, 1
    %v9014 = vrot.slane %v8972, 1
    %v9015 = vrot.slane %v8973, 1
    %v9016 = vsel %vm274, %v9012, %v9014
    %v9017 = vsel %vm274, %v9013, %v9015
    %v9018 = vsel %vm274, %v9010, %v9012
    %v9019 = vsel %vm274, %v9011, %v9013
    %v9020 = vsel %vm274, %v9014, %v9010
    %v9021 = vsel %vm274, %v9015, %v9011
    %9022 = vset.pattern.permute.xlu0 1
    %9023 = vperm.xlu0 %9022, %v8974
    %v9024 = vpop.permute.xlu0 %9023
    %9026 = vset.pattern.permute.xlu0 1
    %9027 = vperm.xlu0 %9026, %v8975
    %v9028 = vpop.permute.xlu0 %9027
    %9030 = vset.pattern.permute.xlu0 1
    %9031 = vperm.xlu0 %9030, %v8976
    %v9032 = vpop.permute.xlu0 %9031
    %v9034 = vmul.f32 %v9018, %v9024
    %v9035 = vmul.f32 %v9019, %v9024
    %v9036 = vmul.f32 %v9016, %v9028
    %v9037 = vmul.f32 %v9017, %v9028
    %v9038 = vmul.f32 %v9020, %v9032
    %v9039 = vmul.f32 %v9021, %v9032
    %9046 = vrot.lane.b32.xlu0 %v8968, 16
    %v9047 = vpop.permute.xlu0 %9046
    %9048 = vrot.lane.b32.xlu0 %v8969, 16
    %v9049 = vpop.permute.xlu0 %9048
    %9050 = vrot.lane.b32.xlu0 %v8970, 16
    %v9051 = vpop.permute.xlu0 %9050
    %9052 = vrot.lane.b32.xlu0 %v8971, 16
    %v9053 = vpop.permute.xlu0 %9052
    %9054 = vrot.lane.b32.xlu0 %v8972, 16
    %v9055 = vpop.permute.xlu0 %9054
    %9056 = vrot.lane.b32.xlu0 %v8973, 16
    %v9057 = vpop.permute.xlu0 %9056
    %v9058 = vsel %vm443, %v9047, %v9049
    %v9059 = vsel %vm443, %v9051, %v9053
    %v9060 = vsel %vm443, %v9055, %v9057
    %9073 = vrot.lane.b32.xlu0 %v9034, 32
    %v9074 = vpop.permute.xlu0 %9073
    %9075 = vrot.lane.b32.xlu0 %v9035, 32
    %v9076 = vpop.permute.xlu0 %9075
    %9077 = vrot.lane.b32.xlu0 %v9036, 32
    %v9078 = vpop.permute.xlu0 %9077
    %9079 = vrot.lane.b32.xlu0 %v9037, 32
    %v9080 = vpop.permute.xlu0 %9079
    %9081 = vrot.lane.b32.xlu0 %v9038, 32
    %v9082 = vpop.permute.xlu0 %9081
    %9083 = vrot.lane.b32.xlu0 %v9039, 32
    %v9084 = vpop.permute.xlu0 %9083
    %v9085 = vsel %vm552, %v9074, %v9076
    %v9086 = vsel %vm552, %v9078, %v9080
    %v9087 = vsel %vm552, %v9082, %v9084
    %v9094 = vsel %vm443, %v9005, %v9047
    %v9095 = vsel %vm443, %v9007, %v9051
    %v9096 = vsel %vm443, %v9009, %v9055
    %v9097 = vsel %vm552, %v9058, %v9074
    %v9098 = vsel %vm552, %v9059, %v9078
    %v9099 = vsel %vm552, %v9060, %v9082
    %v9100 = vpack.c.bf16 %v9006, %v9004
    %v9101 = vpack.c.bf16 %v9095, %v9094
    %v9102 = vpack.c.bf16 %v9098, %v9097
    %v9103 = vpack.c.bf16 %v9086, %v9085
    %v9104 = vpack.c.bf16 %v9008, %v9008
    %v9105 = vpack.c.bf16 %v9096, %v9096
    %v9106 = vpack.c.bf16 %v9099, %v9099
    %v9107 = vpack.c.bf16 %v9087, %v9087
    %v9108 = vld [vmem:[%s14] sm:$0xff]
    %v9109 = vld [vmem:[%s14 + $0x8] sm:$0xff]
    %v9110 = vld [vmem:[%s14 + $0x10] sm:$0xff]
    %v9111 = vld [vmem:[%s14 + $0x18] sm:$0xff]
    %v9112 = vld [vmem:[%s14 + $0x20] sm:$0xff]
    %v9113 = vld [vmem:[%s14 + $0x28] sm:$0xff]
    %v9114 = vld [vmem:[%s14 + $0x30] sm:$0xff]
    %v9115 = vld [vmem:[%s14 + $0x38] sm:$0xff]
    %v9116 = vld [vmem:[%s14 + $0x40] sm:$0xff]
    %v9117 = vld [vmem:[%s14 + $0x48] sm:$0xff]
    %v9118 = vld [vmem:[%s14 + $0x50] sm:$0xff]
    %v9119 = vld [vmem:[%s14 + $0x58] sm:$0xff]
    %v9120 = vld [vmem:[%s14 + $0x60] sm:$0xff]
    %v9121 = vld [vmem:[%s14 + $0x68] sm:$0xff]
    %v9122 = vld [vmem:[%s14 + $0x70] sm:$0xff]
    %v9123 = vld [vmem:[%s14 + $0x78] sm:$0xff]
    %v9124 = vld [vmem:[%s14 + $0x80] sm:$0xff]
    %v9125 = vld [vmem:[%s14 + $0x88] sm:$0xff]
    %v9126 = vld [vmem:[%s14 + $0x90] sm:$0xff]
    %v9127 = vld [vmem:[%s14 + $0x98] sm:$0xff]
    %v9128 = vld [vmem:[%s14 + $0xa0] sm:$0xff]
    %v9129 = vld [vmem:[%s14 + $0xa8] sm:$0xff]
    %v9130 = vld [vmem:[%s14 + $0xb0] sm:$0xff]
    %v9131 = vld [vmem:[%s14 + $0xb8] sm:$0xff]
    %v9132 = vld [vmem:[%s14 + $0xc0] sm:$0xff]
    %v9133 = vld [vmem:[%s14 + $0xc8] sm:$0xff]
    %v9134 = vld [vmem:[%s14 + $0xd0] sm:$0xff]
    %v9135 = vld [vmem:[%s14 + $0xd8] sm:$0xff]
    %v9136 = vld [vmem:[%s14 + $0xe0] sm:$0xff]
    %v9137 = vld [vmem:[%s14 + $0xe8] sm:$0xff]
    %v9138 = vld [vmem:[%s14 + $0xf0] sm:$0xff]
    %v9139 = vld [vmem:[%s14 + $0xf8] sm:$0xff]
    %v9140 = vld [vmem:[%s14 + $0x100] sm:$0xff]
    %v9141 = vld [vmem:[%s14 + $0x108] sm:$0xff]
    %v9142 = vld [vmem:[%s14 + $0x110] sm:$0xff]
    %v9143 = vld [vmem:[%s14 + $0x118] sm:$0xff]
    %v9144 = vld [vmem:[%s14 + $0x120] sm:$0xff]
    %v9145 = vld [vmem:[%s14 + $0x128] sm:$0xff]
    %v9146 = vld [vmem:[%s14 + $0x130] sm:$0xff]
    %v9147 = vld [vmem:[%s14 + $0x138] sm:$0xff]
    %v9148 = vld [vmem:[%s14 + $0x140] sm:$0xff]
    %v9149 = vld [vmem:[%s14 + $0x148] sm:$0xff]
    %v9150 = vld [vmem:[%s14 + $0x150] sm:$0xff]
    %v9151 = vld [vmem:[%s14 + $0x158] sm:$0xff]
    %v9152 = vld [vmem:[%s14 + $0x160] sm:$0xff]
    %v9153 = vld [vmem:[%s14 + $0x168] sm:$0xff]
    %v9154 = vld [vmem:[%s14 + $0x170] sm:$0xff]
    %v9155 = vld [vmem:[%s14 + $0x178] sm:$0xff]
    %v9156 = vld [vmem:[%s14 + $0x180] sm:$0xff]
    %v9157 = vld [vmem:[%s14 + $0x188] sm:$0xff]
    %v9158 = vld [vmem:[%s14 + $0x190] sm:$0xff]
    %v9159 = vld [vmem:[%s14 + $0x198] sm:$0xff]
    %v9160 = vld [vmem:[%s14 + $0x1a0] sm:$0xff]
    %v9161 = vld [vmem:[%s14 + $0x1a8] sm:$0xff]
    %v9216 = vunpack.c.l.b16 %v9108
    %v9217 = vunpack.c.h.b16 %v9108
    %v9218 = vunpack.c.l.b16 %v9109
    %v9219 = vunpack.c.h.b16 %v9109
    %v9220 = vunpack.c.l.b16 %v9110
    %v9221 = vunpack.c.h.b16 %v9110
    %v9222 = vunpack.c.l.b16 %v9111
    %v9223 = vunpack.c.h.b16 %v9111
    %v9224 = vunpack.c.l.b16 %v9112
    %v9225 = vunpack.c.h.b16 %v9112
    %v9226 = vunpack.c.l.b16 %v9113
    %v9227 = vunpack.c.h.b16 %v9113
    %v9228 = vunpack.c.l.b16 %v9114
    %v9229 = vunpack.c.h.b16 %v9114
    %v9230 = vunpack.c.l.b16 %v9115
    %v9231 = vunpack.c.h.b16 %v9115
    %v9232 = vunpack.c.l.b16 %v9116
    %v9233 = vunpack.c.h.b16 %v9116
    %v9234 = vunpack.c.l.b16 %v9117
    %v9235 = vunpack.c.h.b16 %v9117
    %v9236 = vunpack.c.l.b16 %v9118
    %v9237 = vunpack.c.h.b16 %v9118
    %v9238 = vunpack.c.l.b16 %v9119
    %v9239 = vunpack.c.h.b16 %v9119
    %v9240 = vunpack.c.l.b16 %v9120
    %v9241 = vunpack.c.h.b16 %v9120
    %v9242 = vunpack.c.l.b16 %v9121
    %v9243 = vunpack.c.h.b16 %v9121
    %v9244 = vunpack.c.l.b16 %v9122
    %v9245 = vunpack.c.h.b16 %v9122
    %v9246 = vunpack.c.l.b16 %v9123
    %v9247 = vunpack.c.h.b16 %v9123
    %v9248 = vunpack.c.l.b16 %v9124
    %v9249 = vunpack.c.h.b16 %v9124
    %v9250 = vunpack.c.l.b16 %v9125
    %v9251 = vunpack.c.h.b16 %v9125
    %v9252 = vunpack.c.l.b16 %v9126
    %v9253 = vunpack.c.h.b16 %v9126
    %v9254 = vunpack.c.l.b16 %v9127
    %v9255 = vunpack.c.h.b16 %v9127
    %v9256 = vunpack.c.l.b16 %v9128
    %v9257 = vunpack.c.h.b16 %v9128
    %v9258 = vunpack.c.l.b16 %v9129
    %v9259 = vunpack.c.h.b16 %v9129
    %v9260 = vunpack.c.l.b16 %v9130
    %v9261 = vunpack.c.h.b16 %v9130
    %v9262 = vunpack.c.l.b16 %v9131
    %v9263 = vunpack.c.h.b16 %v9131
    %v9264 = vunpack.c.l.b16 %v9132
    %v9265 = vunpack.c.h.b16 %v9132
    %v9266 = vunpack.c.l.b16 %v9133
    %v9267 = vunpack.c.h.b16 %v9133
    %v9268 = vunpack.c.l.b16 %v9134
    %v9269 = vunpack.c.h.b16 %v9134
    %v9270 = vunpack.c.l.b16 %v9135
    %v9271 = vunpack.c.h.b16 %v9135
    %v9272 = vunpack.c.l.b16 %v9136
    %v9273 = vunpack.c.h.b16 %v9136
    %v9274 = vunpack.c.l.b16 %v9137
    %v9275 = vunpack.c.h.b16 %v9137
    %v9276 = vunpack.c.l.b16 %v9138
    %v9277 = vunpack.c.h.b16 %v9138
    %v9278 = vunpack.c.l.b16 %v9139
    %v9279 = vunpack.c.h.b16 %v9139
    %v9280 = vunpack.c.l.b16 %v9140
    %v9281 = vunpack.c.h.b16 %v9140
    %v9282 = vunpack.c.l.b16 %v9141
    %v9283 = vunpack.c.h.b16 %v9141
    %v9284 = vunpack.c.l.b16 %v9142
    %v9285 = vunpack.c.h.b16 %v9142
    %v9286 = vunpack.c.l.b16 %v9143
    %v9287 = vunpack.c.h.b16 %v9143
    %v9288 = vunpack.c.l.b16 %v9144
    %v9289 = vunpack.c.h.b16 %v9144
    %v9290 = vunpack.c.l.b16 %v9145
    %v9291 = vunpack.c.h.b16 %v9145
    %v9292 = vunpack.c.l.b16 %v9146
    %v9293 = vunpack.c.h.b16 %v9146
    %v9294 = vunpack.c.l.b16 %v9147
    %v9295 = vunpack.c.h.b16 %v9147
    %v9296 = vunpack.c.l.b16 %v9148
    %v9297 = vunpack.c.h.b16 %v9148
    %v9298 = vunpack.c.l.b16 %v9149
    %v9299 = vunpack.c.h.b16 %v9149
    %v9300 = vunpack.c.l.b16 %v9150
    %v9301 = vunpack.c.h.b16 %v9150
    %v9302 = vunpack.c.l.b16 %v9151
    %v9303 = vunpack.c.h.b16 %v9151
    %v9304 = vunpack.c.l.b16 %v9152
    %v9305 = vunpack.c.h.b16 %v9152
    %v9306 = vunpack.c.l.b16 %v9153
    %v9307 = vunpack.c.h.b16 %v9153
    %v9308 = vunpack.c.l.b16 %v9154
    %v9309 = vunpack.c.h.b16 %v9154
    %v9310 = vunpack.c.l.b16 %v9155
    %v9311 = vunpack.c.h.b16 %v9155
    %v9312 = vunpack.c.l.b16 %v9156
    %v9313 = vunpack.c.h.b16 %v9156
    %v9314 = vunpack.c.l.b16 %v9157
    %v9315 = vunpack.c.h.b16 %v9157
    %v9316 = vunpack.c.l.b16 %v9158
    %v9317 = vunpack.c.h.b16 %v9158
    %v9318 = vunpack.c.l.b16 %v9159
    %v9319 = vunpack.c.h.b16 %v9159
    %v9320 = vunpack.c.l.b16 %v9160
    %v9321 = vunpack.c.h.b16 %v9160
    %v9322 = vunpack.c.l.b16 %v9161
    %v9323 = vunpack.c.h.b16 %v9161
    %v9324 = vpack.c.b16 %v9218, %v9216
    %v9325 = vpack.c.b16 %v9219, %v9217
    %v9326 = vpack.c.b16 %v9222, %v9220
    %v9327 = vpack.c.b16 %v9223, %v9221
    %v9328 = vpack.c.b16 %v9226, %v9224
    %v9329 = vpack.c.b16 %v9227, %v9225
    %v9330 = vpack.c.b16 %v9230, %v9228
    %v9331 = vpack.c.b16 %v9231, %v9229
    %v9332 = vpack.c.b16 %v9234, %v9232
    %v9333 = vpack.c.b16 %v9235, %v9233
    %v9334 = vpack.c.b16 %v9238, %v9236
    %v9335 = vpack.c.b16 %v9239, %v9237
    %v9336 = vpack.c.b16 %v9242, %v9240
    %v9337 = vpack.c.b16 %v9243, %v9241
    %v9338 = vpack.c.b16 %v9246, %v9244
    %v9339 = vpack.c.b16 %v9247, %v9245
    %v9340 = vpack.c.b16 %v9250, %v9248
    %v9341 = vpack.c.b16 %v9251, %v9249
    %v9342 = vpack.c.b16 %v9254, %v9252
    %v9343 = vpack.c.b16 %v9255, %v9253
    %v9344 = vpack.c.b16 %v9258, %v9256
    %v9345 = vpack.c.b16 %v9259, %v9257
    %v9346 = vpack.c.b16 %v9262, %v9260
    %v9347 = vpack.c.b16 %v9263, %v9261
    %v9348 = vpack.c.b16 %v9266, %v9264
    %v9349 = vpack.c.b16 %v9267, %v9265
    %v9350 = vpack.c.b16 %v9270, %v9268
    %v9351 = vpack.c.b16 %v9271, %v9269
    %v9352 = vpack.c.b16 %v9274, %v9272
    %v9353 = vpack.c.b16 %v9275, %v9273
    %v9354 = vpack.c.b16 %v9278, %v9276
    %v9355 = vpack.c.b16 %v9279, %v9277
    %v9356 = vpack.c.b16 %v9282, %v9280
    %v9357 = vpack.c.b16 %v9283, %v9281
    %v9358 = vpack.c.b16 %v9286, %v9284
    %v9359 = vpack.c.b16 %v9287, %v9285
    %v9360 = vpack.c.b16 %v9290, %v9288
    %v9361 = vpack.c.b16 %v9291, %v9289
    %v9362 = vpack.c.b16 %v9294, %v9292
    %v9363 = vpack.c.b16 %v9295, %v9293
    %v9364 = vpack.c.b16 %v9298, %v9296
    %v9365 = vpack.c.b16 %v9299, %v9297
    %v9366 = vpack.c.b16 %v9302, %v9300
    %v9367 = vpack.c.b16 %v9303, %v9301
    %v9368 = vpack.c.b16 %v9306, %v9304
    %v9369 = vpack.c.b16 %v9307, %v9305
    %v9370 = vpack.c.b16 %v9310, %v9308
    %v9371 = vpack.c.b16 %v9311, %v9309
    %v9372 = vpack.c.b16 %v9314, %v9312
    %v9373 = vpack.c.b16 %v9315, %v9313
    %v9374 = vpack.c.b16 %v9318, %v9316
    %v9375 = vpack.c.b16 %v9319, %v9317
    %v9376 = vpack.c.b16 %v9322, %v9320
    %v9377 = vpack.c.b16 %v9323, %v9321
    %v9433 = vsel %vm1501, %v9103, 0
    %v9436 = vsel %vm1501, %v9107, 0
    %9438 = vmatprep.subr.bf16.mxu0 %v9325
    %9439 = vmatpush1.bf16.msra.mxu0 %v9324
    %9440 = vmatprep.subr.bf16.mxu0 %v9327
    %9441 = vmatpush1.bf16.msra.mxu0 %v9326
    %9442 = vmatprep.subr.bf16.mxu0 %v9329
    %9443 = vmatpush1.bf16.msra.mxu0 %v9328
    %9444 = vmatprep.subr.bf16.mxu0 %v9331
    %9445 = vmatpush1.bf16.msra.mxu0 %v9330
    %9446 = vmatprep.subr.bf16.mxu0 %v9333
    %9447 = vmatpush1.bf16.msra.mxu0 %v9332
    %9448 = vmatprep.subr.bf16.mxu0 %v9335
    %9449 = vmatpush1.bf16.msra.mxu0 %v9334
    %9450 = vmatprep.subr.bf16.mxu0 %v9337
    %9451 = vmatpush1.bf16.msra.mxu0 %v9336
    %9452 = vmatprep.subr.bf16.mxu0 %v9339
    %9453 = vmatpush1.bf16.msra.mxu0 %v9338
    %9454 = vmatprep.subr.bf16.mxu0 %v9341
    %9455 = vmatpush1.bf16.msra.mxu0 %v9340
    %9456 = vmatprep.subr.bf16.mxu0 %v9343
    %9457 = vmatpush1.bf16.msra.mxu0 %v9342
    %9458 = vmatprep.subr.bf16.mxu0 %v9345
    %9459 = vmatpush1.bf16.msra.mxu0 %v9344
    %9460 = vmatprep.subr.bf16.mxu0 %v9347
    %9461 = vmatpush1.bf16.msra.mxu0 %v9346
    %9462 = vmatprep.subr.bf16.mxu0 %v9349
    %9463 = vmatpush1.bf16.msra.mxu0 %v9348
    %9464 = vmatprep.subr.bf16.mxu0 %v9351
    %9465 = vmatpush1.bf16.msra.mxu0 %v9350
    %9466 = vmatprep.subr.bf16.mxu0 %v9353
    %9467 = vmatpush1.bf16.msra.mxu0 %v9352
    %9468 = vmatprep.subr.bf16.mxu0 %v9355
    %9469 = vmatpush1.bf16.msra.mxu0 %v9354
    %9470 = vmatprep.mubr.bf16.mxu0 %v9101
    %9471 = vmatmul.mubr.bf16.gmra.mrb[0].mxu0 %v9100
    %v9472 = vpop.f32.mrb[0].mxu0
    %v9473 = vadd.f32 0.0, %v9472
    %v9474 = vpop.f32.mrb[0].mxu0
    %v9475 = vadd.f32 0.0, %v9474
    %v9476 = vpop.f32.mrb[0].mxu0
    %v9477 = vadd.f32 0.0, %v9476
    %v9478 = vpop.f32.mrb[0].mxu0
    %v9479 = vadd.f32 0.0, %v9478
    %9480 = vmatprep.mubr.bf16.mxu0 %v9105
    %9481 = vmatmul.mubr.bf16.gmra.mrb[0].mxu0 %v9104
    %v9482 = vpop.f32.mrb[0].mxu0
    %v9483 = vadd.f32 0.0, %v9482
    %v9484 = vpop.f32.mrb[0].mxu0
    %v9485 = vadd.f32 0.0, %v9484
    %v9486 = vpop.f32.mrb[0].mxu0
    %v9487 = vpop.f32.mrb[0].mxu0
    %9488 = vdwg.mxu0
    %9489 = vmatprep.subr.bf16.mxu0 %v9357
    %9490 = vmatpush1.bf16.msra.mxu0 %v9356
    %9491 = vmatprep.subr.bf16.mxu0 %v9359
    %9492 = vmatpush1.bf16.msra.mxu0 %v9358
    %9493 = vmatprep.subr.bf16.mxu0 %v9361
    %9494 = vmatpush1.bf16.msra.mxu0 %v9360
    %9495 = vmatprep.subr.bf16.mxu0 %v9363
    %9496 = vmatpush1.bf16.msra.mxu0 %v9362
    %9497 = vmatprep.subr.bf16.mxu0 %v9365
    %9498 = vmatpush1.bf16.msra.mxu0 %v9364
    %9499 = vmatprep.subr.bf16.mxu0 %v9367
    %9500 = vmatpush1.bf16.msra.mxu0 %v9366
    %9501 = vmatprep.subr.bf16.mxu0 %v9369
    %9502 = vmatpush1.bf16.msra.mxu0 %v9368
    %9503 = vmatprep.subr.bf16.mxu0 %v9371
    %9504 = vmatpush1.bf16.msra.mxu0 %v9370
    %9505 = vmatprep.subr.bf16.mxu0 %v9373
    %9506 = vmatpush1.bf16.msra.mxu0 %v9372
    %9507 = vmatprep.subr.bf16.mxu0 %v9375
    %9508 = vmatpush1.bf16.msra.mxu0 %v9374
    %9509 = vmatprep.subr.bf16.mxu0 %v9377
    %9510 = vmatpush1.bf16.msra.mxu0 %v9376
    %9511 = vmatprep.subr.bf16.mxu0 0
    %9512 = vmatpush1.bf16.msra.mxu0 0
    %9513 = vmatprep.subr.bf16.mxu0 0
    %9514 = vmatpush1.bf16.msra.mxu0 0
    %9515 = vmatprep.subr.bf16.mxu0 0
    %9516 = vmatpush1.bf16.msra.mxu0 0
    %9517 = vmatprep.subr.bf16.mxu0 0
    %9518 = vmatpush1.bf16.msra.mxu0 0
    %9519 = vmatprep.subr.bf16.mxu0 0
    %9520 = vmatpush1.bf16.msra.mxu0 0
    %9521 = vmatprep.mubr.bf16.mxu0 %v9433
    %9522 = vmatmul.mubr.bf16.gmra.mrb[0].mxu0 %v9102
    %v9523 = vpop.f32.mrb[0].mxu0
    %v9524 = vadd.f32 %v9473, %v9523
    %v9525 = vpop.f32.mrb[0].mxu0
    %v9526 = vadd.f32 %v9475, %v9525
    %v9527 = vpop.f32.mrb[0].mxu0
    %v9528 = vadd.f32 %v9477, %v9527
    %v9529 = vpop.f32.mrb[0].mxu0
    %v9530 = vadd.f32 %v9479, %v9529
    %9531 = vmatprep.mubr.bf16.mxu0 %v9436
    %9532 = vmatmul.mubr.bf16.gmra.mrb[0].mxu0 %v9106
    %v9533 = vpop.f32.mrb[0].mxu0
    %v9534 = vadd.f32 %v9483, %v9533
    %v9535 = vpop.f32.mrb[0].mxu0
    %v9536 = vadd.f32 %v9485, %v9535
    %v9537 = vpop.f32.mrb[0].mxu0
    %v9538 = vpop.f32.mrb[0].mxu0
    %9539 = vdwg.mxu0
    %v9540 = vld [vmem:[%s15] sm:$0xff]
    %v9541 = vld [vmem:[%s15 + $0x8] sm:$0xff]
    %v9542 = vld [vmem:[%s15 + $0x10] sm:$0xf]
    %v9543 = vld [vmem:[%s15 + $0x18] sm:$0xf]
    %v9544 = vadd.f32 %v9524, %v9528
    %v9545 = vadd.f32 %v9544, %v9534
    %v9546 = vrot.slane %v9545, 4
    %v9547 = vadd.f32 %v9545, %v9546
    %v9548 = vrot.slane %v9547, 2
    %v9549 = vadd.f32 %v9547, %v9548
    %v9550 = vrot.slane %v9549, 1
    %v9551 = vadd.f32 %v9549, %v9550
    %v9552 = vsel %vm443, %v9526, 0.0
    %v9553 = vsel %vm443, %v9530, 0.0
    %v9554 = vadd.f32 %v9552, %v9553
    %v9555 = vsel %vm443, %v9536, 0.0
    %v9556 = vadd.f32 %v9554, %v9555
    %v9557 = vrot.slane %v9556, 4
    %v9558 = vadd.f32 %v9556, %v9557
    %v9559 = vrot.slane %v9558, 2
    %v9560 = vadd.f32 %v9558, %v9559
    %v9561 = vrot.slane %v9560, 1
    %v9562 = vadd.f32 %v9560, %v9561
    %v9563 = vrcp.pop 24.0
    %v9564 = vmul.f32 %v9551, %v9563
    %v9565 = vmul.f32 %v9562, %v9563
    %v9566 = vmul.f32 %v9524, %v9524
    %v9567 = vmul.f32 %v9526, %v9526
    %v9568 = vmul.f32 %v9528, %v9528
    %v9569 = vmul.f32 %v9530, %v9530
    %v9570 = vmul.f32 %v9534, %v9534
    %v9571 = vmul.f32 %v9536, %v9536
    %v9572 = vadd.f32 %v9566, %v9568
    %v9573 = vadd.f32 %v9572, %v9570
    %v9574 = vrot.slane %v9573, 4
    %v9575 = vadd.f32 %v9573, %v9574
    %v9576 = vrot.slane %v9575, 2
    %v9577 = vadd.f32 %v9575, %v9576
    %v9578 = vrot.slane %v9577, 1
    %v9579 = vadd.f32 %v9577, %v9578
    %v9580 = vsel %vm443, %v9567, 0.0
    %v9581 = vsel %vm443, %v9569, 0.0
    %v9582 = vadd.f32 %v9580, %v9581
    %v9583 = vsel %vm443, %v9571, 0.0
    %v9584 = vadd.f32 %v9582, %v9583
    %v9585 = vrot.slane %v9584, 4
    %v9586 = vadd.f32 %v9584, %v9585
    %v9587 = vrot.slane %v9586, 2
    %v9588 = vadd.f32 %v9586, %v9587
    %v9589 = vrot.slane %v9588, 1
    %v9590 = vadd.f32 %v9588, %v9589
    %v9591 = vmul.f32 %v9579, %v9563
    %v9592 = vmul.f32 %v9590, %v9563
    %v9593 = vsel %vm2330, %v9564, %v9591
    %v9594 = vsel %vm2330, %v9565, %v9592
    %v9596 = vsel %vm443, %v9594, 0
    %v9599 = vsel %vm443, %v9541, 0
    %v9602 = vsel %vm443, %v9543, 0
    %9604 = vmatprep.subr.mxu0 %v9599
    %9605 = vmatpush1.xpose.msra.mxu0 %v9540
    %9606 = vmatprep.subr.mxu0 %v9602
    %9607 = vmatpush1.xpose.msra.mxu0 %v9542
    %9608 = vmatprep.subr.mxu0 0.0
    %9609 = vmatpush1.xpose.msra.mxu0 0.0
    %9610 = vmatprep.subr.mxu0 0.0
    %9611 = vmatpush1.xpose.msra.mxu0 0.0
    %9612 = vmatprep.subr.mxu0 0.0
    %9613 = vmatpush1.xpose.msra.mxu0 0.0
    %9614 = vmatprep.subr.mxu0 0.0
    %9615 = vmatpush1.xpose.msra.mxu0 0.0
    %9616 = vmatprep.subr.mxu0 0.0
    %9617 = vmatpush1.xpose.msra.mxu0 0.0
    %9618 = vmatprep.subr.mxu0 0.0
    %9619 = vmatpush1.xpose.msra.mxu0 0.0
    %9620 = vmatprep.subr.mxu0 0.0
    %9621 = vmatpush1.xpose.msra.mxu0 0.0
    %9622 = vmatprep.subr.mxu0 0.0
    %9623 = vmatpush1.xpose.msra.mxu0 0.0
    %9624 = vmatprep.subr.mxu0 0.0
    %9625 = vmatpush1.xpose.msra.mxu0 0.0
    %9626 = vmatprep.subr.mxu0 0.0
    %9627 = vmatpush1.xpose.msra.mxu0 0.0
    %9628 = vmatprep.subr.mxu0 0.0
    %9629 = vmatpush1.xpose.msra.mxu0 0.0
    %9630 = vmatprep.subr.mxu0 0.0
    %9631 = vmatpush1.xpose.msra.mxu0 0.0
    %9632 = vmatprep.subr.mxu0 0.0
    %9633 = vmatpush1.xpose.msra.mxu0 0.0
    %9634 = vmatprep.subr.mxu0 0.0
    %9635 = vmatpush1.xpose.msra.mxu0 0.0
    %9636 = vmatprep.subr.mxu0 0.0
    %9637 = vmatpush1.xpose.msra.mxu0 0.0
    %9638 = vmatprep.subr.mxu0 0.0
    %9639 = vmatpush1.xpose.msra.mxu0 0.0
    %9640 = vmatprep.subr.mxu0 0.0
    %9641 = vmatpush1.xpose.msra.mxu0 0.0
    %9642 = vmatprep.subr.mxu0 0.0
    %9643 = vmatpush1.xpose.msra.mxu0 0.0
    %9644 = vmatprep.subr.mxu0 0.0
    %9645 = vmatpush1.xpose.msra.mxu0 0.0
    %9646 = vmatprep.subr.mxu0 0.0
    %9647 = vmatpush1.xpose.msra.mxu0 0.0
    %9648 = vmatprep.subr.mxu0 0.0
    %9649 = vmatpush1.xpose.msra.mxu0 0.0
    %9650 = vmatprep.subr.mxu0 0.0
    %9651 = vmatpush1.xpose.msra.mxu0 0.0
    %9652 = vmatprep.subr.mxu0 0.0
    %9653 = vmatpush1.xpose.msra.mxu0 0.0
    %9654 = vmatprep.subr.mxu0 0.0
    %9655 = vmatpush1.xpose.msra.mxu0 0.0
    %9656 = vmatprep.subr.mxu0 0.0
    %9657 = vmatpush1.xpose.msra.mxu0 0.0
    %9658 = vmatprep.subr.mxu0 0.0
    %9659 = vmatpush1.xpose.msra.mxu0 0.0
    %9660 = vmatprep.subr.mxu0 0.0
    %9661 = vmatpush1.xpose.msra.mxu0 0.0
    %9662 = vmatprep.subr.mxu0 0.0
    %9663 = vmatpush1.xpose.msra.mxu0 0.0
    %9664 = vmatprep.subr.mxu0 0.0
    %9665 = vmatpush1.xpose.msra.mxu0 0.0
    %9666 = vmatprep.subr.mxu0 0.0
    %9667 = vmatpush1.xpose.msra.mxu0 0.0
    %9668 = vmatprep.mubr.f32.mxu0 %v9596
    %9669 = vmatmul.mubr.f32.gmra.mrb[0].mxu0 %v9593
    %v9670 = vpop.f32.mrb[0].mxu0
    %v9671 = vadd.f32 0.0, %v9670
    %v9672 = vpop.f32.mrb[0].mxu0
    %9673 = vdwg.mxu0
    %v9674 = vmul.f32 %v9671, 0.083333336
    %v9675 = vmul.f32 %v9674, %v9674
    %v9677 = vrot.slane %v9675, 7
    %v9679 = vsub.f32 %v9674, %v9677
    %v9680 = vmax.f32 %v9679, 0.0
    %v9681 = vld [vmem:[%s16] sm:$0x1]
    %v9682 = vadd.f32 %v9680, 1e-05
    %v9683 = vrsqrt.pop %v9682
    %v9686 = vunpack.c.l.s4 1966171168
    %v9687 = vunpack.c.0.s8 %v9686
    %v9688 = vlaneseq
    %v9689 = vshrl.u32 %v9688, 7
    %v9690 = vsub.s32 %v9687, %v9689
    %v9691 = vrot.slane %v9683, %v9690
    %v9692 = vcombine.high %v9691, %v9691
    %v9694 = vunpack.c.l.s4 1966171168
    %v9695 = vunpack.c.0.s8 %v9694
    %v9696 = vlaneseq
    %v9697 = vshrl.u32 %v9696, 7
    %v9698 = vsub.s32 %v9695, %v9697
    %v9699 = vrot.slane %v9692, %v9698
    %v9701 = vmul.f32 %v9681, %v9699
    %s9702 = scalar_lea.vmem %s16, 1
    %v9703 = vld [vmem:[%s9702] sm:$0x1]
    %v9704 = vmul.f32 %v9674, %v9701
    %v9705 = vsub.f32 %v9703, %v9704
    %v9707 = vlaneseq
    %v9708 = vshrl.u32 %v9707, 7
    %v9709 = vsub.s32 0, %v9708
    %v9710 = vrot.slane %v9705, %v9709
    %v9712 = vsel %vm2330, %v9701, %v9710
    %v9714 = vsel %vm2594, %v9712, 0
    %v9717 = vsel %vm2598, %v9542, 0
    %v9719 = vsel %vm2598, %v9543, 0
    %9721 = vmatprep.subr.mxu0 %v9541
    %9722 = vmatpush1.msra.mxu0 %v9540
    %9723 = vmatprep.subr.mxu0 %v9719
    %9724 = vmatpush1.msra.mxu0 %v9717
    %9725 = vmatprep.subr.mxu0 0.0
    %9726 = vmatpush1.msra.mxu0 0.0
    %9727 = vmatprep.subr.mxu0 0.0
    %9728 = vmatpush1.msra.mxu0 0.0
    %9729 = vmatprep.subr.mxu0 0.0
    %9730 = vmatpush1.msra.mxu0 0.0
    %9731 = vmatprep.subr.mxu0 0.0
    %9732 = vmatpush1.msra.mxu0 0.0
    %9733 = vmatprep.subr.mxu0 0.0
    %9734 = vmatpush1.msra.mxu0 0.0
    %9735 = vmatprep.subr.mxu0 0.0
    %9736 = vmatpush1.msra.mxu0 0.0
    %9737 = vmatprep.subr.mxu0 0.0
    %9738 = vmatpush1.msra.mxu0 0.0
    %9739 = vmatprep.subr.mxu0 0.0
    %9740 = vmatpush1.msra.mxu0 0.0
    %9741 = vmatprep.subr.mxu0 0.0
    %9742 = vmatpush1.msra.mxu0 0.0
    %9743 = vmatprep.subr.mxu0 0.0
    %9744 = vmatpush1.msra.mxu0 0.0
    %9745 = vmatprep.subr.mxu0 0.0
    %9746 = vmatpush1.msra.mxu0 0.0
    %9747 = vmatprep.subr.mxu0 0.0
    %9748 = vmatpush1.msra.mxu0 0.0
    %9749 = vmatprep.subr.mxu0 0.0
    %9750 = vmatpush1.msra.mxu0 0.0
    %9751 = vmatprep.subr.mxu0 0.0
    %9752 = vmatpush1.msra.mxu0 0.0
    %9753 = vmatprep.subr.mxu0 0.0
    %9754 = vmatpush1.msra.mxu0 0.0
    %9755 = vmatprep.subr.mxu0 0.0
    %9756 = vmatpush1.msra.mxu0 0.0
    %9757 = vmatprep.subr.mxu0 0.0
    %9758 = vmatpush1.msra.mxu0 0.0
    %9759 = vmatprep.subr.mxu0 0.0
    %9760 = vmatpush1.msra.mxu0 0.0
    %9761 = vmatprep.subr.mxu0 0.0
    %9762 = vmatpush1.msra.mxu0 0.0
    %9763 = vmatprep.subr.mxu0 0.0
    %9764 = vmatpush1.msra.mxu0 0.0
    %9765 = vmatprep.subr.mxu0 0.0
    %9766 = vmatpush1.msra.mxu0 0.0
    %9767 = vmatprep.subr.mxu0 0.0
    %9768 = vmatpush1.msra.mxu0 0.0
    %9769 = vmatprep.subr.mxu0 0.0
    %9770 = vmatpush1.msra.mxu0 0.0
    %9771 = vmatprep.subr.mxu0 0.0
    %9772 = vmatpush1.msra.mxu0 0.0
    %9773 = vmatprep.subr.mxu0 0.0
    %9774 = vmatpush1.msra.mxu0 0.0
    %9775 = vmatprep.subr.mxu0 0.0
    %9776 = vmatpush1.msra.mxu0 0.0
    %9777 = vmatprep.subr.mxu0 0.0
    %9778 = vmatpush1.msra.mxu0 0.0
    %9779 = vmatprep.subr.mxu0 0.0
    %9780 = vmatpush1.msra.mxu0 0.0
    %9781 = vmatprep.subr.mxu0 0.0
    %9782 = vmatpush1.msra.mxu0 0.0
    %9783 = vmatprep.subr.mxu0 0.0
    %9784 = vmatpush1.msra.mxu0 0.0
    %9785 = vmatprep.mubr.f32.mxu0 0.0
    %9786 = vmatmul.mubr.f32.gmra.mrb[0].mxu0 %v9714
    %v9787 = vpop.f32.mrb[0].mxu0
    %v9788 = vadd.f32 0.0, %v9787
    %v9789 = vpop.f32.mrb[0].mxu0
    %v9790 = vadd.f32 0.0, %v9789
    %9791 = vdwg.mxu0
    %v9792 = vlaneseq
    %v9793 = vshrl.u32 %v9792, 7
    %v9794 = vsub.s32 0, %v9793
    %v9795 = vrot.slane %v9788, %v9794
    %v9796 = vlaneseq
    %v9797 = vshrl.u32 %v9796, 7
    %v9798 = vsub.s32 0, %v9797
    %v9799 = vrot.slane %v9790, %v9798
    %v9800 = vmul.f32 %v9524, %v9795
    %v9801 = vmul.f32 %v9526, %v9799
    %v9802 = vmul.f32 %v9528, %v9795
    %v9803 = vmul.f32 %v9530, %v9799
    %v9804 = vmul.f32 %v9534, %v9795
    %v9805 = vmul.f32 %v9536, %v9799
    %v9806 = vlaneseq
    %v9807 = vshrl.u32 %v9806, 7
    %v9808 = vsub.s32 1, %v9807
    %v9809 = vrot.slane %v9788, %v9808
    %v9810 = vlaneseq
    %v9811 = vshrl.u32 %v9810, 7
    %v9812 = vsub.s32 1, %v9811
    %v9813 = vrot.slane %v9790, %v9812
    %v9814 = vadd.f32 %v9800, %v9809
    %v9815 = vadd.f32 %v9801, %v9813
    %v9816 = vadd.f32 %v9802, %v9809
    %v9817 = vadd.f32 %v9803, %v9813
    %v9818 = vadd.f32 %v9804, %v9809
    %v9819 = vadd.f32 %v9805, %v9813
    %v9820 = vmax.f32 %v9814, 0.0
    %v9821 = vmax.f32 %v9815, 0.0
    %v9822 = vmax.f32 %v9816, 0.0
    %v9823 = vmax.f32 %v9817, 0.0
    %v9824 = vmax.f32 %v9818, 0.0
    %v9825 = vmax.f32 %v9819, 0.0
    %v9826 = vrot.slane %v9820, 7
    %v9827 = vrot.slane %v9821, 7
    %v9828 = vrot.slane %v9822, 7
    %v9829 = vrot.slane %v9823, 7
    %v9830 = vrot.slane %v9824, 7
    %v9831 = vrot.slane %v9825, 7
    %v9832 = vsel %vm141, %v9828, %v9830
    %v9833 = vsel %vm141, %v9829, %v9831
    %v9834 = vsel %vm141, %v9826, %v9828
    %v9835 = vsel %vm141, %v9827, %v9829
    %v9836 = vsel %vm141, %v9830, %v9826
    %v9837 = vsel %vm141, %v9831, %v9827
    %v9838 = vmul.f32 %v9836, %v8992
    %v9839 = vmul.f32 %v9837, %v8992
    %v9840 = vmul.f32 %v9834, %v8997
    %v9841 = vmul.f32 %v9835, %v8997
    %v9842 = vmul.f32 %v9832, %v9002
    %v9843 = vmul.f32 %v9833, %v9002
    %v9844 = vrot.slane %v9820, 1
    %v9845 = vrot.slane %v9821, 1
    %v9846 = vrot.slane %v9822, 1
    %v9847 = vrot.slane %v9823, 1
    %v9848 = vrot.slane %v9824, 1
    %v9849 = vrot.slane %v9825, 1
    %v9850 = vsel %vm274, %v9846, %v9848
    %v9851 = vsel %vm274, %v9847, %v9849
    %v9852 = vsel %vm274, %v9844, %v9846
    %v9853 = vsel %vm274, %v9845, %v9847
    %v9854 = vsel %vm274, %v9848, %v9844
    %v9855 = vsel %vm274, %v9849, %v9845
    %v9856 = vmul.f32 %v9852, %v9024
    %v9857 = vmul.f32 %v9853, %v9024
    %v9858 = vmul.f32 %v9850, %v9028
    %v9859 = vmul.f32 %v9851, %v9028
    %v9860 = vmul.f32 %v9854, %v9032
    %v9861 = vmul.f32 %v9855, %v9032
    %9868 = vrot.lane.b32.xlu0 %v9820, 16
    %v9869 = vpop.permute.xlu0 %9868
    %9870 = vrot.lane.b32.xlu0 %v9821, 16
    %v9871 = vpop.permute.xlu0 %9870
    %9872 = vrot.lane.b32.xlu0 %v9822, 16
    %v9873 = vpop.permute.xlu0 %9872
    %9874 = vrot.lane.b32.xlu0 %v9823, 16
    %v9875 = vpop.permute.xlu0 %9874
    %9876 = vrot.lane.b32.xlu0 %v9824, 16
    %v9877 = vpop.permute.xlu0 %9876
    %9878 = vrot.lane.b32.xlu0 %v9825, 16
    %v9879 = vpop.permute.xlu0 %9878
    %v9880 = vsel %vm443, %v9869, %v9871
    %v9881 = vsel %vm443, %v9873, %v9875
    %v9882 = vsel %vm443, %v9877, %v9879
    %9895 = vrot.lane.b32.xlu0 %v9856, 32
    %v9896 = vpop.permute.xlu0 %9895
    %9897 = vrot.lane.b32.xlu0 %v9857, 32
    %v9898 = vpop.permute.xlu0 %9897
    %9899 = vrot.lane.b32.xlu0 %v9858, 32
    %v9900 = vpop.permute.xlu0 %9899
    %9901 = vrot.lane.b32.xlu0 %v9859, 32
    %v9902 = vpop.permute.xlu0 %9901
    %9903 = vrot.lane.b32.xlu0 %v9860, 32
    %v9904 = vpop.permute.xlu0 %9903
    %9905 = vrot.lane.b32.xlu0 %v9861, 32
    %v9906 = vpop.permute.xlu0 %9905
    %v9907 = vsel %vm552, %v9896, %v9898
    %v9908 = vsel %vm552, %v9900, %v9902
    %v9909 = vsel %vm552, %v9904, %v9906
    %v9916 = vsel %vm443, %v9839, %v9869
    %v9917 = vsel %vm443, %v9841, %v9873
    %v9918 = vsel %vm443, %v9843, %v9877
    %v9919 = vsel %vm552, %v9880, %v9896
    %v9920 = vsel %vm552, %v9881, %v9900
    %v9921 = vsel %vm552, %v9882, %v9904
    %v9922 = vpack.c.bf16 %v9840, %v9838
    %v9923 = vpack.c.bf16 %v9917, %v9916
    %v9924 = vpack.c.bf16 %v9920, %v9919
    %v9925 = vpack.c.bf16 %v9908, %v9907
    %v9926 = vpack.c.bf16 %v9842, %v9842
    %v9927 = vpack.c.bf16 %v9918, %v9918
    %v9928 = vpack.c.bf16 %v9921, %v9921
    %v9929 = vpack.c.bf16 %v9909, %v9909
    %v9930 = vld [vmem:[%s17] sm:$0xff]
    %v9931 = vld [vmem:[%s17 + $0x8] sm:$0xff]
    %v9932 = vld [vmem:[%s17 + $0x10] sm:$0xff]
    %v9933 = vld [vmem:[%s17 + $0x18] sm:$0xff]
    %v9934 = vld [vmem:[%s17 + $0x20] sm:$0xff]
    %v9935 = vld [vmem:[%s17 + $0x28] sm:$0xff]
    %v9936 = vld [vmem:[%s17 + $0x30] sm:$0xff]
    %v9937 = vld [vmem:[%s17 + $0x38] sm:$0xff]
    %v9938 = vld [vmem:[%s17 + $0x40] sm:$0xff]
    %v9939 = vld [vmem:[%s17 + $0x48] sm:$0xff]
    %v9940 = vld [vmem:[%s17 + $0x50] sm:$0xff]
    %v9941 = vld [vmem:[%s17 + $0x58] sm:$0xff]
    %v9942 = vld [vmem:[%s17 + $0x60] sm:$0xff]
    %v9943 = vld [vmem:[%s17 + $0x68] sm:$0xff]
    %v9944 = vld [vmem:[%s17 + $0x70] sm:$0xff]
    %v9945 = vld [vmem:[%s17 + $0x78] sm:$0xff]
    %v9946 = vld [vmem:[%s17 + $0x80] sm:$0xff]
    %v9947 = vld [vmem:[%s17 + $0x88] sm:$0xff]
    %v9948 = vld [vmem:[%s17 + $0x90] sm:$0xff]
    %v9949 = vld [vmem:[%s17 + $0x98] sm:$0xff]
    %v9950 = vld [vmem:[%s17 + $0xa0] sm:$0xff]
    %v9951 = vld [vmem:[%s17 + $0xa8] sm:$0xff]
    %v9952 = vld [vmem:[%s17 + $0xb0] sm:$0xff]
    %v9953 = vld [vmem:[%s17 + $0xb8] sm:$0xff]
    %v9954 = vld [vmem:[%s17 + $0xc0] sm:$0xff]
    %v9955 = vld [vmem:[%s17 + $0xc8] sm:$0xff]
    %v9956 = vld [vmem:[%s17 + $0xd0] sm:$0xff]
    %v9957 = vld [vmem:[%s17 + $0xd8] sm:$0xff]
    %v9958 = vld [vmem:[%s17 + $0xe0] sm:$0xff]
    %v9959 = vld [vmem:[%s17 + $0xe8] sm:$0xff]
    %v9960 = vld [vmem:[%s17 + $0xf0] sm:$0xff]
    %v9961 = vld [vmem:[%s17 + $0xf8] sm:$0xff]
    %v9962 = vld [vmem:[%s17 + $0x100] sm:$0xff]
    %v9963 = vld [vmem:[%s17 + $0x108] sm:$0xff]
    %v9964 = vld [vmem:[%s17 + $0x110] sm:$0xff]
    %v9965 = vld [vmem:[%s17 + $0x118] sm:$0xff]
    %v9966 = vld [vmem:[%s17 + $0x120] sm:$0xff]
    %v9967 = vld [vmem:[%s17 + $0x128] sm:$0xff]
    %v9968 = vld [vmem:[%s17 + $0x130] sm:$0xff]
    %v9969 = vld [vmem:[%s17 + $0x138] sm:$0xff]
    %v9970 = vld [vmem:[%s17 + $0x140] sm:$0xff]
    %v9971 = vld [vmem:[%s17 + $0x148] sm:$0xff]
    %v9972 = vld [vmem:[%s17 + $0x150] sm:$0xff]
    %v9973 = vld [vmem:[%s17 + $0x158] sm:$0xff]
    %v9974 = vld [vmem:[%s17 + $0x160] sm:$0xff]
    %v9975 = vld [vmem:[%s17 + $0x168] sm:$0xff]
    %v9976 = vld [vmem:[%s17 + $0x170] sm:$0xff]
    %v9977 = vld [vmem:[%s17 + $0x178] sm:$0xff]
    %v9978 = vld [vmem:[%s17 + $0x180] sm:$0xff]
    %v9979 = vld [vmem:[%s17 + $0x188] sm:$0xff]
    %v9980 = vld [vmem:[%s17 + $0x190] sm:$0xff]
    %v9981 = vld [vmem:[%s17 + $0x198] sm:$0xff]
    %v9982 = vld [vmem:[%s17 + $0x1a0] sm:$0xff]
    %v9983 = vld [vmem:[%s17 + $0x1a8] sm:$0xff]
    %v10038 = vunpack.c.l.b16 %v9930
    %v10039 = vunpack.c.h.b16 %v9930
    %v10040 = vunpack.c.l.b16 %v9931
    %v10041 = vunpack.c.h.b16 %v9931
    %v10042 = vunpack.c.l.b16 %v9932
    %v10043 = vunpack.c.h.b16 %v9932
    %v10044 = vunpack.c.l.b16 %v9933
    %v10045 = vunpack.c.h.b16 %v9933
    %v10046 = vunpack.c.l.b16 %v9934
    %v10047 = vunpack.c.h.b16 %v9934
    %v10048 = vunpack.c.l.b16 %v9935
    %v10049 = vunpack.c.h.b16 %v9935
    %v10050 = vunpack.c.l.b16 %v9936
    %v10051 = vunpack.c.h.b16 %v9936
    %v10052 = vunpack.c.l.b16 %v9937
    %v10053 = vunpack.c.h.b16 %v9937
    %v10054 = vunpack.c.l.b16 %v9938
    %v10055 = vunpack.c.h.b16 %v9938
    %v10056 = vunpack.c.l.b16 %v9939
    %v10057 = vunpack.c.h.b16 %v9939
    %v10058 = vunpack.c.l.b16 %v9940
    %v10059 = vunpack.c.h.b16 %v9940
    %v10060 = vunpack.c.l.b16 %v9941
    %v10061 = vunpack.c.h.b16 %v9941
    %v10062 = vunpack.c.l.b16 %v9942
    %v10063 = vunpack.c.h.b16 %v9942
    %v10064 = vunpack.c.l.b16 %v9943
    %v10065 = vunpack.c.h.b16 %v9943
    %v10066 = vunpack.c.l.b16 %v9944
    %v10067 = vunpack.c.h.b16 %v9944
    %v10068 = vunpack.c.l.b16 %v9945
    %v10069 = vunpack.c.h.b16 %v9945
    %v10070 = vunpack.c.l.b16 %v9946
    %v10071 = vunpack.c.h.b16 %v9946
    %v10072 = vunpack.c.l.b16 %v9947
    %v10073 = vunpack.c.h.b16 %v9947
    %v10074 = vunpack.c.l.b16 %v9948
    %v10075 = vunpack.c.h.b16 %v9948
    %v10076 = vunpack.c.l.b16 %v9949
    %v10077 = vunpack.c.h.b16 %v9949
    %v10078 = vunpack.c.l.b16 %v9950
    %v10079 = vunpack.c.h.b16 %v9950
    %v10080 = vunpack.c.l.b16 %v9951
    %v10081 = vunpack.c.h.b16 %v9951
    %v10082 = vunpack.c.l.b16 %v9952
    %v10083 = vunpack.c.h.b16 %v9952
    %v10084 = vunpack.c.l.b16 %v9953
    %v10085 = vunpack.c.h.b16 %v9953
    %v10086 = vunpack.c.l.b16 %v9954
    %v10087 = vunpack.c.h.b16 %v9954
    %v10088 = vunpack.c.l.b16 %v9955
    %v10089 = vunpack.c.h.b16 %v9955
    %v10090 = vunpack.c.l.b16 %v9956
    %v10091 = vunpack.c.h.b16 %v9956
    %v10092 = vunpack.c.l.b16 %v9957
    %v10093 = vunpack.c.h.b16 %v9957
    %v10094 = vunpack.c.l.b16 %v9958
    %v10095 = vunpack.c.h.b16 %v9958
    %v10096 = vunpack.c.l.b16 %v9959
    %v10097 = vunpack.c.h.b16 %v9959
    %v10098 = vunpack.c.l.b16 %v9960
    %v10099 = vunpack.c.h.b16 %v9960
    %v10100 = vunpack.c.l.b16 %v9961
    %v10101 = vunpack.c.h.b16 %v9961
    %v10102 = vunpack.c.l.b16 %v9962
    %v10103 = vunpack.c.h.b16 %v9962
    %v10104 = vunpack.c.l.b16 %v9963
    %v10105 = vunpack.c.h.b16 %v9963
    %v10106 = vunpack.c.l.b16 %v9964
    %v10107 = vunpack.c.h.b16 %v9964
    %v10108 = vunpack.c.l.b16 %v9965
    %v10109 = vunpack.c.h.b16 %v9965
    %v10110 = vunpack.c.l.b16 %v9966
    %v10111 = vunpack.c.h.b16 %v9966
    %v10112 = vunpack.c.l.b16 %v9967
    %v10113 = vunpack.c.h.b16 %v9967
    %v10114 = vunpack.c.l.b16 %v9968
    %v10115 = vunpack.c.h.b16 %v9968
    %v10116 = vunpack.c.l.b16 %v9969
    %v10117 = vunpack.c.h.b16 %v9969
    %v10118 = vunpack.c.l.b16 %v9970
    %v10119 = vunpack.c.h.b16 %v9970
    %v10120 = vunpack.c.l.b16 %v9971
    %v10121 = vunpack.c.h.b16 %v9971
    %v10122 = vunpack.c.l.b16 %v9972
    %v10123 = vunpack.c.h.b16 %v9972
    %v10124 = vunpack.c.l.b16 %v9973
    %v10125 = vunpack.c.h.b16 %v9973
    %v10126 = vunpack.c.l.b16 %v9974
    %v10127 = vunpack.c.h.b16 %v9974
    %v10128 = vunpack.c.l.b16 %v9975
    %v10129 = vunpack.c.h.b16 %v9975
    %v10130 = vunpack.c.l.b16 %v9976
    %v10131 = vunpack.c.h.b16 %v9976
    %v10132 = vunpack.c.l.b16 %v9977
    %v10133 = vunpack.c.h.b16 %v9977
    %v10134 = vunpack.c.l.b16 %v9978
    %v10135 = vunpack.c.h.b16 %v9978
    %v10136 = vunpack.c.l.b16 %v9979
    %v10137 = vunpack.c.h.b16 %v9979
    %v10138 = vunpack.c.l.b16 %v9980
    %v10139 = vunpack.c.h.b16 %v9980
    %v10140 = vunpack.c.l.b16 %v9981
    %v10141 = vunpack.c.h.b16 %v9981
    %v10142 = vunpack.c.l.b16 %v9982
    %v10143 = vunpack.c.h.b16 %v9982
    %v10144 = vunpack.c.l.b16 %v9983
    %v10145 = vunpack.c.h.b16 %v9983
    %v10146 = vpack.c.b16 %v10040, %v10038
    %v10147 = vpack.c.b16 %v10041, %v10039
    %v10148 = vpack.c.b16 %v10044, %v10042
    %v10149 = vpack.c.b16 %v10045, %v10043
    %v10150 = vpack.c.b16 %v10048, %v10046
    %v10151 = vpack.c.b16 %v10049, %v10047
    %v10152 = vpack.c.b16 %v10052, %v10050
    %v10153 = vpack.c.b16 %v10053, %v10051
    %v10154 = vpack.c.b16 %v10056, %v10054
    %v10155 = vpack.c.b16 %v10057, %v10055
    %v10156 = vpack.c.b16 %v10060, %v10058
    %v10157 = vpack.c.b16 %v10061, %v10059
    %v10158 = vpack.c.b16 %v10064, %v10062
    %v10159 = vpack.c.b16 %v10065, %v10063
    %v10160 = vpack.c.b16 %v10068, %v10066
    %v10161 = vpack.c.b16 %v10069, %v10067
    %v10162 = vpack.c.b16 %v10072, %v10070
    %v10163 = vpack.c.b16 %v10073, %v10071
    %v10164 = vpack.c.b16 %v10076, %v10074
    %v10165 = vpack.c.b16 %v10077, %v10075
    %v10166 = vpack.c.b16 %v10080, %v10078
    %v10167 = vpack.c.b16 %v10081, %v10079
    %v10168 = vpack.c.b16 %v10084, %v10082
    %v10169 = vpack.c.b16 %v10085, %v10083
    %v10170 = vpack.c.b16 %v10088, %v10086
    %v10171 = vpack.c.b16 %v10089, %v10087
    %v10172 = vpack.c.b16 %v10092, %v10090
    %v10173 = vpack.c.b16 %v10093, %v10091
    %v10174 = vpack.c.b16 %v10096, %v10094
    %v10175 = vpack.c.b16 %v10097, %v10095
    %v10176 = vpack.c.b16 %v10100, %v10098
    %v10177 = vpack.c.b16 %v10101, %v10099
    %v10178 = vpack.c.b16 %v10104, %v10102
    %v10179 = vpack.c.b16 %v10105, %v10103
    %v10180 = vpack.c.b16 %v10108, %v10106
    %v10181 = vpack.c.b16 %v10109, %v10107
    %v10182 = vpack.c.b16 %v10112, %v10110
    %v10183 = vpack.c.b16 %v10113, %v10111
    %v10184 = vpack.c.b16 %v10116, %v10114
    %v10185 = vpack.c.b16 %v10117, %v10115
    %v10186 = vpack.c.b16 %v10120, %v10118
    %v10187 = vpack.c.b16 %v10121, %v10119
    %v10188 = vpack.c.b16 %v10124, %v10122
    %v10189 = vpack.c.b16 %v10125, %v10123
    %v10190 = vpack.c.b16 %v10128, %v10126
    %v10191 = vpack.c.b16 %v10129, %v10127
    %v10192 = vpack.c.b16 %v10132, %v10130
    %v10193 = vpack.c.b16 %v10133, %v10131
    %v10194 = vpack.c.b16 %v10136, %v10134
    %v10195 = vpack.c.b16 %v10137, %v10135
    %v10196 = vpack.c.b16 %v10140, %v10138
    %v10197 = vpack.c.b16 %v10141, %v10139
    %v10198 = vpack.c.b16 %v10144, %v10142
    %v10199 = vpack.c.b16 %v10145, %v10143
    %v10255 = vsel %vm1501, %v9925, 0
    %v10258 = vsel %vm1501, %v9929, 0
    %10260 = vmatprep.subr.bf16.mxu0 %v10147
    %10261 = vmatpush1.bf16.msra.mxu0 %v10146
    %10262 = vmatprep.subr.bf16.mxu0 %v10149
    %10263 = vmatpush1.bf16.msra.mxu0 %v10148
    %10264 = vmatprep.subr.bf16.mxu0 %v10151
    %10265 = vmatpush1.bf16.msra.mxu0 %v10150
    %10266 = vmatprep.subr.bf16.mxu0 %v10153
    %10267 = vmatpush1.bf16.msra.mxu0 %v10152
    %10268 = vmatprep.subr.bf16.mxu0 %v10155
    %10269 = vmatpush1.bf16.msra.mxu0 %v10154
    %10270 = vmatprep.subr.bf16.mxu0 %v10157
    %10271 = vmatpush1.bf16.msra.mxu0 %v10156
    %10272 = vmatprep.subr.bf16.mxu0 %v10159
    %10273 = vmatpush1.bf16.msra.mxu0 %v10158
    %10274 = vmatprep.subr.bf16.mxu0 %v10161
    %10275 = vmatpush1.bf16.msra.mxu0 %v10160
    %10276 = vmatprep.subr.bf16.mxu0 %v10163
    %10277 = vmatpush1.bf16.msra.mxu0 %v10162
    %10278 = vmatprep.subr.bf16.mxu0 %v10165
    %10279 = vmatpush1.bf16.msra.mxu0 %v10164
    %10280 = vmatprep.subr.bf16.mxu0 %v10167
    %10281 = vmatpush1.bf16.msra.mxu0 %v10166
    %10282 = vmatprep.subr.bf16.mxu0 %v10169
    %10283 = vmatpush1.bf16.msra.mxu0 %v10168
    %10284 = vmatprep.subr.bf16.mxu0 %v10171
    %10285 = vmatpush1.bf16.msra.mxu0 %v10170
    %10286 = vmatprep.subr.bf16.mxu0 %v10173
    %10287 = vmatpush1.bf16.msra.mxu0 %v10172
    %10288 = vmatprep.subr.bf16.mxu0 %v10175
    %10289 = vmatpush1.bf16.msra.mxu0 %v10174
    %10290 = vmatprep.subr.bf16.mxu0 %v10177
    %10291 = vmatpush1.bf16.msra.mxu0 %v10176
    %10292 = vmatprep.mubr.bf16.mxu0 %v9923
    %10293 = vmatmul.mubr.bf16.gmra.mrb[0].mxu0 %v9922
    %v10294 = vpop.f32.mrb[0].mxu0
    %v10295 = vadd.f32 0.0, %v10294
    %v10296 = vpop.f32.mrb[0].mxu0
    %v10297 = vadd.f32 0.0, %v10296
    %v10298 = vpop.f32.mrb[0].mxu0
    %v10299 = vadd.f32 0.0, %v10298
    %v10300 = vpop.f32.mrb[0].mxu0
    %v10301 = vadd.f32 0.0, %v10300
    %10302 = vmatprep.mubr.bf16.mxu0 %v9927
    %10303 = vmatmul.mubr.bf16.gmra.mrb[0].mxu0 %v9926
    %v10304 = vpop.f32.mrb[0].mxu0
    %v10305 = vadd.f32 0.0, %v10304
    %v10306 = vpop.f32.mrb[0].mxu0
    %v10307 = vadd.f32 0.0, %v10306
    %v10308 = vpop.f32.mrb[0].mxu0
    %v10309 = vpop.f32.mrb[0].mxu0
    %10310 = vdwg.mxu0
    %10311 = vmatprep.subr.bf16.mxu0 %v10179
    %10312 = vmatpush1.bf16.msra.mxu0 %v10178
    %10313 = vmatprep.subr.bf16.mxu0 %v10181
    %10314 = vmatpush1.bf16.msra.mxu0 %v10180
    %10315 = vmatprep.subr.bf16.mxu0 %v10183
    %10316 = vmatpush1.bf16.msra.mxu0 %v10182
    %10317 = vmatprep.subr.bf16.mxu0 %v10185
    %10318 = vmatpush1.bf16.msra.mxu0 %v10184
    %10319 = vmatprep.subr.bf16.mxu0 %v10187
    %10320 = vmatpush1.bf16.msra.mxu0 %v10186
    %10321 = vmatprep.subr.bf16.mxu0 %v10189
    %10322 = vmatpush1.bf16.msra.mxu0 %v10188
    %10323 = vmatprep.subr.bf16.mxu0 %v10191
    %10324 = vmatpush1.bf16.msra.mxu0 %v10190
    %10325 = vmatprep.subr.bf16.mxu0 %v10193
    %10326 = vmatpush1.bf16.msra.mxu0 %v10192
    %10327 = vmatprep.subr.bf16.mxu0 %v10195
    %10328 = vmatpush1.bf16.msra.mxu0 %v10194
    %10329 = vmatprep.subr.bf16.mxu0 %v10197
    %10330 = vmatpush1.bf16.msra.mxu0 %v10196
    %10331 = vmatprep.subr.bf16.mxu0 %v10199
    %10332 = vmatpush1.bf16.msra.mxu0 %v10198
    %10333 = vmatprep.subr.bf16.mxu0 0
    %10334 = vmatpush1.bf16.msra.mxu0 0
    %10335 = vmatprep.subr.bf16.mxu0 0
    %10336 = vmatpush1.bf16.msra.mxu0 0
    %10337 = vmatprep.subr.bf16.mxu0 0
    %10338 = vmatpush1.bf16.msra.mxu0 0
    %10339 = vmatprep.subr.bf16.mxu0 0
    %10340 = vmatpush1.bf16.msra.mxu0 0
    %10341 = vmatprep.subr.bf16.mxu0 0
    %10342 = vmatpush1.bf16.msra.mxu0 0
    %10343 = vmatprep.mubr.bf16.mxu0 %v10255
    %10344 = vmatmul.mubr.bf16.gmra.mrb[0].mxu0 %v9924
    %v10345 = vpop.f32.mrb[0].mxu0
    %v10346 = vadd.f32 %v10295, %v10345
    %v10347 = vpop.f32.mrb[0].mxu0
    %v10348 = vadd.f32 %v10297, %v10347
    %v10349 = vpop.f32.mrb[0].mxu0
    %v10350 = vadd.f32 %v10299, %v10349
    %v10351 = vpop.f32.mrb[0].mxu0
    %v10352 = vadd.f32 %v10301, %v10351
    %10353 = vmatprep.mubr.bf16.mxu0 %v10258
    %10354 = vmatmul.mubr.bf16.gmra.mrb[0].mxu0 %v9928
    %v10355 = vpop.f32.mrb[0].mxu0
    %v10356 = vadd.f32 %v10305, %v10355
    %v10357 = vpop.f32.mrb[0].mxu0
    %v10358 = vadd.f32 %v10307, %v10357
    %v10359 = vpop.f32.mrb[0].mxu0
    %v10360 = vpop.f32.mrb[0].mxu0
    %10361 = vdwg.mxu0
    %v10362 = vadd.f32 %v10346, %v10350
    %v10363 = vadd.f32 %v10362, %v10356
    %v10364 = vrot.slane %v10363, 4
    %v10365 = vadd.f32 %v10363, %v10364
    %v10366 = vrot.slane %v10365, 2
    %v10367 = vadd.f32 %v10365, %v10366
    %v10368 = vrot.slane %v10367, 1
    %v10369 = vadd.f32 %v10367, %v10368
    %v10370 = vsel %vm443, %v10348, 0.0
    %v10371 = vsel %vm443, %v10352, 0.0
    %v10372 = vadd.f32 %v10370, %v10371
    %v10373 = vsel %vm443, %v10358, 0.0
    %v10374 = vadd.f32 %v10372, %v10373
    %v10375 = vrot.slane %v10374, 4
    %v10376 = vadd.f32 %v10374, %v10375
    %v10377 = vrot.slane %v10376, 2
    %v10378 = vadd.f32 %v10376, %v10377
    %v10379 = vrot.slane %v10378, 1
    %v10380 = vadd.f32 %v10378, %v10379
    %v10381 = vmul.f32 %v10369, %v9563
    %v10382 = vmul.f32 %v10380, %v9563
    %v10383 = vmul.f32 %v10346, %v10346
    %v10384 = vmul.f32 %v10348, %v10348
    %v10385 = vmul.f32 %v10350, %v10350
    %v10386 = vmul.f32 %v10352, %v10352
    %v10387 = vmul.f32 %v10356, %v10356
    %v10388 = vmul.f32 %v10358, %v10358
    %v10389 = vadd.f32 %v10383, %v10385
    %v10390 = vadd.f32 %v10389, %v10387
    %v10391 = vrot.slane %v10390, 4
    %v10392 = vadd.f32 %v10390, %v10391
    %v10393 = vrot.slane %v10392, 2
    %v10394 = vadd.f32 %v10392, %v10393
    %v10395 = vrot.slane %v10394, 1
    %v10396 = vadd.f32 %v10394, %v10395
    %v10397 = vsel %vm443, %v10384, 0.0
    %v10398 = vsel %vm443, %v10386, 0.0
    %v10399 = vadd.f32 %v10397, %v10398
    %v10400 = vsel %vm443, %v10388, 0.0
    %v10401 = vadd.f32 %v10399, %v10400
    %v10402 = vrot.slane %v10401, 4
    %v10403 = vadd.f32 %v10401, %v10402
    %v10404 = vrot.slane %v10403, 2
    %v10405 = vadd.f32 %v10403, %v10404
    %v10406 = vrot.slane %v10405, 1
    %v10407 = vadd.f32 %v10405, %v10406
    %v10408 = vmul.f32 %v10396, %v9563
    %v10409 = vmul.f32 %v10407, %v9563
    %v10410 = vsel %vm2330, %v10381, %v10408
    %v10411 = vsel %vm2330, %v10382, %v10409
    %v10413 = vsel %vm443, %v10411, 0
    %10415 = vmatprep.subr.mxu0 %v9599
    %10416 = vmatpush1.xpose.msra.mxu0 %v9540
    %10417 = vmatprep.subr.mxu0 %v9602
    %10418 = vmatpush1.xpose.msra.mxu0 %v9542
    %10419 = vmatprep.subr.mxu0 0.0
    %10420 = vmatpush1.xpose.msra.mxu0 0.0
    %10421 = vmatprep.subr.mxu0 0.0
    %10422 = vmatpush1.xpose.msra.mxu0 0.0
    %10423 = vmatprep.subr.mxu0 0.0
    %10424 = vmatpush1.xpose.msra.mxu0 0.0
    %10425 = vmatprep.subr.mxu0 0.0
    %10426 = vmatpush1.xpose.msra.mxu0 0.0
    %10427 = vmatprep.subr.mxu0 0.0
    %10428 = vmatpush1.xpose.msra.mxu0 0.0
    %10429 = vmatprep.subr.mxu0 0.0
    %10430 = vmatpush1.xpose.msra.mxu0 0.0
    %10431 = vmatprep.subr.mxu0 0.0
    %10432 = vmatpush1.xpose.msra.mxu0 0.0
    %10433 = vmatprep.subr.mxu0 0.0
    %10434 = vmatpush1.xpose.msra.mxu0 0.0
    %10435 = vmatprep.subr.mxu0 0.0
    %10436 = vmatpush1.xpose.msra.mxu0 0.0
    %10437 = vmatprep.subr.mxu0 0.0
    %10438 = vmatpush1.xpose.msra.mxu0 0.0
    %10439 = vmatprep.subr.mxu0 0.0
    %10440 = vmatpush1.xpose.msra.mxu0 0.0
    %10441 = vmatprep.subr.mxu0 0.0
    %10442 = vmatpush1.xpose.msra.mxu0 0.0
    %10443 = vmatprep.subr.mxu0 0.0
    %10444 = vmatpush1.xpose.msra.mxu0 0.0
    %10445 = vmatprep.subr.mxu0 0.0
    %10446 = vmatpush1.xpose.msra.mxu0 0.0
    %10447 = vmatprep.subr.mxu0 0.0
    %10448 = vmatpush1.xpose.msra.mxu0 0.0
    %10449 = vmatprep.subr.mxu0 0.0
    %10450 = vmatpush1.xpose.msra.mxu0 0.0
    %10451 = vmatprep.subr.mxu0 0.0
    %10452 = vmatpush1.xpose.msra.mxu0 0.0
    %10453 = vmatprep.subr.mxu0 0.0
    %10454 = vmatpush1.xpose.msra.mxu0 0.0
    %10455 = vmatprep.subr.mxu0 0.0
    %10456 = vmatpush1.xpose.msra.mxu0 0.0
    %10457 = vmatprep.subr.mxu0 0.0
    %10458 = vmatpush1.xpose.msra.mxu0 0.0
    %10459 = vmatprep.subr.mxu0 0.0
    %10460 = vmatpush1.xpose.msra.mxu0 0.0
    %10461 = vmatprep.subr.mxu0 0.0
    %10462 = vmatpush1.xpose.msra.mxu0 0.0
    %10463 = vmatprep.subr.mxu0 0.0
    %10464 = vmatpush1.xpose.msra.mxu0 0.0
    %10465 = vmatprep.subr.mxu0 0.0
    %10466 = vmatpush1.xpose.msra.mxu0 0.0
    %10467 = vmatprep.subr.mxu0 0.0
    %10468 = vmatpush1.xpose.msra.mxu0 0.0
    %10469 = vmatprep.subr.mxu0 0.0
    %10470 = vmatpush1.xpose.msra.mxu0 0.0
    %10471 = vmatprep.subr.mxu0 0.0
    %10472 = vmatpush1.xpose.msra.mxu0 0.0
    %10473 = vmatprep.subr.mxu0 0.0
    %10474 = vmatpush1.xpose.msra.mxu0 0.0
    %10475 = vmatprep.subr.mxu0 0.0
    %10476 = vmatpush1.xpose.msra.mxu0 0.0
    %10477 = vmatprep.subr.mxu0 0.0
    %10478 = vmatpush1.xpose.msra.mxu0 0.0
    %10479 = vmatprep.mubr.f32.mxu0 %v10413
    %10480 = vmatmul.mubr.f32.gmra.mrb[0].mxu0 %v10410
    %v10481 = vpop.f32.mrb[0].mxu0
    %v10482 = vadd.f32 0.0, %v10481
    %v10483 = vpop.f32.mrb[0].mxu0
    %10484 = vdwg.mxu0
    %v10485 = vmul.f32 %v10482, 0.083333336
    %v10486 = vmul.f32 %v10485, %v10485
    %v10488 = vrot.slane %v10486, 7
    %v10490 = vsub.f32 %v10485, %v10488
    %v10491 = vmax.f32 %v10490, 0.0
    %v10492 = vld [vmem:[%s18] sm:$0x1]
    %v10493 = vadd.f32 %v10491, 1e-05
    %v10494 = vrsqrt.pop %v10493
    %v10497 = vunpack.c.l.s4 1966171168
    %v10498 = vunpack.c.0.s8 %v10497
    %v10499 = vlaneseq
    %v10500 = vshrl.u32 %v10499, 7
    %v10501 = vsub.s32 %v10498, %v10500
    %v10502 = vrot.slane %v10494, %v10501
    %v10503 = vcombine.high %v10502, %v10502
    %v10505 = vunpack.c.l.s4 1966171168
    %v10506 = vunpack.c.0.s8 %v10505
    %v10507 = vlaneseq
    %v10508 = vshrl.u32 %v10507, 7
    %v10509 = vsub.s32 %v10506, %v10508
    %v10510 = vrot.slane %v10503, %v10509
    %v10512 = vmul.f32 %v10492, %v10510
    %s10513 = scalar_lea.vmem %s18, 1
    %v10514 = vld [vmem:[%s10513] sm:$0x1]
    %v10515 = vmul.f32 %v10485, %v10512
    %v10516 = vsub.f32 %v10514, %v10515
    %v10518 = vlaneseq
    %v10519 = vshrl.u32 %v10518, 7
    %v10520 = vsub.s32 0, %v10519
    %v10521 = vrot.slane %v10516, %v10520
    %v10523 = vsel %vm2330, %v10512, %v10521
    %v10525 = vsel %vm2594, %v10523, 0
    %10527 = vmatprep.subr.mxu0 %v9541
    %10528 = vmatpush1.msra.mxu0 %v9540
    %10529 = vmatprep.subr.mxu0 %v9719
    %10530 = vmatpush1.msra.mxu0 %v9717
    %10531 = vmatprep.subr.mxu0 0.0
    %10532 = vmatpush1.msra.mxu0 0.0
    %10533 = vmatprep.subr.mxu0 0.0
    %10534 = vmatpush1.msra.mxu0 0.0
    %10535 = vmatprep.subr.mxu0 0.0
    %10536 = vmatpush1.msra.mxu0 0.0
    %10537 = vmatprep.subr.mxu0 0.0
    %10538 = vmatpush1.msra.mxu0 0.0
    %10539 = vmatprep.subr.mxu0 0.0
    %10540 = vmatpush1.msra.mxu0 0.0
    %10541 = vmatprep.subr.mxu0 0.0
    %10542 = vmatpush1.msra.mxu0 0.0
    %10543 = vmatprep.subr.mxu0 0.0
    %10544 = vmatpush1.msra.mxu0 0.0
    %10545 = vmatprep.subr.mxu0 0.0
    %10546 = vmatpush1.msra.mxu0 0.0
    %10547 = vmatprep.subr.mxu0 0.0
    %10548 = vmatpush1.msra.mxu0 0.0
    %10549 = vmatprep.subr.mxu0 0.0
    %10550 = vmatpush1.msra.mxu0 0.0
    %10551 = vmatprep.subr.mxu0 0.0
    %10552 = vmatpush1.msra.mxu0 0.0
    %10553 = vmatprep.subr.mxu0 0.0
    %10554 = vmatpush1.msra.mxu0 0.0
    %10555 = vmatprep.subr.mxu0 0.0
    %10556 = vmatpush1.msra.mxu0 0.0
    %10557 = vmatprep.subr.mxu0 0.0
    %10558 = vmatpush1.msra.mxu0 0.0
    %10559 = vmatprep.subr.mxu0 0.0
    %10560 = vmatpush1.msra.mxu0 0.0
    %10561 = vmatprep.subr.mxu0 0.0
    %10562 = vmatpush1.msra.mxu0 0.0
    %10563 = vmatprep.subr.mxu0 0.0
    %10564 = vmatpush1.msra.mxu0 0.0
    %10565 = vmatprep.subr.mxu0 0.0
    %10566 = vmatpush1.msra.mxu0 0.0
    %10567 = vmatprep.subr.mxu0 0.0
    %10568 = vmatpush1.msra.mxu0 0.0
    %10569 = vmatprep.subr.mxu0 0.0
    %10570 = vmatpush1.msra.mxu0 0.0
    %10571 = vmatprep.subr.mxu0 0.0
    %10572 = vmatpush1.msra.mxu0 0.0
    %10573 = vmatprep.subr.mxu0 0.0
    %10574 = vmatpush1.msra.mxu0 0.0
    %10575 = vmatprep.subr.mxu0 0.0
    %10576 = vmatpush1.msra.mxu0 0.0
    %10577 = vmatprep.subr.mxu0 0.0
    %10578 = vmatpush1.msra.mxu0 0.0
    %10579 = vmatprep.subr.mxu0 0.0
    %10580 = vmatpush1.msra.mxu0 0.0
    %10581 = vmatprep.subr.mxu0 0.0
    %10582 = vmatpush1.msra.mxu0 0.0
    %10583 = vmatprep.subr.mxu0 0.0
    %10584 = vmatpush1.msra.mxu0 0.0
    %10585 = vmatprep.subr.mxu0 0.0
    %10586 = vmatpush1.msra.mxu0 0.0
    %10587 = vmatprep.subr.mxu0 0.0
    %10588 = vmatpush1.msra.mxu0 0.0
    %10589 = vmatprep.subr.mxu0 0.0
    %10590 = vmatpush1.msra.mxu0 0.0
    %10591 = vmatprep.mubr.f32.mxu0 0.0
    %10592 = vmatmul.mubr.f32.gmra.mrb[0].mxu0 %v10525
    %v10593 = vpop.f32.mrb[0].mxu0
    %v10594 = vadd.f32 0.0, %v10593
    %v10595 = vpop.f32.mrb[0].mxu0
    %v10596 = vadd.f32 0.0, %v10595
    %10597 = vdwg.mxu0
    %v10598 = vlaneseq
    %v10599 = vshrl.u32 %v10598, 7
    %v10600 = vsub.s32 0, %v10599
    %v10601 = vrot.slane %v10594, %v10600
    %v10602 = vlaneseq
    %v10603 = vshrl.u32 %v10602, 7
    %v10604 = vsub.s32 0, %v10603
    %v10605 = vrot.slane %v10596, %v10604
    %v10606 = vmul.f32 %v10346, %v10601
    %v10607 = vmul.f32 %v10348, %v10605
    %v10608 = vmul.f32 %v10350, %v10601
    %v10609 = vmul.f32 %v10352, %v10605
    %v10610 = vmul.f32 %v10356, %v10601
    %v10611 = vmul.f32 %v10358, %v10605
    %v10612 = vlaneseq
    %v10613 = vshrl.u32 %v10612, 7
    %v10614 = vsub.s32 1, %v10613
    %v10615 = vrot.slane %v10594, %v10614
    %v10616 = vlaneseq
    %v10617 = vshrl.u32 %v10616, 7
    %v10618 = vsub.s32 1, %v10617
    %v10619 = vrot.slane %v10596, %v10618
    %v10620 = vadd.f32 %v10606, %v10615
    %v10621 = vadd.f32 %v10607, %v10619
    %v10622 = vadd.f32 %v10608, %v10615
    %v10623 = vadd.f32 %v10609, %v10619
    %v10624 = vadd.f32 %v10610, %v10615
    %v10625 = vadd.f32 %v10611, %v10619
    %v10626 = vmax.f32 %v10620, 0.0
    %v10627 = vmax.f32 %v10621, 0.0
    %v10628 = vmax.f32 %v10622, 0.0
    %v10629 = vmax.f32 %v10623, 0.0
    %v10630 = vmax.f32 %v10624, 0.0
    %v10631 = vmax.f32 %v10625, 0.0
    %v10632 = vld [vmem:[%s19] sm:$0xff]
    %v10633 = vld [vmem:[%s19 + $0x8] sm:$0xff]
    %v10634 = vld [vmem:[%s19 + $0x10] sm:$0xff]
    %v10635 = vld [vmem:[%s19 + $0x18] sm:$0xff]
    %v10636 = vld [vmem:[%s19 + $0x20] sm:$0xff]
    %v10637 = vld [vmem:[%s19 + $0x28] sm:$0xff]
    %v10638 = vld [vmem:[%s19 + $0x30] sm:$0xff]
    %v10639 = vld [vmem:[%s19 + $0x38] sm:$0xff]
    %v10640 = vld [vmem:[%s19 + $0x40] sm:$0xff]
    %v10641 = vld [vmem:[%s19 + $0x48] sm:$0xff]
    %v10642 = vld [vmem:[%s19 + $0x50] sm:$0xff]
    %v10643 = vld [vmem:[%s19 + $0x58] sm:$0xff]
    %v10644 = vld [vmem:[%s19 + $0x60] sm:$0xff]
    %v10645 = vld [vmem:[%s19 + $0x68] sm:$0xff]
    %v10646 = vld [vmem:[%s19 + $0x70] sm:$0xff]
    %v10647 = vld [vmem:[%s19 + $0x78] sm:$0xff]
    %v10648 = vld [vmem:[%s19 + $0x80] sm:$0xff]
    %v10649 = vld [vmem:[%s19 + $0x88] sm:$0xff]
    %v10651 = vsel %vm443, %v10627, 0
    %v10654 = vsel %vm443, %v10629, 0
    %v10657 = vsel %vm443, %v10631, 0
    %10659 = vmatprep.subr.mxu0 0.0
    %10660 = vmatpush1.msra.mxu0 %v10632
    %10661 = vmatprep.subr.mxu0 0.0
    %10662 = vmatpush1.msra.mxu0 %v10633
    %10663 = vmatprep.subr.mxu0 0.0
    %10664 = vmatpush1.msra.mxu0 %v10634
    %10665 = vmatprep.subr.mxu0 0.0
    %10666 = vmatpush1.msra.mxu0 %v10635
    %10667 = vmatprep.subr.mxu0 0.0
    %10668 = vmatpush1.msra.mxu0 %v10636
    %10669 = vmatprep.subr.mxu0 0.0
    %10670 = vmatpush1.msra.mxu0 %v10637
    %10671 = vmatprep.subr.mxu0 0.0
    %10672 = vmatpush1.msra.mxu0 %v10638
    %10673 = vmatprep.subr.mxu0 0.0
    %10674 = vmatpush1.msra.mxu0 %v10639
    %10675 = vmatprep.subr.mxu0 0.0
    %10676 = vmatpush1.msra.mxu0 %v10640
    %10677 = vmatprep.subr.mxu0 0.0
    %10678 = vmatpush1.msra.mxu0 %v10641
    %10679 = vmatprep.subr.mxu0 0.0
    %10680 = vmatpush1.msra.mxu0 %v10642
    %10681 = vmatprep.subr.mxu0 0.0
    %10682 = vmatpush1.msra.mxu0 %v10643
    %10683 = vmatprep.subr.mxu0 0.0
    %10684 = vmatpush1.msra.mxu0 %v10644
    %10685 = vmatprep.subr.mxu0 0.0
    %10686 = vmatpush1.msra.mxu0 %v10645
    %10687 = vmatprep.subr.mxu0 0.0
    %10688 = vmatpush1.msra.mxu0 %v10646
    %10689 = vmatprep.subr.mxu0 0.0
    %10690 = vmatpush1.msra.mxu0 %v10647
    %10691 = vmatprep.subr.mxu0 0.0
    %10692 = vmatpush1.msra.mxu0 %v10648
    %10693 = vmatprep.subr.mxu0 0.0
    %10694 = vmatpush1.msra.mxu0 %v10649
    %10695 = vmatprep.subr.mxu0 0.0
    %10696 = vmatpush1.msra.mxu0 0.0
    %10697 = vmatprep.subr.mxu0 0.0
    %10698 = vmatpush1.msra.mxu0 0.0
    %10699 = vmatprep.subr.mxu0 0.0
    %10700 = vmatpush1.msra.mxu0 0.0
    %10701 = vmatprep.subr.mxu0 0.0
    %10702 = vmatpush1.msra.mxu0 0.0
    %10703 = vmatprep.subr.mxu0 0.0
    %10704 = vmatpush1.msra.mxu0 0.0
    %10705 = vmatprep.subr.mxu0 0.0
    %10706 = vmatpush1.msra.mxu0 0.0
    %10707 = vmatprep.subr.mxu0 0.0
    %10708 = vmatpush1.msra.mxu0 0.0
    %10709 = vmatprep.subr.mxu0 0.0
    %10710 = vmatpush1.msra.mxu0 0.0
    %10711 = vmatprep.subr.mxu0 0.0
    %10712 = vmatpush1.msra.mxu0 0.0
    %10713 = vmatprep.subr.mxu0 0.0
    %10714 = vmatpush1.msra.mxu0 0.0
    %10715 = vmatprep.subr.mxu0 0.0
    %10716 = vmatpush1.msra.mxu0 0.0
    %10717 = vmatprep.subr.mxu0 0.0
    %10718 = vmatpush1.msra.mxu0 0.0
    %10719 = vmatprep.subr.mxu0 0.0
    %10720 = vmatpush1.msra.mxu0 0.0
    %10721 = vmatprep.subr.mxu0 0.0
    %10722 = vmatpush1.msra.mxu0 0.0
    %10723 = vmatprep.mubr.f32.mxu0 %v10651
    %10724 = vmatmul.mubr.f32.gmra.mrb[0].mxu0 %v10626
    %v10725 = vpop.f32.mrb[0].mxu0
    %v10726 = vadd.f32 0.0, %v10725
    %v10727 = vpop.f32.mrb[0].mxu0
    %10728 = vmatprep.mubr.f32.mxu0 %v10654
    %10729 = vmatmul.mubr.f32.gmra.mrb[0].mxu0 %v10628
    %v10730 = vpop.f32.mrb[0].mxu0
    %v10731 = vadd.f32 0.0, %v10730
    %v10732 = vpop.f32.mrb[0].mxu0
    %10733 = vmatprep.mubr.f32.mxu0 %v10657
    %10734 = vmatmul.mubr.f32.gmra.mrb[0].mxu0 %v10630
    %v10735 = vpop.f32.mrb[0].mxu0
    %v10736 = vadd.f32 0.0, %v10735
    %v10737 = vpop.f32.mrb[0].mxu0
    %10738 = vdwg.mxu0
    %v10739 = vld [vmem:[%s21] sm:$0x3]
    %v10740 = vld [vmem:[%s20] sm:$0xff]
    %v10741 = vld [vmem:[%s20 + $0x8] sm:$0xff]
    %v10742 = vld [vmem:[%s20 + $0x10] sm:$0xff]
    %v10743 = vmul.f32 %v10726, %v10740
    %v10744 = vmul.f32 %v10731, %v10741
    %v10745 = vmul.f32 %v10736, %v10742
    %vm10746 = vcmask 195584
    %v10748 = vsel %vm10746, %v10739, 0
    %10750 = vmatprep.subr.mxu0 0.0
    %10751 = vmatpush1.msra.mxu0 %v10743
    %10752 = vmatprep.subr.mxu0 0.0
    %10753 = vmatpush1.msra.mxu0 %v10744
    %10754 = vmatprep.subr.mxu0 0.0
    %10755 = vmatpush1.msra.mxu0 %v10745
    %10756 = vmatprep.subr.mxu0 0.0
    %10757 = vmatpush1.msra.mxu0 0.0
    %10758 = vmatprep.subr.mxu0 0.0
    %10759 = vmatpush1.msra.mxu0 0.0
    %10760 = vmatprep.subr.mxu0 0.0
    %10761 = vmatpush1.msra.mxu0 0.0
    %10762 = vmatprep.subr.mxu0 0.0
    %10763 = vmatpush1.msra.mxu0 0.0
    %10764 = vmatprep.subr.mxu0 0.0
    %10765 = vmatpush1.msra.mxu0 0.0
    %10766 = vmatprep.subr.mxu0 0.0
    %10767 = vmatpush1.msra.mxu0 0.0
    %10768 = vmatprep.subr.mxu0 0.0
    %10769 = vmatpush1.msra.mxu0 0.0
    %10770 = vmatprep.subr.mxu0 0.0
    %10771 = vmatpush1.msra.mxu0 0.0
    %10772 = vmatprep.subr.mxu0 0.0
    %10773 = vmatpush1.msra.mxu0 0.0
    %10774 = vmatprep.subr.mxu0 0.0
    %10775 = vmatpush1.msra.mxu0 0.0
    %10776 = vmatprep.subr.mxu0 0.0
    %10777 = vmatpush1.msra.mxu0 0.0
    %10778 = vmatprep.subr.mxu0 0.0
    %10779 = vmatpush1.msra.mxu0 0.0
    %10780 = vmatprep.subr.mxu0 0.0
    %10781 = vmatpush1.msra.mxu0 0.0
    %10782 = vmatprep.subr.mxu0 0.0
    %10783 = vmatpush1.msra.mxu0 0.0
    %10784 = vmatprep.subr.mxu0 0.0
    %10785 = vmatpush1.msra.mxu0 0.0
    %10786 = vmatprep.subr.mxu0 0.0
    %10787 = vmatpush1.msra.mxu0 0.0
    %10788 = vmatprep.subr.mxu0 0.0
    %10789 = vmatpush1.msra.mxu0 0.0
    %10790 = vmatprep.subr.mxu0 0.0
    %10791 = vmatpush1.msra.mxu0 0.0
    %10792 = vmatprep.subr.mxu0 0.0
    %10793 = vmatpush1.msra.mxu0 0.0
    %10794 = vmatprep.subr.mxu0 0.0
    %10795 = vmatpush1.msra.mxu0 0.0
    %10796 = vmatprep.subr.mxu0 0.0
    %10797 = vmatpush1.msra.mxu0 0.0
    %10798 = vmatprep.subr.mxu0 0.0
    %10799 = vmatpush1.msra.mxu0 0.0
    %10800 = vmatprep.subr.mxu0 0.0
    %10801 = vmatpush1.msra.mxu0 0.0
    %10802 = vmatprep.subr.mxu0 0.0
    %10803 = vmatpush1.msra.mxu0 0.0
    %10804 = vmatprep.subr.mxu0 0.0
    %10805 = vmatpush1.msra.mxu0 0.0
    %10806 = vmatprep.subr.mxu0 0.0
    %10807 = vmatpush1.msra.mxu0 0.0
    %10808 = vmatprep.subr.mxu0 0.0
    %10809 = vmatpush1.msra.mxu0 0.0
    %10810 = vmatprep.subr.mxu0 0.0
    %10811 = vmatpush1.msra.mxu0 0.0
    %10812 = vmatprep.subr.mxu0 0.0
    %10813 = vmatpush1.msra.mxu0 0.0
    %10814 = vmatprep.mubr.f32.mxu0 0.0
    %10815 = vmatmul.mubr.f32.gmra.mrb[0].mxu0 %v10748
    %v10816 = vpop.f32.mrb[0].mxu0
    %v10817 = vadd.f32 0.0, %v10816
    %v10818 = vpop.f32.mrb[0].mxu0
    %10819 = vdwg.mxu0
    %v10820 = vld [vmem:[%s22] sm:$0xff]
    %v10821 = vld [vmem:[%s22 + $0x8] sm:$0xff]
    %v10822 = vld [vmem:[%s22 + $0x10] sm:$0xff]
    %v10823 = vld [vmem:[%s22 + $0x18] sm:$0xff]
    %v10824 = vld [vmem:[%s22 + $0x20] sm:$0xff]
    %v10825 = vld [vmem:[%s22 + $0x28] sm:$0xff]
    %v10826 = vld [vmem:[%s23] sm:$0x1]
    %v10828 = vlaneseq
    %v10829 = vshrl.u32 %v10828, 7
    %v10830 = vsub.s32 0, %v10829
    %v10831 = vrot.slane %v10826, %v10830
    %v10834 = vsel %vm1501, %v10817, 0
    %10836 = vmatprep.subr.mxu0 0.0
    %10837 = vmatpush1.msra.mxu0 %v10820
    %10838 = vmatprep.subr.mxu0 0.0
    %10839 = vmatpush1.msra.mxu0 %v10821
    %10840 = vmatprep.subr.mxu0 0.0
    %10841 = vmatpush1.msra.mxu0 %v10822
    %10842 = vmatprep.subr.mxu0 0.0
    %10843 = vmatpush1.msra.mxu0 %v10823
    %10844 = vmatprep.subr.mxu0 0.0
    %10845 = vmatpush1.msra.mxu0 %v10824
    %10846 = vmatprep.subr.mxu0 0.0
    %10847 = vmatpush1.msra.mxu0 %v10825
    %10848 = vmatprep.subr.mxu0 0.0
    %10849 = vmatpush1.msra.mxu0 0.0
    %10850 = vmatprep.subr.mxu0 0.0
    %10851 = vmatpush1.msra.mxu0 0.0
    %10852 = vmatprep.subr.mxu0 0.0
    %10853 = vmatpush1.msra.mxu0 0.0
    %10854 = vmatprep.subr.mxu0 0.0
    %10855 = vmatpush1.msra.mxu0 0.0
    %10856 = vmatprep.subr.mxu0 0.0
    %10857 = vmatpush1.msra.mxu0 0.0
    %10858 = vmatprep.subr.mxu0 0.0
    %10859 = vmatpush1.msra.mxu0 0.0
    %10860 = vmatprep.subr.mxu0 0.0
    %10861 = vmatpush1.msra.mxu0 0.0
    %10862 = vmatprep.subr.mxu0 0.0
    %10863 = vmatpush1.msra.mxu0 0.0
    %10864 = vmatprep.subr.mxu0 0.0
    %10865 = vmatpush1.msra.mxu0 0.0
    %10866 = vmatprep.subr.mxu0 0.0
    %10867 = vmatpush1.msra.mxu0 0.0
    %10868 = vmatprep.subr.mxu0 0.0
    %10869 = vmatpush1.msra.mxu0 0.0
    %10870 = vmatprep.subr.mxu0 0.0
    %10871 = vmatpush1.msra.mxu0 0.0
    %10872 = vmatprep.subr.mxu0 0.0
    %10873 = vmatpush1.msra.mxu0 0.0
    %10874 = vmatprep.subr.mxu0 0.0
    %10875 = vmatpush1.msra.mxu0 0.0
    %10876 = vmatprep.subr.mxu0 0.0
    %10877 = vmatpush1.msra.mxu0 0.0
    %10878 = vmatprep.subr.mxu0 0.0
    %10879 = vmatpush1.msra.mxu0 0.0
    %10880 = vmatprep.subr.mxu0 0.0
    %10881 = vmatpush1.msra.mxu0 0.0
    %10882 = vmatprep.subr.mxu0 0.0
    %10883 = vmatpush1.msra.mxu0 0.0
    %10884 = vmatprep.subr.mxu0 0.0
    %10885 = vmatpush1.msra.mxu0 0.0
    %10886 = vmatprep.subr.mxu0 0.0
    %10887 = vmatpush1.msra.mxu0 0.0
    %10888 = vmatprep.subr.mxu0 0.0
    %10889 = vmatpush1.msra.mxu0 0.0
    %10890 = vmatprep.subr.mxu0 0.0
    %10891 = vmatpush1.msra.mxu0 0.0
    %10892 = vmatprep.subr.mxu0 0.0
    %10893 = vmatpush1.msra.mxu0 0.0
    %10894 = vmatprep.subr.mxu0 0.0
    %10895 = vmatpush1.msra.mxu0 0.0
    %10896 = vmatprep.subr.mxu0 0.0
    %10897 = vmatpush1.msra.mxu0 0.0
    %10898 = vmatprep.subr.mxu0 0.0
    %10899 = vmatpush1.msra.mxu0 0.0
    %10900 = vmatprep.mubr.f32.mxu0 0.0
    %10901 = vmatmul.mubr.f32.gmra.mrb[0].mxu0 %v10834
    %v10902 = vpop.f32.mrb[0].mxu0
    %v10903 = vadd.f32 %v10831, %v10902
    %v10904 = vpop.f32.mrb[0].mxu0
    %10905 = vdwg.mxu0
    %vm10906 = vcmask 25600
    %10907 = vst.msk [vmem:[#allocation2] sm:$0x3] %vm10906, %v10903
    // Predicated region
    $region98: #{net_forward.1} parent=1 // pred_check
      _
    $region99: #{net_forward.1} parent=1 // pred_check_branch
      %10909 = sbr.rel (0) target = $region101
    $region100: #{net_forward.1} parent=1 // pred_region
      %s10911 = ssub.s32 32, 32
      %10912 = vsyncadd [#allocation3], %s10911
      %s10914 = sshll.u32 [#allocation2], 4
      %s10915 = int_to_ptr.vmem [resolvable:$true] %s10914
      %10917 = dma.vmem_to_hbm [thread:$0]  %s10915, 32, %s24, [#allocation3]
    $region101: #{net_forward.1} parent=1 // pred_fallthru
      _
    // Predicated region
    $region102: #{net_forward.1} parent=1 // pred_check
      _
    $region103: #{net_forward.1} parent=1 // pred_check_branch
      %10919 = sbr.rel (0) target = $region105
    $region104: #{net_forward.1} parent=1 // pred_region
      %10920 = dma.done [#allocation3], 32
    $region105: #{net_forward.1} parent=1 // pred_fallthru
      _
    %10921 = vsyncpa [#allocation3], 1

</llo_original>
